<compile_context>
chip_gen: v6e
topology: v6e:2x2x1
jax: 0.10.0
libtpu: 0.0.40
codegen_flags: <defaults>
</compile_context>

<pallas_src>
import functools

import jax
import jax.numpy as jnp
from jax.experimental import pallas as pl
from jax.experimental.pallas import tpu as pltpu

_VMEM_LIMIT = 32 * 1024 * 1024


# ----------------------------- Pallas kernels ------------------------------

def _matmul_kernel(a_ref, b_ref, o_ref):
    o_ref[...] = jnp.dot(a_ref[...], b_ref[...],
                         preferred_element_type=jnp.float32)


def _bn_stats_kernel(x_ref, sum_ref, sq_ref):
    @pl.when(pl.program_id(0) == 0)
    def _():
        sum_ref[...] = jnp.zeros_like(sum_ref)
        sq_ref[...] = jnp.zeros_like(sq_ref)
    x = x_ref[...]
    sum_ref[...] += jnp.sum(x, axis=0, keepdims=True)
    sq_ref[...] += jnp.sum(x * x, axis=0, keepdims=True)


def _bn_relu_kernel(x_ref, sum_ref, sq_ref, g_ref, b_ref, o_ref, *, inv_count):
    mean = sum_ref[...] * inv_count
    var = sq_ref[...] * inv_count - mean * mean          # biased variance
    scale = g_ref[...] * jax.lax.rsqrt(var + 1e-5)
    shift = b_ref[...] - mean * scale
    o_ref[...] = jnp.maximum(x_ref[...] * scale + shift, 0.0)


def _tanh_kernel(x_ref, o_ref):
    o_ref[...] = jnp.tanh(x_ref[...])


# ----------------------------- Pallas wrappers ------------------------------

def _matmul_tile(m):
    """Full block for small M; >=2 parallel grid steps for the big layers."""
    if m <= 256:
        return m, m
    tm = min(512, ((m // 2 + 7) // 8) * 8)
    mp = ((m + tm - 1) // tm) * tm
    return tm, mp


def pallas_matmul(a, b):
    """(M, K) @ (K, N) -> (M, N) fp32; bf16 operands, B resident in VMEM."""
    m, k = a.shape
    k2, n = b.shape
    assert k == k2
    a = a.astype(jnp.bfloat16)
    b = b.astype(jnp.bfloat16)
    tm, mp = _matmul_tile(m)
    a_p = a if mp == m else jnp.pad(a, ((0, mp - m), (0, 0)))
    out = pl.pallas_call(
        _matmul_kernel,
        out_shape=jax.ShapeDtypeStruct((mp, n), jnp.float32),
        grid=(mp // tm,),
        in_specs=[pl.BlockSpec((tm, k), lambda i: (i, 0)),
                  pl.BlockSpec(memory_space=pltpu.MemorySpace.VMEM)],
        out_specs=pl.BlockSpec((tm, n), lambda i: (i, 0)),
        compiler_params=pltpu.CompilerParams(
            dimension_semantics=("parallel",),
            vmem_limit_bytes=_VMEM_LIMIT),
    )(a_p, b)
    return out if mp == m else out[:m]


def _row_tile(r, cap=2048):
    if r <= cap:
        return r, r
    rp = ((r + cap - 1) // cap) * cap
    return cap, rp


def pallas_bn_relu(x2d, gamma, beta):
    """Training-mode BatchNorm (batch stats, eps=1e-5) + ReLU, row tiled."""
    r, c = x2d.shape
    tr, rp = _row_tile(r)
    x_p = x2d if rp == r else jnp.pad(x2d, ((0, rp - r), (0, 0)))
    grid_r = rp // tr
    # pass 1: per-channel sum / sum-of-squares (zero-padded rows contribute 0,
    # and we divide by the true row count, so stats stay exact)
    s, sq = pl.pallas_call(
        _bn_stats_kernel,
        out_shape=(jax.ShapeDtypeStruct((1, c), jnp.float32),
                   jax.ShapeDtypeStruct((1, c), jnp.float32)),
        grid=(grid_r,),
        in_specs=[pl.BlockSpec((tr, c), lambda i: (i, 0))],
        out_specs=(pl.BlockSpec((1, c), lambda i: (0, 0)),
                   pl.BlockSpec((1, c), lambda i: (0, 0))),
        compiler_params=pltpu.CompilerParams(
            dimension_semantics=("arbitrary",),
            vmem_limit_bytes=_VMEM_LIMIT),
    )(x_p)
    # pass 2: normalize + affine + ReLU
    out = pl.pallas_call(
        functools.partial(_bn_relu_kernel, inv_count=1.0 / r),
        out_shape=jax.ShapeDtypeStruct((rp, c), jnp.float32),
        grid=(grid_r,),
        in_specs=[pl.BlockSpec((tr, c), lambda i: (i, 0)),
                  pl.BlockSpec(memory_space=pltpu.MemorySpace.VMEM),
                  pl.BlockSpec(memory_space=pltpu.MemorySpace.VMEM),
                  pl.BlockSpec(memory_space=pltpu.MemorySpace.VMEM),
                  pl.BlockSpec(memory_space=pltpu.MemorySpace.VMEM)],
        out_specs=pl.BlockSpec((tr, c), lambda i: (i, 0)),
        compiler_params=pltpu.CompilerParams(
            dimension_semantics=("parallel",),
            vmem_limit_bytes=_VMEM_LIMIT),
    )(x_p, s, sq, gamma, beta)
    return out if rp == r else out[:r]


def pallas_tanh(x2d):
    r, c = x2d.shape
    tr, rp = _row_tile(r)
    x_p = x2d if rp == r else jnp.pad(x2d, ((0, rp - r), (0, 0)))
    out = pl.pallas_call(
        _tanh_kernel,
        out_shape=jax.ShapeDtypeStruct((rp, c), jnp.float32),
        grid=(rp // tr,),
        in_specs=[pl.BlockSpec((tr, c), lambda i: (i, 0))],
        out_specs=pl.BlockSpec((tr, c), lambda i: (i, 0)),
        compiler_params=pltpu.CompilerParams(
            dimension_semantics=("parallel",),
            vmem_limit_bytes=_VMEM_LIMIT),
    )(x_p)
    return out if rp == r else out[:r]


# ------------------------- ConvTranspose overlap-add -------------------------

def _overlap_add_s2p1(y):
    """Tap tensor (N, H, W, 4, 4, C) of a k=4 / s=2 / p=1 ConvT -> (N, 2H, 2W, C).

    From oh = 2h - 1 + i:
        out[2m]   = tap_i1[m] + tap_i3[m-1]
        out[2m+1] = tap_i2[m] + tap_i0[m+1]     (identically along width with j)
    Implemented with shifts + interleaving reshapes only (no scatter, no zeros
    fed to the MXU).
    """
    n, h, w, _, _, c = y.shape
    # height taps (axis 3)
    t0, t1, t2, t3 = (y[:, :, :, i] for i in range(4))        # (N, H, W, 4, C)
    zrow = jnp.zeros_like(t0[:, :1])
    even = t1 + jnp.concatenate([zrow, t3[:, :-1]], axis=1)
    odd = t2 + jnp.concatenate([t0[:, 1:], zrow], axis=1)
    z = jnp.stack([even, odd], axis=2).reshape(n, 2 * h, w, 4, c)
    # width taps (axis 3)
    u0, u1, u2, u3 = (z[:, :, :, j] for j in range(4))        # (N, 2H, W, C)
    zcol = jnp.zeros_like(u0[:, :, :1])
    even = u1 + jnp.concatenate([zcol, u3[:, :, :-1]], axis=2)
    odd = u2 + jnp.concatenate([u0[:, :, 1:], zcol], axis=2)
    return jnp.stack([even, odd], axis=3).reshape(n, 2 * h, 2 * w, c)


# ------------------------------ full forward -------------------------------

def generator_forward(z, prep):
    """z: (N, in_channels) latent (cnn_broadcast -> (N, Cin, 1, 1) NCHW)."""
    n = z.shape[0]
    x2d = z.reshape(n, -1).astype(jnp.float32)                # (N*1*1, Cin)
    h = w = 1
    for li, blk in enumerate(prep["blocks"]):
        cout = blk["cout"]
        y = pallas_matmul(x2d, blk["w_mat"])[:, :blk["cols"]]
        y = y.reshape(n, h, w, 4, 4, cout)
        if li == 0:                      # stride 1, pad 0 on a 1x1 input
            x = y.reshape(n, 4, 4, cout)
            h = w = 4
        else:                            # stride 2, pad 1
            x = _overlap_add_s2p1(y)
            h, w = 2 * h, 2 * w
        x2d = pallas_bn_relu(x.reshape(n * h * w, cout),
                             blk["gamma"], blk["beta"])
    fin = prep["final"]
    cout = fin["cout"]
    y = pallas_matmul(x2d, fin["w_mat"])[:, :fin["cols"]]
    x = _overlap_add_s2p1(y.reshape(n, h, w, 4, 4, cout))
    h, w = 2 * h, 2 * w
    x2d = pallas_tanh(x.reshape(n * h * w, cout))
    # single NHWC -> NCHW conversion at the very end
    return x2d.reshape(n, h, w, cout).transpose(0, 3, 1, 2)


# ----------------------------- parameter init ------------------------------

def init_params(key, in_channels=4, hidden_dim=8, out_channels=None):
    """weight_init semantics: conv weights ~ N(0, 0.02); BN gamma ~ N(1, 0.02),
    BN beta = 0.  ConvTranspose2d weight layout is (Cin, Cout, 4, 4)."""
    out_channels = in_channels if out_channels is None else out_channels
    chans = [in_channels, hidden_dim * 8, hidden_dim * 4,
             hidden_dim * 2, hidden_dim, out_channels]
    keys = jax.random.split(key, 9)
    ki = 0
    blocks = []
    for li in range(4):
        cin, cout = chans[li], chans[li + 1]
        w = 0.02 * jax.random.normal(keys[ki], (cin, cout, 4, 4), jnp.float32)
        ki += 1
        g = 1.0 + 0.02 * jax.random.normal(keys[ki], (cout,), jnp.float32)
        ki += 1
        b = jnp.zeros((cout,), jnp.float32)
        blocks.append((w, g, b))
    final_w = 0.02 * jax.random.normal(keys[ki],
                                       (chans[4], chans[5], 4, 4), jnp.float32)
    return {"blocks": blocks, "final_w": final_w}


def _prep_convt_weight(w):
    """(Cin, Cout, 4, 4) PyTorch ConvT weight -> lane-padded (Cin, *) bf16."""
    cin, cout, kh, kw = w.shape
    cols = kh * kw * cout
    w_mat = w.transpose(0, 2, 3, 1).reshape(cin, cols)    # columns = (i, j, c)
    pad = (-cols) % 128                                   # lane-dense matmul out
    if pad:
        w_mat = jnp.pad(w_mat, ((0, 0), (0, pad)))
    return {"w_mat": w_mat.astype(jnp.bfloat16), "cols": cols, "cout": cout}


def prepare_params(params):
    """Hoist all weight reorg (transpose/reshape/pad/bf16 cast) out of forward."""
    blocks = []
    for w, g, b in params["blocks"]:
        blk = _prep_convt_weight(w)
        blk["gamma"] = g.reshape(1, -1).astype(jnp.float32)
        blk["beta"] = b.reshape(1, -1).astype(jnp.float32)
        blocks.append(blk)
    return {"blocks": blocks, "final": _prep_convt_weight(params["final_w"])}


if __name__ == "__main__":
    key = jax.random.PRNGKey(0)
    pkey, zkey = jax.random.split(key)
    # small shapes: batch=2, in_channels=4, hidden_dim=8 -> output (2, 4, 64, 64)
    params = init_params(pkey, in_channels=4, hidden_dim=8)
    prep = prepare_params(params)
    z = jax.random.normal(zkey, (2, 4), jnp.float32)
    fwd = jax.jit(lambda latent: generator_forward(latent, prep))
    out = jax.block_until_ready(fwd(z))
    assert out.shape == (2, 4, 64, 64), out.shape
    assert bool(jnp.all(jnp.isfinite(out)))
    assert bool(jnp.all(jnp.abs(out) <= 1.0))  # tanh range
    print("KERNEL_OK")
</pallas_src>

<mosaic_0001>
module attributes {stable_mosaic.version = 11 : i64} {
  func.func @_matmul_kernel(%arg0: i32, %arg1: memref<2x4xbf16, #tpu.memory_space<vmem>>, %arg2: memref<4x1024xbf16, #tpu.memory_space<vmem>>, %arg3: memref<2x1024xf32, #tpu.memory_space<vmem>>) attributes {dimension_semantics = [#tpu.dimension_semantics<parallel>], iteration_bounds = array<i64: 1>, scalar_prefetch = 0 : i64, scratch_operands = 0 : i64, tpu.core_type = #tpu.core_type<tc>, window_params = [{transform_indices = @transform_0, window_bounds = array<i64: 2, 4>}, {pipeline_mode = #tpu.pipeline_mode<synchronous>, transform_indices = @transform_1, window_bounds = array<i64: 4, 1024>}, {transform_indices = @transform_2, window_bounds = array<i64: 2, 1024>}]} {
    %c0 = arith.constant 0 : index
    %c0_0 = arith.constant 0 : index
    %0 = vector.load %arg1[%c0, %c0_0] : memref<2x4xbf16, #tpu.memory_space<vmem>>, vector<2x4xbf16>
    %c0_1 = arith.constant 0 : index
    %c0_2 = arith.constant 0 : index
    %1 = vector.load %arg2[%c0_1, %c0_2] : memref<4x1024xbf16, #tpu.memory_space<vmem>>, vector<4x1024xbf16>
    %cst = arith.constant dense<0.000000e+00> : vector<2x1024xf32>
    %2 = tpu.matmul %0, %1, %cst {dimension_numbers = #tpu.dot_dimension_numbers<[1], [0], [0], [1], [0, 0, 1, 1], [], []>} : vector<2x4xbf16>, vector<4x1024xbf16>, vector<2x1024xf32> -> vector<2x1024xf32>
    %c0_3 = arith.constant 0 : index
    %c0_4 = arith.constant 0 : index
    %3 = vector.load %arg3[%c0_3, %c0_4] : memref<2x1024xf32, #tpu.memory_space<vmem>>, vector<2x1024xf32>
    tpu.vector_store %arg3[%c0_3, %c0_4], %2 {strides = array<i32>} : memref<2x1024xf32, #tpu.memory_space<vmem>>, vector<2x1024xf32>,
    return
  }
  func.func @transform_0(%arg0: i32) -> (i32, i32) {
    %c0_i32 = arith.constant 0 : i32
    %c0_i32_0 = arith.constant 0 : i32
    return %arg0, %c0_i32 : i32, i32
  }
  func.func @transform_1(%arg0: i32) -> (i32, i32) {
    %c0_i32 = arith.constant 0 : i32
    %c0_i32_0 = arith.constant 0 : i32
    %c0_i32_1 = arith.constant 0 : i32
    return %c0_i32, %c0_i32_0 : i32, i32
  }
  func.func @transform_2(%arg0: i32) -> (i32, i32) {
    %c0_i32 = arith.constant 0 : i32
    %c0_i32_0 = arith.constant 0 : i32
    return %arg0, %c0_i32 : i32, i32
  }
}

module attributes {stable_mosaic.version = 11 : i64} {
  func.func @_bn_stats_kernel(%arg0: i32, %arg1: memref<32x64xf32, #tpu.memory_space<vmem>>, %arg2: memref<1x64xf32, #tpu.memory_space<vmem>>, %arg3: memref<1x64xf32, #tpu.memory_space<vmem>>) attributes {dimension_semantics = [#tpu.dimension_semantics<arbitrary>], iteration_bounds = array<i64: 1>, scalar_prefetch = 0 : i64, scratch_operands = 0 : i64, tpu.core_type = #tpu.core_type<tc>, window_params = [{transform_indices = @transform_0, window_bounds = array<i64: 32, 64>}, {pipeline_mode = #tpu.pipeline_mode<synchronous>, transform_indices = @transform_1, window_bounds = array<i64: 1, 64>}, {pipeline_mode = #tpu.pipeline_mode<synchronous>, transform_indices = @transform_2, window_bounds = array<i64: 1, 64>}]} {
    %c0_i32 = arith.constant 0 : i32
    %0 = arith.cmpi eq, %arg0, %c0_i32 : i32
    %1 = arith.extui %0 : i1 to i32
    %c0_i32_0 = arith.constant 0 : i32
    %2 = arith.cmpi ne, %1, %c0_i32_0 : i32
    scf.if %2 {
      %cst_11 = arith.constant 0.000000e+00 : f32
      %15 = vector.broadcast %cst_11 : f32 to vector<1x64xf32>
      %c0_12 = arith.constant 0 : index
      %c0_13 = arith.constant 0 : index
      %16 = vector.load %arg2[%c0_12, %c0_13] : memref<1x64xf32, #tpu.memory_space<vmem>>, vector<1x64xf32>
      tpu.vector_store %arg2[%c0_12, %c0_13], %15 {strides = array<i32>} : memref<1x64xf32, #tpu.memory_space<vmem>>, vector<1x64xf32>,
      %cst_14 = arith.constant 0.000000e+00 : f32
      %17 = vector.broadcast %cst_14 : f32 to vector<1x64xf32>
      %c0_15 = arith.constant 0 : index
      %c0_16 = arith.constant 0 : index
      %18 = vector.load %arg3[%c0_15, %c0_16] : memref<1x64xf32, #tpu.memory_space<vmem>>, vector<1x64xf32>
      tpu.vector_store %arg3[%c0_15, %c0_16], %17 {strides = array<i32>} : memref<1x64xf32, #tpu.memory_space<vmem>>, vector<1x64xf32>,
    } else {
    }
    %c0 = arith.constant 0 : index
    %c0_1 = arith.constant 0 : index
    %3 = vector.load %arg1[%c0, %c0_1] : memref<32x64xf32, #tpu.memory_space<vmem>>, vector<32x64xf32>
    %c0_2 = arith.constant 0 : index
    %c0_3 = arith.constant 0 : index
    %4 = vector.load %arg2[%c0_2, %c0_3] : memref<1x64xf32, #tpu.memory_space<vmem>>, vector<1x64xf32>
    %cst = arith.constant dense<0.000000e+00> : vector<64xf32>
    %5 = vector.multi_reduction <add>, %3, %cst [0] : vector<32x64xf32> to vector<64xf32>
    %6 = vector.shape_cast %5 : vector<64xf32> to vector<1x64xf32>
    %7 = arith.addf %4, %6 : vector<1x64xf32>
    %c0_4 = arith.constant 0 : index
    %c0_5 = arith.constant 0 : index
    %8 = vector.load %arg2[%c0_4, %c0_5] : memref<1x64xf32, #tpu.memory_space<vmem>>, vector<1x64xf32>
    tpu.vector_store %arg2[%c0_4, %c0_5], %7 {strides = array<i32>} : memref<1x64xf32, #tpu.memory_space<vmem>>, vector<1x64xf32>,
    %c0_6 = arith.constant 0 : index
    %c0_7 = arith.constant 0 : index
    %9 = vector.load %arg3[%c0_6, %c0_7] : memref<1x64xf32, #tpu.memory_space<vmem>>, vector<1x64xf32>
    %10 = arith.mulf %3, %3 : vector<32x64xf32>
    %cst_8 = arith.constant dense<0.000000e+00> : vector<64xf32>
    %11 = vector.multi_reduction <add>, %10, %cst_8 [0] : vector<32x64xf32> to vector<64xf32>
    %12 = vector.shape_cast %11 : vector<64xf32> to vector<1x64xf32>
    %13 = arith.addf %9, %12 : vector<1x64xf32>
    %c0_9 = arith.constant 0 : index
    %c0_10 = arith.constant 0 : index
    %14 = vector.load %arg3[%c0_9, %c0_10] : memref<1x64xf32, #tpu.memory_space<vmem>>, vector<1x64xf32>
    tpu.vector_store %arg3[%c0_9, %c0_10], %13 {strides = array<i32>} : memref<1x64xf32, #tpu.memory_space<vmem>>, vector<1x64xf32>,
    return
  }
  func.func @transform_0(%arg0: i32) -> (i32, i32) {
    %c0_i32 = arith.constant 0 : i32
    %c0_i32_0 = arith.constant 0 : i32
    return %arg0, %c0_i32 : i32, i32
  }
  func.func @transform_1(%arg0: i32) -> (i32, i32) {
    %c0_i32 = arith.constant 0 : i32
    %c0_i32_0 = arith.constant 0 : i32
    %c0_i32_1 = arith.constant 0 : i32
    return %c0_i32, %c0_i32_0 : i32, i32
  }
  func.func @transform_2(%arg0: i32) -> (i32, i32) {
    %c0_i32 = arith.constant 0 : i32
    %c0_i32_0 = arith.constant 0 : i32
    %c0_i32_1 = arith.constant 0 : i32
    return %c0_i32, %c0_i32_0 : i32, i32
  }
}

module attributes {stable_mosaic.version = 11 : i64} {
  func.func @_bn_relu_kernel(%arg0: i32, %arg1: memref<32x64xf32, #tpu.memory_space<vmem>>, %arg2: memref<1x64xf32, #tpu.memory_space<vmem>>, %arg3: memref<1x64xf32, #tpu.memory_space<vmem>>, %arg4: memref<1x64xf32, #tpu.memory_space<vmem>>, %arg5: memref<1x64xf32, #tpu.memory_space<vmem>>, %arg6: memref<32x64xf32, #tpu.memory_space<vmem>>) attributes {dimension_semantics = [#tpu.dimension_semantics<parallel>], iteration_bounds = array<i64: 1>, scalar_prefetch = 0 : i64, scratch_operands = 0 : i64, tpu.core_type = #tpu.core_type<tc>, window_params = [{transform_indices = @transform_0, window_bounds = array<i64: 32, 64>}, {pipeline_mode = #tpu.pipeline_mode<synchronous>, transform_indices = @transform_1, window_bounds = array<i64: 1, 64>}, {pipeline_mode = #tpu.pipeline_mode<synchronous>, transform_indices = @transform_2, window_bounds = array<i64: 1, 64>}, {pipeline_mode = #tpu.pipeline_mode<synchronous>, transform_indices = @transform_3, window_bounds = array<i64: 1, 64>}, {pipeline_mode = #tpu.pipeline_mode<synchronous>, transform_indices = @transform_4, window_bounds = array<i64: 1, 64>}, {transform_indices = @transform_5, window_bounds = array<i64: 32, 64>}]} {
    %c0 = arith.constant 0 : index
    %c0_0 = arith.constant 0 : index
    %0 = vector.load %arg2[%c0, %c0_0] : memref<1x64xf32, #tpu.memory_space<vmem>>, vector<1x64xf32>
    %cst = arith.constant 3.125000e-02 : f32
    %1 = vector.broadcast %cst : f32 to vector<1x64xf32>
    %2 = arith.mulf %0, %1 : vector<1x64xf32>
    %c0_1 = arith.constant 0 : index
    %c0_2 = arith.constant 0 : index
    %3 = vector.load %arg3[%c0_1, %c0_2] : memref<1x64xf32, #tpu.memory_space<vmem>>, vector<1x64xf32>
    %cst_3 = arith.constant 3.125000e-02 : f32
    %4 = vector.broadcast %cst_3 : f32 to vector<1x64xf32>
    %5 = arith.mulf %3, %4 : vector<1x64xf32>
    %6 = arith.mulf %2, %2 : vector<1x64xf32>
    %7 = arith.subf %5, %6 : vector<1x64xf32>
    %c0_4 = arith.constant 0 : index
    %c0_5 = arith.constant 0 : index
    %8 = vector.load %arg4[%c0_4, %c0_5] : memref<1x64xf32, #tpu.memory_space<vmem>>, vector<1x64xf32>
    %cst_6 = arith.constant 9.99999974E-6 : f32
    %9 = vector.broadcast %cst_6 : f32 to vector<1x64xf32>
    %10 = arith.addf %7, %9 : vector<1x64xf32>
    %11 = math.rsqrt %10 : vector<1x64xf32>
    %12 = arith.mulf %8, %11 : vector<1x64xf32>
    %c0_7 = arith.constant 0 : index
    %c0_8 = arith.constant 0 : index
    %13 = vector.load %arg5[%c0_7, %c0_8] : memref<1x64xf32, #tpu.memory_space<vmem>>, vector<1x64xf32>
    %14 = arith.mulf %2, %12 : vector<1x64xf32>
    %15 = arith.subf %13, %14 : vector<1x64xf32>
    %c0_9 = arith.constant 0 : index
    %c0_10 = arith.constant 0 : index
    %16 = vector.load %arg1[%c0_9, %c0_10] : memref<32x64xf32, #tpu.memory_space<vmem>>, vector<32x64xf32>
    %17 = vector.broadcast %12 : vector<1x64xf32> to vector<32x64xf32>
    %18 = arith.mulf %16, %17 : vector<32x64xf32>
    %19 = vector.broadcast %15 : vector<1x64xf32> to vector<32x64xf32>
    %20 = arith.addf %18, %19 : vector<32x64xf32>
    %cst_11 = arith.constant 0.000000e+00 : f32
    %21 = vector.broadcast %cst_11 : f32 to vector<32x64xf32>
    %22 = arith.maximumf %20, %21 : vector<32x64xf32>
    %c0_12 = arith.constant 0 : index
    %c0_13 = arith.constant 0 : index
    %23 = vector.load %arg6[%c0_12, %c0_13] : memref<32x64xf32, #tpu.memory_space<vmem>>, vector<32x64xf32>
    tpu.vector_store %arg6[%c0_12, %c0_13], %22 {strides = array<i32>} : memref<32x64xf32, #tpu.memory_space<vmem>>, vector<32x64xf32>,
    return
  }
  func.func @transform_0(%arg0: i32) -> (i32, i32) {
    %c0_i32 = arith.constant 0 : i32
    %c0_i32_0 = arith.constant 0 : i32
    return %arg0, %c0_i32 : i32, i32
  }
  func.func @transform_1(%arg0: i32) -> (i32, i32) {
    %c0_i32 = arith.constant 0 : i32
    %c0_i32_0 = arith.constant 0 : i32
    %c0_i32_1 = arith.constant 0 : i32
    return %c0_i32, %c0_i32_0 : i32, i32
  }
  func.func @transform_2(%arg0: i32) -> (i32, i32) {
    %c0_i32 = arith.constant 0 : i32
    %c0_i32_0 = arith.constant 0 : i32
    %c0_i32_1 = arith.constant 0 : i32
    return %c0_i32, %c0_i32_0 : i32, i32
  }
  func.func @transform_3(%arg0: i32) -> (i32, i32) {
    %c0_i32 = arith.constant 0 : i32
    %c0_i32_0 = arith.constant 0 : i32
    %c0_i32_1 = arith.constant 0 : i32
    return %c0_i32, %c0_i32_0 : i32, i32
  }
  func.func @transform_4(%arg0: i32) -> (i32, i32) {
    %c0_i32 = arith.constant 0 : i32
    %c0_i32_0 = arith.constant 0 : i32
    %c0_i32_1 = arith.constant 0 : i32
    return %c0_i32, %c0_i32_0 : i32, i32
  }
  func.func @transform_5(%arg0: i32) -> (i32, i32) {
    %c0_i32 = arith.constant 0 : i32
    %c0_i32_0 = arith.constant 0 : i32
    return %arg0, %c0_i32 : i32, i32
  }
}

module attributes {stable_mosaic.version = 11 : i64} {
  func.func @_matmul_kernel(%arg0: i32, %arg1: memref<32x64xbf16, #tpu.memory_space<vmem>>, %arg2: memref<64x512xbf16, #tpu.memory_space<vmem>>, %arg3: memref<32x512xf32, #tpu.memory_space<vmem>>) attributes {dimension_semantics = [#tpu.dimension_semantics<parallel>], iteration_bounds = array<i64: 1>, scalar_prefetch = 0 : i64, scratch_operands = 0 : i64, tpu.core_type = #tpu.core_type<tc>, window_params = [{transform_indices = @transform_0, window_bounds = array<i64: 32, 64>}, {pipeline_mode = #tpu.pipeline_mode<synchronous>, transform_indices = @transform_1, window_bounds = array<i64: 64, 512>}, {transform_indices = @transform_2, window_bounds = array<i64: 32, 512>}]} {
    %c0 = arith.constant 0 : index
    %c0_0 = arith.constant 0 : index
    %0 = vector.load %arg1[%c0, %c0_0] : memref<32x64xbf16, #tpu.memory_space<vmem>>, vector<32x64xbf16>
    %c0_1 = arith.constant 0 : index
    %c0_2 = arith.constant 0 : index
    %1 = vector.load %arg2[%c0_1, %c0_2] : memref<64x512xbf16, #tpu.memory_space<vmem>>, vector<64x512xbf16>
    %cst = arith.constant dense<0.000000e+00> : vector<32x512xf32>
    %2 = tpu.matmul %0, %1, %cst {dimension_numbers = #tpu.dot_dimension_numbers<[1], [0], [0], [1], [0, 0, 1, 1], [], []>} : vector<32x64xbf16>, vector<64x512xbf16>, vector<32x512xf32> -> vector<32x512xf32>
    %c0_3 = arith.constant 0 : index
    %c0_4 = arith.constant 0 : index
    %3 = vector.load %arg3[%c0_3, %c0_4] : memref<32x512xf32, #tpu.memory_space<vmem>>, vector<32x512xf32>
    tpu.vector_store %arg3[%c0_3, %c0_4], %2 {strides = array<i32>} : memref<32x512xf32, #tpu.memory_space<vmem>>, vector<32x512xf32>,
    return
  }
  func.func @transform_0(%arg0: i32) -> (i32, i32) {
    %c0_i32 = arith.constant 0 : i32
    %c0_i32_0 = arith.constant 0 : i32
    return %arg0, %c0_i32 : i32, i32
  }
  func.func @transform_1(%arg0: i32) -> (i32, i32) {
    %c0_i32 = arith.constant 0 : i32
    %c0_i32_0 = arith.constant 0 : i32
    %c0_i32_1 = arith.constant 0 : i32
    return %c0_i32, %c0_i32_0 : i32, i32
  }
  func.func @transform_2(%arg0: i32) -> (i32, i32) {
    %c0_i32 = arith.constant 0 : i32
    %c0_i32_0 = arith.constant 0 : i32
    return %arg0, %c0_i32 : i32, i32
  }
}

module attributes {stable_mosaic.version = 11 : i64} {
  func.func @_bn_stats_kernel(%arg0: i32, %arg1: memref<128x32xf32, #tpu.memory_space<vmem>>, %arg2: memref<1x32xf32, #tpu.memory_space<vmem>>, %arg3: memref<1x32xf32, #tpu.memory_space<vmem>>) attributes {dimension_semantics = [#tpu.dimension_semantics<arbitrary>], iteration_bounds = array<i64: 1>, scalar_prefetch = 0 : i64, scratch_operands = 0 : i64, tpu.core_type = #tpu.core_type<tc>, window_params = [{transform_indices = @transform_0, window_bounds = array<i64: 128, 32>}, {pipeline_mode = #tpu.pipeline_mode<synchronous>, transform_indices = @transform_1, window_bounds = array<i64: 1, 32>}, {pipeline_mode = #tpu.pipeline_mode<synchronous>, transform_indices = @transform_2, window_bounds = array<i64: 1, 32>}]} {
    %c0_i32 = arith.constant 0 : i32
    %0 = arith.cmpi eq, %arg0, %c0_i32 : i32
    %1 = arith.extui %0 : i1 to i32
    %c0_i32_0 = arith.constant 0 : i32
    %2 = arith.cmpi ne, %1, %c0_i32_0 : i32
    scf.if %2 {
      %cst_11 = arith.constant 0.000000e+00 : f32
      %15 = vector.broadcast %cst_11 : f32 to vector<1x32xf32>
      %c0_12 = arith.constant 0 : index
      %c0_13 = arith.constant 0 : index
      %16 = vector.load %arg2[%c0_12, %c0_13] : memref<1x32xf32, #tpu.memory_space<vmem>>, vector<1x32xf32>
      tpu.vector_store %arg2[%c0_12, %c0_13], %15 {strides = array<i32>} : memref<1x32xf32, #tpu.memory_space<vmem>>, vector<1x32xf32>,
      %cst_14 = arith.constant 0.000000e+00 : f32
      %17 = vector.broadcast %cst_14 : f32 to vector<1x32xf32>
      %c0_15 = arith.constant 0 : index
      %c0_16 = arith.constant 0 : index
      %18 = vector.load %arg3[%c0_15, %c0_16] : memref<1x32xf32, #tpu.memory_space<vmem>>, vector<1x32xf32>
      tpu.vector_store %arg3[%c0_15, %c0_16], %17 {strides = array<i32>} : memref<1x32xf32, #tpu.memory_space<vmem>>, vector<1x32xf32>,
    } else {
    }
    %c0 = arith.constant 0 : index
    %c0_1 = arith.constant 0 : index
    %3 = vector.load %arg1[%c0, %c0_1] : memref<128x32xf32, #tpu.memory_space<vmem>>, vector<128x32xf32>
    %c0_2 = arith.constant 0 : index
    %c0_3 = arith.constant 0 : index
    %4 = vector.load %arg2[%c0_2, %c0_3] : memref<1x32xf32, #tpu.memory_space<vmem>>, vector<1x32xf32>
    %cst = arith.constant dense<0.000000e+00> : vector<32xf32>
    %5 = vector.multi_reduction <add>, %3, %cst [0] : vector<128x32xf32> to vector<32xf32>
    %6 = vector.shape_cast %5 : vector<32xf32> to vector<1x32xf32>
    %7 = arith.addf %4, %6 : vector<1x32xf32>
    %c0_4 = arith.constant 0 : index
    %c0_5 = arith.constant 0 : index
    %8 = vector.load %arg2[%c0_4, %c0_5] : memref<1x32xf32, #tpu.memory_space<vmem>>, vector<1x32xf32>
    tpu.vector_store %arg2[%c0_4, %c0_5], %7 {strides = array<i32>} : memref<1x32xf32, #tpu.memory_space<vmem>>, vector<1x32xf32>,
    %c0_6 = arith.constant 0 : index
    %c0_7 = arith.constant 0 : index
    %9 = vector.load %arg3[%c0_6, %c0_7] : memref<1x32xf32, #tpu.memory_space<vmem>>, vector<1x32xf32>
    %10 = arith.mulf %3, %3 : vector<128x32xf32>
    %cst_8 = arith.constant dense<0.000000e+00> : vector<32xf32>
    %11 = vector.multi_reduction <add>, %10, %cst_8 [0] : vector<128x32xf32> to vector<32xf32>
    %12 = vector.shape_cast %11 : vector<32xf32> to vector<1x32xf32>
    %13 = arith.addf %9, %12 : vector<1x32xf32>
    %c0_9 = arith.constant 0 : index
    %c0_10 = arith.constant 0 : index
    %14 = vector.load %arg3[%c0_9, %c0_10] : memref<1x32xf32, #tpu.memory_space<vmem>>, vector<1x32xf32>
    tpu.vector_store %arg3[%c0_9, %c0_10], %13 {strides = array<i32>} : memref<1x32xf32, #tpu.memory_space<vmem>>, vector<1x32xf32>,
    return
  }
  func.func @transform_0(%arg0: i32) -> (i32, i32) {
    %c0_i32 = arith.constant 0 : i32
    %c0_i32_0 = arith.constant 0 : i32
    return %arg0, %c0_i32 : i32, i32
  }
  func.func @transform_1(%arg0: i32) -> (i32, i32) {
    %c0_i32 = arith.constant 0 : i32
    %c0_i32_0 = arith.constant 0 : i32
    %c0_i32_1 = arith.constant 0 : i32
    return %c0_i32, %c0_i32_0 : i32, i32
  }
  func.func @transform_2(%arg0: i32) -> (i32, i32) {
    %c0_i32 = arith.constant 0 : i32
    %c0_i32_0 = arith.constant 0 : i32
    %c0_i32_1 = arith.constant 0 : i32
    return %c0_i32, %c0_i32_0 : i32, i32
  }
}

module attributes {stable_mosaic.version = 11 : i64} {
  func.func @_matmul_kernel(%arg0: i32, %arg1: memref<128x32xbf16, #tpu.memory_space<vmem>>, %arg2: memref<32x256xbf16, #tpu.memory_space<vmem>>, %arg3: memref<128x256xf32, #tpu.memory_space<vmem>>) attributes {dimension_semantics = [#tpu.dimension_semantics<parallel>], iteration_bounds = array<i64: 1>, scalar_prefetch = 0 : i64, scratch_operands = 0 : i64, tpu.core_type = #tpu.core_type<tc>, window_params = [{transform_indices = @transform_0, window_bounds = array<i64: 128, 32>}, {pipeline_mode = #tpu.pipeline_mode<synchronous>, transform_indices = @transform_1, window_bounds = array<i64: 32, 256>}, {transform_indices = @transform_2, window_bounds = array<i64: 128, 256>}]} {
    %c0 = arith.constant 0 : index
    %c0_0 = arith.constant 0 : index
    %0 = vector.load %arg1[%c0, %c0_0] : memref<128x32xbf16, #tpu.memory_space<vmem>>, vector<128x32xbf16>
    %c0_1 = arith.constant 0 : index
    %c0_2 = arith.constant 0 : index
    %1 = vector.load %arg2[%c0_1, %c0_2] : memref<32x256xbf16, #tpu.memory_space<vmem>>, vector<32x256xbf16>
    %cst = arith.constant dense<0.000000e+00> : vector<128x256xf32>
    %2 = tpu.matmul %0, %1, %cst {dimension_numbers = #tpu.dot_dimension_numbers<[1], [0], [0], [1], [0, 0, 1, 1], [], []>} : vector<128x32xbf16>, vector<32x256xbf16>, vector<128x256xf32> -> vector<128x256xf32>
    %c0_3 = arith.constant 0 : index
    %c0_4 = arith.constant 0 : index
    %3 = vector.load %arg3[%c0_3, %c0_4] : memref<128x256xf32, #tpu.memory_space<vmem>>, vector<128x256xf32>
    tpu.vector_store %arg3[%c0_3, %c0_4], %2 {strides = array<i32>} : memref<128x256xf32, #tpu.memory_space<vmem>>, vector<128x256xf32>,
    return
  }
  func.func @transform_0(%arg0: i32) -> (i32, i32) {
    %c0_i32 = arith.constant 0 : i32
    %c0_i32_0 = arith.constant 0 : i32
    return %arg0, %c0_i32 : i32, i32
  }
  func.func @transform_1(%arg0: i32) -> (i32, i32) {
    %c0_i32 = arith.constant 0 : i32
    %c0_i32_0 = arith.constant 0 : i32
    %c0_i32_1 = arith.constant 0 : i32
    return %c0_i32, %c0_i32_0 : i32, i32
  }
  func.func @transform_2(%arg0: i32) -> (i32, i32) {
    %c0_i32 = arith.constant 0 : i32
    %c0_i32_0 = arith.constant 0 : i32
    return %arg0, %c0_i32 : i32, i32
  }
}

module attributes {stable_mosaic.version = 11 : i64} {
  func.func @_bn_relu_kernel(%arg0: i32, %arg1: memref<128x32xf32, #tpu.memory_space<vmem>>, %arg2: memref<1x32xf32, #tpu.memory_space<vmem>>, %arg3: memref<1x32xf32, #tpu.memory_space<vmem>>, %arg4: memref<1x32xf32, #tpu.memory_space<vmem>>, %arg5: memref<1x32xf32, #tpu.memory_space<vmem>>, %arg6: memref<128x32xf32, #tpu.memory_space<vmem>>) attributes {dimension_semantics = [#tpu.dimension_semantics<parallel>], iteration_bounds = array<i64: 1>, scalar_prefetch = 0 : i64, scratch_operands = 0 : i64, tpu.core_type = #tpu.core_type<tc>, window_params = [{transform_indices = @transform_0, window_bounds = array<i64: 128, 32>}, {pipeline_mode = #tpu.pipeline_mode<synchronous>, transform_indices = @transform_1, window_bounds = array<i64: 1, 32>}, {pipeline_mode = #tpu.pipeline_mode<synchronous>, transform_indices = @transform_2, window_bounds = array<i64: 1, 32>}, {pipeline_mode = #tpu.pipeline_mode<synchronous>, transform_indices = @transform_3, window_bounds = array<i64: 1, 32>}, {pipeline_mode = #tpu.pipeline_mode<synchronous>, transform_indices = @transform_4, window_bounds = array<i64: 1, 32>}, {transform_indices = @transform_5, window_bounds = array<i64: 128, 32>}]} {
    %c0 = arith.constant 0 : index
    %c0_0 = arith.constant 0 : index
    %0 = vector.load %arg2[%c0, %c0_0] : memref<1x32xf32, #tpu.memory_space<vmem>>, vector<1x32xf32>
    %cst = arith.constant 7.812500e-03 : f32
    %1 = vector.broadcast %cst : f32 to vector<1x32xf32>
    %2 = arith.mulf %0, %1 : vector<1x32xf32>
    %c0_1 = arith.constant 0 : index
    %c0_2 = arith.constant 0 : index
    %3 = vector.load %arg3[%c0_1, %c0_2] : memref<1x32xf32, #tpu.memory_space<vmem>>, vector<1x32xf32>
    %cst_3 = arith.constant 7.812500e-03 : f32
    %4 = vector.broadcast %cst_3 : f32 to vector<1x32xf32>
    %5 = arith.mulf %3, %4 : vector<1x32xf32>
    %6 = arith.mulf %2, %2 : vector<1x32xf32>
    %7 = arith.subf %5, %6 : vector<1x32xf32>
    %c0_4 = arith.constant 0 : index
    %c0_5 = arith.constant 0 : index
    %8 = vector.load %arg4[%c0_4, %c0_5] : memref<1x32xf32, #tpu.memory_space<vmem>>, vector<1x32xf32>
    %cst_6 = arith.constant 9.99999974E-6 : f32
    %9 = vector.broadcast %cst_6 : f32 to vector<1x32xf32>
    %10 = arith.addf %7, %9 : vector<1x32xf32>
    %11 = math.rsqrt %10 : vector<1x32xf32>
    %12 = arith.mulf %8, %11 : vector<1x32xf32>
    %c0_7 = arith.constant 0 : index
    %c0_8 = arith.constant 0 : index
    %13 = vector.load %arg5[%c0_7, %c0_8] : memref<1x32xf32, #tpu.memory_space<vmem>>, vector<1x32xf32>
    %14 = arith.mulf %2, %12 : vector<1x32xf32>
    %15 = arith.subf %13, %14 : vector<1x32xf32>
    %c0_9 = arith.constant 0 : index
    %c0_10 = arith.constant 0 : index
    %16 = vector.load %arg1[%c0_9, %c0_10] : memref<128x32xf32, #tpu.memory_space<vmem>>, vector<128x32xf32>
    %17 = vector.broadcast %12 : vector<1x32xf32> to vector<128x32xf32>
    %18 = arith.mulf %16, %17 : vector<128x32xf32>
    %19 = vector.broadcast %15 : vector<1x32xf32> to vector<128x32xf32>
    %20 = arith.addf %18, %19 : vector<128x32xf32>
    %cst_11 = arith.constant 0.000000e+00 : f32
    %21 = vector.broadcast %cst_11 : f32 to vector<128x32xf32>
    %22 = arith.maximumf %20, %21 : vector<128x32xf32>
    %c0_12 = arith.constant 0 : index
    %c0_13 = arith.constant 0 : index
    %23 = vector.load %arg6[%c0_12, %c0_13] : memref<128x32xf32, #tpu.memory_space<vmem>>, vector<128x32xf32>
    tpu.vector_store %arg6[%c0_12, %c0_13], %22 {strides = array<i32>} : memref<128x32xf32, #tpu.memory_space<vmem>>, vector<128x32xf32>,
    return
  }
  func.func @transform_0(%arg0: i32) -> (i32, i32) {
    %c0_i32 = arith.constant 0 : i32
    %c0_i32_0 = arith.constant 0 : i32
    return %arg0, %c0_i32 : i32, i32
  }
  func.func @transform_1(%arg0: i32) -> (i32, i32) {
    %c0_i32 = arith.constant 0 : i32
    %c0_i32_0 = arith.constant 0 : i32
    %c0_i32_1 = arith.constant 0 : i32
    return %c0_i32, %c0_i32_0 : i32, i32
  }
  func.func @transform_2(%arg0: i32) -> (i32, i32) {
    %c0_i32 = arith.constant 0 : i32
    %c0_i32_0 = arith.constant 0 : i32
    %c0_i32_1 = arith.constant 0 : i32
    return %c0_i32, %c0_i32_0 : i32, i32
  }
  func.func @transform_3(%arg0: i32) -> (i32, i32) {
    %c0_i32 = arith.constant 0 : i32
    %c0_i32_0 = arith.constant 0 : i32
    %c0_i32_1 = arith.constant 0 : i32
    return %c0_i32, %c0_i32_0 : i32, i32
  }
  func.func @transform_4(%arg0: i32) -> (i32, i32) {
    %c0_i32 = arith.constant 0 : i32
    %c0_i32_0 = arith.constant 0 : i32
    %c0_i32_1 = arith.constant 0 : i32
    return %c0_i32, %c0_i32_0 : i32, i32
  }
  func.func @transform_5(%arg0: i32) -> (i32, i32) {
    %c0_i32 = arith.constant 0 : i32
    %c0_i32_0 = arith.constant 0 : i32
    return %arg0, %c0_i32 : i32, i32
  }
}

module attributes {stable_mosaic.version = 11 : i64} {
  func.func @_bn_stats_kernel(%arg0: i32, %arg1: memref<512x16xf32, #tpu.memory_space<vmem>>, %arg2: memref<1x16xf32, #tpu.memory_space<vmem>>, %arg3: memref<1x16xf32, #tpu.memory_space<vmem>>) attributes {dimension_semantics = [#tpu.dimension_semantics<arbitrary>], iteration_bounds = array<i64: 1>, scalar_prefetch = 0 : i64, scratch_operands = 0 : i64, tpu.core_type = #tpu.core_type<tc>, window_params = [{transform_indices = @transform_0, window_bounds = array<i64: 512, 16>}, {pipeline_mode = #tpu.pipeline_mode<synchronous>, transform_indices = @transform_1, window_bounds = array<i64: 1, 16>}, {pipeline_mode = #tpu.pipeline_mode<synchronous>, transform_indices = @transform_2, window_bounds = array<i64: 1, 16>}]} {
    %c0_i32 = arith.constant 0 : i32
    %0 = arith.cmpi eq, %arg0, %c0_i32 : i32
    %1 = arith.extui %0 : i1 to i32
    %c0_i32_0 = arith.constant 0 : i32
    %2 = arith.cmpi ne, %1, %c0_i32_0 : i32
    scf.if %2 {
      %cst_11 = arith.constant 0.000000e+00 : f32
      %15 = vector.broadcast %cst_11 : f32 to vector<1x16xf32>
      %c0_12 = arith.constant 0 : index
      %c0_13 = arith.constant 0 : index
      %16 = vector.load %arg2[%c0_12, %c0_13] : memref<1x16xf32, #tpu.memory_space<vmem>>, vector<1x16xf32>
      tpu.vector_store %arg2[%c0_12, %c0_13], %15 {strides = array<i32>} : memref<1x16xf32, #tpu.memory_space<vmem>>, vector<1x16xf32>,
      %cst_14 = arith.constant 0.000000e+00 : f32
      %17 = vector.broadcast %cst_14 : f32 to vector<1x16xf32>
      %c0_15 = arith.constant 0 : index
      %c0_16 = arith.constant 0 : index
      %18 = vector.load %arg3[%c0_15, %c0_16] : memref<1x16xf32, #tpu.memory_space<vmem>>, vector<1x16xf32>
      tpu.vector_store %arg3[%c0_15, %c0_16], %17 {strides = array<i32>} : memref<1x16xf32, #tpu.memory_space<vmem>>, vector<1x16xf32>,
    } else {
    }
    %c0 = arith.constant 0 : index
    %c0_1 = arith.constant 0 : index
    %3 = vector.load %arg1[%c0, %c0_1] : memref<512x16xf32, #tpu.memory_space<vmem>>, vector<512x16xf32>
    %c0_2 = arith.constant 0 : index
    %c0_3 = arith.constant 0 : index
    %4 = vector.load %arg2[%c0_2, %c0_3] : memref<1x16xf32, #tpu.memory_space<vmem>>, vector<1x16xf32>
    %cst = arith.constant dense<0.000000e+00> : vector<16xf32>
    %5 = vector.multi_reduction <add>, %3, %cst [0] : vector<512x16xf32> to vector<16xf32>
    %6 = vector.shape_cast %5 : vector<16xf32> to vector<1x16xf32>
    %7 = arith.addf %4, %6 : vector<1x16xf32>
    %c0_4 = arith.constant 0 : index
    %c0_5 = arith.constant 0 : index
    %8 = vector.load %arg2[%c0_4, %c0_5] : memref<1x16xf32, #tpu.memory_space<vmem>>, vector<1x16xf32>
    tpu.vector_store %arg2[%c0_4, %c0_5], %7 {strides = array<i32>} : memref<1x16xf32, #tpu.memory_space<vmem>>, vector<1x16xf32>,
    %c0_6 = arith.constant 0 : index
    %c0_7 = arith.constant 0 : index
    %9 = vector.load %arg3[%c0_6, %c0_7] : memref<1x16xf32, #tpu.memory_space<vmem>>, vector<1x16xf32>
    %10 = arith.mulf %3, %3 : vector<512x16xf32>
    %cst_8 = arith.constant dense<0.000000e+00> : vector<16xf32>
    %11 = vector.multi_reduction <add>, %10, %cst_8 [0] : vector<512x16xf32> to vector<16xf32>
    %12 = vector.shape_cast %11 : vector<16xf32> to vector<1x16xf32>
    %13 = arith.addf %9, %12 : vector<1x16xf32>
    %c0_9 = arith.constant 0 : index
    %c0_10 = arith.constant 0 : index
    %14 = vector.load %arg3[%c0_9, %c0_10] : memref<1x16xf32, #tpu.memory_space<vmem>>, vector<1x16xf32>
    tpu.vector_store %arg3[%c0_9, %c0_10], %13 {strides = array<i32>} : memref<1x16xf32, #tpu.memory_space<vmem>>, vector<1x16xf32>,
    return
  }
  func.func @transform_0(%arg0: i32) -> (i32, i32) {
    %c0_i32 = arith.constant 0 : i32
    %c0_i32_0 = arith.constant 0 : i32
    return %arg0, %c0_i32 : i32, i32
  }
  func.func @transform_1(%arg0: i32) -> (i32, i32) {
    %c0_i32 = arith.constant 0 : i32
    %c0_i32_0 = arith.constant 0 : i32
    %c0_i32_1 = arith.constant 0 : i32
    return %c0_i32, %c0_i32_0 : i32, i32
  }
  func.func @transform_2(%arg0: i32) -> (i32, i32) {
    %c0_i32 = arith.constant 0 : i32
    %c0_i32_0 = arith.constant 0 : i32
    %c0_i32_1 = arith.constant 0 : i32
    return %c0_i32, %c0_i32_0 : i32, i32
  }
}

module attributes {stable_mosaic.version = 11 : i64} {
  func.func @_bn_relu_kernel(%arg0: i32, %arg1: memref<512x16xf32, #tpu.memory_space<vmem>>, %arg2: memref<1x16xf32, #tpu.memory_space<vmem>>, %arg3: memref<1x16xf32, #tpu.memory_space<vmem>>, %arg4: memref<1x16xf32, #tpu.memory_space<vmem>>, %arg5: memref<1x16xf32, #tpu.memory_space<vmem>>, %arg6: memref<512x16xf32, #tpu.memory_space<vmem>>) attributes {dimension_semantics = [#tpu.dimension_semantics<parallel>], iteration_bounds = array<i64: 1>, scalar_prefetch = 0 : i64, scratch_operands = 0 : i64, tpu.core_type = #tpu.core_type<tc>, window_params = [{transform_indices = @transform_0, window_bounds = array<i64: 512, 16>}, {pipeline_mode = #tpu.pipeline_mode<synchronous>, transform_indices = @transform_1, window_bounds = array<i64: 1, 16>}, {pipeline_mode = #tpu.pipeline_mode<synchronous>, transform_indices = @transform_2, window_bounds = array<i64: 1, 16>}, {pipeline_mode = #tpu.pipeline_mode<synchronous>, transform_indices = @transform_3, window_bounds = array<i64: 1, 16>}, {pipeline_mode = #tpu.pipeline_mode<synchronous>, transform_indices = @transform_4, window_bounds = array<i64: 1, 16>}, {transform_indices = @transform_5, window_bounds = array<i64: 512, 16>}]} {
    %c0 = arith.constant 0 : index
    %c0_0 = arith.constant 0 : index
    %0 = vector.load %arg2[%c0, %c0_0] : memref<1x16xf32, #tpu.memory_space<vmem>>, vector<1x16xf32>
    %cst = arith.constant 0.001953125 : f32
    %1 = vector.broadcast %cst : f32 to vector<1x16xf32>
    %2 = arith.mulf %0, %1 : vector<1x16xf32>
    %c0_1 = arith.constant 0 : index
    %c0_2 = arith.constant 0 : index
    %3 = vector.load %arg3[%c0_1, %c0_2] : memref<1x16xf32, #tpu.memory_space<vmem>>, vector<1x16xf32>
    %cst_3 = arith.constant 0.001953125 : f32
    %4 = vector.broadcast %cst_3 : f32 to vector<1x16xf32>
    %5 = arith.mulf %3, %4 : vector<1x16xf32>
    %6 = arith.mulf %2, %2 : vector<1x16xf32>
    %7 = arith.subf %5, %6 : vector<1x16xf32>
    %c0_4 = arith.constant 0 : index
    %c0_5 = arith.constant 0 : index
    %8 = vector.load %arg4[%c0_4, %c0_5] : memref<1x16xf32, #tpu.memory_space<vmem>>, vector<1x16xf32>
    %cst_6 = arith.constant 9.99999974E-6 : f32
    %9 = vector.broadcast %cst_6 : f32 to vector<1x16xf32>
    %10 = arith.addf %7, %9 : vector<1x16xf32>
    %11 = math.rsqrt %10 : vector<1x16xf32>
    %12 = arith.mulf %8, %11 : vector<1x16xf32>
    %c0_7 = arith.constant 0 : index
    %c0_8 = arith.constant 0 : index
    %13 = vector.load %arg5[%c0_7, %c0_8] : memref<1x16xf32, #tpu.memory_space<vmem>>, vector<1x16xf32>
    %14 = arith.mulf %2, %12 : vector<1x16xf32>
    %15 = arith.subf %13, %14 : vector<1x16xf32>
    %c0_9 = arith.constant 0 : index
    %c0_10 = arith.constant 0 : index
    %16 = vector.load %arg1[%c0_9, %c0_10] : memref<512x16xf32, #tpu.memory_space<vmem>>, vector<512x16xf32>
    %17 = vector.broadcast %12 : vector<1x16xf32> to vector<512x16xf32>
    %18 = arith.mulf %16, %17 : vector<512x16xf32>
    %19 = vector.broadcast %15 : vector<1x16xf32> to vector<512x16xf32>
    %20 = arith.addf %18, %19 : vector<512x16xf32>
    %cst_11 = arith.constant 0.000000e+00 : f32
    %21 = vector.broadcast %cst_11 : f32 to vector<512x16xf32>
    %22 = arith.maximumf %20, %21 : vector<512x16xf32>
    %c0_12 = arith.constant 0 : index
    %c0_13 = arith.constant 0 : index
    %23 = vector.load %arg6[%c0_12, %c0_13] : memref<512x16xf32, #tpu.memory_space<vmem>>, vector<512x16xf32>
    tpu.vector_store %arg6[%c0_12, %c0_13], %22 {strides = array<i32>} : memref<512x16xf32, #tpu.memory_space<vmem>>, vector<512x16xf32>,
    return
  }
  func.func @transform_0(%arg0: i32) -> (i32, i32) {
    %c0_i32 = arith.constant 0 : i32
    %c0_i32_0 = arith.constant 0 : i32
    return %arg0, %c0_i32 : i32, i32
  }
  func.func @transform_1(%arg0: i32) -> (i32, i32) {
    %c0_i32 = arith.constant 0 : i32
    %c0_i32_0 = arith.constant 0 : i32
    %c0_i32_1 = arith.constant 0 : i32
    return %c0_i32, %c0_i32_0 : i32, i32
  }
  func.func @transform_2(%arg0: i32) -> (i32, i32) {
    %c0_i32 = arith.constant 0 : i32
    %c0_i32_0 = arith.constant 0 : i32
    %c0_i32_1 = arith.constant 0 : i32
    return %c0_i32, %c0_i32_0 : i32, i32
  }
  func.func @transform_3(%arg0: i32) -> (i32, i32) {
    %c0_i32 = arith.constant 0 : i32
    %c0_i32_0 = arith.constant 0 : i32
    %c0_i32_1 = arith.constant 0 : i32
    return %c0_i32, %c0_i32_0 : i32, i32
  }
  func.func @transform_4(%arg0: i32) -> (i32, i32) {
    %c0_i32 = arith.constant 0 : i32
    %c0_i32_0 = arith.constant 0 : i32
    %c0_i32_1 = arith.constant 0 : i32
    return %c0_i32, %c0_i32_0 : i32, i32
  }
  func.func @transform_5(%arg0: i32) -> (i32, i32) {
    %c0_i32 = arith.constant 0 : i32
    %c0_i32_0 = arith.constant 0 : i32
    return %arg0, %c0_i32 : i32, i32
  }
}

module attributes {stable_mosaic.version = 11 : i64} {
  func.func @_matmul_kernel(%arg0: i32, %arg1: memref<256x16xbf16, #tpu.memory_space<vmem>>, %arg2: memref<16x128xbf16, #tpu.memory_space<vmem>>, %arg3: memref<256x128xf32, #tpu.memory_space<vmem>>) attributes {dimension_semantics = [#tpu.dimension_semantics<parallel>], iteration_bounds = array<i64: 2>, scalar_prefetch = 0 : i64, scratch_operands = 0 : i64, tpu.core_type = #tpu.core_type<tc>, window_params = [{transform_indices = @transform_0, window_bounds = array<i64: 256, 16>}, {pipeline_mode = #tpu.pipeline_mode<synchronous>, transform_indices = @transform_1, window_bounds = array<i64: 16, 128>}, {transform_indices = @transform_2, window_bounds = array<i64: 256, 128>}]} {
    %c0 = arith.constant 0 : index
    %c0_0 = arith.constant 0 : index
    %0 = vector.load %arg1[%c0, %c0_0] : memref<256x16xbf16, #tpu.memory_space<vmem>>, vector<256x16xbf16>
    %c0_1 = arith.constant 0 : index
    %c0_2 = arith.constant 0 : index
    %1 = vector.load %arg2[%c0_1, %c0_2] : memref<16x128xbf16, #tpu.memory_space<vmem>>, vector<16x128xbf16>
    %cst = arith.constant dense<0.000000e+00> : vector<256x128xf32>
    %2 = tpu.matmul %0, %1, %cst {dimension_numbers = #tpu.dot_dimension_numbers<[1], [0], [0], [1], [0, 0, 1, 1], [], []>} : vector<256x16xbf16>, vector<16x128xbf16>, vector<256x128xf32> -> vector<256x128xf32>
    %c0_3 = arith.constant 0 : index
    %c0_4 = arith.constant 0 : index
    %3 = vector.load %arg3[%c0_3, %c0_4] : memref<256x128xf32, #tpu.memory_space<vmem>>, vector<256x128xf32>
    tpu.vector_store %arg3[%c0_3, %c0_4], %2 {strides = array<i32>} : memref<256x128xf32, #tpu.memory_space<vmem>>, vector<256x128xf32>,
    return
  }
  func.func @transform_0(%arg0: i32) -> (i32, i32) {
    %c0_i32 = arith.constant 0 : i32
    %c0_i32_0 = arith.constant 0 : i32
    return %arg0, %c0_i32 : i32, i32
  }
  func.func @transform_1(%arg0: i32) -> (i32, i32) {
    %c0_i32 = arith.constant 0 : i32
    %c0_i32_0 = arith.constant 0 : i32
    %c0_i32_1 = arith.constant 0 : i32
    return %c0_i32, %c0_i32_0 : i32, i32
  }
  func.func @transform_2(%arg0: i32) -> (i32, i32) {
    %c0_i32 = arith.constant 0 : i32
    %c0_i32_0 = arith.constant 0 : i32
    return %arg0, %c0_i32 : i32, i32
  }
}

module attributes {stable_mosaic.version = 11 : i64} {
  func.func @_bn_stats_kernel(%arg0: i32, %arg1: memref<2048x8xf32, #tpu.memory_space<vmem>>, %arg2: memref<1x8xf32, #tpu.memory_space<vmem>>, %arg3: memref<1x8xf32, #tpu.memory_space<vmem>>) attributes {dimension_semantics = [#tpu.dimension_semantics<arbitrary>], iteration_bounds = array<i64: 1>, scalar_prefetch = 0 : i64, scratch_operands = 0 : i64, tpu.core_type = #tpu.core_type<tc>, window_params = [{transform_indices = @transform_0, window_bounds = array<i64: 2048, 8>}, {pipeline_mode = #tpu.pipeline_mode<synchronous>, transform_indices = @transform_1, window_bounds = array<i64: 1, 8>}, {pipeline_mode = #tpu.pipeline_mode<synchronous>, transform_indices = @transform_2, window_bounds = array<i64: 1, 8>}]} {
    %c0_i32 = arith.constant 0 : i32
    %0 = arith.cmpi eq, %arg0, %c0_i32 : i32
    %1 = arith.extui %0 : i1 to i32
    %c0_i32_0 = arith.constant 0 : i32
    %2 = arith.cmpi ne, %1, %c0_i32_0 : i32
    scf.if %2 {
      %cst_11 = arith.constant 0.000000e+00 : f32
      %15 = vector.broadcast %cst_11 : f32 to vector<1x8xf32>
      %c0_12 = arith.constant 0 : index
      %c0_13 = arith.constant 0 : index
      %16 = vector.load %arg2[%c0_12, %c0_13] : memref<1x8xf32, #tpu.memory_space<vmem>>, vector<1x8xf32>
      tpu.vector_store %arg2[%c0_12, %c0_13], %15 {strides = array<i32>} : memref<1x8xf32, #tpu.memory_space<vmem>>, vector<1x8xf32>,
      %cst_14 = arith.constant 0.000000e+00 : f32
      %17 = vector.broadcast %cst_14 : f32 to vector<1x8xf32>
      %c0_15 = arith.constant 0 : index
      %c0_16 = arith.constant 0 : index
      %18 = vector.load %arg3[%c0_15, %c0_16] : memref<1x8xf32, #tpu.memory_space<vmem>>, vector<1x8xf32>
      tpu.vector_store %arg3[%c0_15, %c0_16], %17 {strides = array<i32>} : memref<1x8xf32, #tpu.memory_space<vmem>>, vector<1x8xf32>,
    } else {
    }
    %c0 = arith.constant 0 : index
    %c0_1 = arith.constant 0 : index
    %3 = vector.load %arg1[%c0, %c0_1] : memref<2048x8xf32, #tpu.memory_space<vmem>>, vector<2048x8xf32>
    %c0_2 = arith.constant 0 : index
    %c0_3 = arith.constant 0 : index
    %4 = vector.load %arg2[%c0_2, %c0_3] : memref<1x8xf32, #tpu.memory_space<vmem>>, vector<1x8xf32>
    %cst = arith.constant dense<0.000000e+00> : vector<8xf32>
    %5 = vector.multi_reduction <add>, %3, %cst [0] : vector<2048x8xf32> to vector<8xf32>
    %6 = vector.shape_cast %5 : vector<8xf32> to vector<1x8xf32>
    %7 = arith.addf %4, %6 : vector<1x8xf32>
    %c0_4 = arith.constant 0 : index
    %c0_5 = arith.constant 0 : index
    %8 = vector.load %arg2[%c0_4, %c0_5] : memref<1x8xf32, #tpu.memory_space<vmem>>, vector<1x8xf32>
    tpu.vector_store %arg2[%c0_4, %c0_5], %7 {strides = array<i32>} : memref<1x8xf32, #tpu.memory_space<vmem>>, vector<1x8xf32>,
    %c0_6 = arith.constant 0 : index
    %c0_7 = arith.constant 0 : index
    %9 = vector.load %arg3[%c0_6, %c0_7] : memref<1x8xf32, #tpu.memory_space<vmem>>, vector<1x8xf32>
    %10 = arith.mulf %3, %3 : vector<2048x8xf32>
    %cst_8 = arith.constant dense<0.000000e+00> : vector<8xf32>
    %11 = vector.multi_reduction <add>, %10, %cst_8 [0] : vector<2048x8xf32> to vector<8xf32>
    %12 = vector.shape_cast %11 : vector<8xf32> to vector<1x8xf32>
    %13 = arith.addf %9, %12 : vector<1x8xf32>
    %c0_9 = arith.constant 0 : index
    %c0_10 = arith.constant 0 : index
    %14 = vector.load %arg3[%c0_9, %c0_10] : memref<1x8xf32, #tpu.memory_space<vmem>>, vector<1x8xf32>
    tpu.vector_store %arg3[%c0_9, %c0_10], %13 {strides = array<i32>} : memref<1x8xf32, #tpu.memory_space<vmem>>, vector<1x8xf32>,
    return
  }
  func.func @transform_0(%arg0: i32) -> (i32, i32) {
    %c0_i32 = arith.constant 0 : i32
    %c0_i32_0 = arith.constant 0 : i32
    return %arg0, %c0_i32 : i32, i32
  }
  func.func @transform_1(%arg0: i32) -> (i32, i32) {
    %c0_i32 = arith.constant 0 : i32
    %c0_i32_0 = arith.constant 0 : i32
    %c0_i32_1 = arith.constant 0 : i32
    return %c0_i32, %c0_i32_0 : i32, i32
  }
  func.func @transform_2(%arg0: i32) -> (i32, i32) {
    %c0_i32 = arith.constant 0 : i32
    %c0_i32_0 = arith.constant 0 : i32
    %c0_i32_1 = arith.constant 0 : i32
    return %c0_i32, %c0_i32_0 : i32, i32
  }
}

module attributes {stable_mosaic.version = 11 : i64} {
  func.func @_bn_relu_kernel(%arg0: i32, %arg1: memref<2048x8xf32, #tpu.memory_space<vmem>>, %arg2: memref<1x8xf32, #tpu.memory_space<vmem>>, %arg3: memref<1x8xf32, #tpu.memory_space<vmem>>, %arg4: memref<1x8xf32, #tpu.memory_space<vmem>>, %arg5: memref<1x8xf32, #tpu.memory_space<vmem>>, %arg6: memref<2048x8xf32, #tpu.memory_space<vmem>>) attributes {dimension_semantics = [#tpu.dimension_semantics<parallel>], iteration_bounds = array<i64: 1>, scalar_prefetch = 0 : i64, scratch_operands = 0 : i64, tpu.core_type = #tpu.core_type<tc>, window_params = [{transform_indices = @transform_0, window_bounds = array<i64: 2048, 8>}, {pipeline_mode = #tpu.pipeline_mode<synchronous>, transform_indices = @transform_1, window_bounds = array<i64: 1, 8>}, {pipeline_mode = #tpu.pipeline_mode<synchronous>, transform_indices = @transform_2, window_bounds = array<i64: 1, 8>}, {pipeline_mode = #tpu.pipeline_mode<synchronous>, transform_indices = @transform_3, window_bounds = array<i64: 1, 8>}, {pipeline_mode = #tpu.pipeline_mode<synchronous>, transform_indices = @transform_4, window_bounds = array<i64: 1, 8>}, {transform_indices = @transform_5, window_bounds = array<i64: 2048, 8>}]} {
    %c0 = arith.constant 0 : index
    %c0_0 = arith.constant 0 : index
    %0 = vector.load %arg2[%c0, %c0_0] : memref<1x8xf32, #tpu.memory_space<vmem>>, vector<1x8xf32>
    %cst = arith.constant 4.8828125E-4 : f32
    %1 = vector.broadcast %cst : f32 to vector<1x8xf32>
    %2 = arith.mulf %0, %1 : vector<1x8xf32>
    %c0_1 = arith.constant 0 : index
    %c0_2 = arith.constant 0 : index
    %3 = vector.load %arg3[%c0_1, %c0_2] : memref<1x8xf32, #tpu.memory_space<vmem>>, vector<1x8xf32>
    %cst_3 = arith.constant 4.8828125E-4 : f32
    %4 = vector.broadcast %cst_3 : f32 to vector<1x8xf32>
    %5 = arith.mulf %3, %4 : vector<1x8xf32>
    %6 = arith.mulf %2, %2 : vector<1x8xf32>
    %7 = arith.subf %5, %6 : vector<1x8xf32>
    %c0_4 = arith.constant 0 : index
    %c0_5 = arith.constant 0 : index
    %8 = vector.load %arg4[%c0_4, %c0_5] : memref<1x8xf32, #tpu.memory_space<vmem>>, vector<1x8xf32>
    %cst_6 = arith.constant 9.99999974E-6 : f32
    %9 = vector.broadcast %cst_6 : f32 to vector<1x8xf32>
    %10 = arith.addf %7, %9 : vector<1x8xf32>
    %11 = math.rsqrt %10 : vector<1x8xf32>
    %12 = arith.mulf %8, %11 : vector<1x8xf32>
    %c0_7 = arith.constant 0 : index
    %c0_8 = arith.constant 0 : index
    %13 = vector.load %arg5[%c0_7, %c0_8] : memref<1x8xf32, #tpu.memory_space<vmem>>, vector<1x8xf32>
    %14 = arith.mulf %2, %12 : vector<1x8xf32>
    %15 = arith.subf %13, %14 : vector<1x8xf32>
    %c0_9 = arith.constant 0 : index
    %c0_10 = arith.constant 0 : index
    %16 = vector.load %arg1[%c0_9, %c0_10] : memref<2048x8xf32, #tpu.memory_space<vmem>>, vector<2048x8xf32>
    %17 = vector.broadcast %12 : vector<1x8xf32> to vector<2048x8xf32>
    %18 = arith.mulf %16, %17 : vector<2048x8xf32>
    %19 = vector.broadcast %15 : vector<1x8xf32> to vector<2048x8xf32>
    %20 = arith.addf %18, %19 : vector<2048x8xf32>
    %cst_11 = arith.constant 0.000000e+00 : f32
    %21 = vector.broadcast %cst_11 : f32 to vector<2048x8xf32>
    %22 = arith.maximumf %20, %21 : vector<2048x8xf32>
    %c0_12 = arith.constant 0 : index
    %c0_13 = arith.constant 0 : index
    %23 = vector.load %arg6[%c0_12, %c0_13] : memref<2048x8xf32, #tpu.memory_space<vmem>>, vector<2048x8xf32>
    tpu.vector_store %arg6[%c0_12, %c0_13], %22 {strides = array<i32>} : memref<2048x8xf32, #tpu.memory_space<vmem>>, vector<2048x8xf32>,
    return
  }
  func.func @transform_0(%arg0: i32) -> (i32, i32) {
    %c0_i32 = arith.constant 0 : i32
    %c0_i32_0 = arith.constant 0 : i32
    return %arg0, %c0_i32 : i32, i32
  }
  func.func @transform_1(%arg0: i32) -> (i32, i32) {
    %c0_i32 = arith.constant 0 : i32
    %c0_i32_0 = arith.constant 0 : i32
    %c0_i32_1 = arith.constant 0 : i32
    return %c0_i32, %c0_i32_0 : i32, i32
  }
  func.func @transform_2(%arg0: i32) -> (i32, i32) {
    %c0_i32 = arith.constant 0 : i32
    %c0_i32_0 = arith.constant 0 : i32
    %c0_i32_1 = arith.constant 0 : i32
    return %c0_i32, %c0_i32_0 : i32, i32
  }
  func.func @transform_3(%arg0: i32) -> (i32, i32) {
    %c0_i32 = arith.constant 0 : i32
    %c0_i32_0 = arith.constant 0 : i32
    %c0_i32_1 = arith.constant 0 : i32
    return %c0_i32, %c0_i32_0 : i32, i32
  }
  func.func @transform_4(%arg0: i32) -> (i32, i32) {
    %c0_i32 = arith.constant 0 : i32
    %c0_i32_0 = arith.constant 0 : i32
    %c0_i32_1 = arith.constant 0 : i32
    return %c0_i32, %c0_i32_0 : i32, i32
  }
  func.func @transform_5(%arg0: i32) -> (i32, i32) {
    %c0_i32 = arith.constant 0 : i32
    %c0_i32_0 = arith.constant 0 : i32
    return %arg0, %c0_i32 : i32, i32
  }
}

module attributes {stable_mosaic.version = 11 : i64} {
  func.func @_matmul_kernel(%arg0: i32, %arg1: memref<512x8xbf16, #tpu.memory_space<vmem>>, %arg2: memref<8x128xbf16, #tpu.memory_space<vmem>>, %arg3: memref<512x128xf32, #tpu.memory_space<vmem>>) attributes {dimension_semantics = [#tpu.dimension_semantics<parallel>], iteration_bounds = array<i64: 4>, scalar_prefetch = 0 : i64, scratch_operands = 0 : i64, tpu.core_type = #tpu.core_type<tc>, window_params = [{transform_indices = @transform_0, window_bounds = array<i64: 512, 8>}, {pipeline_mode = #tpu.pipeline_mode<synchronous>, transform_indices = @transform_1, window_bounds = array<i64: 8, 128>}, {transform_indices = @transform_2, window_bounds = array<i64: 512, 128>}]} {
    %c0 = arith.constant 0 : index
    %c0_0 = arith.constant 0 : index
    %0 = vector.load %arg1[%c0, %c0_0] : memref<512x8xbf16, #tpu.memory_space<vmem>>, vector<512x8xbf16>
    %c0_1 = arith.constant 0 : index
    %c0_2 = arith.constant 0 : index
    %1 = vector.load %arg2[%c0_1, %c0_2] : memref<8x128xbf16, #tpu.memory_space<vmem>>, vector<8x128xbf16>
    %cst = arith.constant dense<0.000000e+00> : vector<512x128xf32>
    %2 = tpu.matmul %0, %1, %cst {dimension_numbers = #tpu.dot_dimension_numbers<[1], [0], [0], [1], [0, 0, 1, 1], [], []>} : vector<512x8xbf16>, vector<8x128xbf16>, vector<512x128xf32> -> vector<512x128xf32>
    %c0_3 = arith.constant 0 : index
    %c0_4 = arith.constant 0 : index
    %3 = vector.load %arg3[%c0_3, %c0_4] : memref<512x128xf32, #tpu.memory_space<vmem>>, vector<512x128xf32>
    tpu.vector_store %arg3[%c0_3, %c0_4], %2 {strides = array<i32>} : memref<512x128xf32, #tpu.memory_space<vmem>>, vector<512x128xf32>,
    return
  }
  func.func @transform_0(%arg0: i32) -> (i32, i32) {
    %c0_i32 = arith.constant 0 : i32
    %c0_i32_0 = arith.constant 0 : i32
    return %arg0, %c0_i32 : i32, i32
  }
  func.func @transform_1(%arg0: i32) -> (i32, i32) {
    %c0_i32 = arith.constant 0 : i32
    %c0_i32_0 = arith.constant 0 : i32
    %c0_i32_1 = arith.constant 0 : i32
    return %c0_i32, %c0_i32_0 : i32, i32
  }
  func.func @transform_2(%arg0: i32) -> (i32, i32) {
    %c0_i32 = arith.constant 0 : i32
    %c0_i32_0 = arith.constant 0 : i32
    return %arg0, %c0_i32 : i32, i32
  }
}

module attributes {stable_mosaic.version = 11 : i64} {
  func.func @_tanh_kernel(%arg0: i32, %arg1: memref<2048x4xf32, #tpu.memory_space<vmem>>, %arg2: memref<2048x4xf32, #tpu.memory_space<vmem>>) attributes {dimension_semantics = [#tpu.dimension_semantics<parallel>], iteration_bounds = array<i64: 4>, scalar_prefetch = 0 : i64, scratch_operands = 0 : i64, tpu.core_type = #tpu.core_type<tc>, window_params = [{transform_indices = @transform_0, window_bounds = array<i64: 2048, 4>}, {transform_indices = @transform_1, window_bounds = array<i64: 2048, 4>}]} {
    %c0 = arith.constant 0 : index
    %c0_0 = arith.constant 0 : index
    %0 = vector.load %arg1[%c0, %c0_0] : memref<2048x4xf32, #tpu.memory_space<vmem>>, vector<2048x4xf32>
    %1 = math.tanh %0 : vector<2048x4xf32>
    %c0_1 = arith.constant 0 : index
    %c0_2 = arith.constant 0 : index
    %2 = vector.load %arg2[%c0_1, %c0_2] : memref<2048x4xf32, #tpu.memory_space<vmem>>, vector<2048x4xf32>
    tpu.vector_store %arg2[%c0_1, %c0_2], %1 {strides = array<i32>} : memref<2048x4xf32, #tpu.memory_space<vmem>>, vector<2048x4xf32>,
    return
  }
  func.func @transform_0(%arg0: i32) -> (i32, i32) {
    %c0_i32 = arith.constant 0 : i32
    %c0_i32_0 = arith.constant 0 : i32
    return %arg0, %c0_i32 : i32, i32
  }
  func.func @transform_1(%arg0: i32) -> (i32, i32) {
    %c0_i32 = arith.constant 0 : i32
    %c0_i32_0 = arith.constant 0 : i32
    return %arg0, %c0_i32 : i32, i32
  }
}

</mosaic_0001>

<llo_original>
// kernel: _lambda_.15
$region0: #{_lambda_.15}
  #allocation0 [shape = 'u32[]', space=smem, size = 0x4, offset = 0x4, fixed_abs, tag = 'smem constant byte address 0x4 - core index']
  #allocation1 [shape = 'u32[144,128]{1,0:T(1,128)}', space=vmem, size = 0x12000, scoped, tag = 'internal scratch']
  %s0 = inlined_call_operand.vmem [shape: f32[32,64], index: 0, kind: input, shape index: {}]
  %s1 = inlined_call_operand.vmem [shape: f32[1,64], index: 1, kind: output, shape index: {0}]
  %s2 = inlined_call_operand.vmem [shape: f32[1,64], index: 2, kind: output, shape index: {1}]
  %3 = xla_tuple %s1, %s2
  %s4 = sld [smem:[#allocation0]]
  $region26: #{_lambda_.15} parent=0
    _
  %s6 = ssub.s32 1, %s4
  %s7 = scalar_select 0, %s6, %s4
  // Predicated region
  $region2: #{_lambda_.15} parent=0 // pred_check
    _
  $region3: #{_lambda_.15} parent=0 // pred_check_branch
    %9 = sbr.rel (0) target = $region5
  $region4: #{_lambda_.15} parent=0 // pred_region
    _
  $region5: #{_lambda_.15} parent=0 // pred_fallthru
    _
  %p10 = scmp.eq.s32.totalorder 0, 0
  // Predicated region
  $region6: #{_lambda_.15} parent=0 // pred_check
    %p11 = pneg %p10
  $region7: #{_lambda_.15} parent=0 // pred_check_branch
    %13 = sbr.rel (%p11) target = $region9
  $region8: #{_lambda_.15} parent=0 // pred_region
    %vm14 = vcmask 516096
    %15 = vst.msk [vmem:[%s1] sm:$0x1] %vm14, 0.0
    %16 = vst.msk [vmem:[%s2] sm:$0x1] %vm14, 0.0
  $region9: #{_lambda_.15} parent=0 // pred_fallthru
    _
  %v17 = vld [vmem:[%s0] sm:$0xff]
  %v18 = vld [vmem:[%s0 + $0x8] sm:$0xff]
  %v19 = vld [vmem:[%s0 + $0x10] sm:$0xff]
  %v20 = vld [vmem:[%s0 + $0x18] sm:$0xff]
  %v21 = vld [vmem:[%s1] sm:$0x1]
  %vm22 = vcmask 523264
  %v23 = vsel %vm22, %v17, 0.0
  %v24 = vsel %vm22, %v18, 0.0
  %v25 = vadd.f32 %v23, %v24
  %v26 = vsel %vm22, %v19, 0.0
  %v27 = vadd.f32 %v25, %v26
  %v28 = vsel %vm22, %v20, 0.0
  %v29 = vadd.f32 %v27, %v28
  %v30 = vrot.slane %v29, 4
  %v31 = vadd.f32 %v29, %v30
  %v32 = vrot.slane %v31, 2
  %v33 = vadd.f32 %v31, %v32
  %v34 = vrot.slane %v33, 1
  %v35 = vadd.f32 %v33, %v34
  %v36 = vadd.f32 %v21, %v35
  %vm37 = vcmask 516096
  %38 = vst.msk [vmem:[%s1] sm:$0x1] %vm37, %v36
  %v39 = vld [vmem:[%s2] sm:$0x1]
  %v40 = vmul.f32 %v17, %v17
  %v41 = vmul.f32 %v18, %v18
  %v42 = vmul.f32 %v19, %v19
  %v43 = vmul.f32 %v20, %v20
  %v44 = vsel %vm22, %v40, 0.0
  %v45 = vsel %vm22, %v41, 0.0
  %v46 = vadd.f32 %v44, %v45
  %v47 = vsel %vm22, %v42, 0.0
  %v48 = vadd.f32 %v46, %v47
  %v49 = vsel %vm22, %v43, 0.0
  %v50 = vadd.f32 %v48, %v49
  %v51 = vrot.slane %v50, 4
  %v52 = vadd.f32 %v50, %v51
  %v53 = vrot.slane %v52, 2
  %v54 = vadd.f32 %v52, %v53
  %v55 = vrot.slane %v54, 1
  %v56 = vadd.f32 %v54, %v55
  %v57 = vadd.f32 %v39, %v56
  %58 = vst.msk [vmem:[%s2] sm:$0x1] %vm37, %v57
  // Predicated region
  $region10: #{_lambda_.15} parent=0 // pred_check
    _
  $region11: #{_lambda_.15} parent=0 // pred_check_branch
    %60 = sbr.rel (0) target = $region13
  $region12: #{_lambda_.15} parent=0 // pred_region
    _
  $region13: #{_lambda_.15} parent=0 // pred_fallthru
    _
  // Predicated region
  $region14: #{_lambda_.15} parent=0 // pred_check
    _
  $region15: #{_lambda_.15} parent=0 // pred_check_branch
    %62 = sbr.rel (0) target = $region17
  $region16: #{_lambda_.15} parent=0 // pred_region
    _
  $region17: #{_lambda_.15} parent=0 // pred_fallthru
    _
  // Predicated region
  $region18: #{_lambda_.15} parent=0 // pred_check
    _
  $region19: #{_lambda_.15} parent=0 // pred_check_branch
    %64 = sbr.rel (0) target = $region21
  $region20: #{_lambda_.15} parent=0 // pred_region
    _
  $region21: #{_lambda_.15} parent=0 // pred_fallthru
    _
  // Predicated region
  $region22: #{_lambda_.15} parent=0 // pred_check
    _
  $region23: #{_lambda_.15} parent=0 // pred_check_branch
    %66 = sbr.rel (0) target = $region25
  $region24: #{_lambda_.15} parent=0 // pred_region
    _
  $region25: #{_lambda_.15} parent=0 // pred_fallthru
    _

// kernel: _lambda_.14
$region0: #{_lambda_.14}
  #allocation0 [shape = 'u32[]', space=smem, size = 0x4, offset = 0x4, fixed_abs, tag = 'smem constant byte address 0x4 - core index']
  #allocation1 [shape = 'u32[144,128]{1,0:T(1,128)}', space=vmem, size = 0x12000, scoped, tag = 'internal scratch']
  %s0 = inlined_call_operand.vmem [shape: bf16[2,4], index: 0, kind: input, shape index: {}]
  %s1 = inlined_call_operand.hbm [shape: bf16[4,1024], index: 1, kind: input, shape index: {}]
  %s2 = inlined_call_operand.vmem [shape: f32[2,1024], index: 2, kind: output, shape index: {}]
  %s3 = sld [smem:[#allocation0]]
  $region22: #{_lambda_.14} parent=0
    _
  %s5 = ssub.s32 1, %s3
  %s6 = scalar_select 0, %s5, %s3
  $region1: #{_lambda_.14} parent=0
    #allocation2 [shape = 'u8[8192]{0}', space=vmem, size = 0x2000, scoped, tag = 'input window, operand 1, single buffered']
    #allocation3 [shape = 's32[1]{0}', space=sflag, size = 0x4, scoped, tag = 'scoped memory for _lambda_.14']
    %7 = vsyncpa [#allocation3], 0
    // Predicated region
    $region2: #{_lambda_.14} parent=1 // pred_check
      _
    $region3: #{_lambda_.14} parent=1 // pred_check_branch
      %9 = sbr.rel (0) target = $region5
    $region4: #{_lambda_.14} parent=1 // pred_region
      _
    $region5: #{_lambda_.14} parent=1 // pred_fallthru
      _
    // Predicated region
    $region6: #{_lambda_.14} parent=1 // pred_check
      _
    $region7: #{_lambda_.14} parent=1 // pred_check_branch
      %11 = sbr.rel (0) target = $region9
    $region8: #{_lambda_.14} parent=1 // pred_region
      %s13 = ssub.s32 256, 256
      %14 = vsyncadd [#allocation3], %s13
      %s16 = sshll.u32 [#allocation2], 4
      %s17 = int_to_ptr.vmem [resolvable:$true] %s16
      %19 = dma.hbm_to_vmem [thread:$0]  %s1, 256, %s17, [#allocation3]
    $region9: #{_lambda_.14} parent=1 // pred_fallthru
      _
    // Predicated region
    $region10: #{_lambda_.14} parent=1 // pred_check
      _
    $region11: #{_lambda_.14} parent=1 // pred_check_branch
      %21 = sbr.rel (0) target = $region13
    $region12: #{_lambda_.14} parent=1 // pred_region
      %22 = dma.done [#allocation3], 256
    $region13: #{_lambda_.14} parent=1 // pred_fallthru
      _
    %v24 = vld [vmem:[%s0] sm:$0x1]
    %v25 = vld [vmem:[#allocation2] sm:$0xff]
    %v26 = vld [vmem:[#allocation2 + $0x8] sm:$0xff]
    %v29 = vcombine.high %v25, %v25
    %v31 = vunpack.c.l.s4 1983009808
    %v32 = vunpack.c.0.s8 %v31
    %v33 = vlaneseq
    %v34 = vshrl.u32 %v33, 7
    %v35 = vsub.s32 %v32, %v34
    %v36 = vrot.slane %v25, %v35
    %v38 = vunpack.c.l.s4 1983009808
    %v39 = vunpack.c.0.s8 %v38
    %v40 = vlaneseq
    %v41 = vshrl.u32 %v40, 7
    %v42 = vsub.s32 %v39, %v41
    %v43 = vrot.slane %v29, %v42
    %v44 = vcombine.high %v36, %v36
    %v45 = vcombine.high %v43, %v43
    %v46 = vcombine.high %v26, %v26
    %v48 = vunpack.c.l.s4 1983009808
    %v49 = vunpack.c.0.s8 %v48
    %v50 = vlaneseq
    %v51 = vshrl.u32 %v50, 7
    %v52 = vsub.s32 %v49, %v51
    %v53 = vrot.slane %v26, %v52
    %v55 = vunpack.c.l.s4 1983009808
    %v56 = vunpack.c.0.s8 %v55
    %v57 = vlaneseq
    %v58 = vshrl.u32 %v57, 7
    %v59 = vsub.s32 %v56, %v58
    %v60 = vrot.slane %v46, %v59
    %v61 = vcombine.high %v53, %v53
    %v62 = vcombine.high %v60, %v60
    %vm63 = vcmask 31744
    %v65 = vsel %vm63, %v24, 0
    %vm67 = vcmask 1041408
    %v69 = vsel %vm67, %v36, 0
    %v72 = vsel %vm67, %v44, 0
    %v75 = vsel %vm67, %v43, 0
    %v78 = vsel %vm67, %v45, 0
    %v81 = vsel %vm67, %v53, 0
    %v84 = vsel %vm67, %v61, 0
    %v87 = vsel %vm67, %v60, 0
    %v90 = vsel %vm67, %v62, 0
    %92 = vmatprep.subr.bf16.mxu0 0
    %93 = vmatpush1.bf16.msra.mxu0 0
    %94 = vmatprep.subr.bf16.mxu0 0
    %95 = vmatpush1.bf16.msra.mxu0 0
    %96 = vmatprep.subr.bf16.mxu0 0
    %97 = vmatpush1.bf16.msra.mxu0 0
    %98 = vmatprep.subr.bf16.mxu0 0
    %99 = vmatpush1.bf16.msra.mxu0 0
    %100 = vmatprep.subr.bf16.mxu0 0
    %101 = vmatpush1.bf16.msra.mxu0 0
    %102 = vmatprep.subr.bf16.mxu0 0
    %103 = vmatpush1.bf16.msra.mxu0 0
    %104 = vmatprep.subr.bf16.mxu0 0
    %105 = vmatpush1.bf16.msra.mxu0 0
    %106 = vmatprep.subr.bf16.mxu0 %v72
    %107 = vmatpush1.bf16.msra.mxu0 %v69
    %108 = vmatprep.subr.bf16.mxu0 0
    %109 = vmatpush2.bf16.msra.mxu0 0
    %110 = vmatprep.subr.bf16.mxu0 0
    %111 = vmatpush2.bf16.msra.mxu0 0
    %112 = vmatprep.subr.bf16.mxu0 0
    %113 = vmatpush2.bf16.msra.mxu0 0
    %114 = vmatprep.subr.bf16.mxu0 0
    %115 = vmatpush2.bf16.msra.mxu0 0
    %116 = vmatprep.subr.bf16.mxu0 0
    %117 = vmatpush2.bf16.msra.mxu0 0
    %118 = vmatprep.subr.bf16.mxu0 0
    %119 = vmatpush2.bf16.msra.mxu0 0
    %120 = vmatprep.subr.bf16.mxu0 0
    %121 = vmatpush2.bf16.msra.mxu0 0
    %122 = vmatprep.subr.bf16.mxu0 0
    %123 = vmatpush2.bf16.msra.mxu0 0
    %124 = vmatprep.mubr.bf16.mxu0 0
    %125 = vmatmul.mubr.bf16.gmra.mxu0 %v65
    %v126 = vpop.f32.mrf.mxu0
    %v127 = vadd.f32 0.0, %v126
    %v128 = vpop.f32.mrf.mxu0
    %v129 = vadd.f32 0.0, %v128
    %v130 = vpop.f32.mrf.mxu0
    %v131 = vpop.f32.mrf.mxu0
    %132 = vdwg.mxu0
    %133 = vmatprep.subr.bf16.mxu0 0
    %134 = vmatpush1.bf16.msra.mxu0 0
    %135 = vmatprep.subr.bf16.mxu0 0
    %136 = vmatpush1.bf16.msra.mxu0 0
    %137 = vmatprep.subr.bf16.mxu0 0
    %138 = vmatpush1.bf16.msra.mxu0 0
    %139 = vmatprep.subr.bf16.mxu0 0
    %140 = vmatpush1.bf16.msra.mxu0 0
    %141 = vmatprep.subr.bf16.mxu0 0
    %142 = vmatpush1.bf16.msra.mxu0 0
    %143 = vmatprep.subr.bf16.mxu0 0
    %144 = vmatpush1.bf16.msra.mxu0 0
    %145 = vmatprep.subr.bf16.mxu0 0
    %146 = vmatpush1.bf16.msra.mxu0 0
    %147 = vmatprep.subr.bf16.mxu0 %v78
    %148 = vmatpush1.bf16.msra.mxu0 %v75
    %149 = vmatprep.subr.bf16.mxu0 0
    %150 = vmatpush2.bf16.msra.mxu0 0
    %151 = vmatprep.subr.bf16.mxu0 0
    %152 = vmatpush2.bf16.msra.mxu0 0
    %153 = vmatprep.subr.bf16.mxu0 0
    %154 = vmatpush2.bf16.msra.mxu0 0
    %155 = vmatprep.subr.bf16.mxu0 0
    %156 = vmatpush2.bf16.msra.mxu0 0
    %157 = vmatprep.subr.bf16.mxu0 0
    %158 = vmatpush2.bf16.msra.mxu0 0
    %159 = vmatprep.subr.bf16.mxu0 0
    %160 = vmatpush2.bf16.msra.mxu0 0
    %161 = vmatprep.subr.bf16.mxu0 0
    %162 = vmatpush2.bf16.msra.mxu0 0
    %163 = vmatprep.subr.bf16.mxu0 0
    %164 = vmatpush2.bf16.msra.mxu0 0
    %165 = vmatprep.mubr.bf16.mxu0 0
    %166 = vmatmul.mubr.bf16.gmra.mxu0 %v65
    %v167 = vpop.f32.mrf.mxu0
    %v168 = vadd.f32 0.0, %v167
    %v169 = vpop.f32.mrf.mxu0
    %v170 = vadd.f32 0.0, %v169
    %v171 = vpop.f32.mrf.mxu0
    %v172 = vpop.f32.mrf.mxu0
    %173 = vdwg.mxu0
    %174 = vmatprep.subr.bf16.mxu0 0
    %175 = vmatpush1.bf16.msra.mxu0 0
    %176 = vmatprep.subr.bf16.mxu0 0
    %177 = vmatpush1.bf16.msra.mxu0 0
    %178 = vmatprep.subr.bf16.mxu0 0
    %179 = vmatpush1.bf16.msra.mxu0 0
    %180 = vmatprep.subr.bf16.mxu0 0
    %181 = vmatpush1.bf16.msra.mxu0 0
    %182 = vmatprep.subr.bf16.mxu0 0
    %183 = vmatpush1.bf16.msra.mxu0 0
    %184 = vmatprep.subr.bf16.mxu0 0
    %185 = vmatpush1.bf16.msra.mxu0 0
    %186 = vmatprep.subr.bf16.mxu0 0
    %187 = vmatpush1.bf16.msra.mxu0 0
    %188 = vmatprep.subr.bf16.mxu0 %v84
    %189 = vmatpush1.bf16.msra.mxu0 %v81
    %190 = vmatprep.subr.bf16.mxu0 0
    %191 = vmatpush2.bf16.msra.mxu0 0
    %192 = vmatprep.subr.bf16.mxu0 0
    %193 = vmatpush2.bf16.msra.mxu0 0
    %194 = vmatprep.subr.bf16.mxu0 0
    %195 = vmatpush2.bf16.msra.mxu0 0
    %196 = vmatprep.subr.bf16.mxu0 0
    %197 = vmatpush2.bf16.msra.mxu0 0
    %198 = vmatprep.subr.bf16.mxu0 0
    %199 = vmatpush2.bf16.msra.mxu0 0
    %200 = vmatprep.subr.bf16.mxu0 0
    %201 = vmatpush2.bf16.msra.mxu0 0
    %202 = vmatprep.subr.bf16.mxu0 0
    %203 = vmatpush2.bf16.msra.mxu0 0
    %204 = vmatprep.subr.bf16.mxu0 0
    %205 = vmatpush2.bf16.msra.mxu0 0
    %206 = vmatprep.mubr.bf16.mxu0 0
    %207 = vmatmul.mubr.bf16.gmra.mxu0 %v65
    %v208 = vpop.f32.mrf.mxu0
    %v209 = vadd.f32 0.0, %v208
    %v210 = vpop.f32.mrf.mxu0
    %v211 = vadd.f32 0.0, %v210
    %v212 = vpop.f32.mrf.mxu0
    %v213 = vpop.f32.mrf.mxu0
    %214 = vdwg.mxu0
    %215 = vmatprep.subr.bf16.mxu0 0
    %216 = vmatpush1.bf16.msra.mxu0 0
    %217 = vmatprep.subr.bf16.mxu0 0
    %218 = vmatpush1.bf16.msra.mxu0 0
    %219 = vmatprep.subr.bf16.mxu0 0
    %220 = vmatpush1.bf16.msra.mxu0 0
    %221 = vmatprep.subr.bf16.mxu0 0
    %222 = vmatpush1.bf16.msra.mxu0 0
    %223 = vmatprep.subr.bf16.mxu0 0
    %224 = vmatpush1.bf16.msra.mxu0 0
    %225 = vmatprep.subr.bf16.mxu0 0
    %226 = vmatpush1.bf16.msra.mxu0 0
    %227 = vmatprep.subr.bf16.mxu0 0
    %228 = vmatpush1.bf16.msra.mxu0 0
    %229 = vmatprep.subr.bf16.mxu0 %v90
    %230 = vmatpush1.bf16.msra.mxu0 %v87
    %231 = vmatprep.subr.bf16.mxu0 0
    %232 = vmatpush2.bf16.msra.mxu0 0
    %233 = vmatprep.subr.bf16.mxu0 0
    %234 = vmatpush2.bf16.msra.mxu0 0
    %235 = vmatprep.subr.bf16.mxu0 0
    %236 = vmatpush2.bf16.msra.mxu0 0
    %237 = vmatprep.subr.bf16.mxu0 0
    %238 = vmatpush2.bf16.msra.mxu0 0
    %239 = vmatprep.subr.bf16.mxu0 0
    %240 = vmatpush2.bf16.msra.mxu0 0
    %241 = vmatprep.subr.bf16.mxu0 0
    %242 = vmatpush2.bf16.msra.mxu0 0
    %243 = vmatprep.subr.bf16.mxu0 0
    %244 = vmatpush2.bf16.msra.mxu0 0
    %245 = vmatprep.subr.bf16.mxu0 0
    %246 = vmatpush2.bf16.msra.mxu0 0
    %247 = vmatprep.mubr.bf16.mxu0 0
    %248 = vmatmul.mubr.bf16.gmra.mxu0 %v65
    %v249 = vpop.f32.mrf.mxu0
    %v250 = vadd.f32 0.0, %v249
    %v251 = vpop.f32.mrf.mxu0
    %v252 = vadd.f32 0.0, %v251
    %v253 = vpop.f32.mrf.mxu0
    %v254 = vpop.f32.mrf.mxu0
    %255 = vdwg.mxu0
    %v264 = vcombine.low %v127, %v129
    %v265 = vcombine.low %v168, %v170
    %v267 = vunpack.c.l.s4 1983009808
    %v268 = vunpack.c.0.s8 %v267
    %v269 = vlaneseq
    %v270 = vshrl.u32 %v269, 7
    %v271 = vsub.s32 %v268, %v270
    %v272 = vrot.slane %v264, %v271
    %v274 = vunpack.c.l.s4 1983009808
    %v275 = vunpack.c.0.s8 %v274
    %v276 = vlaneseq
    %v277 = vshrl.u32 %v276, 7
    %v278 = vsub.s32 %v275, %v277
    %v279 = vrot.slane %v265, %v278
    %v280 = vcombine.low %v272, %v279
    %v281 = vcombine.low %v209, %v211
    %v282 = vcombine.low %v250, %v252
    %v284 = vunpack.c.l.s4 1983009808
    %v285 = vunpack.c.0.s8 %v284
    %v286 = vlaneseq
    %v287 = vshrl.u32 %v286, 7
    %v288 = vsub.s32 %v285, %v287
    %v289 = vrot.slane %v281, %v288
    %v291 = vunpack.c.l.s4 1983009808
    %v292 = vunpack.c.0.s8 %v291
    %v293 = vlaneseq
    %v294 = vshrl.u32 %v293, 7
    %v295 = vsub.s32 %v292, %v294
    %v296 = vrot.slane %v282, %v295
    %v297 = vcombine.low %v289, %v296
    %300 = vst [vmem:[%s2] sm:$0xff] %v280
    %301 = vst [vmem:[%s2 + $0x8] sm:$0xff] %v297
    // Predicated region
    $region14: #{_lambda_.14} parent=1 // pred_check
      _
    $region15: #{_lambda_.14} parent=1 // pred_check_branch
      %303 = sbr.rel (0) target = $region17
    $region16: #{_lambda_.14} parent=1 // pred_region
      _
    $region17: #{_lambda_.14} parent=1 // pred_fallthru
      _
    // Predicated region
    $region18: #{_lambda_.14} parent=1 // pred_check
      _
    $region19: #{_lambda_.14} parent=1 // pred_check_branch
      %305 = sbr.rel (0) target = $region21
    $region20: #{_lambda_.14} parent=1 // pred_region
      _
    $region21: #{_lambda_.14} parent=1 // pred_fallthru
      _
    %306 = vsyncpa [#allocation3], 1

// kernel: _lambda_.16
$region0: #{_lambda_.16}
  #allocation0 [shape = 'u32[]', space=smem, size = 0x4, offset = 0x4, fixed_abs, tag = 'smem constant byte address 0x4 - core index']
  #allocation1 [shape = 'u32[144,128]{1,0:T(1,128)}', space=vmem, size = 0x12000, scoped, tag = 'internal scratch']
  %s0 = inlined_call_operand.vmem [shape: f32[32,64], index: 0, kind: input, shape index: {}]
  %s1 = inlined_call_operand.vmem [shape: f32[1,64], index: 1, kind: input, shape index: {}]
  %s2 = inlined_call_operand.vmem [shape: f32[1,64], index: 2, kind: input, shape index: {}]
  %s3 = inlined_call_operand.hbm [shape: f32[1,64], index: 3, kind: input, shape index: {}]
  %s4 = inlined_call_operand.vmem [shape: f32[1,64], index: 4, kind: input, shape index: {}]
  %s5 = inlined_call_operand.vmem [shape: f32[32,64], index: 5, kind: output, shape index: {}]
  %s6 = sld [smem:[#allocation0]]
  $region34: #{_lambda_.16} parent=0
    _
  %s8 = ssub.s32 1, %s6
  %s9 = scalar_select 0, %s8, %s6
  $region1: #{_lambda_.16} parent=0
    #allocation2 [shape = 'u8[512]{0}', space=vmem, size = 0x400, scoped, tag = 'input window, operand 3, single buffered']
    #allocation3 [shape = 's32[1]{0}', space=sflag, size = 0x4, scoped, tag = 'scoped memory for _lambda_.16']
    %10 = vsyncpa [#allocation3], 0
    // Predicated region
    $region2: #{_lambda_.16} parent=1 // pred_check
      _
    $region3: #{_lambda_.16} parent=1 // pred_check_branch
      %12 = sbr.rel (0) target = $region5
    $region4: #{_lambda_.16} parent=1 // pred_region
      _
    $region5: #{_lambda_.16} parent=1 // pred_fallthru
      _
    // Predicated region
    $region6: #{_lambda_.16} parent=1 // pred_check
      _
    $region7: #{_lambda_.16} parent=1 // pred_check_branch
      %14 = sbr.rel (0) target = $region9
    $region8: #{_lambda_.16} parent=1 // pred_region
      _
    $region9: #{_lambda_.16} parent=1 // pred_fallthru
      _
    // Predicated region
    $region10: #{_lambda_.16} parent=1 // pred_check
      _
    $region11: #{_lambda_.16} parent=1 // pred_check_branch
      %16 = sbr.rel (0) target = $region13
    $region12: #{_lambda_.16} parent=1 // pred_region
      _
    $region13: #{_lambda_.16} parent=1 // pred_fallthru
      _
    // Predicated region
    $region14: #{_lambda_.16} parent=1 // pred_check
      _
    $region15: #{_lambda_.16} parent=1 // pred_check_branch
      %18 = sbr.rel (0) target = $region17
    $region16: #{_lambda_.16} parent=1 // pred_region
      %s20 = ssub.s32 16, 16
      %21 = vsyncadd [#allocation3], %s20
      %s23 = sshll.u32 [#allocation2], 4
      %s24 = int_to_ptr.vmem [resolvable:$true] %s23
      %26 = dma.hbm_to_vmem [thread:$0]  %s3, 16, %s24, [#allocation3]
    $region17: #{_lambda_.16} parent=1 // pred_fallthru
      _
    // Predicated region
    $region18: #{_lambda_.16} parent=1 // pred_check
      _
    $region19: #{_lambda_.16} parent=1 // pred_check_branch
      %28 = sbr.rel (0) target = $region21
    $region20: #{_lambda_.16} parent=1 // pred_region
      _
    $region21: #{_lambda_.16} parent=1 // pred_fallthru
      _
    // Predicated region
    $region22: #{_lambda_.16} parent=1 // pred_check
      _
    $region23: #{_lambda_.16} parent=1 // pred_check_branch
      %30 = sbr.rel (0) target = $region25
    $region24: #{_lambda_.16} parent=1 // pred_region
      %31 = dma.done [#allocation3], 16
    $region25: #{_lambda_.16} parent=1 // pred_fallthru
      _
    %v32 = vld [vmem:[%s1] sm:$0x1]
    %v33 = vmul.f32 %v32, 0.03125
    %v34 = vld [vmem:[%s2] sm:$0x1]
    %v35 = vmul.f32 %v34, 0.03125
    %v36 = vmul.f32 %v33, %v33
    %v37 = vsub.f32 %v35, %v36
    %v38 = vld [vmem:[#allocation2] sm:$0x1]
    %v39 = vadd.f32 %v37, 1e-05
    %v40 = vrsqrt.pop %v39
    %v41 = vmul.f32 %v38, %v40
    %v42 = vld [vmem:[%s4] sm:$0x1]
    %v43 = vmul.f32 %v33, %v41
    %v44 = vsub.f32 %v42, %v43
    %v45 = vld [vmem:[%s0] sm:$0xff]
    %v46 = vld [vmem:[%s0 + $0x8] sm:$0xff]
    %v47 = vld [vmem:[%s0 + $0x10] sm:$0xff]
    %v48 = vld [vmem:[%s0 + $0x18] sm:$0xff]
    %v50 = vlaneseq
    %v51 = vshrl.u32 %v50, 7
    %v52 = vsub.s32 0, %v51
    %v53 = vrot.slane %v41, %v52
    %v55 = vmul.f32 %v45, %v53
    %v56 = vmul.f32 %v46, %v53
    %v57 = vmul.f32 %v47, %v53
    %v58 = vmul.f32 %v48, %v53
    %v60 = vlaneseq
    %v61 = vshrl.u32 %v60, 7
    %v62 = vsub.s32 0, %v61
    %v63 = vrot.slane %v44, %v62
    %v65 = vadd.f32 %v55, %v63
    %v66 = vadd.f32 %v56, %v63
    %v67 = vadd.f32 %v57, %v63
    %v68 = vadd.f32 %v58, %v63
    %v69 = vmax.f32 %v65, 0.0
    %v70 = vmax.f32 %v66, 0.0
    %v71 = vmax.f32 %v67, 0.0
    %v72 = vmax.f32 %v68, 0.0
    %vm73 = vcmask 523264
    %74 = vst.msk [vmem:[%s5] sm:$0xff] %vm73, %v69
    %75 = vst.msk [vmem:[%s5 + $0x8] sm:$0xff] %vm73, %v70
    %76 = vst.msk [vmem:[%s5 + $0x10] sm:$0xff] %vm73, %v71
    %77 = vst.msk [vmem:[%s5 + $0x18] sm:$0xff] %vm73, %v72
    // Predicated region
    $region26: #{_lambda_.16} parent=1 // pred_check
      _
    $region27: #{_lambda_.16} parent=1 // pred_check_branch
      %79 = sbr.rel (0) target = $region29
    $region28: #{_lambda_.16} parent=1 // pred_region
      _
    $region29: #{_lambda_.16} parent=1 // pred_fallthru
      _
    // Predicated region
    $region30: #{_lambda_.16} parent=1 // pred_check
      _
    $region31: #{_lambda_.16} parent=1 // pred_check_branch
      %81 = sbr.rel (0) target = $region33
    $region32: #{_lambda_.16} parent=1 // pred_region
      _
    $region33: #{_lambda_.16} parent=1 // pred_fallthru
      _
    %82 = vsyncpa [#allocation3], 1

// kernel: _lambda_.17
$region0: #{_lambda_.17}
  #allocation0 [shape = 'u32[]', space=smem, size = 0x4, offset = 0x4, fixed_abs, tag = 'smem constant byte address 0x4 - core index']
  #allocation1 [shape = 'u32[144,128]{1,0:T(1,128)}', space=vmem, size = 0x12000, scoped, tag = 'internal scratch']
  %s0 = inlined_call_operand.vmem [shape: bf16[32,64], index: 0, kind: input, shape index: {}]
  %s1 = inlined_call_operand.hbm [shape: bf16[64,512], index: 1, kind: input, shape index: {}]
  %s2 = inlined_call_operand.vmem [shape: f32[32,512], index: 2, kind: output, shape index: {}]
  %s3 = sld [smem:[#allocation0]]
  $region22: #{_lambda_.17} parent=0
    _
  %s5 = ssub.s32 1, %s3
  %s6 = scalar_select 0, %s5, %s3
  $region1: #{_lambda_.17} parent=0
    #allocation2 [shape = 'u8[65536]{0}', space=vmem, size = 0x10000, scoped, tag = 'input window, operand 1, single buffered']
    #allocation3 [shape = 's32[1]{0}', space=sflag, size = 0x4, scoped, tag = 'scoped memory for _lambda_.17']
    %7 = vsyncpa [#allocation3], 0
    // Predicated region
    $region2: #{_lambda_.17} parent=1 // pred_check
      _
    $region3: #{_lambda_.17} parent=1 // pred_check_branch
      %9 = sbr.rel (0) target = $region5
    $region4: #{_lambda_.17} parent=1 // pred_region
      _
    $region5: #{_lambda_.17} parent=1 // pred_fallthru
      _
    // Predicated region
    $region6: #{_lambda_.17} parent=1 // pred_check
      _
    $region7: #{_lambda_.17} parent=1 // pred_check_branch
      %11 = sbr.rel (0) target = $region9
    $region8: #{_lambda_.17} parent=1 // pred_region
      %s13 = ssub.s32 2048, 2048
      %14 = vsyncadd [#allocation3], %s13
      %s15 = sshll.u32 [#allocation2], 4
      %s16 = int_to_ptr.vmem [resolvable:$true] %s15
      %21 = dma.hbm_to_vmem [thread:$0]  %s1, 2048, %s16, [#allocation3], 256, 256, 16
    $region9: #{_lambda_.17} parent=1 // pred_fallthru
      _
    // Predicated region
    $region10: #{_lambda_.17} parent=1 // pred_check
      _
    $region11: #{_lambda_.17} parent=1 // pred_check_branch
      %23 = sbr.rel (0) target = $region13
    $region12: #{_lambda_.17} parent=1 // pred_region
      %24 = dma.done [#allocation3], 2048
    $region13: #{_lambda_.17} parent=1 // pred_fallthru
      _
    %v26 = vld [vmem:[%s0] sm:$0xf]
    %v27 = vld [vmem:[%s0 + $0x4] sm:$0xf]
    %v28 = vld [vmem:[%s0 + $0x8] sm:$0xf]
    %v29 = vld [vmem:[%s0 + $0xc] sm:$0xf]
    %v30 = vld [vmem:[#allocation2] sm:$0xff]
    %v31 = vld [vmem:[#allocation2 + $0x8] sm:$0xff]
    %v32 = vld [vmem:[#allocation2 + $0x10] sm:$0xff]
    %v33 = vld [vmem:[#allocation2 + $0x18] sm:$0xff]
    %v34 = vld [vmem:[#allocation2 + $0x20] sm:$0xff]
    %v35 = vld [vmem:[#allocation2 + $0x28] sm:$0xff]
    %v36 = vld [vmem:[#allocation2 + $0x30] sm:$0xff]
    %v37 = vld [vmem:[#allocation2 + $0x38] sm:$0xff]
    %v38 = vld [vmem:[#allocation2 + $0x40] sm:$0xff]
    %v39 = vld [vmem:[#allocation2 + $0x48] sm:$0xff]
    %v40 = vld [vmem:[#allocation2 + $0x50] sm:$0xff]
    %v41 = vld [vmem:[#allocation2 + $0x58] sm:$0xff]
    %v42 = vld [vmem:[#allocation2 + $0x60] sm:$0xff]
    %v43 = vld [vmem:[#allocation2 + $0x68] sm:$0xff]
    %v44 = vld [vmem:[#allocation2 + $0x70] sm:$0xff]
    %v45 = vld [vmem:[#allocation2 + $0x78] sm:$0xff]
    %v50 = vunpack.c.l.b16 %v26
    %v51 = vunpack.c.l.b16 %v27
    %v52 = vunpack.c.l.b16 %v28
    %v53 = vunpack.c.l.b16 %v29
    %v54 = vpack.c.b16 %v51, %v50
    %v55 = vpack.c.b16 %v53, %v52
    %v72 = vunpack.c.l.b16 %v30
    %v73 = vunpack.c.h.b16 %v30
    %v74 = vunpack.c.l.b16 %v31
    %v75 = vunpack.c.h.b16 %v31
    %v76 = vunpack.c.l.b16 %v32
    %v77 = vunpack.c.h.b16 %v32
    %v78 = vunpack.c.l.b16 %v33
    %v79 = vunpack.c.h.b16 %v33
    %v80 = vunpack.c.l.b16 %v34
    %v81 = vunpack.c.h.b16 %v34
    %v82 = vunpack.c.l.b16 %v35
    %v83 = vunpack.c.h.b16 %v35
    %v84 = vunpack.c.l.b16 %v36
    %v85 = vunpack.c.h.b16 %v36
    %v86 = vunpack.c.l.b16 %v37
    %v87 = vunpack.c.h.b16 %v37
    %v88 = vunpack.c.l.b16 %v38
    %v89 = vunpack.c.h.b16 %v38
    %v90 = vunpack.c.l.b16 %v39
    %v91 = vunpack.c.h.b16 %v39
    %v92 = vunpack.c.l.b16 %v40
    %v93 = vunpack.c.h.b16 %v40
    %v94 = vunpack.c.l.b16 %v41
    %v95 = vunpack.c.h.b16 %v41
    %v96 = vunpack.c.l.b16 %v42
    %v97 = vunpack.c.h.b16 %v42
    %v98 = vunpack.c.l.b16 %v43
    %v99 = vunpack.c.h.b16 %v43
    %v100 = vunpack.c.l.b16 %v44
    %v101 = vunpack.c.h.b16 %v44
    %v102 = vunpack.c.l.b16 %v45
    %v103 = vunpack.c.h.b16 %v45
    %v104 = vpack.c.b16 %v76, %v72
    %v105 = vpack.c.b16 %v77, %v73
    %v106 = vpack.c.b16 %v78, %v74
    %v107 = vpack.c.b16 %v79, %v75
    %v108 = vpack.c.b16 %v84, %v80
    %v109 = vpack.c.b16 %v85, %v81
    %v110 = vpack.c.b16 %v86, %v82
    %v111 = vpack.c.b16 %v87, %v83
    %v112 = vpack.c.b16 %v92, %v88
    %v113 = vpack.c.b16 %v93, %v89
    %v114 = vpack.c.b16 %v94, %v90
    %v115 = vpack.c.b16 %v95, %v91
    %v116 = vpack.c.b16 %v100, %v96
    %v117 = vpack.c.b16 %v101, %v97
    %v118 = vpack.c.b16 %v102, %v98
    %v119 = vpack.c.b16 %v103, %v99
    %vm136 = vcmask 523264
    %v138 = vsel %vm136, %v54, 0
    %v141 = vsel %vm136, %v55, 0
    %143 = vmatprep.subr.bf16.mxu0 0
    %144 = vmatpush1.bf16.msra.mxu0 0
    %145 = vmatprep.subr.bf16.mxu0 0
    %146 = vmatpush1.bf16.msra.mxu0 0
    %147 = vmatprep.subr.bf16.mxu0 0
    %148 = vmatpush1.bf16.msra.mxu0 0
    %149 = vmatprep.subr.bf16.mxu0 0
    %150 = vmatpush1.bf16.msra.mxu0 0
    %151 = vmatprep.subr.bf16.mxu0 %v117
    %152 = vmatpush1.bf16.msra.mxu0 %v116
    %153 = vmatprep.subr.bf16.mxu0 %v113
    %154 = vmatpush1.bf16.msra.mxu0 %v112
    %155 = vmatprep.subr.bf16.mxu0 %v109
    %156 = vmatpush1.bf16.msra.mxu0 %v108
    %157 = vmatprep.subr.bf16.mxu0 %v105
    %158 = vmatpush1.bf16.msra.mxu0 %v104
    %159 = vmatprep.subr.bf16.mxu0 0
    %160 = vmatpush2.bf16.msra.mxu0 0
    %161 = vmatprep.subr.bf16.mxu0 0
    %162 = vmatpush2.bf16.msra.mxu0 0
    %163 = vmatprep.subr.bf16.mxu0 0
    %164 = vmatpush2.bf16.msra.mxu0 0
    %165 = vmatprep.subr.bf16.mxu0 0
    %166 = vmatpush2.bf16.msra.mxu0 0
    %167 = vmatprep.subr.bf16.mxu0 0
    %168 = vmatpush2.bf16.msra.mxu0 0
    %169 = vmatprep.subr.bf16.mxu0 0
    %170 = vmatpush2.bf16.msra.mxu0 0
    %171 = vmatprep.subr.bf16.mxu0 0
    %172 = vmatpush2.bf16.msra.mxu0 0
    %173 = vmatprep.subr.bf16.mxu0 0
    %174 = vmatpush2.bf16.msra.mxu0 0
    %175 = vmatprep.mubr.bf16.mxu0 0
    %176 = vmatmul.mubr.bf16.gmra.mxu0 %v138
    %v177 = vpop.f32.mrf.mxu0
    %v178 = vadd.f32 0.0, %v177
    %v179 = vpop.f32.mrf.mxu0
    %v180 = vadd.f32 0.0, %v179
    %v181 = vpop.f32.mrf.mxu0
    %v182 = vadd.f32 0.0, %v181
    %v183 = vpop.f32.mrf.mxu0
    %v184 = vadd.f32 0.0, %v183
    %185 = vmatprep.mubr.bf16.mxu0 0
    %186 = vmatmul.mubr.bf16.gmra.mxu0 %v141
    %v187 = vpop.f32.mrf.mxu0
    %v188 = vadd.f32 0.0, %v187
    %v189 = vpop.f32.mrf.mxu0
    %v190 = vadd.f32 0.0, %v189
    %v191 = vpop.f32.mrf.mxu0
    %v192 = vadd.f32 0.0, %v191
    %v193 = vpop.f32.mrf.mxu0
    %v194 = vadd.f32 0.0, %v193
    %195 = vdwg.mxu0
    %196 = vmatprep.subr.bf16.mxu0 0
    %197 = vmatpush1.bf16.msra.mxu0 0
    %198 = vmatprep.subr.bf16.mxu0 0
    %199 = vmatpush1.bf16.msra.mxu0 0
    %200 = vmatprep.subr.bf16.mxu0 0
    %201 = vmatpush1.bf16.msra.mxu0 0
    %202 = vmatprep.subr.bf16.mxu0 0
    %203 = vmatpush1.bf16.msra.mxu0 0
    %204 = vmatprep.subr.bf16.mxu0 %v119
    %205 = vmatpush1.bf16.msra.mxu0 %v118
    %206 = vmatprep.subr.bf16.mxu0 %v115
    %207 = vmatpush1.bf16.msra.mxu0 %v114
    %208 = vmatprep.subr.bf16.mxu0 %v111
    %209 = vmatpush1.bf16.msra.mxu0 %v110
    %210 = vmatprep.subr.bf16.mxu0 %v107
    %211 = vmatpush1.bf16.msra.mxu0 %v106
    %212 = vmatprep.subr.bf16.mxu0 0
    %213 = vmatpush2.bf16.msra.mxu0 0
    %214 = vmatprep.subr.bf16.mxu0 0
    %215 = vmatpush2.bf16.msra.mxu0 0
    %216 = vmatprep.subr.bf16.mxu0 0
    %217 = vmatpush2.bf16.msra.mxu0 0
    %218 = vmatprep.subr.bf16.mxu0 0
    %219 = vmatpush2.bf16.msra.mxu0 0
    %220 = vmatprep.subr.bf16.mxu0 0
    %221 = vmatpush2.bf16.msra.mxu0 0
    %222 = vmatprep.subr.bf16.mxu0 0
    %223 = vmatpush2.bf16.msra.mxu0 0
    %224 = vmatprep.subr.bf16.mxu0 0
    %225 = vmatpush2.bf16.msra.mxu0 0
    %226 = vmatprep.subr.bf16.mxu0 0
    %227 = vmatpush2.bf16.msra.mxu0 0
    %228 = vmatprep.mubr.bf16.mxu0 0
    %229 = vmatmul.mubr.bf16.gmra.mxu0 %v138
    %v230 = vpop.f32.mrf.mxu0
    %v231 = vadd.f32 0.0, %v230
    %v232 = vpop.f32.mrf.mxu0
    %v233 = vadd.f32 0.0, %v232
    %v234 = vpop.f32.mrf.mxu0
    %v235 = vadd.f32 0.0, %v234
    %v236 = vpop.f32.mrf.mxu0
    %v237 = vadd.f32 0.0, %v236
    %238 = vmatprep.mubr.bf16.mxu0 0
    %239 = vmatmul.mubr.bf16.gmra.mxu0 %v141
    %v240 = vpop.f32.mrf.mxu0
    %v241 = vadd.f32 0.0, %v240
    %v242 = vpop.f32.mrf.mxu0
    %v243 = vadd.f32 0.0, %v242
    %v244 = vpop.f32.mrf.mxu0
    %v245 = vadd.f32 0.0, %v244
    %v246 = vpop.f32.mrf.mxu0
    %v247 = vadd.f32 0.0, %v246
    %248 = vdwg.mxu0
    %249 = vst [vmem:[%s2] sm:$0xff] %v178
    %250 = vst [vmem:[%s2 + $0x8] sm:$0xff] %v180
    %251 = vst [vmem:[%s2 + $0x10] sm:$0xff] %v231
    %252 = vst [vmem:[%s2 + $0x18] sm:$0xff] %v233
    %253 = vst [vmem:[%s2 + $0x20] sm:$0xff] %v182
    %254 = vst [vmem:[%s2 + $0x28] sm:$0xff] %v184
    %255 = vst [vmem:[%s2 + $0x30] sm:$0xff] %v235
    %256 = vst [vmem:[%s2 + $0x38] sm:$0xff] %v237
    %257 = vst [vmem:[%s2 + $0x40] sm:$0xff] %v188
    %258 = vst [vmem:[%s2 + $0x48] sm:$0xff] %v190
    %259 = vst [vmem:[%s2 + $0x50] sm:$0xff] %v241
    %260 = vst [vmem:[%s2 + $0x58] sm:$0xff] %v243
    %261 = vst [vmem:[%s2 + $0x60] sm:$0xff] %v192
    %262 = vst [vmem:[%s2 + $0x68] sm:$0xff] %v194
    %263 = vst [vmem:[%s2 + $0x70] sm:$0xff] %v245
    %264 = vst [vmem:[%s2 + $0x78] sm:$0xff] %v247
    // Predicated region
    $region14: #{_lambda_.17} parent=1 // pred_check
      _
    $region15: #{_lambda_.17} parent=1 // pred_check_branch
      %266 = sbr.rel (0) target = $region17
    $region16: #{_lambda_.17} parent=1 // pred_region
      _
    $region17: #{_lambda_.17} parent=1 // pred_fallthru
      _
    // Predicated region
    $region18: #{_lambda_.17} parent=1 // pred_check
      _
    $region19: #{_lambda_.17} parent=1 // pred_check_branch
      %268 = sbr.rel (0) target = $region21
    $region20: #{_lambda_.17} parent=1 // pred_region
      _
    $region21: #{_lambda_.17} parent=1 // pred_fallthru
      _
    %269 = vsyncpa [#allocation3], 1

// kernel: _lambda_.18
$region0: #{_lambda_.18}
  #allocation0 [shape = 'u32[]', space=smem, size = 0x4, offset = 0x4, fixed_abs, tag = 'smem constant byte address 0x4 - core index']
  #allocation1 [shape = 'u32[144,128]{1,0:T(1,128)}', space=vmem, size = 0x12000, scoped, tag = 'internal scratch']
  %s0 = inlined_call_operand.vmem [shape: f32[128,32], index: 0, kind: input, shape index: {}]
  %s1 = inlined_call_operand.vmem [shape: f32[1,32], index: 1, kind: output, shape index: {0}]
  %s2 = inlined_call_operand.vmem [shape: f32[1,32], index: 2, kind: output, shape index: {1}]
  %3 = xla_tuple %s1, %s2
  %s4 = sld [smem:[#allocation0]]
  $region26: #{_lambda_.18} parent=0
    _
  %s6 = ssub.s32 1, %s4
  %s7 = scalar_select 0, %s6, %s4
  // Predicated region
  $region2: #{_lambda_.18} parent=0 // pred_check
    _
  $region3: #{_lambda_.18} parent=0 // pred_check_branch
    %9 = sbr.rel (0) target = $region5
  $region4: #{_lambda_.18} parent=0 // pred_region
    _
  $region5: #{_lambda_.18} parent=0 // pred_fallthru
    _
  %p10 = scmp.eq.s32.totalorder 0, 0
  // Predicated region
  $region6: #{_lambda_.18} parent=0 // pred_check
    %p11 = pneg %p10
  $region7: #{_lambda_.18} parent=0 // pred_check_branch
    %13 = sbr.rel (%p11) target = $region9
  $region8: #{_lambda_.18} parent=0 // pred_region
    %vm14 = vcmask 253952
    %15 = vst.msk [vmem:[%s1] sm:$0x1] %vm14, 0.0
    %16 = vst.msk [vmem:[%s2] sm:$0x1] %vm14, 0.0
  $region9: #{_lambda_.18} parent=0 // pred_fallthru
    _
  %v17 = vld [vmem:[%s0] sm:$0xff]
  %v18 = vld [vmem:[%s0 + $0x8] sm:$0xff]
  %v19 = vld [vmem:[%s0 + $0x10] sm:$0xff]
  %v20 = vld [vmem:[%s0 + $0x18] sm:$0xff]
  %v21 = vld [vmem:[%s0 + $0x20] sm:$0xff]
  %v22 = vld [vmem:[%s0 + $0x28] sm:$0xff]
  %v23 = vld [vmem:[%s0 + $0x30] sm:$0xff]
  %v24 = vld [vmem:[%s0 + $0x38] sm:$0xff]
  %v25 = vld [vmem:[%s0 + $0x40] sm:$0xff]
  %v26 = vld [vmem:[%s0 + $0x48] sm:$0xff]
  %v27 = vld [vmem:[%s0 + $0x50] sm:$0xff]
  %v28 = vld [vmem:[%s0 + $0x58] sm:$0xff]
  %v29 = vld [vmem:[%s0 + $0x60] sm:$0xff]
  %v30 = vld [vmem:[%s0 + $0x68] sm:$0xff]
  %v31 = vld [vmem:[%s0 + $0x70] sm:$0xff]
  %v32 = vld [vmem:[%s0 + $0x78] sm:$0xff]
  %v33 = vld [vmem:[%s1] sm:$0x1]
  %vm34 = vcmask 261120
  %v35 = vsel %vm34, %v17, 0.0
  %v36 = vsel %vm34, %v18, 0.0
  %v37 = vadd.f32 %v35, %v36
  %v38 = vsel %vm34, %v19, 0.0
  %v39 = vadd.f32 %v37, %v38
  %v40 = vsel %vm34, %v20, 0.0
  %v41 = vadd.f32 %v39, %v40
  %v42 = vsel %vm34, %v21, 0.0
  %v43 = vadd.f32 %v41, %v42
  %v44 = vsel %vm34, %v22, 0.0
  %v45 = vadd.f32 %v43, %v44
  %v46 = vsel %vm34, %v23, 0.0
  %v47 = vadd.f32 %v45, %v46
  %v48 = vsel %vm34, %v24, 0.0
  %v49 = vadd.f32 %v47, %v48
  %v50 = vsel %vm34, %v25, 0.0
  %v51 = vadd.f32 %v49, %v50
  %v52 = vsel %vm34, %v26, 0.0
  %v53 = vadd.f32 %v51, %v52
  %v54 = vsel %vm34, %v27, 0.0
  %v55 = vadd.f32 %v53, %v54
  %v56 = vsel %vm34, %v28, 0.0
  %v57 = vadd.f32 %v55, %v56
  %v58 = vsel %vm34, %v29, 0.0
  %v59 = vadd.f32 %v57, %v58
  %v60 = vsel %vm34, %v30, 0.0
  %v61 = vadd.f32 %v59, %v60
  %v62 = vsel %vm34, %v31, 0.0
  %v63 = vadd.f32 %v61, %v62
  %v64 = vsel %vm34, %v32, 0.0
  %v65 = vadd.f32 %v63, %v64
  %v66 = vrot.slane %v65, 4
  %v67 = vadd.f32 %v65, %v66
  %v68 = vrot.slane %v67, 2
  %v69 = vadd.f32 %v67, %v68
  %v70 = vrot.slane %v69, 1
  %v71 = vadd.f32 %v69, %v70
  %v72 = vadd.f32 %v33, %v71
  %vm73 = vcmask 253952
  %74 = vst.msk [vmem:[%s1] sm:$0x1] %vm73, %v72
  %v75 = vld [vmem:[%s2] sm:$0x1]
  %v76 = vmul.f32 %v17, %v17
  %v77 = vmul.f32 %v18, %v18
  %v78 = vmul.f32 %v19, %v19
  %v79 = vmul.f32 %v20, %v20
  %v80 = vmul.f32 %v21, %v21
  %v81 = vmul.f32 %v22, %v22
  %v82 = vmul.f32 %v23, %v23
  %v83 = vmul.f32 %v24, %v24
  %v84 = vmul.f32 %v25, %v25
  %v85 = vmul.f32 %v26, %v26
  %v86 = vmul.f32 %v27, %v27
  %v87 = vmul.f32 %v28, %v28
  %v88 = vmul.f32 %v29, %v29
  %v89 = vmul.f32 %v30, %v30
  %v90 = vmul.f32 %v31, %v31
  %v91 = vmul.f32 %v32, %v32
  %v92 = vsel %vm34, %v76, 0.0
  %v93 = vsel %vm34, %v77, 0.0
  %v94 = vadd.f32 %v92, %v93
  %v95 = vsel %vm34, %v78, 0.0
  %v96 = vadd.f32 %v94, %v95
  %v97 = vsel %vm34, %v79, 0.0
  %v98 = vadd.f32 %v96, %v97
  %v99 = vsel %vm34, %v80, 0.0
  %v100 = vadd.f32 %v98, %v99
  %v101 = vsel %vm34, %v81, 0.0
  %v102 = vadd.f32 %v100, %v101
  %v103 = vsel %vm34, %v82, 0.0
  %v104 = vadd.f32 %v102, %v103
  %v105 = vsel %vm34, %v83, 0.0
  %v106 = vadd.f32 %v104, %v105
  %v107 = vsel %vm34, %v84, 0.0
  %v108 = vadd.f32 %v106, %v107
  %v109 = vsel %vm34, %v85, 0.0
  %v110 = vadd.f32 %v108, %v109
  %v111 = vsel %vm34, %v86, 0.0
  %v112 = vadd.f32 %v110, %v111
  %v113 = vsel %vm34, %v87, 0.0
  %v114 = vadd.f32 %v112, %v113
  %v115 = vsel %vm34, %v88, 0.0
  %v116 = vadd.f32 %v114, %v115
  %v117 = vsel %vm34, %v89, 0.0
  %v118 = vadd.f32 %v116, %v117
  %v119 = vsel %vm34, %v90, 0.0
  %v120 = vadd.f32 %v118, %v119
  %v121 = vsel %vm34, %v91, 0.0
  %v122 = vadd.f32 %v120, %v121
  %v123 = vrot.slane %v122, 4
  %v124 = vadd.f32 %v122, %v123
  %v125 = vrot.slane %v124, 2
  %v126 = vadd.f32 %v124, %v125
  %v127 = vrot.slane %v126, 1
  %v128 = vadd.f32 %v126, %v127
  %v129 = vadd.f32 %v75, %v128
  %130 = vst.msk [vmem:[%s2] sm:$0x1] %vm73, %v129
  // Predicated region
  $region10: #{_lambda_.18} parent=0 // pred_check
    _
  $region11: #{_lambda_.18} parent=0 // pred_check_branch
    %132 = sbr.rel (0) target = $region13
  $region12: #{_lambda_.18} parent=0 // pred_region
    _
  $region13: #{_lambda_.18} parent=0 // pred_fallthru
    _
  // Predicated region
  $region14: #{_lambda_.18} parent=0 // pred_check
    _
  $region15: #{_lambda_.18} parent=0 // pred_check_branch
    %134 = sbr.rel (0) target = $region17
  $region16: #{_lambda_.18} parent=0 // pred_region
    _
  $region17: #{_lambda_.18} parent=0 // pred_fallthru
    _
  // Predicated region
  $region18: #{_lambda_.18} parent=0 // pred_check
    _
  $region19: #{_lambda_.18} parent=0 // pred_check_branch
    %136 = sbr.rel (0) target = $region21
  $region20: #{_lambda_.18} parent=0 // pred_region
    _
  $region21: #{_lambda_.18} parent=0 // pred_fallthru
    _
  // Predicated region
  $region22: #{_lambda_.18} parent=0 // pred_check
    _
  $region23: #{_lambda_.18} parent=0 // pred_check_branch
    %138 = sbr.rel (0) target = $region25
  $region24: #{_lambda_.18} parent=0 // pred_region
    _
  $region25: #{_lambda_.18} parent=0 // pred_fallthru
    _

// kernel: _lambda_.20
$region0: #{_lambda_.20}
  #allocation0 [shape = 'u32[]', space=smem, size = 0x4, offset = 0x4, fixed_abs, tag = 'smem constant byte address 0x4 - core index']
  #allocation1 [shape = 'u32[144,128]{1,0:T(1,128)}', space=vmem, size = 0x12000, scoped, tag = 'internal scratch']
  %s0 = inlined_call_operand.vmem [shape: bf16[128,32], index: 0, kind: input, shape index: {}]
  %s1 = inlined_call_operand.vmem [shape: bf16[32,256], index: 1, kind: input, shape index: {}]
  %s2 = inlined_call_operand.vmem [shape: f32[128,256], index: 2, kind: output, shape index: {}]
  %s3 = sld [smem:[#allocation0]]
  $region18: #{_lambda_.20} parent=0
    _
  %s5 = ssub.s32 1, %s3
  %s6 = scalar_select 0, %s5, %s3
  // Predicated region
  $region2: #{_lambda_.20} parent=0 // pred_check
    _
  $region3: #{_lambda_.20} parent=0 // pred_check_branch
    %8 = sbr.rel (0) target = $region5
  $region4: #{_lambda_.20} parent=0 // pred_region
    _
  $region5: #{_lambda_.20} parent=0 // pred_fallthru
    _
  // Predicated region
  $region6: #{_lambda_.20} parent=0 // pred_check
    _
  $region7: #{_lambda_.20} parent=0 // pred_check_branch
    %10 = sbr.rel (0) target = $region9
  $region8: #{_lambda_.20} parent=0 // pred_region
    _
  $region9: #{_lambda_.20} parent=0 // pred_fallthru
    _
  %v12 = vld [vmem:[%s0] sm:$0xf]
  %v13 = vld [vmem:[%s0 + $0x4] sm:$0xf]
  %v14 = vld [vmem:[%s0 + $0x8] sm:$0xf]
  %v15 = vld [vmem:[%s0 + $0xc] sm:$0xf]
  %v16 = vld [vmem:[%s0 + $0x10] sm:$0xf]
  %v17 = vld [vmem:[%s0 + $0x14] sm:$0xf]
  %v18 = vld [vmem:[%s0 + $0x18] sm:$0xf]
  %v19 = vld [vmem:[%s0 + $0x1c] sm:$0xf]
  %v20 = vld [vmem:[%s0 + $0x20] sm:$0xf]
  %v21 = vld [vmem:[%s0 + $0x24] sm:$0xf]
  %v22 = vld [vmem:[%s0 + $0x28] sm:$0xf]
  %v23 = vld [vmem:[%s0 + $0x2c] sm:$0xf]
  %v24 = vld [vmem:[%s0 + $0x30] sm:$0xf]
  %v25 = vld [vmem:[%s0 + $0x34] sm:$0xf]
  %v26 = vld [vmem:[%s0 + $0x38] sm:$0xf]
  %v27 = vld [vmem:[%s0 + $0x3c] sm:$0xf]
  %v28 = vld [vmem:[%s1] sm:$0xff]
  %v29 = vld [vmem:[%s1 + $0x8] sm:$0xff]
  %v30 = vld [vmem:[%s1 + $0x10] sm:$0xff]
  %v31 = vld [vmem:[%s1 + $0x18] sm:$0xff]
  %v48 = vunpack.c.l.b16 %v12
  %v49 = vunpack.c.l.b16 %v13
  %v50 = vunpack.c.l.b16 %v14
  %v51 = vunpack.c.l.b16 %v15
  %v52 = vunpack.c.l.b16 %v16
  %v53 = vunpack.c.l.b16 %v17
  %v54 = vunpack.c.l.b16 %v18
  %v55 = vunpack.c.l.b16 %v19
  %v56 = vunpack.c.l.b16 %v20
  %v57 = vunpack.c.l.b16 %v21
  %v58 = vunpack.c.l.b16 %v22
  %v59 = vunpack.c.l.b16 %v23
  %v60 = vunpack.c.l.b16 %v24
  %v61 = vunpack.c.l.b16 %v25
  %v62 = vunpack.c.l.b16 %v26
  %v63 = vunpack.c.l.b16 %v27
  %v64 = vpack.c.b16 %v49, %v48
  %v65 = vpack.c.b16 %v51, %v50
  %v66 = vpack.c.b16 %v53, %v52
  %v67 = vpack.c.b16 %v55, %v54
  %v68 = vpack.c.b16 %v57, %v56
  %v69 = vpack.c.b16 %v59, %v58
  %v70 = vpack.c.b16 %v61, %v60
  %v71 = vpack.c.b16 %v63, %v62
  %v76 = vunpack.c.l.b16 %v28
  %v77 = vunpack.c.h.b16 %v28
  %v78 = vunpack.c.l.b16 %v29
  %v79 = vunpack.c.h.b16 %v29
  %v80 = vunpack.c.l.b16 %v30
  %v81 = vunpack.c.h.b16 %v30
  %v82 = vunpack.c.l.b16 %v31
  %v83 = vunpack.c.h.b16 %v31
  %v84 = vpack.c.b16 %v78, %v76
  %v85 = vpack.c.b16 %v79, %v77
  %v86 = vpack.c.b16 %v82, %v80
  %v87 = vpack.c.b16 %v83, %v81
  %vm92 = vcmask 261120
  %v94 = vsel %vm92, %v64, 0
  %v97 = vsel %vm92, %v65, 0
  %v100 = vsel %vm92, %v66, 0
  %v103 = vsel %vm92, %v67, 0
  %v106 = vsel %vm92, %v68, 0
  %v109 = vsel %vm92, %v69, 0
  %v112 = vsel %vm92, %v70, 0
  %v115 = vsel %vm92, %v71, 0
  %117 = vmatprep.subr.bf16.mxu0 0
  %118 = vmatpush1.bf16.msra.mxu0 0
  %119 = vmatprep.subr.bf16.mxu0 0
  %120 = vmatpush1.bf16.msra.mxu0 0
  %121 = vmatprep.subr.bf16.mxu0 0
  %122 = vmatpush1.bf16.msra.mxu0 0
  %123 = vmatprep.subr.bf16.mxu0 0
  %124 = vmatpush1.bf16.msra.mxu0 0
  %125 = vmatprep.subr.bf16.mxu0 0
  %126 = vmatpush1.bf16.msra.mxu0 0
  %127 = vmatprep.subr.bf16.mxu0 0
  %128 = vmatpush1.bf16.msra.mxu0 0
  %129 = vmatprep.subr.bf16.mxu0 %v87
  %130 = vmatpush1.bf16.msra.mxu0 %v86
  %131 = vmatprep.subr.bf16.mxu0 %v85
  %132 = vmatpush1.bf16.msra.mxu0 %v84
  %133 = vmatprep.subr.bf16.mxu0 0
  %134 = vmatpush2.bf16.msra.mxu0 0
  %135 = vmatprep.subr.bf16.mxu0 0
  %136 = vmatpush2.bf16.msra.mxu0 0
  %137 = vmatprep.subr.bf16.mxu0 0
  %138 = vmatpush2.bf16.msra.mxu0 0
  %139 = vmatprep.subr.bf16.mxu0 0
  %140 = vmatpush2.bf16.msra.mxu0 0
  %141 = vmatprep.subr.bf16.mxu0 0
  %142 = vmatpush2.bf16.msra.mxu0 0
  %143 = vmatprep.subr.bf16.mxu0 0
  %144 = vmatpush2.bf16.msra.mxu0 0
  %145 = vmatprep.subr.bf16.mxu0 0
  %146 = vmatpush2.bf16.msra.mxu0 0
  %147 = vmatprep.subr.bf16.mxu0 0
  %148 = vmatpush2.bf16.msra.mxu0 0
  %149 = vmatprep.mubr.bf16.mxu0 0
  %150 = vmatmul.mubr.bf16.gmra.mxu0 %v94
  %v151 = vpop.f32.mrf.mxu0
  %v152 = vadd.f32 0.0, %v151
  %v153 = vpop.f32.mrf.mxu0
  %v154 = vadd.f32 0.0, %v153
  %v155 = vpop.f32.mrf.mxu0
  %v156 = vadd.f32 0.0, %v155
  %v157 = vpop.f32.mrf.mxu0
  %v158 = vadd.f32 0.0, %v157
  %159 = vmatprep.mubr.bf16.mxu0 0
  %160 = vmatmul.mubr.bf16.gmra.mxu0 %v97
  %v161 = vpop.f32.mrf.mxu0
  %v162 = vadd.f32 0.0, %v161
  %v163 = vpop.f32.mrf.mxu0
  %v164 = vadd.f32 0.0, %v163
  %v165 = vpop.f32.mrf.mxu0
  %v166 = vadd.f32 0.0, %v165
  %v167 = vpop.f32.mrf.mxu0
  %v168 = vadd.f32 0.0, %v167
  %169 = vmatprep.mubr.bf16.mxu0 0
  %170 = vmatmul.mubr.bf16.gmra.mxu0 %v100
  %v171 = vpop.f32.mrf.mxu0
  %v172 = vadd.f32 0.0, %v171
  %v173 = vpop.f32.mrf.mxu0
  %v174 = vadd.f32 0.0, %v173
  %v175 = vpop.f32.mrf.mxu0
  %v176 = vadd.f32 0.0, %v175
  %v177 = vpop.f32.mrf.mxu0
  %v178 = vadd.f32 0.0, %v177
  %179 = vmatprep.mubr.bf16.mxu0 0
  %180 = vmatmul.mubr.bf16.gmra.mxu0 %v103
  %v181 = vpop.f32.mrf.mxu0
  %v182 = vadd.f32 0.0, %v181
  %v183 = vpop.f32.mrf.mxu0
  %v184 = vadd.f32 0.0, %v183
  %v185 = vpop.f32.mrf.mxu0
  %v186 = vadd.f32 0.0, %v185
  %v187 = vpop.f32.mrf.mxu0
  %v188 = vadd.f32 0.0, %v187
  %189 = vmatprep.mubr.bf16.mxu0 0
  %190 = vmatmul.mubr.bf16.gmra.mxu0 %v106
  %v191 = vpop.f32.mrf.mxu0
  %v192 = vadd.f32 0.0, %v191
  %v193 = vpop.f32.mrf.mxu0
  %v194 = vadd.f32 0.0, %v193
  %v195 = vpop.f32.mrf.mxu0
  %v196 = vadd.f32 0.0, %v195
  %v197 = vpop.f32.mrf.mxu0
  %v198 = vadd.f32 0.0, %v197
  %199 = vmatprep.mubr.bf16.mxu0 0
  %200 = vmatmul.mubr.bf16.gmra.mxu0 %v109
  %v201 = vpop.f32.mrf.mxu0
  %v202 = vadd.f32 0.0, %v201
  %v203 = vpop.f32.mrf.mxu0
  %v204 = vadd.f32 0.0, %v203
  %v205 = vpop.f32.mrf.mxu0
  %v206 = vadd.f32 0.0, %v205
  %v207 = vpop.f32.mrf.mxu0
  %v208 = vadd.f32 0.0, %v207
  %209 = vmatprep.mubr.bf16.mxu0 0
  %210 = vmatmul.mubr.bf16.gmra.mxu0 %v112
  %v211 = vpop.f32.mrf.mxu0
  %v212 = vadd.f32 0.0, %v211
  %v213 = vpop.f32.mrf.mxu0
  %v214 = vadd.f32 0.0, %v213
  %v215 = vpop.f32.mrf.mxu0
  %v216 = vadd.f32 0.0, %v215
  %v217 = vpop.f32.mrf.mxu0
  %v218 = vadd.f32 0.0, %v217
  %219 = vmatprep.mubr.bf16.mxu0 0
  %220 = vmatmul.mubr.bf16.gmra.mxu0 %v115
  %v221 = vpop.f32.mrf.mxu0
  %v222 = vadd.f32 0.0, %v221
  %v223 = vpop.f32.mrf.mxu0
  %v224 = vadd.f32 0.0, %v223
  %v225 = vpop.f32.mrf.mxu0
  %v226 = vadd.f32 0.0, %v225
  %v227 = vpop.f32.mrf.mxu0
  %v228 = vadd.f32 0.0, %v227
  %229 = vdwg.mxu0
  %230 = vst [vmem:[%s2] sm:$0xff] %v152
  %231 = vst [vmem:[%s2 + $0x8] sm:$0xff] %v154
  %232 = vst [vmem:[%s2 + $0x10] sm:$0xff] %v156
  %233 = vst [vmem:[%s2 + $0x18] sm:$0xff] %v158
  %234 = vst [vmem:[%s2 + $0x20] sm:$0xff] %v162
  %235 = vst [vmem:[%s2 + $0x28] sm:$0xff] %v164
  %236 = vst [vmem:[%s2 + $0x30] sm:$0xff] %v166
  %237 = vst [vmem:[%s2 + $0x38] sm:$0xff] %v168
  %238 = vst [vmem:[%s2 + $0x40] sm:$0xff] %v172
  %239 = vst [vmem:[%s2 + $0x48] sm:$0xff] %v174
  %240 = vst [vmem:[%s2 + $0x50] sm:$0xff] %v176
  %241 = vst [vmem:[%s2 + $0x58] sm:$0xff] %v178
  %242 = vst [vmem:[%s2 + $0x60] sm:$0xff] %v182
  %243 = vst [vmem:[%s2 + $0x68] sm:$0xff] %v184
  %244 = vst [vmem:[%s2 + $0x70] sm:$0xff] %v186
  %245 = vst [vmem:[%s2 + $0x78] sm:$0xff] %v188
  %246 = vst [vmem:[%s2 + $0x80] sm:$0xff] %v192
  %247 = vst [vmem:[%s2 + $0x88] sm:$0xff] %v194
  %248 = vst [vmem:[%s2 + $0x90] sm:$0xff] %v196
  %249 = vst [vmem:[%s2 + $0x98] sm:$0xff] %v198
  %250 = vst [vmem:[%s2 + $0xa0] sm:$0xff] %v202
  %251 = vst [vmem:[%s2 + $0xa8] sm:$0xff] %v204
  %252 = vst [vmem:[%s2 + $0xb0] sm:$0xff] %v206
  %253 = vst [vmem:[%s2 + $0xb8] sm:$0xff] %v208
  %254 = vst [vmem:[%s2 + $0xc0] sm:$0xff] %v212
  %255 = vst [vmem:[%s2 + $0xc8] sm:$0xff] %v214
  %256 = vst [vmem:[%s2 + $0xd0] sm:$0xff] %v216
  %257 = vst [vmem:[%s2 + $0xd8] sm:$0xff] %v218
  %258 = vst [vmem:[%s2 + $0xe0] sm:$0xff] %v222
  %259 = vst [vmem:[%s2 + $0xe8] sm:$0xff] %v224
  %260 = vst [vmem:[%s2 + $0xf0] sm:$0xff] %v226
  %261 = vst [vmem:[%s2 + $0xf8] sm:$0xff] %v228
  // Predicated region
  $region10: #{_lambda_.20} parent=0 // pred_check
    _
  $region11: #{_lambda_.20} parent=0 // pred_check_branch
    %263 = sbr.rel (0) target = $region13
  $region12: #{_lambda_.20} parent=0 // pred_region
    _
  $region13: #{_lambda_.20} parent=0 // pred_fallthru
    _
  // Predicated region
  $region14: #{_lambda_.20} parent=0 // pred_check
    _
  $region15: #{_lambda_.20} parent=0 // pred_check_branch
    %265 = sbr.rel (0) target = $region17
  $region16: #{_lambda_.20} parent=0 // pred_region
    _
  $region17: #{_lambda_.20} parent=0 // pred_fallthru
    _

// kernel: _lambda_.19
$region0: #{_lambda_.19}
  #allocation0 [shape = 'u32[]', space=smem, size = 0x4, offset = 0x4, fixed_abs, tag = 'smem constant byte address 0x4 - core index']
  #allocation1 [shape = 'u32[144,128]{1,0:T(1,128)}', space=vmem, size = 0x12000, scoped, tag = 'internal scratch']
  %s0 = inlined_call_operand.vmem [shape: f32[128,32], index: 0, kind: input, shape index: {}]
  %s1 = inlined_call_operand.vmem [shape: f32[1,32], index: 1, kind: input, shape index: {}]
  %s2 = inlined_call_operand.vmem [shape: f32[1,32], index: 2, kind: input, shape index: {}]
  %s3 = inlined_call_operand.vmem [shape: f32[1,32], index: 3, kind: input, shape index: {}]
  %s4 = inlined_call_operand.vmem [shape: f32[1,32], index: 4, kind: input, shape index: {}]
  %s5 = inlined_call_operand.vmem [shape: f32[128,32], index: 5, kind: output, shape index: {}]
  %s6 = sld [smem:[#allocation0]]
  $region30: #{_lambda_.19} parent=0
    _
  %s8 = ssub.s32 1, %s6
  %s9 = scalar_select 0, %s8, %s6
  // Predicated region
  $region2: #{_lambda_.19} parent=0 // pred_check
    _
  $region3: #{_lambda_.19} parent=0 // pred_check_branch
    %11 = sbr.rel (0) target = $region5
  $region4: #{_lambda_.19} parent=0 // pred_region
    _
  $region5: #{_lambda_.19} parent=0 // pred_fallthru
    _
  // Predicated region
  $region6: #{_lambda_.19} parent=0 // pred_check
    _
  $region7: #{_lambda_.19} parent=0 // pred_check_branch
    %13 = sbr.rel (0) target = $region9
  $region8: #{_lambda_.19} parent=0 // pred_region
    _
  $region9: #{_lambda_.19} parent=0 // pred_fallthru
    _
  // Predicated region
  $region10: #{_lambda_.19} parent=0 // pred_check
    _
  $region11: #{_lambda_.19} parent=0 // pred_check_branch
    %15 = sbr.rel (0) target = $region13
  $region12: #{_lambda_.19} parent=0 // pred_region
    _
  $region13: #{_lambda_.19} parent=0 // pred_fallthru
    _
  // Predicated region
  $region14: #{_lambda_.19} parent=0 // pred_check
    _
  $region15: #{_lambda_.19} parent=0 // pred_check_branch
    %17 = sbr.rel (0) target = $region17
  $region16: #{_lambda_.19} parent=0 // pred_region
    _
  $region17: #{_lambda_.19} parent=0 // pred_fallthru
    _
  // Predicated region
  $region18: #{_lambda_.19} parent=0 // pred_check
    _
  $region19: #{_lambda_.19} parent=0 // pred_check_branch
    %19 = sbr.rel (0) target = $region21
  $region20: #{_lambda_.19} parent=0 // pred_region
    _
  $region21: #{_lambda_.19} parent=0 // pred_fallthru
    _
  %v20 = vld [vmem:[%s1] sm:$0x1]
  %v21 = vmul.f32 %v20, 0.0078125
  %v22 = vld [vmem:[%s2] sm:$0x1]
  %v23 = vmul.f32 %v22, 0.0078125
  %v24 = vmul.f32 %v21, %v21
  %v25 = vsub.f32 %v23, %v24
  %v26 = vld [vmem:[%s3] sm:$0x1]
  %v27 = vadd.f32 %v25, 1e-05
  %v28 = vrsqrt.pop %v27
  %v29 = vmul.f32 %v26, %v28
  %v30 = vld [vmem:[%s4] sm:$0x1]
  %v31 = vmul.f32 %v21, %v29
  %v32 = vsub.f32 %v30, %v31
  %v33 = vld [vmem:[%s0] sm:$0xff]
  %v34 = vld [vmem:[%s0 + $0x8] sm:$0xff]
  %v35 = vld [vmem:[%s0 + $0x10] sm:$0xff]
  %v36 = vld [vmem:[%s0 + $0x18] sm:$0xff]
  %v37 = vld [vmem:[%s0 + $0x20] sm:$0xff]
  %v38 = vld [vmem:[%s0 + $0x28] sm:$0xff]
  %v39 = vld [vmem:[%s0 + $0x30] sm:$0xff]
  %v40 = vld [vmem:[%s0 + $0x38] sm:$0xff]
  %v41 = vld [vmem:[%s0 + $0x40] sm:$0xff]
  %v42 = vld [vmem:[%s0 + $0x48] sm:$0xff]
  %v43 = vld [vmem:[%s0 + $0x50] sm:$0xff]
  %v44 = vld [vmem:[%s0 + $0x58] sm:$0xff]
  %v45 = vld [vmem:[%s0 + $0x60] sm:$0xff]
  %v46 = vld [vmem:[%s0 + $0x68] sm:$0xff]
  %v47 = vld [vmem:[%s0 + $0x70] sm:$0xff]
  %v48 = vld [vmem:[%s0 + $0x78] sm:$0xff]
  %v50 = vlaneseq
  %v51 = vshrl.u32 %v50, 7
  %v52 = vsub.s32 0, %v51
  %v53 = vrot.slane %v29, %v52
  %v55 = vmul.f32 %v33, %v53
  %v56 = vmul.f32 %v34, %v53
  %v57 = vmul.f32 %v35, %v53
  %v58 = vmul.f32 %v36, %v53
  %v59 = vmul.f32 %v37, %v53
  %v60 = vmul.f32 %v38, %v53
  %v61 = vmul.f32 %v39, %v53
  %v62 = vmul.f32 %v40, %v53
  %v63 = vmul.f32 %v41, %v53
  %v64 = vmul.f32 %v42, %v53
  %v65 = vmul.f32 %v43, %v53
  %v66 = vmul.f32 %v44, %v53
  %v67 = vmul.f32 %v45, %v53
  %v68 = vmul.f32 %v46, %v53
  %v69 = vmul.f32 %v47, %v53
  %v70 = vmul.f32 %v48, %v53
  %v72 = vlaneseq
  %v73 = vshrl.u32 %v72, 7
  %v74 = vsub.s32 0, %v73
  %v75 = vrot.slane %v32, %v74
  %v77 = vadd.f32 %v55, %v75
  %v78 = vadd.f32 %v56, %v75
  %v79 = vadd.f32 %v57, %v75
  %v80 = vadd.f32 %v58, %v75
  %v81 = vadd.f32 %v59, %v75
  %v82 = vadd.f32 %v60, %v75
  %v83 = vadd.f32 %v61, %v75
  %v84 = vadd.f32 %v62, %v75
  %v85 = vadd.f32 %v63, %v75
  %v86 = vadd.f32 %v64, %v75
  %v87 = vadd.f32 %v65, %v75
  %v88 = vadd.f32 %v66, %v75
  %v89 = vadd.f32 %v67, %v75
  %v90 = vadd.f32 %v68, %v75
  %v91 = vadd.f32 %v69, %v75
  %v92 = vadd.f32 %v70, %v75
  %v93 = vmax.f32 %v77, 0.0
  %v94 = vmax.f32 %v78, 0.0
  %v95 = vmax.f32 %v79, 0.0
  %v96 = vmax.f32 %v80, 0.0
  %v97 = vmax.f32 %v81, 0.0
  %v98 = vmax.f32 %v82, 0.0
  %v99 = vmax.f32 %v83, 0.0
  %v100 = vmax.f32 %v84, 0.0
  %v101 = vmax.f32 %v85, 0.0
  %v102 = vmax.f32 %v86, 0.0
  %v103 = vmax.f32 %v87, 0.0
  %v104 = vmax.f32 %v88, 0.0
  %v105 = vmax.f32 %v89, 0.0
  %v106 = vmax.f32 %v90, 0.0
  %v107 = vmax.f32 %v91, 0.0
  %v108 = vmax.f32 %v92, 0.0
  %vm109 = vcmask 261120
  %110 = vst.msk [vmem:[%s5] sm:$0xff] %vm109, %v93
  %111 = vst.msk [vmem:[%s5 + $0x8] sm:$0xff] %vm109, %v94
  %112 = vst.msk [vmem:[%s5 + $0x10] sm:$0xff] %vm109, %v95
  %113 = vst.msk [vmem:[%s5 + $0x18] sm:$0xff] %vm109, %v96
  %114 = vst.msk [vmem:[%s5 + $0x20] sm:$0xff] %vm109, %v97
  %115 = vst.msk [vmem:[%s5 + $0x28] sm:$0xff] %vm109, %v98
  %116 = vst.msk [vmem:[%s5 + $0x30] sm:$0xff] %vm109, %v99
  %117 = vst.msk [vmem:[%s5 + $0x38] sm:$0xff] %vm109, %v100
  %118 = vst.msk [vmem:[%s5 + $0x40] sm:$0xff] %vm109, %v101
  %119 = vst.msk [vmem:[%s5 + $0x48] sm:$0xff] %vm109, %v102
  %120 = vst.msk [vmem:[%s5 + $0x50] sm:$0xff] %vm109, %v103
  %121 = vst.msk [vmem:[%s5 + $0x58] sm:$0xff] %vm109, %v104
  %122 = vst.msk [vmem:[%s5 + $0x60] sm:$0xff] %vm109, %v105
  %123 = vst.msk [vmem:[%s5 + $0x68] sm:$0xff] %vm109, %v106
  %124 = vst.msk [vmem:[%s5 + $0x70] sm:$0xff] %vm109, %v107
  %125 = vst.msk [vmem:[%s5 + $0x78] sm:$0xff] %vm109, %v108
  // Predicated region
  $region22: #{_lambda_.19} parent=0 // pred_check
    _
  $region23: #{_lambda_.19} parent=0 // pred_check_branch
    %127 = sbr.rel (0) target = $region25
  $region24: #{_lambda_.19} parent=0 // pred_region
    _
  $region25: #{_lambda_.19} parent=0 // pred_fallthru
    _
  // Predicated region
  $region26: #{_lambda_.19} parent=0 // pred_check
    _
  $region27: #{_lambda_.19} parent=0 // pred_check_branch
    %129 = sbr.rel (0) target = $region29
  $region28: #{_lambda_.19} parent=0 // pred_region
    _
  $region29: #{_lambda_.19} parent=0 // pred_fallthru
    _

// kernel: _lambda_.21
$region0: #{_lambda_.21}
  #allocation0 [shape = 'u32[]', space=smem, size = 0x4, offset = 0x4, fixed_abs, tag = 'smem constant byte address 0x4 - core index']
  #allocation1 [shape = 'u32[144,128]{1,0:T(1,128)}', space=vmem, size = 0x12000, scoped, tag = 'internal scratch']
  %s0 = inlined_call_operand.vmem [shape: f32[512,16], index: 0, kind: input, shape index: {}]
  %s1 = inlined_call_operand.vmem [shape: f32[1,16], index: 1, kind: output, shape index: {0}]
  %s2 = inlined_call_operand.vmem [shape: f32[1,16], index: 2, kind: output, shape index: {1}]
  %3 = xla_tuple %s1, %s2
  %s4 = sld [smem:[#allocation0]]
  $region26: #{_lambda_.21} parent=0
    _
  %s6 = ssub.s32 1, %s4
  %s7 = scalar_select 0, %s6, %s4
  // Predicated region
  $region2: #{_lambda_.21} parent=0 // pred_check
    _
  $region3: #{_lambda_.21} parent=0 // pred_check_branch
    %9 = sbr.rel (0) target = $region5
  $region4: #{_lambda_.21} parent=0 // pred_region
    _
  $region5: #{_lambda_.21} parent=0 // pred_fallthru
    _
  %p10 = scmp.eq.s32.totalorder 0, 0
  // Predicated region
  $region6: #{_lambda_.21} parent=0 // pred_check
    %p11 = pneg %p10
  $region7: #{_lambda_.21} parent=0 // pred_check_branch
    %13 = sbr.rel (%p11) target = $region9
  $region8: #{_lambda_.21} parent=0 // pred_region
    %vm14 = vcmask 122880
    %15 = vst.msk [vmem:[%s1] sm:$0x1] %vm14, 0.0
    %16 = vst.msk [vmem:[%s2] sm:$0x1] %vm14, 0.0
  $region9: #{_lambda_.21} parent=0 // pred_fallthru
    _
  %v17 = vld [vmem:[%s0] sm:$0xff]
  %v18 = vld [vmem:[%s0 + $0x8] sm:$0xff]
  %v19 = vld [vmem:[%s0 + $0x10] sm:$0xff]
  %v20 = vld [vmem:[%s0 + $0x18] sm:$0xff]
  %v21 = vld [vmem:[%s0 + $0x20] sm:$0xff]
  %v22 = vld [vmem:[%s0 + $0x28] sm:$0xff]
  %v23 = vld [vmem:[%s0 + $0x30] sm:$0xff]
  %v24 = vld [vmem:[%s0 + $0x38] sm:$0xff]
  %v25 = vld [vmem:[%s0 + $0x40] sm:$0xff]
  %v26 = vld [vmem:[%s0 + $0x48] sm:$0xff]
  %v27 = vld [vmem:[%s0 + $0x50] sm:$0xff]
  %v28 = vld [vmem:[%s0 + $0x58] sm:$0xff]
  %v29 = vld [vmem:[%s0 + $0x60] sm:$0xff]
  %v30 = vld [vmem:[%s0 + $0x68] sm:$0xff]
  %v31 = vld [vmem:[%s0 + $0x70] sm:$0xff]
  %v32 = vld [vmem:[%s0 + $0x78] sm:$0xff]
  %v33 = vld [vmem:[%s0 + $0x80] sm:$0xff]
  %v34 = vld [vmem:[%s0 + $0x88] sm:$0xff]
  %v35 = vld [vmem:[%s0 + $0x90] sm:$0xff]
  %v36 = vld [vmem:[%s0 + $0x98] sm:$0xff]
  %v37 = vld [vmem:[%s0 + $0xa0] sm:$0xff]
  %v38 = vld [vmem:[%s0 + $0xa8] sm:$0xff]
  %v39 = vld [vmem:[%s0 + $0xb0] sm:$0xff]
  %v40 = vld [vmem:[%s0 + $0xb8] sm:$0xff]
  %v41 = vld [vmem:[%s0 + $0xc0] sm:$0xff]
  %v42 = vld [vmem:[%s0 + $0xc8] sm:$0xff]
  %v43 = vld [vmem:[%s0 + $0xd0] sm:$0xff]
  %v44 = vld [vmem:[%s0 + $0xd8] sm:$0xff]
  %v45 = vld [vmem:[%s0 + $0xe0] sm:$0xff]
  %v46 = vld [vmem:[%s0 + $0xe8] sm:$0xff]
  %v47 = vld [vmem:[%s0 + $0xf0] sm:$0xff]
  %v48 = vld [vmem:[%s0 + $0xf8] sm:$0xff]
  %v49 = vld [vmem:[%s0 + $0x100] sm:$0xff]
  %v50 = vld [vmem:[%s0 + $0x108] sm:$0xff]
  %v51 = vld [vmem:[%s0 + $0x110] sm:$0xff]
  %v52 = vld [vmem:[%s0 + $0x118] sm:$0xff]
  %v53 = vld [vmem:[%s0 + $0x120] sm:$0xff]
  %v54 = vld [vmem:[%s0 + $0x128] sm:$0xff]
  %v55 = vld [vmem:[%s0 + $0x130] sm:$0xff]
  %v56 = vld [vmem:[%s0 + $0x138] sm:$0xff]
  %v57 = vld [vmem:[%s0 + $0x140] sm:$0xff]
  %v58 = vld [vmem:[%s0 + $0x148] sm:$0xff]
  %v59 = vld [vmem:[%s0 + $0x150] sm:$0xff]
  %v60 = vld [vmem:[%s0 + $0x158] sm:$0xff]
  %v61 = vld [vmem:[%s0 + $0x160] sm:$0xff]
  %v62 = vld [vmem:[%s0 + $0x168] sm:$0xff]
  %v63 = vld [vmem:[%s0 + $0x170] sm:$0xff]
  %v64 = vld [vmem:[%s0 + $0x178] sm:$0xff]
  %v65 = vld [vmem:[%s0 + $0x180] sm:$0xff]
  %v66 = vld [vmem:[%s0 + $0x188] sm:$0xff]
  %v67 = vld [vmem:[%s0 + $0x190] sm:$0xff]
  %v68 = vld [vmem:[%s0 + $0x198] sm:$0xff]
  %v69 = vld [vmem:[%s0 + $0x1a0] sm:$0xff]
  %v70 = vld [vmem:[%s0 + $0x1a8] sm:$0xff]
  %v71 = vld [vmem:[%s0 + $0x1b0] sm:$0xff]
  %v72 = vld [vmem:[%s0 + $0x1b8] sm:$0xff]
  %v73 = vld [vmem:[%s0 + $0x1c0] sm:$0xff]
  %v74 = vld [vmem:[%s0 + $0x1c8] sm:$0xff]
  %v75 = vld [vmem:[%s0 + $0x1d0] sm:$0xff]
  %v76 = vld [vmem:[%s0 + $0x1d8] sm:$0xff]
  %v77 = vld [vmem:[%s0 + $0x1e0] sm:$0xff]
  %v78 = vld [vmem:[%s0 + $0x1e8] sm:$0xff]
  %v79 = vld [vmem:[%s0 + $0x1f0] sm:$0xff]
  %v80 = vld [vmem:[%s0 + $0x1f8] sm:$0xff]
  %v81 = vld [vmem:[%s1] sm:$0x1]
  %vm82 = vcmask 130048
  %v83 = vsel %vm82, %v17, 0.0
  %v84 = vsel %vm82, %v18, 0.0
  %v85 = vadd.f32 %v83, %v84
  %v86 = vsel %vm82, %v19, 0.0
  %v87 = vadd.f32 %v85, %v86
  %v88 = vsel %vm82, %v20, 0.0
  %v89 = vadd.f32 %v87, %v88
  %v90 = vsel %vm82, %v21, 0.0
  %v91 = vadd.f32 %v89, %v90
  %v92 = vsel %vm82, %v22, 0.0
  %v93 = vadd.f32 %v91, %v92
  %v94 = vsel %vm82, %v23, 0.0
  %v95 = vadd.f32 %v93, %v94
  %v96 = vsel %vm82, %v24, 0.0
  %v97 = vadd.f32 %v95, %v96
  %v98 = vsel %vm82, %v25, 0.0
  %v99 = vadd.f32 %v97, %v98
  %v100 = vsel %vm82, %v26, 0.0
  %v101 = vadd.f32 %v99, %v100
  %v102 = vsel %vm82, %v27, 0.0
  %v103 = vadd.f32 %v101, %v102
  %v104 = vsel %vm82, %v28, 0.0
  %v105 = vadd.f32 %v103, %v104
  %v106 = vsel %vm82, %v29, 0.0
  %v107 = vadd.f32 %v105, %v106
  %v108 = vsel %vm82, %v30, 0.0
  %v109 = vadd.f32 %v107, %v108
  %v110 = vsel %vm82, %v31, 0.0
  %v111 = vadd.f32 %v109, %v110
  %v112 = vsel %vm82, %v32, 0.0
  %v113 = vadd.f32 %v111, %v112
  %v114 = vsel %vm82, %v33, 0.0
  %v115 = vadd.f32 %v113, %v114
  %v116 = vsel %vm82, %v34, 0.0
  %v117 = vadd.f32 %v115, %v116
  %v118 = vsel %vm82, %v35, 0.0
  %v119 = vadd.f32 %v117, %v118
  %v120 = vsel %vm82, %v36, 0.0
  %v121 = vadd.f32 %v119, %v120
  %v122 = vsel %vm82, %v37, 0.0
  %v123 = vadd.f32 %v121, %v122
  %v124 = vsel %vm82, %v38, 0.0
  %v125 = vadd.f32 %v123, %v124
  %v126 = vsel %vm82, %v39, 0.0
  %v127 = vadd.f32 %v125, %v126
  %v128 = vsel %vm82, %v40, 0.0
  %v129 = vadd.f32 %v127, %v128
  %v130 = vsel %vm82, %v41, 0.0
  %v131 = vadd.f32 %v129, %v130
  %v132 = vsel %vm82, %v42, 0.0
  %v133 = vadd.f32 %v131, %v132
  %v134 = vsel %vm82, %v43, 0.0
  %v135 = vadd.f32 %v133, %v134
  %v136 = vsel %vm82, %v44, 0.0
  %v137 = vadd.f32 %v135, %v136
  %v138 = vsel %vm82, %v45, 0.0
  %v139 = vadd.f32 %v137, %v138
  %v140 = vsel %vm82, %v46, 0.0
  %v141 = vadd.f32 %v139, %v140
  %v142 = vsel %vm82, %v47, 0.0
  %v143 = vadd.f32 %v141, %v142
  %v144 = vsel %vm82, %v48, 0.0
  %v145 = vadd.f32 %v143, %v144
  %v146 = vsel %vm82, %v49, 0.0
  %v147 = vadd.f32 %v145, %v146
  %v148 = vsel %vm82, %v50, 0.0
  %v149 = vadd.f32 %v147, %v148
  %v150 = vsel %vm82, %v51, 0.0
  %v151 = vadd.f32 %v149, %v150
  %v152 = vsel %vm82, %v52, 0.0
  %v153 = vadd.f32 %v151, %v152
  %v154 = vsel %vm82, %v53, 0.0
  %v155 = vadd.f32 %v153, %v154
  %v156 = vsel %vm82, %v54, 0.0
  %v157 = vadd.f32 %v155, %v156
  %v158 = vsel %vm82, %v55, 0.0
  %v159 = vadd.f32 %v157, %v158
  %v160 = vsel %vm82, %v56, 0.0
  %v161 = vadd.f32 %v159, %v160
  %v162 = vsel %vm82, %v57, 0.0
  %v163 = vadd.f32 %v161, %v162
  %v164 = vsel %vm82, %v58, 0.0
  %v165 = vadd.f32 %v163, %v164
  %v166 = vsel %vm82, %v59, 0.0
  %v167 = vadd.f32 %v165, %v166
  %v168 = vsel %vm82, %v60, 0.0
  %v169 = vadd.f32 %v167, %v168
  %v170 = vsel %vm82, %v61, 0.0
  %v171 = vadd.f32 %v169, %v170
  %v172 = vsel %vm82, %v62, 0.0
  %v173 = vadd.f32 %v171, %v172
  %v174 = vsel %vm82, %v63, 0.0
  %v175 = vadd.f32 %v173, %v174
  %v176 = vsel %vm82, %v64, 0.0
  %v177 = vadd.f32 %v175, %v176
  %v178 = vsel %vm82, %v65, 0.0
  %v179 = vadd.f32 %v177, %v178
  %v180 = vsel %vm82, %v66, 0.0
  %v181 = vadd.f32 %v179, %v180
  %v182 = vsel %vm82, %v67, 0.0
  %v183 = vadd.f32 %v181, %v182
  %v184 = vsel %vm82, %v68, 0.0
  %v185 = vadd.f32 %v183, %v184
  %v186 = vsel %vm82, %v69, 0.0
  %v187 = vadd.f32 %v185, %v186
  %v188 = vsel %vm82, %v70, 0.0
  %v189 = vadd.f32 %v187, %v188
  %v190 = vsel %vm82, %v71, 0.0
  %v191 = vadd.f32 %v189, %v190
  %v192 = vsel %vm82, %v72, 0.0
  %v193 = vadd.f32 %v191, %v192
  %v194 = vsel %vm82, %v73, 0.0
  %v195 = vadd.f32 %v193, %v194
  %v196 = vsel %vm82, %v74, 0.0
  %v197 = vadd.f32 %v195, %v196
  %v198 = vsel %vm82, %v75, 0.0
  %v199 = vadd.f32 %v197, %v198
  %v200 = vsel %vm82, %v76, 0.0
  %v201 = vadd.f32 %v199, %v200
  %v202 = vsel %vm82, %v77, 0.0
  %v203 = vadd.f32 %v201, %v202
  %v204 = vsel %vm82, %v78, 0.0
  %v205 = vadd.f32 %v203, %v204
  %v206 = vsel %vm82, %v79, 0.0
  %v207 = vadd.f32 %v205, %v206
  %v208 = vsel %vm82, %v80, 0.0
  %v209 = vadd.f32 %v207, %v208
  %v210 = vrot.slane %v209, 4
  %v211 = vadd.f32 %v209, %v210
  %v212 = vrot.slane %v211, 2
  %v213 = vadd.f32 %v211, %v212
  %v214 = vrot.slane %v213, 1
  %v215 = vadd.f32 %v213, %v214
  %v216 = vadd.f32 %v81, %v215
  %vm217 = vcmask 122880
  %218 = vst.msk [vmem:[%s1] sm:$0x1] %vm217, %v216
  %v219 = vld [vmem:[%s2] sm:$0x1]
  %v220 = vmul.f32 %v17, %v17
  %v221 = vmul.f32 %v18, %v18
  %v222 = vmul.f32 %v19, %v19
  %v223 = vmul.f32 %v20, %v20
  %v224 = vmul.f32 %v21, %v21
  %v225 = vmul.f32 %v22, %v22
  %v226 = vmul.f32 %v23, %v23
  %v227 = vmul.f32 %v24, %v24
  %v228 = vmul.f32 %v25, %v25
  %v229 = vmul.f32 %v26, %v26
  %v230 = vmul.f32 %v27, %v27
  %v231 = vmul.f32 %v28, %v28
  %v232 = vmul.f32 %v29, %v29
  %v233 = vmul.f32 %v30, %v30
  %v234 = vmul.f32 %v31, %v31
  %v235 = vmul.f32 %v32, %v32
  %v236 = vmul.f32 %v33, %v33
  %v237 = vmul.f32 %v34, %v34
  %v238 = vmul.f32 %v35, %v35
  %v239 = vmul.f32 %v36, %v36
  %v240 = vmul.f32 %v37, %v37
  %v241 = vmul.f32 %v38, %v38
  %v242 = vmul.f32 %v39, %v39
  %v243 = vmul.f32 %v40, %v40
  %v244 = vmul.f32 %v41, %v41
  %v245 = vmul.f32 %v42, %v42
  %v246 = vmul.f32 %v43, %v43
  %v247 = vmul.f32 %v44, %v44
  %v248 = vmul.f32 %v45, %v45
  %v249 = vmul.f32 %v46, %v46
  %v250 = vmul.f32 %v47, %v47
  %v251 = vmul.f32 %v48, %v48
  %v252 = vmul.f32 %v49, %v49
  %v253 = vmul.f32 %v50, %v50
  %v254 = vmul.f32 %v51, %v51
  %v255 = vmul.f32 %v52, %v52
  %v256 = vmul.f32 %v53, %v53
  %v257 = vmul.f32 %v54, %v54
  %v258 = vmul.f32 %v55, %v55
  %v259 = vmul.f32 %v56, %v56
  %v260 = vmul.f32 %v57, %v57
  %v261 = vmul.f32 %v58, %v58
  %v262 = vmul.f32 %v59, %v59
  %v263 = vmul.f32 %v60, %v60
  %v264 = vmul.f32 %v61, %v61
  %v265 = vmul.f32 %v62, %v62
  %v266 = vmul.f32 %v63, %v63
  %v267 = vmul.f32 %v64, %v64
  %v268 = vmul.f32 %v65, %v65
  %v269 = vmul.f32 %v66, %v66
  %v270 = vmul.f32 %v67, %v67
  %v271 = vmul.f32 %v68, %v68
  %v272 = vmul.f32 %v69, %v69
  %v273 = vmul.f32 %v70, %v70
  %v274 = vmul.f32 %v71, %v71
  %v275 = vmul.f32 %v72, %v72
  %v276 = vmul.f32 %v73, %v73
  %v277 = vmul.f32 %v74, %v74
  %v278 = vmul.f32 %v75, %v75
  %v279 = vmul.f32 %v76, %v76
  %v280 = vmul.f32 %v77, %v77
  %v281 = vmul.f32 %v78, %v78
  %v282 = vmul.f32 %v79, %v79
  %v283 = vmul.f32 %v80, %v80
  %v284 = vsel %vm82, %v220, 0.0
  %v285 = vsel %vm82, %v221, 0.0
  %v286 = vadd.f32 %v284, %v285
  %v287 = vsel %vm82, %v222, 0.0
  %v288 = vadd.f32 %v286, %v287
  %v289 = vsel %vm82, %v223, 0.0
  %v290 = vadd.f32 %v288, %v289
  %v291 = vsel %vm82, %v224, 0.0
  %v292 = vadd.f32 %v290, %v291
  %v293 = vsel %vm82, %v225, 0.0
  %v294 = vadd.f32 %v292, %v293
  %v295 = vsel %vm82, %v226, 0.0
  %v296 = vadd.f32 %v294, %v295
  %v297 = vsel %vm82, %v227, 0.0
  %v298 = vadd.f32 %v296, %v297
  %v299 = vsel %vm82, %v228, 0.0
  %v300 = vadd.f32 %v298, %v299
  %v301 = vsel %vm82, %v229, 0.0
  %v302 = vadd.f32 %v300, %v301
  %v303 = vsel %vm82, %v230, 0.0
  %v304 = vadd.f32 %v302, %v303
  %v305 = vsel %vm82, %v231, 0.0
  %v306 = vadd.f32 %v304, %v305
  %v307 = vsel %vm82, %v232, 0.0
  %v308 = vadd.f32 %v306, %v307
  %v309 = vsel %vm82, %v233, 0.0
  %v310 = vadd.f32 %v308, %v309
  %v311 = vsel %vm82, %v234, 0.0
  %v312 = vadd.f32 %v310, %v311
  %v313 = vsel %vm82, %v235, 0.0
  %v314 = vadd.f32 %v312, %v313
  %v315 = vsel %vm82, %v236, 0.0
  %v316 = vadd.f32 %v314, %v315
  %v317 = vsel %vm82, %v237, 0.0
  %v318 = vadd.f32 %v316, %v317
  %v319 = vsel %vm82, %v238, 0.0
  %v320 = vadd.f32 %v318, %v319
  %v321 = vsel %vm82, %v239, 0.0
  %v322 = vadd.f32 %v320, %v321
  %v323 = vsel %vm82, %v240, 0.0
  %v324 = vadd.f32 %v322, %v323
  %v325 = vsel %vm82, %v241, 0.0
  %v326 = vadd.f32 %v324, %v325
  %v327 = vsel %vm82, %v242, 0.0
  %v328 = vadd.f32 %v326, %v327
  %v329 = vsel %vm82, %v243, 0.0
  %v330 = vadd.f32 %v328, %v329
  %v331 = vsel %vm82, %v244, 0.0
  %v332 = vadd.f32 %v330, %v331
  %v333 = vsel %vm82, %v245, 0.0
  %v334 = vadd.f32 %v332, %v333
  %v335 = vsel %vm82, %v246, 0.0
  %v336 = vadd.f32 %v334, %v335
  %v337 = vsel %vm82, %v247, 0.0
  %v338 = vadd.f32 %v336, %v337
  %v339 = vsel %vm82, %v248, 0.0
  %v340 = vadd.f32 %v338, %v339
  %v341 = vsel %vm82, %v249, 0.0
  %v342 = vadd.f32 %v340, %v341
  %v343 = vsel %vm82, %v250, 0.0
  %v344 = vadd.f32 %v342, %v343
  %v345 = vsel %vm82, %v251, 0.0
  %v346 = vadd.f32 %v344, %v345
  %v347 = vsel %vm82, %v252, 0.0
  %v348 = vadd.f32 %v346, %v347
  %v349 = vsel %vm82, %v253, 0.0
  %v350 = vadd.f32 %v348, %v349
  %v351 = vsel %vm82, %v254, 0.0
  %v352 = vadd.f32 %v350, %v351
  %v353 = vsel %vm82, %v255, 0.0
  %v354 = vadd.f32 %v352, %v353
  %v355 = vsel %vm82, %v256, 0.0
  %v356 = vadd.f32 %v354, %v355
  %v357 = vsel %vm82, %v257, 0.0
  %v358 = vadd.f32 %v356, %v357
  %v359 = vsel %vm82, %v258, 0.0
  %v360 = vadd.f32 %v358, %v359
  %v361 = vsel %vm82, %v259, 0.0
  %v362 = vadd.f32 %v360, %v361
  %v363 = vsel %vm82, %v260, 0.0
  %v364 = vadd.f32 %v362, %v363
  %v365 = vsel %vm82, %v261, 0.0
  %v366 = vadd.f32 %v364, %v365
  %v367 = vsel %vm82, %v262, 0.0
  %v368 = vadd.f32 %v366, %v367
  %v369 = vsel %vm82, %v263, 0.0
  %v370 = vadd.f32 %v368, %v369
  %v371 = vsel %vm82, %v264, 0.0
  %v372 = vadd.f32 %v370, %v371
  %v373 = vsel %vm82, %v265, 0.0
  %v374 = vadd.f32 %v372, %v373
  %v375 = vsel %vm82, %v266, 0.0
  %v376 = vadd.f32 %v374, %v375
  %v377 = vsel %vm82, %v267, 0.0
  %v378 = vadd.f32 %v376, %v377
  %v379 = vsel %vm82, %v268, 0.0
  %v380 = vadd.f32 %v378, %v379
  %v381 = vsel %vm82, %v269, 0.0
  %v382 = vadd.f32 %v380, %v381
  %v383 = vsel %vm82, %v270, 0.0
  %v384 = vadd.f32 %v382, %v383
  %v385 = vsel %vm82, %v271, 0.0
  %v386 = vadd.f32 %v384, %v385
  %v387 = vsel %vm82, %v272, 0.0
  %v388 = vadd.f32 %v386, %v387
  %v389 = vsel %vm82, %v273, 0.0
  %v390 = vadd.f32 %v388, %v389
  %v391 = vsel %vm82, %v274, 0.0
  %v392 = vadd.f32 %v390, %v391
  %v393 = vsel %vm82, %v275, 0.0
  %v394 = vadd.f32 %v392, %v393
  %v395 = vsel %vm82, %v276, 0.0
  %v396 = vadd.f32 %v394, %v395
  %v397 = vsel %vm82, %v277, 0.0
  %v398 = vadd.f32 %v396, %v397
  %v399 = vsel %vm82, %v278, 0.0
  %v400 = vadd.f32 %v398, %v399
  %v401 = vsel %vm82, %v279, 0.0
  %v402 = vadd.f32 %v400, %v401
  %v403 = vsel %vm82, %v280, 0.0
  %v404 = vadd.f32 %v402, %v403
  %v405 = vsel %vm82, %v281, 0.0
  %v406 = vadd.f32 %v404, %v405
  %v407 = vsel %vm82, %v282, 0.0
  %v408 = vadd.f32 %v406, %v407
  %v409 = vsel %vm82, %v283, 0.0
  %v410 = vadd.f32 %v408, %v409
  %v411 = vrot.slane %v410, 4
  %v412 = vadd.f32 %v410, %v411
  %v413 = vrot.slane %v412, 2
  %v414 = vadd.f32 %v412, %v413
  %v415 = vrot.slane %v414, 1
  %v416 = vadd.f32 %v414, %v415
  %v417 = vadd.f32 %v219, %v416
  %418 = vst.msk [vmem:[%s2] sm:$0x1] %vm217, %v417
  // Predicated region
  $region10: #{_lambda_.21} parent=0 // pred_check
    _
  $region11: #{_lambda_.21} parent=0 // pred_check_branch
    %420 = sbr.rel (0) target = $region13
  $region12: #{_lambda_.21} parent=0 // pred_region
    _
  $region13: #{_lambda_.21} parent=0 // pred_fallthru
    _
  // Predicated region
  $region14: #{_lambda_.21} parent=0 // pred_check
    _
  $region15: #{_lambda_.21} parent=0 // pred_check_branch
    %422 = sbr.rel (0) target = $region17
  $region16: #{_lambda_.21} parent=0 // pred_region
    _
  $region17: #{_lambda_.21} parent=0 // pred_fallthru
    _
  // Predicated region
  $region18: #{_lambda_.21} parent=0 // pred_check
    _
  $region19: #{_lambda_.21} parent=0 // pred_check_branch
    %424 = sbr.rel (0) target = $region21
  $region20: #{_lambda_.21} parent=0 // pred_region
    _
  $region21: #{_lambda_.21} parent=0 // pred_fallthru
    _
  // Predicated region
  $region22: #{_lambda_.21} parent=0 // pred_check
    _
  $region23: #{_lambda_.21} parent=0 // pred_check_branch
    %426 = sbr.rel (0) target = $region25
  $region24: #{_lambda_.21} parent=0 // pred_region
    _
  $region25: #{_lambda_.21} parent=0 // pred_fallthru
    _

// kernel: _lambda_.22
$region0: #{_lambda_.22}
  #allocation0 [shape = 'u32[]', space=smem, size = 0x4, offset = 0x4, fixed_abs, tag = 'smem constant byte address 0x4 - core index']
  #allocation1 [shape = 'u32[144,128]{1,0:T(1,128)}', space=vmem, size = 0x12000, scoped, tag = 'internal scratch']
  %s0 = inlined_call_operand.vmem [shape: f32[512,16], index: 0, kind: input, shape index: {}]
  %s1 = inlined_call_operand.vmem [shape: f32[1,16], index: 1, kind: input, shape index: {}]
  %s2 = inlined_call_operand.vmem [shape: f32[1,16], index: 2, kind: input, shape index: {}]
  %s3 = inlined_call_operand.vmem [shape: f32[1,16], index: 3, kind: input, shape index: {}]
  %s4 = inlined_call_operand.vmem [shape: f32[1,16], index: 4, kind: input, shape index: {}]
  %s5 = inlined_call_operand.vmem [shape: f32[512,16], index: 5, kind: output, shape index: {}]
  %s6 = sld [smem:[#allocation0]]
  $region30: #{_lambda_.22} parent=0
    _
  %s8 = ssub.s32 1, %s6
  %s9 = scalar_select 0, %s8, %s6
  // Predicated region
  $region2: #{_lambda_.22} parent=0 // pred_check
    _
  $region3: #{_lambda_.22} parent=0 // pred_check_branch
    %11 = sbr.rel (0) target = $region5
  $region4: #{_lambda_.22} parent=0 // pred_region
    _
  $region5: #{_lambda_.22} parent=0 // pred_fallthru
    _
  // Predicated region
  $region6: #{_lambda_.22} parent=0 // pred_check
    _
  $region7: #{_lambda_.22} parent=0 // pred_check_branch
    %13 = sbr.rel (0) target = $region9
  $region8: #{_lambda_.22} parent=0 // pred_region
    _
  $region9: #{_lambda_.22} parent=0 // pred_fallthru
    _
  // Predicated region
  $region10: #{_lambda_.22} parent=0 // pred_check
    _
  $region11: #{_lambda_.22} parent=0 // pred_check_branch
    %15 = sbr.rel (0) target = $region13
  $region12: #{_lambda_.22} parent=0 // pred_region
    _
  $region13: #{_lambda_.22} parent=0 // pred_fallthru
    _
  // Predicated region
  $region14: #{_lambda_.22} parent=0 // pred_check
    _
  $region15: #{_lambda_.22} parent=0 // pred_check_branch
    %17 = sbr.rel (0) target = $region17
  $region16: #{_lambda_.22} parent=0 // pred_region
    _
  $region17: #{_lambda_.22} parent=0 // pred_fallthru
    _
  // Predicated region
  $region18: #{_lambda_.22} parent=0 // pred_check
    _
  $region19: #{_lambda_.22} parent=0 // pred_check_branch
    %19 = sbr.rel (0) target = $region21
  $region20: #{_lambda_.22} parent=0 // pred_region
    _
  $region21: #{_lambda_.22} parent=0 // pred_fallthru
    _
  %v20 = vld [vmem:[%s1] sm:$0x1]
  %v21 = vmul.f32 %v20, 0.001953125
  %v22 = vld [vmem:[%s2] sm:$0x1]
  %v23 = vmul.f32 %v22, 0.001953125
  %v24 = vmul.f32 %v21, %v21
  %v25 = vsub.f32 %v23, %v24
  %v26 = vld [vmem:[%s3] sm:$0x1]
  %v27 = vadd.f32 %v25, 1e-05
  %v28 = vrsqrt.pop %v27
  %v29 = vmul.f32 %v26, %v28
  %v30 = vld [vmem:[%s4] sm:$0x1]
  %v31 = vmul.f32 %v21, %v29
  %v32 = vsub.f32 %v30, %v31
  %v33 = vld [vmem:[%s0] sm:$0xff]
  %v34 = vld [vmem:[%s0 + $0x8] sm:$0xff]
  %v35 = vld [vmem:[%s0 + $0x10] sm:$0xff]
  %v36 = vld [vmem:[%s0 + $0x18] sm:$0xff]
  %v37 = vld [vmem:[%s0 + $0x20] sm:$0xff]
  %v38 = vld [vmem:[%s0 + $0x28] sm:$0xff]
  %v39 = vld [vmem:[%s0 + $0x30] sm:$0xff]
  %v40 = vld [vmem:[%s0 + $0x38] sm:$0xff]
  %v41 = vld [vmem:[%s0 + $0x40] sm:$0xff]
  %v42 = vld [vmem:[%s0 + $0x48] sm:$0xff]
  %v43 = vld [vmem:[%s0 + $0x50] sm:$0xff]
  %v44 = vld [vmem:[%s0 + $0x58] sm:$0xff]
  %v45 = vld [vmem:[%s0 + $0x60] sm:$0xff]
  %v46 = vld [vmem:[%s0 + $0x68] sm:$0xff]
  %v47 = vld [vmem:[%s0 + $0x70] sm:$0xff]
  %v48 = vld [vmem:[%s0 + $0x78] sm:$0xff]
  %v49 = vld [vmem:[%s0 + $0x80] sm:$0xff]
  %v50 = vld [vmem:[%s0 + $0x88] sm:$0xff]
  %v51 = vld [vmem:[%s0 + $0x90] sm:$0xff]
  %v52 = vld [vmem:[%s0 + $0x98] sm:$0xff]
  %v53 = vld [vmem:[%s0 + $0xa0] sm:$0xff]
  %v54 = vld [vmem:[%s0 + $0xa8] sm:$0xff]
  %v55 = vld [vmem:[%s0 + $0xb0] sm:$0xff]
  %v56 = vld [vmem:[%s0 + $0xb8] sm:$0xff]
  %v57 = vld [vmem:[%s0 + $0xc0] sm:$0xff]
  %v58 = vld [vmem:[%s0 + $0xc8] sm:$0xff]
  %v59 = vld [vmem:[%s0 + $0xd0] sm:$0xff]
  %v60 = vld [vmem:[%s0 + $0xd8] sm:$0xff]
  %v61 = vld [vmem:[%s0 + $0xe0] sm:$0xff]
  %v62 = vld [vmem:[%s0 + $0xe8] sm:$0xff]
  %v63 = vld [vmem:[%s0 + $0xf0] sm:$0xff]
  %v64 = vld [vmem:[%s0 + $0xf8] sm:$0xff]
  %v65 = vld [vmem:[%s0 + $0x100] sm:$0xff]
  %v66 = vld [vmem:[%s0 + $0x108] sm:$0xff]
  %v67 = vld [vmem:[%s0 + $0x110] sm:$0xff]
  %v68 = vld [vmem:[%s0 + $0x118] sm:$0xff]
  %v69 = vld [vmem:[%s0 + $0x120] sm:$0xff]
  %v70 = vld [vmem:[%s0 + $0x128] sm:$0xff]
  %v71 = vld [vmem:[%s0 + $0x130] sm:$0xff]
  %v72 = vld [vmem:[%s0 + $0x138] sm:$0xff]
  %v73 = vld [vmem:[%s0 + $0x140] sm:$0xff]
  %v74 = vld [vmem:[%s0 + $0x148] sm:$0xff]
  %v75 = vld [vmem:[%s0 + $0x150] sm:$0xff]
  %v76 = vld [vmem:[%s0 + $0x158] sm:$0xff]
  %v77 = vld [vmem:[%s0 + $0x160] sm:$0xff]
  %v78 = vld [vmem:[%s0 + $0x168] sm:$0xff]
  %v79 = vld [vmem:[%s0 + $0x170] sm:$0xff]
  %v80 = vld [vmem:[%s0 + $0x178] sm:$0xff]
  %v81 = vld [vmem:[%s0 + $0x180] sm:$0xff]
  %v82 = vld [vmem:[%s0 + $0x188] sm:$0xff]
  %v83 = vld [vmem:[%s0 + $0x190] sm:$0xff]
  %v84 = vld [vmem:[%s0 + $0x198] sm:$0xff]
  %v85 = vld [vmem:[%s0 + $0x1a0] sm:$0xff]
  %v86 = vld [vmem:[%s0 + $0x1a8] sm:$0xff]
  %v87 = vld [vmem:[%s0 + $0x1b0] sm:$0xff]
  %v88 = vld [vmem:[%s0 + $0x1b8] sm:$0xff]
  %v89 = vld [vmem:[%s0 + $0x1c0] sm:$0xff]
  %v90 = vld [vmem:[%s0 + $0x1c8] sm:$0xff]
  %v91 = vld [vmem:[%s0 + $0x1d0] sm:$0xff]
  %v92 = vld [vmem:[%s0 + $0x1d8] sm:$0xff]
  %v93 = vld [vmem:[%s0 + $0x1e0] sm:$0xff]
  %v94 = vld [vmem:[%s0 + $0x1e8] sm:$0xff]
  %v95 = vld [vmem:[%s0 + $0x1f0] sm:$0xff]
  %v96 = vld [vmem:[%s0 + $0x1f8] sm:$0xff]
  %v98 = vlaneseq
  %v99 = vshrl.u32 %v98, 7
  %v100 = vsub.s32 0, %v99
  %v101 = vrot.slane %v29, %v100
  %v103 = vmul.f32 %v33, %v101
  %v104 = vmul.f32 %v34, %v101
  %v105 = vmul.f32 %v35, %v101
  %v106 = vmul.f32 %v36, %v101
  %v107 = vmul.f32 %v37, %v101
  %v108 = vmul.f32 %v38, %v101
  %v109 = vmul.f32 %v39, %v101
  %v110 = vmul.f32 %v40, %v101
  %v111 = vmul.f32 %v41, %v101
  %v112 = vmul.f32 %v42, %v101
  %v113 = vmul.f32 %v43, %v101
  %v114 = vmul.f32 %v44, %v101
  %v115 = vmul.f32 %v45, %v101
  %v116 = vmul.f32 %v46, %v101
  %v117 = vmul.f32 %v47, %v101
  %v118 = vmul.f32 %v48, %v101
  %v119 = vmul.f32 %v49, %v101
  %v120 = vmul.f32 %v50, %v101
  %v121 = vmul.f32 %v51, %v101
  %v122 = vmul.f32 %v52, %v101
  %v123 = vmul.f32 %v53, %v101
  %v124 = vmul.f32 %v54, %v101
  %v125 = vmul.f32 %v55, %v101
  %v126 = vmul.f32 %v56, %v101
  %v127 = vmul.f32 %v57, %v101
  %v128 = vmul.f32 %v58, %v101
  %v129 = vmul.f32 %v59, %v101
  %v130 = vmul.f32 %v60, %v101
  %v131 = vmul.f32 %v61, %v101
  %v132 = vmul.f32 %v62, %v101
  %v133 = vmul.f32 %v63, %v101
  %v134 = vmul.f32 %v64, %v101
  %v135 = vmul.f32 %v65, %v101
  %v136 = vmul.f32 %v66, %v101
  %v137 = vmul.f32 %v67, %v101
  %v138 = vmul.f32 %v68, %v101
  %v139 = vmul.f32 %v69, %v101
  %v140 = vmul.f32 %v70, %v101
  %v141 = vmul.f32 %v71, %v101
  %v142 = vmul.f32 %v72, %v101
  %v143 = vmul.f32 %v73, %v101
  %v144 = vmul.f32 %v74, %v101
  %v145 = vmul.f32 %v75, %v101
  %v146 = vmul.f32 %v76, %v101
  %v147 = vmul.f32 %v77, %v101
  %v148 = vmul.f32 %v78, %v101
  %v149 = vmul.f32 %v79, %v101
  %v150 = vmul.f32 %v80, %v101
  %v151 = vmul.f32 %v81, %v101
  %v152 = vmul.f32 %v82, %v101
  %v153 = vmul.f32 %v83, %v101
  %v154 = vmul.f32 %v84, %v101
  %v155 = vmul.f32 %v85, %v101
  %v156 = vmul.f32 %v86, %v101
  %v157 = vmul.f32 %v87, %v101
  %v158 = vmul.f32 %v88, %v101
  %v159 = vmul.f32 %v89, %v101
  %v160 = vmul.f32 %v90, %v101
  %v161 = vmul.f32 %v91, %v101
  %v162 = vmul.f32 %v92, %v101
  %v163 = vmul.f32 %v93, %v101
  %v164 = vmul.f32 %v94, %v101
  %v165 = vmul.f32 %v95, %v101
  %v166 = vmul.f32 %v96, %v101
  %v168 = vlaneseq
  %v169 = vshrl.u32 %v168, 7
  %v170 = vsub.s32 0, %v169
  %v171 = vrot.slane %v32, %v170
  %v173 = vadd.f32 %v103, %v171
  %v174 = vadd.f32 %v104, %v171
  %v175 = vadd.f32 %v105, %v171
  %v176 = vadd.f32 %v106, %v171
  %v177 = vadd.f32 %v107, %v171
  %v178 = vadd.f32 %v108, %v171
  %v179 = vadd.f32 %v109, %v171
  %v180 = vadd.f32 %v110, %v171
  %v181 = vadd.f32 %v111, %v171
  %v182 = vadd.f32 %v112, %v171
  %v183 = vadd.f32 %v113, %v171
  %v184 = vadd.f32 %v114, %v171
  %v185 = vadd.f32 %v115, %v171
  %v186 = vadd.f32 %v116, %v171
  %v187 = vadd.f32 %v117, %v171
  %v188 = vadd.f32 %v118, %v171
  %v189 = vadd.f32 %v119, %v171
  %v190 = vadd.f32 %v120, %v171
  %v191 = vadd.f32 %v121, %v171
  %v192 = vadd.f32 %v122, %v171
  %v193 = vadd.f32 %v123, %v171
  %v194 = vadd.f32 %v124, %v171
  %v195 = vadd.f32 %v125, %v171
  %v196 = vadd.f32 %v126, %v171
  %v197 = vadd.f32 %v127, %v171
  %v198 = vadd.f32 %v128, %v171
  %v199 = vadd.f32 %v129, %v171
  %v200 = vadd.f32 %v130, %v171
  %v201 = vadd.f32 %v131, %v171
  %v202 = vadd.f32 %v132, %v171
  %v203 = vadd.f32 %v133, %v171
  %v204 = vadd.f32 %v134, %v171
  %v205 = vadd.f32 %v135, %v171
  %v206 = vadd.f32 %v136, %v171
  %v207 = vadd.f32 %v137, %v171
  %v208 = vadd.f32 %v138, %v171
  %v209 = vadd.f32 %v139, %v171
  %v210 = vadd.f32 %v140, %v171
  %v211 = vadd.f32 %v141, %v171
  %v212 = vadd.f32 %v142, %v171
  %v213 = vadd.f32 %v143, %v171
  %v214 = vadd.f32 %v144, %v171
  %v215 = vadd.f32 %v145, %v171
  %v216 = vadd.f32 %v146, %v171
  %v217 = vadd.f32 %v147, %v171
  %v218 = vadd.f32 %v148, %v171
  %v219 = vadd.f32 %v149, %v171
  %v220 = vadd.f32 %v150, %v171
  %v221 = vadd.f32 %v151, %v171
  %v222 = vadd.f32 %v152, %v171
  %v223 = vadd.f32 %v153, %v171
  %v224 = vadd.f32 %v154, %v171
  %v225 = vadd.f32 %v155, %v171
  %v226 = vadd.f32 %v156, %v171
  %v227 = vadd.f32 %v157, %v171
  %v228 = vadd.f32 %v158, %v171
  %v229 = vadd.f32 %v159, %v171
  %v230 = vadd.f32 %v160, %v171
  %v231 = vadd.f32 %v161, %v171
  %v232 = vadd.f32 %v162, %v171
  %v233 = vadd.f32 %v163, %v171
  %v234 = vadd.f32 %v164, %v171
  %v235 = vadd.f32 %v165, %v171
  %v236 = vadd.f32 %v166, %v171
  %v237 = vmax.f32 %v173, 0.0
  %v238 = vmax.f32 %v174, 0.0
  %v239 = vmax.f32 %v175, 0.0
  %v240 = vmax.f32 %v176, 0.0
  %v241 = vmax.f32 %v177, 0.0
  %v242 = vmax.f32 %v178, 0.0
  %v243 = vmax.f32 %v179, 0.0
  %v244 = vmax.f32 %v180, 0.0
  %v245 = vmax.f32 %v181, 0.0
  %v246 = vmax.f32 %v182, 0.0
  %v247 = vmax.f32 %v183, 0.0
  %v248 = vmax.f32 %v184, 0.0
  %v249 = vmax.f32 %v185, 0.0
  %v250 = vmax.f32 %v186, 0.0
  %v251 = vmax.f32 %v187, 0.0
  %v252 = vmax.f32 %v188, 0.0
  %v253 = vmax.f32 %v189, 0.0
  %v254 = vmax.f32 %v190, 0.0
  %v255 = vmax.f32 %v191, 0.0
  %v256 = vmax.f32 %v192, 0.0
  %v257 = vmax.f32 %v193, 0.0
  %v258 = vmax.f32 %v194, 0.0
  %v259 = vmax.f32 %v195, 0.0
  %v260 = vmax.f32 %v196, 0.0
  %v261 = vmax.f32 %v197, 0.0
  %v262 = vmax.f32 %v198, 0.0
  %v263 = vmax.f32 %v199, 0.0
  %v264 = vmax.f32 %v200, 0.0
  %v265 = vmax.f32 %v201, 0.0
  %v266 = vmax.f32 %v202, 0.0
  %v267 = vmax.f32 %v203, 0.0
  %v268 = vmax.f32 %v204, 0.0
  %v269 = vmax.f32 %v205, 0.0
  %v270 = vmax.f32 %v206, 0.0
  %v271 = vmax.f32 %v207, 0.0
  %v272 = vmax.f32 %v208, 0.0
  %v273 = vmax.f32 %v209, 0.0
  %v274 = vmax.f32 %v210, 0.0
  %v275 = vmax.f32 %v211, 0.0
  %v276 = vmax.f32 %v212, 0.0
  %v277 = vmax.f32 %v213, 0.0
  %v278 = vmax.f32 %v214, 0.0
  %v279 = vmax.f32 %v215, 0.0
  %v280 = vmax.f32 %v216, 0.0
  %v281 = vmax.f32 %v217, 0.0
  %v282 = vmax.f32 %v218, 0.0
  %v283 = vmax.f32 %v219, 0.0
  %v284 = vmax.f32 %v220, 0.0
  %v285 = vmax.f32 %v221, 0.0
  %v286 = vmax.f32 %v222, 0.0
  %v287 = vmax.f32 %v223, 0.0
  %v288 = vmax.f32 %v224, 0.0
  %v289 = vmax.f32 %v225, 0.0
  %v290 = vmax.f32 %v226, 0.0
  %v291 = vmax.f32 %v227, 0.0
  %v292 = vmax.f32 %v228, 0.0
  %v293 = vmax.f32 %v229, 0.0
  %v294 = vmax.f32 %v230, 0.0
  %v295 = vmax.f32 %v231, 0.0
  %v296 = vmax.f32 %v232, 0.0
  %v297 = vmax.f32 %v233, 0.0
  %v298 = vmax.f32 %v234, 0.0
  %v299 = vmax.f32 %v235, 0.0
  %v300 = vmax.f32 %v236, 0.0
  %vm301 = vcmask 130048
  %302 = vst.msk [vmem:[%s5] sm:$0xff] %vm301, %v237
  %303 = vst.msk [vmem:[%s5 + $0x8] sm:$0xff] %vm301, %v238
  %304 = vst.msk [vmem:[%s5 + $0x10] sm:$0xff] %vm301, %v239
  %305 = vst.msk [vmem:[%s5 + $0x18] sm:$0xff] %vm301, %v240
  %306 = vst.msk [vmem:[%s5 + $0x20] sm:$0xff] %vm301, %v241
  %307 = vst.msk [vmem:[%s5 + $0x28] sm:$0xff] %vm301, %v242
  %308 = vst.msk [vmem:[%s5 + $0x30] sm:$0xff] %vm301, %v243
  %309 = vst.msk [vmem:[%s5 + $0x38] sm:$0xff] %vm301, %v244
  %310 = vst.msk [vmem:[%s5 + $0x40] sm:$0xff] %vm301, %v245
  %311 = vst.msk [vmem:[%s5 + $0x48] sm:$0xff] %vm301, %v246
  %312 = vst.msk [vmem:[%s5 + $0x50] sm:$0xff] %vm301, %v247
  %313 = vst.msk [vmem:[%s5 + $0x58] sm:$0xff] %vm301, %v248
  %314 = vst.msk [vmem:[%s5 + $0x60] sm:$0xff] %vm301, %v249
  %315 = vst.msk [vmem:[%s5 + $0x68] sm:$0xff] %vm301, %v250
  %316 = vst.msk [vmem:[%s5 + $0x70] sm:$0xff] %vm301, %v251
  %317 = vst.msk [vmem:[%s5 + $0x78] sm:$0xff] %vm301, %v252
  %318 = vst.msk [vmem:[%s5 + $0x80] sm:$0xff] %vm301, %v253
  %319 = vst.msk [vmem:[%s5 + $0x88] sm:$0xff] %vm301, %v254
  %320 = vst.msk [vmem:[%s5 + $0x90] sm:$0xff] %vm301, %v255
  %321 = vst.msk [vmem:[%s5 + $0x98] sm:$0xff] %vm301, %v256
  %322 = vst.msk [vmem:[%s5 + $0xa0] sm:$0xff] %vm301, %v257
  %323 = vst.msk [vmem:[%s5 + $0xa8] sm:$0xff] %vm301, %v258
  %324 = vst.msk [vmem:[%s5 + $0xb0] sm:$0xff] %vm301, %v259
  %325 = vst.msk [vmem:[%s5 + $0xb8] sm:$0xff] %vm301, %v260
  %326 = vst.msk [vmem:[%s5 + $0xc0] sm:$0xff] %vm301, %v261
  %327 = vst.msk [vmem:[%s5 + $0xc8] sm:$0xff] %vm301, %v262
  %328 = vst.msk [vmem:[%s5 + $0xd0] sm:$0xff] %vm301, %v263
  %329 = vst.msk [vmem:[%s5 + $0xd8] sm:$0xff] %vm301, %v264
  %330 = vst.msk [vmem:[%s5 + $0xe0] sm:$0xff] %vm301, %v265
  %331 = vst.msk [vmem:[%s5 + $0xe8] sm:$0xff] %vm301, %v266
  %332 = vst.msk [vmem:[%s5 + $0xf0] sm:$0xff] %vm301, %v267
  %333 = vst.msk [vmem:[%s5 + $0xf8] sm:$0xff] %vm301, %v268
  %334 = vst.msk [vmem:[%s5 + $0x100] sm:$0xff] %vm301, %v269
  %335 = vst.msk [vmem:[%s5 + $0x108] sm:$0xff] %vm301, %v270
  %336 = vst.msk [vmem:[%s5 + $0x110] sm:$0xff] %vm301, %v271
  %337 = vst.msk [vmem:[%s5 + $0x118] sm:$0xff] %vm301, %v272
  %338 = vst.msk [vmem:[%s5 + $0x120] sm:$0xff] %vm301, %v273
  %339 = vst.msk [vmem:[%s5 + $0x128] sm:$0xff] %vm301, %v274
  %340 = vst.msk [vmem:[%s5 + $0x130] sm:$0xff] %vm301, %v275
  %341 = vst.msk [vmem:[%s5 + $0x138] sm:$0xff] %vm301, %v276
  %342 = vst.msk [vmem:[%s5 + $0x140] sm:$0xff] %vm301, %v277
  %343 = vst.msk [vmem:[%s5 + $0x148] sm:$0xff] %vm301, %v278
  %344 = vst.msk [vmem:[%s5 + $0x150] sm:$0xff] %vm301, %v279
  %345 = vst.msk [vmem:[%s5 + $0x158] sm:$0xff] %vm301, %v280
  %346 = vst.msk [vmem:[%s5 + $0x160] sm:$0xff] %vm301, %v281
  %347 = vst.msk [vmem:[%s5 + $0x168] sm:$0xff] %vm301, %v282
  %348 = vst.msk [vmem:[%s5 + $0x170] sm:$0xff] %vm301, %v283
  %349 = vst.msk [vmem:[%s5 + $0x178] sm:$0xff] %vm301, %v284
  %350 = vst.msk [vmem:[%s5 + $0x180] sm:$0xff] %vm301, %v285
  %351 = vst.msk [vmem:[%s5 + $0x188] sm:$0xff] %vm301, %v286
  %352 = vst.msk [vmem:[%s5 + $0x190] sm:$0xff] %vm301, %v287
  %353 = vst.msk [vmem:[%s5 + $0x198] sm:$0xff] %vm301, %v288
  %354 = vst.msk [vmem:[%s5 + $0x1a0] sm:$0xff] %vm301, %v289
  %355 = vst.msk [vmem:[%s5 + $0x1a8] sm:$0xff] %vm301, %v290
  %356 = vst.msk [vmem:[%s5 + $0x1b0] sm:$0xff] %vm301, %v291
  %357 = vst.msk [vmem:[%s5 + $0x1b8] sm:$0xff] %vm301, %v292
  %358 = vst.msk [vmem:[%s5 + $0x1c0] sm:$0xff] %vm301, %v293
  %359 = vst.msk [vmem:[%s5 + $0x1c8] sm:$0xff] %vm301, %v294
  %360 = vst.msk [vmem:[%s5 + $0x1d0] sm:$0xff] %vm301, %v295
  %361 = vst.msk [vmem:[%s5 + $0x1d8] sm:$0xff] %vm301, %v296
  %362 = vst.msk [vmem:[%s5 + $0x1e0] sm:$0xff] %vm301, %v297
  %363 = vst.msk [vmem:[%s5 + $0x1e8] sm:$0xff] %vm301, %v298
  %364 = vst.msk [vmem:[%s5 + $0x1f0] sm:$0xff] %vm301, %v299
  %365 = vst.msk [vmem:[%s5 + $0x1f8] sm:$0xff] %vm301, %v300
  // Predicated region
  $region22: #{_lambda_.22} parent=0 // pred_check
    _
  $region23: #{_lambda_.22} parent=0 // pred_check_branch
    %367 = sbr.rel (0) target = $region25
  $region24: #{_lambda_.22} parent=0 // pred_region
    _
  $region25: #{_lambda_.22} parent=0 // pred_fallthru
    _
  // Predicated region
  $region26: #{_lambda_.22} parent=0 // pred_check
    _
  $region27: #{_lambda_.22} parent=0 // pred_check_branch
    %369 = sbr.rel (0) target = $region29
  $region28: #{_lambda_.22} parent=0 // pred_region
    _
  $region29: #{_lambda_.22} parent=0 // pred_fallthru
    _

// kernel: _lambda_.23
$region0: #{_lambda_.23}
  #allocation0 [shape = 'u32[]', space=smem, size = 0x4, offset = 0x4, fixed_abs, tag = 'smem constant byte address 0x4 - core index']
  #allocation1 [shape = 'u32[144,128]{1,0:T(1,128)}', space=vmem, size = 0x12000, scoped, tag = 'internal scratch']
  %s0 = inlined_call_operand.vmem [shape: bf16[512,16], index: 0, kind: input, shape index: {}]
  %s1 = inlined_call_operand.vmem [shape: bf16[16,128], index: 1, kind: input, shape index: {}]
  %s2 = inlined_call_operand.vmem [shape: f32[512,128], index: 2, kind: output, shape index: {}]
  %s3 = sld [smem:[#allocation0]]
  $region41: #{_lambda_.23} parent=0
    _
  %s5 = ssub.s32 1, %s3
  %s6 = scalar_select 0, %s5, %s3
  loop: start=0, step=1, limit=4
  $region2: #{_lambda_.23} parent=0 // loop_pre_header
    _
  $region3: #{_lambda_.23} parent=0 // loop_header
    %s8 = sphi 0, %s12
    %p9 = scmp.ge.s32.totalorder %s8, 4
    %s18 = sphi 0, %s20
    %s21 = sphi 0, %s18
    %s22 = sphi 0, %s21
    %s38 = sphi 0, %s22
    %s42 = sphi 0, %s42
    %s44 = sphi 0, %s42
    %s45 = sphi 0, %s44
    %s59 = sphi 0, %s45
    %s65 = sphi 0, %s67
    %s68 = sphi 0, %s65
    %s69 = sphi 0, %s68
    %s85 = sphi 0, %s69
  $region4: #{_lambda_.23} parent=0 // loop_header_branch
    %11 = sbr.rel (%p9) target = $region8
  $region5: #{_lambda_.23} parent=0 // loop_body
    %s13 = ssub.s32 %s8, 1
    %s14 = ssub.s32 %s8, 2
    %s15 = sadd.s32 %s8, 1
    %s16 = ssub.s32 %s8, %s15
    %p17 = scmp.eq.s32.totalorder %s16, 0
    %s19 = sadd.s32 %s18, 1
    %s20 = scalar_select %p17, %s18, %s19
    %p23 = pneg %p17
    %p24 = scmp.eq.s32.totalorder %s8, 1
    %p25 = por %p23, %p24
    %p26 = scmp.ne.s32.totalorder %s18, %s21
    %p27 = scmp.eq.s32.totalorder %s8, 0
    %p28 = por %p26, %p27
    %p29 = scmp.ne.s32.totalorder %s18, %s21
    %p30 = scmp.eq.s32.totalorder %s13, 1
    %p31 = por %p29, %p30
    %p32 = scmp.ne.s32.totalorder %s21, %s22
    %p33 = scmp.eq.s32.totalorder %s13, 0
    %p34 = por %p32, %p33
    %p35 = scmp.ne.s32.totalorder %s21, %s22
    %p36 = scmp.eq.s32.totalorder %s14, 1
    %p37 = por %p35, %p36
    %p39 = scmp.ne.s32.totalorder %s22, %s38
    %p40 = scmp.eq.s32.totalorder %s14, 0
    %p41 = por %p39, %p40
    %s43 = sadd.s32 %s42, 1
    %p46 = scmp.eq.s32.totalorder %s8, 1
    %p47 = scmp.ne.s32.totalorder %s42, %s44
    %p48 = scmp.eq.s32.totalorder %s8, 0
    %p49 = por %p47, %p48
    %p50 = scmp.ne.s32.totalorder %s42, %s44
    %p51 = scmp.eq.s32.totalorder %s13, 1
    %p52 = por %p50, %p51
    %p53 = scmp.ne.s32.totalorder %s44, %s45
    %p54 = scmp.eq.s32.totalorder %s13, 0
    %p55 = por %p53, %p54
    %p56 = scmp.ne.s32.totalorder %s44, %s45
    %p57 = scmp.eq.s32.totalorder %s14, 1
    %p58 = por %p56, %p57
    %p60 = scmp.ne.s32.totalorder %s45, %s59
    %p61 = scmp.eq.s32.totalorder %s14, 0
    %p62 = por %p60, %p61
    %s63 = ssub.s32 %s8, %s15
    %p64 = scmp.eq.s32.totalorder %s63, 0
    %s66 = sadd.s32 %s65, 1
    %s67 = scalar_select %p64, %s65, %s66
    %p70 = pneg %p64
    %p71 = scmp.eq.s32.totalorder %s8, 1
    %p72 = por %p70, %p71
    %p73 = scmp.ne.s32.totalorder %s65, %s68
    %p74 = scmp.eq.s32.totalorder %s8, 0
    %p75 = por %p73, %p74
    %p76 = scmp.ne.s32.totalorder %s65, %s68
    %p77 = scmp.eq.s32.totalorder %s13, 1
    %p78 = por %p76, %p77
    %p79 = scmp.ne.s32.totalorder %s68, %s69
    %p80 = scmp.eq.s32.totalorder %s13, 0
    %p81 = por %p79, %p80
    %p82 = scmp.ne.s32.totalorder %s68, %s69
    %p83 = scmp.eq.s32.totalorder %s14, 1
    %p84 = por %p82, %p83
    %p86 = scmp.ne.s32.totalorder %s69, %s85
    %p87 = scmp.eq.s32.totalorder %s14, 0
    %p88 = por %p86, %p87
    %p89 = scmp.le.s32.totalorder 1, %s8
    %p90 = scmp.lt.s32.totalorder %s8, 3
    %p91 = pnand %p89, %p90
    %p92 = pneg %p91
    // Predicated region
    $region9: #{_lambda_.23} parent=5 // pred_check
      _
    $region10: #{_lambda_.23} parent=5 // pred_check_branch
      %94 = sbr.rel (%p91) target = $region12
    $region11: #{_lambda_.23} parent=5 // pred_region
      %s95 = ssub.s32 %s8, 1
      // Predicated region
      $region13: #{_lambda_.23} parent=11 // pred_check
        %p96 = pneg %p55
      $region14: #{_lambda_.23} parent=11 // pred_check_branch
        %98 = sbr.rel (%p96) target = $region16
      $region15: #{_lambda_.23} parent=11 // pred_region
        _
      $region16: #{_lambda_.23} parent=11 // pred_fallthru
        _
    $region12: #{_lambda_.23} parent=5 // pred_fallthru
      _
    %p99 = scmp.lt.s32.totalorder %s8, 2
    // Predicated region
    $region17: #{_lambda_.23} parent=5 // pred_check
      %p100 = pneg %p99
    $region18: #{_lambda_.23} parent=5 // pred_check_branch
      %102 = sbr.rel (%p100) target = $region20
    $region19: #{_lambda_.23} parent=5 // pred_region
      // Predicated region
      $region21: #{_lambda_.23} parent=19 // pred_check
        %p103 = pneg %p28
      $region22: #{_lambda_.23} parent=19 // pred_check_branch
        %105 = sbr.rel (%p103) target = $region24
      $region23: #{_lambda_.23} parent=19 // pred_region
        %s106 = smul.u32 32, %s8
        %p107 = scmp.lt.s32.totalorder %s106, 63
        %s108 = scalar_select %p107, %s106, 63
        %s109 = smul.addr %s108, 4
        %s110 = scalar_lea.vmem %s0, %s109
        %s111 = smul.u32 32, %s8
      $region24: #{_lambda_.23} parent=19 // pred_fallthru
        _
    $region20: #{_lambda_.23} parent=5 // pred_fallthru
      _
    %p112 = scmp.le.s32.totalorder 1, %s8
    %p113 = scmp.lt.s32.totalorder %s8, 3
    %p114 = pnand %p112, %p113
    %p115 = pneg %p114
    // Predicated region
    $region25: #{_lambda_.23} parent=5 // pred_check
      _
    $region26: #{_lambda_.23} parent=5 // pred_check_branch
      %117 = sbr.rel (%p114) target = $region28
    $region27: #{_lambda_.23} parent=5 // pred_region
      %s118 = ssub.s32 %s8, 1
      %s119 = smul.u32 32, %s13
      %p120 = scmp.lt.s32.totalorder %s119, 63
      %s121 = scalar_select %p120, %s119, 63
      %s122 = smul.addr %s121, 4
      %s123 = scalar_lea.vmem %s0, %s122
      %p124 = pneg %p34
      %p125 = pneg %p31
      %p126 = pneg %p55
      %p127 = pneg %p52
      %p128 = pneg %p81
      %p129 = pneg %p78
      %s130 = smul.u32 32, %s13
      %p131 = scmp.lt.s32.totalorder %s130, 63
      %s132 = scalar_select %p131, %s130, 63
      %s133 = smul.addr %s132, 8
      %s134 = scalar_lea.vmem %s2, %s133
      %s135 = smul.u32 32, %s13
      %p136 = scmp.lt.s32.totalorder %s135, 63
      %s137 = scalar_select %p136, %s135, 63
      %s138 = smul.addr %s137, 4
      %s139 = scalar_lea.vmem %s0, %s138
      %s140 = smul.u32 32, %s13
      %s141 = smul.u32 32, %s13
      %p142 = scmp.lt.s32.totalorder %s141, 63
      %s143 = scalar_select %p142, %s141, 63
      %s144 = smul.addr %s143, 8
      %s145 = scalar_lea.vmem %s2, %s144
      %s146 = smul.u32 32, %s13
      %v148 = vld [vmem:[%s139] sm:$0xf]
      %v149 = vld [vmem:[%s139 + $0x4] sm:$0xf]
      %v150 = vld [vmem:[%s139 + $0x8] sm:$0xf]
      %v151 = vld [vmem:[%s139 + $0xc] sm:$0xf]
      %v152 = vld [vmem:[%s139 + $0x10] sm:$0xf]
      %v153 = vld [vmem:[%s139 + $0x14] sm:$0xf]
      %v154 = vld [vmem:[%s139 + $0x18] sm:$0xf]
      %v155 = vld [vmem:[%s139 + $0x1c] sm:$0xf]
      %v156 = vld [vmem:[%s139 + $0x20] sm:$0xf]
      %v157 = vld [vmem:[%s139 + $0x24] sm:$0xf]
      %v158 = vld [vmem:[%s139 + $0x28] sm:$0xf]
      %v159 = vld [vmem:[%s139 + $0x2c] sm:$0xf]
      %v160 = vld [vmem:[%s139 + $0x30] sm:$0xf]
      %v161 = vld [vmem:[%s139 + $0x34] sm:$0xf]
      %v162 = vld [vmem:[%s139 + $0x38] sm:$0xf]
      %v163 = vld [vmem:[%s139 + $0x3c] sm:$0xf]
      %v164 = vld [vmem:[%s139 + $0x40] sm:$0xf]
      %v165 = vld [vmem:[%s139 + $0x44] sm:$0xf]
      %v166 = vld [vmem:[%s139 + $0x48] sm:$0xf]
      %v167 = vld [vmem:[%s139 + $0x4c] sm:$0xf]
      %v168 = vld [vmem:[%s139 + $0x50] sm:$0xf]
      %v169 = vld [vmem:[%s139 + $0x54] sm:$0xf]
      %v170 = vld [vmem:[%s139 + $0x58] sm:$0xf]
      %v171 = vld [vmem:[%s139 + $0x5c] sm:$0xf]
      %v172 = vld [vmem:[%s139 + $0x60] sm:$0xf]
      %v173 = vld [vmem:[%s139 + $0x64] sm:$0xf]
      %v174 = vld [vmem:[%s139 + $0x68] sm:$0xf]
      %v175 = vld [vmem:[%s139 + $0x6c] sm:$0xf]
      %v176 = vld [vmem:[%s139 + $0x70] sm:$0xf]
      %v177 = vld [vmem:[%s139 + $0x74] sm:$0xf]
      %v178 = vld [vmem:[%s139 + $0x78] sm:$0xf]
      %v179 = vld [vmem:[%s139 + $0x7c] sm:$0xf]
      %v180 = vld [vmem:[%s1] sm:$0xf]
      %v181 = vld [vmem:[%s1 + $0x4] sm:$0xf]
      %v214 = vunpack.c.l.b16 %v148
      %v215 = vunpack.c.l.b16 %v149
      %v216 = vunpack.c.l.b16 %v150
      %v217 = vunpack.c.l.b16 %v151
      %v218 = vunpack.c.l.b16 %v152
      %v219 = vunpack.c.l.b16 %v153
      %v220 = vunpack.c.l.b16 %v154
      %v221 = vunpack.c.l.b16 %v155
      %v222 = vunpack.c.l.b16 %v156
      %v223 = vunpack.c.l.b16 %v157
      %v224 = vunpack.c.l.b16 %v158
      %v225 = vunpack.c.l.b16 %v159
      %v226 = vunpack.c.l.b16 %v160
      %v227 = vunpack.c.l.b16 %v161
      %v228 = vunpack.c.l.b16 %v162
      %v229 = vunpack.c.l.b16 %v163
      %v230 = vunpack.c.l.b16 %v164
      %v231 = vunpack.c.l.b16 %v165
      %v232 = vunpack.c.l.b16 %v166
      %v233 = vunpack.c.l.b16 %v167
      %v234 = vunpack.c.l.b16 %v168
      %v235 = vunpack.c.l.b16 %v169
      %v236 = vunpack.c.l.b16 %v170
      %v237 = vunpack.c.l.b16 %v171
      %v238 = vunpack.c.l.b16 %v172
      %v239 = vunpack.c.l.b16 %v173
      %v240 = vunpack.c.l.b16 %v174
      %v241 = vunpack.c.l.b16 %v175
      %v242 = vunpack.c.l.b16 %v176
      %v243 = vunpack.c.l.b16 %v177
      %v244 = vunpack.c.l.b16 %v178
      %v245 = vunpack.c.l.b16 %v179
      %v246 = vpack.c.b16 %v215, %v214
      %v247 = vpack.c.b16 %v217, %v216
      %v248 = vpack.c.b16 %v219, %v218
      %v249 = vpack.c.b16 %v221, %v220
      %v250 = vpack.c.b16 %v223, %v222
      %v251 = vpack.c.b16 %v225, %v224
      %v252 = vpack.c.b16 %v227, %v226
      %v253 = vpack.c.b16 %v229, %v228
      %v254 = vpack.c.b16 %v231, %v230
      %v255 = vpack.c.b16 %v233, %v232
      %v256 = vpack.c.b16 %v235, %v234
      %v257 = vpack.c.b16 %v237, %v236
      %v258 = vpack.c.b16 %v239, %v238
      %v259 = vpack.c.b16 %v241, %v240
      %v260 = vpack.c.b16 %v243, %v242
      %v261 = vpack.c.b16 %v245, %v244
      %v264 = vunpack.c.l.b16 %v180
      %v265 = vunpack.c.l.b16 %v181
      %v266 = vpack.c.b16 %v265, %v264
      %vm268 = vcmask 130048
      %v270 = vsel %vm268, %v246, 0
      %v273 = vsel %vm268, %v247, 0
      %v276 = vsel %vm268, %v248, 0
      %v279 = vsel %vm268, %v249, 0
      %v282 = vsel %vm268, %v250, 0
      %v285 = vsel %vm268, %v251, 0
      %v288 = vsel %vm268, %v252, 0
      %v291 = vsel %vm268, %v253, 0
      %v294 = vsel %vm268, %v254, 0
      %v297 = vsel %vm268, %v255, 0
      %v300 = vsel %vm268, %v256, 0
      %v303 = vsel %vm268, %v257, 0
      %v306 = vsel %vm268, %v258, 0
      %v309 = vsel %vm268, %v259, 0
      %v312 = vsel %vm268, %v260, 0
      %v315 = vsel %vm268, %v261, 0
      %317 = vmatprep.subr.bf16.mxu0 0
      %318 = vmatpush1.bf16.msra.mxu0 0
      %319 = vmatprep.subr.bf16.mxu0 0
      %320 = vmatpush1.bf16.msra.mxu0 0
      %321 = vmatprep.subr.bf16.mxu0 0
      %322 = vmatpush1.bf16.msra.mxu0 0
      %323 = vmatprep.subr.bf16.mxu0 0
      %324 = vmatpush1.bf16.msra.mxu0 0
      %325 = vmatprep.subr.bf16.mxu0 0
      %326 = vmatpush1.bf16.msra.mxu0 0
      %327 = vmatprep.subr.bf16.mxu0 0
      %328 = vmatpush1.bf16.msra.mxu0 0
      %329 = vmatprep.subr.bf16.mxu0 0
      %330 = vmatpush1.bf16.msra.mxu0 0
      %331 = vmatprep.subr.bf16.mxu0 0
      %332 = vmatpush1.bf16.msra.mxu0 %v266
      %333 = vmatprep.subr.bf16.mxu0 0
      %334 = vmatpush2.bf16.msra.mxu0 0
      %335 = vmatprep.subr.bf16.mxu0 0
      %336 = vmatpush2.bf16.msra.mxu0 0
      %337 = vmatprep.subr.bf16.mxu0 0
      %338 = vmatpush2.bf16.msra.mxu0 0
      %339 = vmatprep.subr.bf16.mxu0 0
      %340 = vmatpush2.bf16.msra.mxu0 0
      %341 = vmatprep.subr.bf16.mxu0 0
      %342 = vmatpush2.bf16.msra.mxu0 0
      %343 = vmatprep.subr.bf16.mxu0 0
      %344 = vmatpush2.bf16.msra.mxu0 0
      %345 = vmatprep.subr.bf16.mxu0 0
      %346 = vmatpush2.bf16.msra.mxu0 0
      %347 = vmatprep.subr.bf16.mxu0 0
      %348 = vmatpush2.bf16.msra.mxu0 0
      %349 = vmatprep.mubr.bf16.mxu0 0
      %350 = vmatmul.mubr.bf16.gmra.mxu0 %v270
      %v351 = vpop.f32.mrf.mxu0
      %v352 = vadd.f32 0.0, %v351
      %v353 = vpop.f32.mrf.mxu0
      %v354 = vpop.f32.mrf.mxu0
      %v355 = vadd.f32 0.0, %v354
      %v356 = vpop.f32.mrf.mxu0
      %357 = vmatprep.mubr.bf16.mxu0 0
      %358 = vmatmul.mubr.bf16.gmra.mxu0 %v273
      %v359 = vpop.f32.mrf.mxu0
      %v360 = vadd.f32 0.0, %v359
      %v361 = vpop.f32.mrf.mxu0
      %v362 = vpop.f32.mrf.mxu0
      %v363 = vadd.f32 0.0, %v362
      %v364 = vpop.f32.mrf.mxu0
      %365 = vmatprep.mubr.bf16.mxu0 0
      %366 = vmatmul.mubr.bf16.gmra.mxu0 %v276
      %v367 = vpop.f32.mrf.mxu0
      %v368 = vadd.f32 0.0, %v367
      %v369 = vpop.f32.mrf.mxu0
      %v370 = vpop.f32.mrf.mxu0
      %v371 = vadd.f32 0.0, %v370
      %v372 = vpop.f32.mrf.mxu0
      %373 = vmatprep.mubr.bf16.mxu0 0
      %374 = vmatmul.mubr.bf16.gmra.mxu0 %v279
      %v375 = vpop.f32.mrf.mxu0
      %v376 = vadd.f32 0.0, %v375
      %v377 = vpop.f32.mrf.mxu0
      %v378 = vpop.f32.mrf.mxu0
      %v379 = vadd.f32 0.0, %v378
      %v380 = vpop.f32.mrf.mxu0
      %381 = vmatprep.mubr.bf16.mxu0 0
      %382 = vmatmul.mubr.bf16.gmra.mxu0 %v282
      %v383 = vpop.f32.mrf.mxu0
      %v384 = vadd.f32 0.0, %v383
      %v385 = vpop.f32.mrf.mxu0
      %v386 = vpop.f32.mrf.mxu0
      %v387 = vadd.f32 0.0, %v386
      %v388 = vpop.f32.mrf.mxu0
      %389 = vmatprep.mubr.bf16.mxu0 0
      %390 = vmatmul.mubr.bf16.gmra.mxu0 %v285
      %v391 = vpop.f32.mrf.mxu0
      %v392 = vadd.f32 0.0, %v391
      %v393 = vpop.f32.mrf.mxu0
      %v394 = vpop.f32.mrf.mxu0
      %v395 = vadd.f32 0.0, %v394
      %v396 = vpop.f32.mrf.mxu0
      %397 = vmatprep.mubr.bf16.mxu0 0
      %398 = vmatmul.mubr.bf16.gmra.mxu0 %v288
      %v399 = vpop.f32.mrf.mxu0
      %v400 = vadd.f32 0.0, %v399
      %v401 = vpop.f32.mrf.mxu0
      %v402 = vpop.f32.mrf.mxu0
      %v403 = vadd.f32 0.0, %v402
      %v404 = vpop.f32.mrf.mxu0
      %405 = vmatprep.mubr.bf16.mxu0 0
      %406 = vmatmul.mubr.bf16.gmra.mxu0 %v291
      %v407 = vpop.f32.mrf.mxu0
      %v408 = vadd.f32 0.0, %v407
      %v409 = vpop.f32.mrf.mxu0
      %v410 = vpop.f32.mrf.mxu0
      %v411 = vadd.f32 0.0, %v410
      %v412 = vpop.f32.mrf.mxu0
      %413 = vmatprep.mubr.bf16.mxu0 0
      %414 = vmatmul.mubr.bf16.gmra.mxu0 %v294
      %v415 = vpop.f32.mrf.mxu0
      %v416 = vadd.f32 0.0, %v415
      %v417 = vpop.f32.mrf.mxu0
      %v418 = vpop.f32.mrf.mxu0
      %v419 = vadd.f32 0.0, %v418
      %v420 = vpop.f32.mrf.mxu0
      %421 = vmatprep.mubr.bf16.mxu0 0
      %422 = vmatmul.mubr.bf16.gmra.mxu0 %v297
      %v423 = vpop.f32.mrf.mxu0
      %v424 = vadd.f32 0.0, %v423
      %v425 = vpop.f32.mrf.mxu0
      %v426 = vpop.f32.mrf.mxu0
      %v427 = vadd.f32 0.0, %v426
      %v428 = vpop.f32.mrf.mxu0
      %429 = vmatprep.mubr.bf16.mxu0 0
      %430 = vmatmul.mubr.bf16.gmra.mxu0 %v300
      %v431 = vpop.f32.mrf.mxu0
      %v432 = vadd.f32 0.0, %v431
      %v433 = vpop.f32.mrf.mxu0
      %v434 = vpop.f32.mrf.mxu0
      %v435 = vadd.f32 0.0, %v434
      %v436 = vpop.f32.mrf.mxu0
      %437 = vmatprep.mubr.bf16.mxu0 0
      %438 = vmatmul.mubr.bf16.gmra.mxu0 %v303
      %v439 = vpop.f32.mrf.mxu0
      %v440 = vadd.f32 0.0, %v439
      %v441 = vpop.f32.mrf.mxu0
      %v442 = vpop.f32.mrf.mxu0
      %v443 = vadd.f32 0.0, %v442
      %v444 = vpop.f32.mrf.mxu0
      %445 = vmatprep.mubr.bf16.mxu0 0
      %446 = vmatmul.mubr.bf16.gmra.mxu0 %v306
      %v447 = vpop.f32.mrf.mxu0
      %v448 = vadd.f32 0.0, %v447
      %v449 = vpop.f32.mrf.mxu0
      %v450 = vpop.f32.mrf.mxu0
      %v451 = vadd.f32 0.0, %v450
      %v452 = vpop.f32.mrf.mxu0
      %453 = vmatprep.mubr.bf16.mxu0 0
      %454 = vmatmul.mubr.bf16.gmra.mxu0 %v309
      %v455 = vpop.f32.mrf.mxu0
      %v456 = vadd.f32 0.0, %v455
      %v457 = vpop.f32.mrf.mxu0
      %v458 = vpop.f32.mrf.mxu0
      %v459 = vadd.f32 0.0, %v458
      %v460 = vpop.f32.mrf.mxu0
      %461 = vmatprep.mubr.bf16.mxu0 0
      %462 = vmatmul.mubr.bf16.gmra.mxu0 %v312
      %v463 = vpop.f32.mrf.mxu0
      %v464 = vadd.f32 0.0, %v463
      %v465 = vpop.f32.mrf.mxu0
      %v466 = vpop.f32.mrf.mxu0
      %v467 = vadd.f32 0.0, %v466
      %v468 = vpop.f32.mrf.mxu0
      %469 = vmatprep.mubr.bf16.mxu0 0
      %470 = vmatmul.mubr.bf16.gmra.mxu0 %v315
      %v471 = vpop.f32.mrf.mxu0
      %v472 = vadd.f32 0.0, %v471
      %v473 = vpop.f32.mrf.mxu0
      %v474 = vpop.f32.mrf.mxu0
      %v475 = vadd.f32 0.0, %v474
      %v476 = vpop.f32.mrf.mxu0
      %477 = vdwg.mxu0
      %478 = vst [vmem:[%s145] sm:$0xff] %v352
      %479 = vst [vmem:[%s145 + $0x8] sm:$0xff] %v355
      %480 = vst [vmem:[%s145 + $0x10] sm:$0xff] %v360
      %481 = vst [vmem:[%s145 + $0x18] sm:$0xff] %v363
      %482 = vst [vmem:[%s145 + $0x20] sm:$0xff] %v368
      %483 = vst [vmem:[%s145 + $0x28] sm:$0xff] %v371
      %484 = vst [vmem:[%s145 + $0x30] sm:$0xff] %v376
      %485 = vst [vmem:[%s145 + $0x38] sm:$0xff] %v379
      %486 = vst [vmem:[%s145 + $0x40] sm:$0xff] %v384
      %487 = vst [vmem:[%s145 + $0x48] sm:$0xff] %v387
      %488 = vst [vmem:[%s145 + $0x50] sm:$0xff] %v392
      %489 = vst [vmem:[%s145 + $0x58] sm:$0xff] %v395
      %490 = vst [vmem:[%s145 + $0x60] sm:$0xff] %v400
      %491 = vst [vmem:[%s145 + $0x68] sm:$0xff] %v403
      %492 = vst [vmem:[%s145 + $0x70] sm:$0xff] %v408
      %493 = vst [vmem:[%s145 + $0x78] sm:$0xff] %v411
      %494 = vst [vmem:[%s145 + $0x80] sm:$0xff] %v416
      %495 = vst [vmem:[%s145 + $0x88] sm:$0xff] %v419
      %496 = vst [vmem:[%s145 + $0x90] sm:$0xff] %v424
      %497 = vst [vmem:[%s145 + $0x98] sm:$0xff] %v427
      %498 = vst [vmem:[%s145 + $0xa0] sm:$0xff] %v432
      %499 = vst [vmem:[%s145 + $0xa8] sm:$0xff] %v435
      %500 = vst [vmem:[%s145 + $0xb0] sm:$0xff] %v440
      %501 = vst [vmem:[%s145 + $0xb8] sm:$0xff] %v443
      %502 = vst [vmem:[%s145 + $0xc0] sm:$0xff] %v448
      %503 = vst [vmem:[%s145 + $0xc8] sm:$0xff] %v451
      %504 = vst [vmem:[%s145 + $0xd0] sm:$0xff] %v456
      %505 = vst [vmem:[%s145 + $0xd8] sm:$0xff] %v459
      %506 = vst [vmem:[%s145 + $0xe0] sm:$0xff] %v464
      %507 = vst [vmem:[%s145 + $0xe8] sm:$0xff] %v467
      %508 = vst [vmem:[%s145 + $0xf0] sm:$0xff] %v472
      %509 = vst [vmem:[%s145 + $0xf8] sm:$0xff] %v475
      %s510 = smul.u32 32, %s13
      %p511 = scmp.lt.s32.totalorder %s510, 63
      %s512 = scalar_select %p511, %s510, 63
      %s513 = smul.addr %s512, 8
      %s514 = scalar_lea.vmem %s2, %s513
      // Predicated region
      $region29: #{_lambda_.23} parent=27 // pred_check
        %p515 = pneg %p78
      $region30: #{_lambda_.23} parent=27 // pred_check_branch
        %517 = sbr.rel (%p515) target = $region32
      $region31: #{_lambda_.23} parent=27 // pred_region
        %s518 = smul.u32 32, %s13
      $region32: #{_lambda_.23} parent=27 // pred_fallthru
        _
    $region28: #{_lambda_.23} parent=5 // pred_fallthru
      _
    %p519 = scmp.le.s32.totalorder 2, %s8
    // Predicated region
    $region33: #{_lambda_.23} parent=5 // pred_check
      %p520 = pneg %p519
    $region34: #{_lambda_.23} parent=5 // pred_check_branch
      %522 = sbr.rel (%p520) target = $region36
    $region35: #{_lambda_.23} parent=5 // pred_region
      %s523 = ssub.s32 %s8, 2
      // Predicated region
      $region37: #{_lambda_.23} parent=35 // pred_check
        %p524 = pneg %p84
      $region38: #{_lambda_.23} parent=35 // pred_check_branch
        %526 = sbr.rel (%p524) target = $region40
      $region39: #{_lambda_.23} parent=35 // pred_region
        %s527 = smul.u32 32, %s14
        %p528 = scmp.lt.s32.totalorder %s527, 63
        %s529 = scalar_select %p528, %s527, 63
        %s530 = smul.addr %s529, 8
        %s531 = scalar_lea.vmem %s2, %s530
      $region40: #{_lambda_.23} parent=35 // pred_fallthru
        _
    $region36: #{_lambda_.23} parent=5 // pred_fallthru
      _
  $region6: #{_lambda_.23} parent=0 // loop_footer
    %s12 = sadd.s32 1, %s8
  $region7: #{_lambda_.23} parent=0 // loop_footer_branch
    %7 = sbr.rel target = $region3
  $region8: #{_lambda_.23} parent=0 // loop_exit
    _

// kernel: _lambda_.24
$region0: #{_lambda_.24}
  #allocation0 [shape = 'u32[]', space=smem, size = 0x4, offset = 0x4, fixed_abs, tag = 'smem constant byte address 0x4 - core index']
  #allocation1 [shape = 'u32[144,128]{1,0:T(1,128)}', space=vmem, size = 0x12000, scoped, tag = 'internal scratch']
  %s0 = inlined_call_operand.vmem [shape: f32[2048,8], index: 0, kind: input, shape index: {}]
  %s1 = inlined_call_operand.vmem [shape: f32[1,8], index: 1, kind: output, shape index: {0}]
  %s2 = inlined_call_operand.vmem [shape: f32[1,8], index: 2, kind: output, shape index: {1}]
  %3 = xla_tuple %s1, %s2
  %s4 = sld [smem:[#allocation0]]
  $region26: #{_lambda_.24} parent=0
    _
  %s6 = ssub.s32 1, %s4
  %s7 = scalar_select 0, %s6, %s4
  // Predicated region
  $region2: #{_lambda_.24} parent=0 // pred_check
    _
  $region3: #{_lambda_.24} parent=0 // pred_check_branch
    %9 = sbr.rel (0) target = $region5
  $region4: #{_lambda_.24} parent=0 // pred_region
    _
  $region5: #{_lambda_.24} parent=0 // pred_fallthru
    _
  %p10 = scmp.eq.s32.totalorder 0, 0
  // Predicated region
  $region6: #{_lambda_.24} parent=0 // pred_check
    %p11 = pneg %p10
  $region7: #{_lambda_.24} parent=0 // pred_check_branch
    %13 = sbr.rel (%p11) target = $region9
  $region8: #{_lambda_.24} parent=0 // pred_region
    %vm14 = vcmask 57344
    %15 = vst.msk [vmem:[%s1] sm:$0x1] %vm14, 0.0
    %16 = vst.msk [vmem:[%s2] sm:$0x1] %vm14, 0.0
  $region9: #{_lambda_.24} parent=0 // pred_fallthru
    _
  %v17 = vld [vmem:[%s0] sm:$0xff]
  %v18 = vld [vmem:[%s0 + $0x8] sm:$0xff]
  %v19 = vld [vmem:[%s0 + $0x10] sm:$0xff]
  %v20 = vld [vmem:[%s0 + $0x18] sm:$0xff]
  %v21 = vld [vmem:[%s0 + $0x20] sm:$0xff]
  %v22 = vld [vmem:[%s0 + $0x28] sm:$0xff]
  %v23 = vld [vmem:[%s0 + $0x30] sm:$0xff]
  %v24 = vld [vmem:[%s0 + $0x38] sm:$0xff]
  %v25 = vld [vmem:[%s0 + $0x40] sm:$0xff]
  %v26 = vld [vmem:[%s0 + $0x48] sm:$0xff]
  %v27 = vld [vmem:[%s0 + $0x50] sm:$0xff]
  %v28 = vld [vmem:[%s0 + $0x58] sm:$0xff]
  %v29 = vld [vmem:[%s0 + $0x60] sm:$0xff]
  %v30 = vld [vmem:[%s0 + $0x68] sm:$0xff]
  %v31 = vld [vmem:[%s0 + $0x70] sm:$0xff]
  %v32 = vld [vmem:[%s0 + $0x78] sm:$0xff]
  %v33 = vld [vmem:[%s0 + $0x80] sm:$0xff]
  %v34 = vld [vmem:[%s0 + $0x88] sm:$0xff]
  %v35 = vld [vmem:[%s0 + $0x90] sm:$0xff]
  %v36 = vld [vmem:[%s0 + $0x98] sm:$0xff]
  %v37 = vld [vmem:[%s0 + $0xa0] sm:$0xff]
  %v38 = vld [vmem:[%s0 + $0xa8] sm:$0xff]
  %v39 = vld [vmem:[%s0 + $0xb0] sm:$0xff]
  %v40 = vld [vmem:[%s0 + $0xb8] sm:$0xff]
  %v41 = vld [vmem:[%s0 + $0xc0] sm:$0xff]
  %v42 = vld [vmem:[%s0 + $0xc8] sm:$0xff]
  %v43 = vld [vmem:[%s0 + $0xd0] sm:$0xff]
  %v44 = vld [vmem:[%s0 + $0xd8] sm:$0xff]
  %v45 = vld [vmem:[%s0 + $0xe0] sm:$0xff]
  %v46 = vld [vmem:[%s0 + $0xe8] sm:$0xff]
  %v47 = vld [vmem:[%s0 + $0xf0] sm:$0xff]
  %v48 = vld [vmem:[%s0 + $0xf8] sm:$0xff]
  %v49 = vld [vmem:[%s0 + $0x100] sm:$0xff]
  %v50 = vld [vmem:[%s0 + $0x108] sm:$0xff]
  %v51 = vld [vmem:[%s0 + $0x110] sm:$0xff]
  %v52 = vld [vmem:[%s0 + $0x118] sm:$0xff]
  %v53 = vld [vmem:[%s0 + $0x120] sm:$0xff]
  %v54 = vld [vmem:[%s0 + $0x128] sm:$0xff]
  %v55 = vld [vmem:[%s0 + $0x130] sm:$0xff]
  %v56 = vld [vmem:[%s0 + $0x138] sm:$0xff]
  %v57 = vld [vmem:[%s0 + $0x140] sm:$0xff]
  %v58 = vld [vmem:[%s0 + $0x148] sm:$0xff]
  %v59 = vld [vmem:[%s0 + $0x150] sm:$0xff]
  %v60 = vld [vmem:[%s0 + $0x158] sm:$0xff]
  %v61 = vld [vmem:[%s0 + $0x160] sm:$0xff]
  %v62 = vld [vmem:[%s0 + $0x168] sm:$0xff]
  %v63 = vld [vmem:[%s0 + $0x170] sm:$0xff]
  %v64 = vld [vmem:[%s0 + $0x178] sm:$0xff]
  %v65 = vld [vmem:[%s0 + $0x180] sm:$0xff]
  %v66 = vld [vmem:[%s0 + $0x188] sm:$0xff]
  %v67 = vld [vmem:[%s0 + $0x190] sm:$0xff]
  %v68 = vld [vmem:[%s0 + $0x198] sm:$0xff]
  %v69 = vld [vmem:[%s0 + $0x1a0] sm:$0xff]
  %v70 = vld [vmem:[%s0 + $0x1a8] sm:$0xff]
  %v71 = vld [vmem:[%s0 + $0x1b0] sm:$0xff]
  %v72 = vld [vmem:[%s0 + $0x1b8] sm:$0xff]
  %v73 = vld [vmem:[%s0 + $0x1c0] sm:$0xff]
  %v74 = vld [vmem:[%s0 + $0x1c8] sm:$0xff]
  %v75 = vld [vmem:[%s0 + $0x1d0] sm:$0xff]
  %v76 = vld [vmem:[%s0 + $0x1d8] sm:$0xff]
  %v77 = vld [vmem:[%s0 + $0x1e0] sm:$0xff]
  %v78 = vld [vmem:[%s0 + $0x1e8] sm:$0xff]
  %v79 = vld [vmem:[%s0 + $0x1f0] sm:$0xff]
  %v80 = vld [vmem:[%s0 + $0x1f8] sm:$0xff]
  %v81 = vld [vmem:[%s0 + $0x200] sm:$0xff]
  %v82 = vld [vmem:[%s0 + $0x208] sm:$0xff]
  %v83 = vld [vmem:[%s0 + $0x210] sm:$0xff]
  %v84 = vld [vmem:[%s0 + $0x218] sm:$0xff]
  %v85 = vld [vmem:[%s0 + $0x220] sm:$0xff]
  %v86 = vld [vmem:[%s0 + $0x228] sm:$0xff]
  %v87 = vld [vmem:[%s0 + $0x230] sm:$0xff]
  %v88 = vld [vmem:[%s0 + $0x238] sm:$0xff]
  %v89 = vld [vmem:[%s0 + $0x240] sm:$0xff]
  %v90 = vld [vmem:[%s0 + $0x248] sm:$0xff]
  %v91 = vld [vmem:[%s0 + $0x250] sm:$0xff]
  %v92 = vld [vmem:[%s0 + $0x258] sm:$0xff]
  %v93 = vld [vmem:[%s0 + $0x260] sm:$0xff]
  %v94 = vld [vmem:[%s0 + $0x268] sm:$0xff]
  %v95 = vld [vmem:[%s0 + $0x270] sm:$0xff]
  %v96 = vld [vmem:[%s0 + $0x278] sm:$0xff]
  %v97 = vld [vmem:[%s0 + $0x280] sm:$0xff]
  %v98 = vld [vmem:[%s0 + $0x288] sm:$0xff]
  %v99 = vld [vmem:[%s0 + $0x290] sm:$0xff]
  %v100 = vld [vmem:[%s0 + $0x298] sm:$0xff]
  %v101 = vld [vmem:[%s0 + $0x2a0] sm:$0xff]
  %v102 = vld [vmem:[%s0 + $0x2a8] sm:$0xff]
  %v103 = vld [vmem:[%s0 + $0x2b0] sm:$0xff]
  %v104 = vld [vmem:[%s0 + $0x2b8] sm:$0xff]
  %v105 = vld [vmem:[%s0 + $0x2c0] sm:$0xff]
  %v106 = vld [vmem:[%s0 + $0x2c8] sm:$0xff]
  %v107 = vld [vmem:[%s0 + $0x2d0] sm:$0xff]
  %v108 = vld [vmem:[%s0 + $0x2d8] sm:$0xff]
  %v109 = vld [vmem:[%s0 + $0x2e0] sm:$0xff]
  %v110 = vld [vmem:[%s0 + $0x2e8] sm:$0xff]
  %v111 = vld [vmem:[%s0 + $0x2f0] sm:$0xff]
  %v112 = vld [vmem:[%s0 + $0x2f8] sm:$0xff]
  %v113 = vld [vmem:[%s0 + $0x300] sm:$0xff]
  %v114 = vld [vmem:[%s0 + $0x308] sm:$0xff]
  %v115 = vld [vmem:[%s0 + $0x310] sm:$0xff]
  %v116 = vld [vmem:[%s0 + $0x318] sm:$0xff]
  %v117 = vld [vmem:[%s0 + $0x320] sm:$0xff]
  %v118 = vld [vmem:[%s0 + $0x328] sm:$0xff]
  %v119 = vld [vmem:[%s0 + $0x330] sm:$0xff]
  %v120 = vld [vmem:[%s0 + $0x338] sm:$0xff]
  %v121 = vld [vmem:[%s0 + $0x340] sm:$0xff]
  %v122 = vld [vmem:[%s0 + $0x348] sm:$0xff]
  %v123 = vld [vmem:[%s0 + $0x350] sm:$0xff]
  %v124 = vld [vmem:[%s0 + $0x358] sm:$0xff]
  %v125 = vld [vmem:[%s0 + $0x360] sm:$0xff]
  %v126 = vld [vmem:[%s0 + $0x368] sm:$0xff]
  %v127 = vld [vmem:[%s0 + $0x370] sm:$0xff]
  %v128 = vld [vmem:[%s0 + $0x378] sm:$0xff]
  %v129 = vld [vmem:[%s0 + $0x380] sm:$0xff]
  %v130 = vld [vmem:[%s0 + $0x388] sm:$0xff]
  %v131 = vld [vmem:[%s0 + $0x390] sm:$0xff]
  %v132 = vld [vmem:[%s0 + $0x398] sm:$0xff]
  %v133 = vld [vmem:[%s0 + $0x3a0] sm:$0xff]
  %v134 = vld [vmem:[%s0 + $0x3a8] sm:$0xff]
  %v135 = vld [vmem:[%s0 + $0x3b0] sm:$0xff]
  %v136 = vld [vmem:[%s0 + $0x3b8] sm:$0xff]
  %v137 = vld [vmem:[%s0 + $0x3c0] sm:$0xff]
  %v138 = vld [vmem:[%s0 + $0x3c8] sm:$0xff]
  %v139 = vld [vmem:[%s0 + $0x3d0] sm:$0xff]
  %v140 = vld [vmem:[%s0 + $0x3d8] sm:$0xff]
  %v141 = vld [vmem:[%s0 + $0x3e0] sm:$0xff]
  %v142 = vld [vmem:[%s0 + $0x3e8] sm:$0xff]
  %v143 = vld [vmem:[%s0 + $0x3f0] sm:$0xff]
  %v144 = vld [vmem:[%s0 + $0x3f8] sm:$0xff]
  %v145 = vld [vmem:[%s0 + $0x400] sm:$0xff]
  %v146 = vld [vmem:[%s0 + $0x408] sm:$0xff]
  %v147 = vld [vmem:[%s0 + $0x410] sm:$0xff]
  %v148 = vld [vmem:[%s0 + $0x418] sm:$0xff]
  %v149 = vld [vmem:[%s0 + $0x420] sm:$0xff]
  %v150 = vld [vmem:[%s0 + $0x428] sm:$0xff]
  %v151 = vld [vmem:[%s0 + $0x430] sm:$0xff]
  %v152 = vld [vmem:[%s0 + $0x438] sm:$0xff]
  %v153 = vld [vmem:[%s0 + $0x440] sm:$0xff]
  %v154 = vld [vmem:[%s0 + $0x448] sm:$0xff]
  %v155 = vld [vmem:[%s0 + $0x450] sm:$0xff]
  %v156 = vld [vmem:[%s0 + $0x458] sm:$0xff]
  %v157 = vld [vmem:[%s0 + $0x460] sm:$0xff]
  %v158 = vld [vmem:[%s0 + $0x468] sm:$0xff]
  %v159 = vld [vmem:[%s0 + $0x470] sm:$0xff]
  %v160 = vld [vmem:[%s0 + $0x478] sm:$0xff]
  %v161 = vld [vmem:[%s0 + $0x480] sm:$0xff]
  %v162 = vld [vmem:[%s0 + $0x488] sm:$0xff]
  %v163 = vld [vmem:[%s0 + $0x490] sm:$0xff]
  %v164 = vld [vmem:[%s0 + $0x498] sm:$0xff]
  %v165 = vld [vmem:[%s0 + $0x4a0] sm:$0xff]
  %v166 = vld [vmem:[%s0 + $0x4a8] sm:$0xff]
  %v167 = vld [vmem:[%s0 + $0x4b0] sm:$0xff]
  %v168 = vld [vmem:[%s0 + $0x4b8] sm:$0xff]
  %v169 = vld [vmem:[%s0 + $0x4c0] sm:$0xff]
  %v170 = vld [vmem:[%s0 + $0x4c8] sm:$0xff]
  %v171 = vld [vmem:[%s0 + $0x4d0] sm:$0xff]
  %v172 = vld [vmem:[%s0 + $0x4d8] sm:$0xff]
  %v173 = vld [vmem:[%s0 + $0x4e0] sm:$0xff]
  %v174 = vld [vmem:[%s0 + $0x4e8] sm:$0xff]
  %v175 = vld [vmem:[%s0 + $0x4f0] sm:$0xff]
  %v176 = vld [vmem:[%s0 + $0x4f8] sm:$0xff]
  %v177 = vld [vmem:[%s0 + $0x500] sm:$0xff]
  %v178 = vld [vmem:[%s0 + $0x508] sm:$0xff]
  %v179 = vld [vmem:[%s0 + $0x510] sm:$0xff]
  %v180 = vld [vmem:[%s0 + $0x518] sm:$0xff]
  %v181 = vld [vmem:[%s0 + $0x520] sm:$0xff]
  %v182 = vld [vmem:[%s0 + $0x528] sm:$0xff]
  %v183 = vld [vmem:[%s0 + $0x530] sm:$0xff]
  %v184 = vld [vmem:[%s0 + $0x538] sm:$0xff]
  %v185 = vld [vmem:[%s0 + $0x540] sm:$0xff]
  %v186 = vld [vmem:[%s0 + $0x548] sm:$0xff]
  %v187 = vld [vmem:[%s0 + $0x550] sm:$0xff]
  %v188 = vld [vmem:[%s0 + $0x558] sm:$0xff]
  %v189 = vld [vmem:[%s0 + $0x560] sm:$0xff]
  %v190 = vld [vmem:[%s0 + $0x568] sm:$0xff]
  %v191 = vld [vmem:[%s0 + $0x570] sm:$0xff]
  %v192 = vld [vmem:[%s0 + $0x578] sm:$0xff]
  %v193 = vld [vmem:[%s0 + $0x580] sm:$0xff]
  %v194 = vld [vmem:[%s0 + $0x588] sm:$0xff]
  %v195 = vld [vmem:[%s0 + $0x590] sm:$0xff]
  %v196 = vld [vmem:[%s0 + $0x598] sm:$0xff]
  %v197 = vld [vmem:[%s0 + $0x5a0] sm:$0xff]
  %v198 = vld [vmem:[%s0 + $0x5a8] sm:$0xff]
  %v199 = vld [vmem:[%s0 + $0x5b0] sm:$0xff]
  %v200 = vld [vmem:[%s0 + $0x5b8] sm:$0xff]
  %v201 = vld [vmem:[%s0 + $0x5c0] sm:$0xff]
  %v202 = vld [vmem:[%s0 + $0x5c8] sm:$0xff]
  %v203 = vld [vmem:[%s0 + $0x5d0] sm:$0xff]
  %v204 = vld [vmem:[%s0 + $0x5d8] sm:$0xff]
  %v205 = vld [vmem:[%s0 + $0x5e0] sm:$0xff]
  %v206 = vld [vmem:[%s0 + $0x5e8] sm:$0xff]
  %v207 = vld [vmem:[%s0 + $0x5f0] sm:$0xff]
  %v208 = vld [vmem:[%s0 + $0x5f8] sm:$0xff]
  %v209 = vld [vmem:[%s0 + $0x600] sm:$0xff]
  %v210 = vld [vmem:[%s0 + $0x608] sm:$0xff]
  %v211 = vld [vmem:[%s0 + $0x610] sm:$0xff]
  %v212 = vld [vmem:[%s0 + $0x618] sm:$0xff]
  %v213 = vld [vmem:[%s0 + $0x620] sm:$0xff]
  %v214 = vld [vmem:[%s0 + $0x628] sm:$0xff]
  %v215 = vld [vmem:[%s0 + $0x630] sm:$0xff]
  %v216 = vld [vmem:[%s0 + $0x638] sm:$0xff]
  %v217 = vld [vmem:[%s0 + $0x640] sm:$0xff]
  %v218 = vld [vmem:[%s0 + $0x648] sm:$0xff]
  %v219 = vld [vmem:[%s0 + $0x650] sm:$0xff]
  %v220 = vld [vmem:[%s0 + $0x658] sm:$0xff]
  %v221 = vld [vmem:[%s0 + $0x660] sm:$0xff]
  %v222 = vld [vmem:[%s0 + $0x668] sm:$0xff]
  %v223 = vld [vmem:[%s0 + $0x670] sm:$0xff]
  %v224 = vld [vmem:[%s0 + $0x678] sm:$0xff]
  %v225 = vld [vmem:[%s0 + $0x680] sm:$0xff]
  %v226 = vld [vmem:[%s0 + $0x688] sm:$0xff]
  %v227 = vld [vmem:[%s0 + $0x690] sm:$0xff]
  %v228 = vld [vmem:[%s0 + $0x698] sm:$0xff]
  %v229 = vld [vmem:[%s0 + $0x6a0] sm:$0xff]
  %v230 = vld [vmem:[%s0 + $0x6a8] sm:$0xff]
  %v231 = vld [vmem:[%s0 + $0x6b0] sm:$0xff]
  %v232 = vld [vmem:[%s0 + $0x6b8] sm:$0xff]
  %v233 = vld [vmem:[%s0 + $0x6c0] sm:$0xff]
  %v234 = vld [vmem:[%s0 + $0x6c8] sm:$0xff]
  %v235 = vld [vmem:[%s0 + $0x6d0] sm:$0xff]
  %v236 = vld [vmem:[%s0 + $0x6d8] sm:$0xff]
  %v237 = vld [vmem:[%s0 + $0x6e0] sm:$0xff]
  %v238 = vld [vmem:[%s0 + $0x6e8] sm:$0xff]
  %v239 = vld [vmem:[%s0 + $0x6f0] sm:$0xff]
  %v240 = vld [vmem:[%s0 + $0x6f8] sm:$0xff]
  %v241 = vld [vmem:[%s0 + $0x700] sm:$0xff]
  %v242 = vld [vmem:[%s0 + $0x708] sm:$0xff]
  %v243 = vld [vmem:[%s0 + $0x710] sm:$0xff]
  %v244 = vld [vmem:[%s0 + $0x718] sm:$0xff]
  %v245 = vld [vmem:[%s0 + $0x720] sm:$0xff]
  %v246 = vld [vmem:[%s0 + $0x728] sm:$0xff]
  %v247 = vld [vmem:[%s0 + $0x730] sm:$0xff]
  %v248 = vld [vmem:[%s0 + $0x738] sm:$0xff]
  %v249 = vld [vmem:[%s0 + $0x740] sm:$0xff]
  %v250 = vld [vmem:[%s0 + $0x748] sm:$0xff]
  %v251 = vld [vmem:[%s0 + $0x750] sm:$0xff]
  %v252 = vld [vmem:[%s0 + $0x758] sm:$0xff]
  %v253 = vld [vmem:[%s0 + $0x760] sm:$0xff]
  %v254 = vld [vmem:[%s0 + $0x768] sm:$0xff]
  %v255 = vld [vmem:[%s0 + $0x770] sm:$0xff]
  %v256 = vld [vmem:[%s0 + $0x778] sm:$0xff]
  %v257 = vld [vmem:[%s0 + $0x780] sm:$0xff]
  %v258 = vld [vmem:[%s0 + $0x788] sm:$0xff]
  %v259 = vld [vmem:[%s0 + $0x790] sm:$0xff]
  %v260 = vld [vmem:[%s0 + $0x798] sm:$0xff]
  %v261 = vld [vmem:[%s0 + $0x7a0] sm:$0xff]
  %v262 = vld [vmem:[%s0 + $0x7a8] sm:$0xff]
  %v263 = vld [vmem:[%s0 + $0x7b0] sm:$0xff]
  %v264 = vld [vmem:[%s0 + $0x7b8] sm:$0xff]
  %v265 = vld [vmem:[%s0 + $0x7c0] sm:$0xff]
  %v266 = vld [vmem:[%s0 + $0x7c8] sm:$0xff]
  %v267 = vld [vmem:[%s0 + $0x7d0] sm:$0xff]
  %v268 = vld [vmem:[%s0 + $0x7d8] sm:$0xff]
  %v269 = vld [vmem:[%s0 + $0x7e0] sm:$0xff]
  %v270 = vld [vmem:[%s0 + $0x7e8] sm:$0xff]
  %v271 = vld [vmem:[%s0 + $0x7f0] sm:$0xff]
  %v272 = vld [vmem:[%s0 + $0x7f8] sm:$0xff]
  %v273 = vld [vmem:[%s1] sm:$0x1]
  %vm274 = vcmask 64512
  %v275 = vsel %vm274, %v17, 0.0
  %v276 = vsel %vm274, %v18, 0.0
  %v277 = vadd.f32 %v275, %v276
  %v278 = vsel %vm274, %v19, 0.0
  %v279 = vadd.f32 %v277, %v278
  %v280 = vsel %vm274, %v20, 0.0
  %v281 = vadd.f32 %v279, %v280
  %v282 = vsel %vm274, %v21, 0.0
  %v283 = vadd.f32 %v281, %v282
  %v284 = vsel %vm274, %v22, 0.0
  %v285 = vadd.f32 %v283, %v284
  %v286 = vsel %vm274, %v23, 0.0
  %v287 = vadd.f32 %v285, %v286
  %v288 = vsel %vm274, %v24, 0.0
  %v289 = vadd.f32 %v287, %v288
  %v290 = vsel %vm274, %v25, 0.0
  %v291 = vadd.f32 %v289, %v290
  %v292 = vsel %vm274, %v26, 0.0
  %v293 = vadd.f32 %v291, %v292
  %v294 = vsel %vm274, %v27, 0.0
  %v295 = vadd.f32 %v293, %v294
  %v296 = vsel %vm274, %v28, 0.0
  %v297 = vadd.f32 %v295, %v296
  %v298 = vsel %vm274, %v29, 0.0
  %v299 = vadd.f32 %v297, %v298
  %v300 = vsel %vm274, %v30, 0.0
  %v301 = vadd.f32 %v299, %v300
  %v302 = vsel %vm274, %v31, 0.0
  %v303 = vadd.f32 %v301, %v302
  %v304 = vsel %vm274, %v32, 0.0
  %v305 = vadd.f32 %v303, %v304
  %v306 = vsel %vm274, %v33, 0.0
  %v307 = vadd.f32 %v305, %v306
  %v308 = vsel %vm274, %v34, 0.0
  %v309 = vadd.f32 %v307, %v308
  %v310 = vsel %vm274, %v35, 0.0
  %v311 = vadd.f32 %v309, %v310
  %v312 = vsel %vm274, %v36, 0.0
  %v313 = vadd.f32 %v311, %v312
  %v314 = vsel %vm274, %v37, 0.0
  %v315 = vadd.f32 %v313, %v314
  %v316 = vsel %vm274, %v38, 0.0
  %v317 = vadd.f32 %v315, %v316
  %v318 = vsel %vm274, %v39, 0.0
  %v319 = vadd.f32 %v317, %v318
  %v320 = vsel %vm274, %v40, 0.0
  %v321 = vadd.f32 %v319, %v320
  %v322 = vsel %vm274, %v41, 0.0
  %v323 = vadd.f32 %v321, %v322
  %v324 = vsel %vm274, %v42, 0.0
  %v325 = vadd.f32 %v323, %v324
  %v326 = vsel %vm274, %v43, 0.0
  %v327 = vadd.f32 %v325, %v326
  %v328 = vsel %vm274, %v44, 0.0
  %v329 = vadd.f32 %v327, %v328
  %v330 = vsel %vm274, %v45, 0.0
  %v331 = vadd.f32 %v329, %v330
  %v332 = vsel %vm274, %v46, 0.0
  %v333 = vadd.f32 %v331, %v332
  %v334 = vsel %vm274, %v47, 0.0
  %v335 = vadd.f32 %v333, %v334
  %v336 = vsel %vm274, %v48, 0.0
  %v337 = vadd.f32 %v335, %v336
  %v338 = vsel %vm274, %v49, 0.0
  %v339 = vadd.f32 %v337, %v338
  %v340 = vsel %vm274, %v50, 0.0
  %v341 = vadd.f32 %v339, %v340
  %v342 = vsel %vm274, %v51, 0.0
  %v343 = vadd.f32 %v341, %v342
  %v344 = vsel %vm274, %v52, 0.0
  %v345 = vadd.f32 %v343, %v344
  %v346 = vsel %vm274, %v53, 0.0
  %v347 = vadd.f32 %v345, %v346
  %v348 = vsel %vm274, %v54, 0.0
  %v349 = vadd.f32 %v347, %v348
  %v350 = vsel %vm274, %v55, 0.0
  %v351 = vadd.f32 %v349, %v350
  %v352 = vsel %vm274, %v56, 0.0
  %v353 = vadd.f32 %v351, %v352
  %v354 = vsel %vm274, %v57, 0.0
  %v355 = vadd.f32 %v353, %v354
  %v356 = vsel %vm274, %v58, 0.0
  %v357 = vadd.f32 %v355, %v356
  %v358 = vsel %vm274, %v59, 0.0
  %v359 = vadd.f32 %v357, %v358
  %v360 = vsel %vm274, %v60, 0.0
  %v361 = vadd.f32 %v359, %v360
  %v362 = vsel %vm274, %v61, 0.0
  %v363 = vadd.f32 %v361, %v362
  %v364 = vsel %vm274, %v62, 0.0
  %v365 = vadd.f32 %v363, %v364
  %v366 = vsel %vm274, %v63, 0.0
  %v367 = vadd.f32 %v365, %v366
  %v368 = vsel %vm274, %v64, 0.0
  %v369 = vadd.f32 %v367, %v368
  %v370 = vsel %vm274, %v65, 0.0
  %v371 = vadd.f32 %v369, %v370
  %v372 = vsel %vm274, %v66, 0.0
  %v373 = vadd.f32 %v371, %v372
  %v374 = vsel %vm274, %v67, 0.0
  %v375 = vadd.f32 %v373, %v374
  %v376 = vsel %vm274, %v68, 0.0
  %v377 = vadd.f32 %v375, %v376
  %v378 = vsel %vm274, %v69, 0.0
  %v379 = vadd.f32 %v377, %v378
  %v380 = vsel %vm274, %v70, 0.0
  %v381 = vadd.f32 %v379, %v380
  %v382 = vsel %vm274, %v71, 0.0
  %v383 = vadd.f32 %v381, %v382
  %v384 = vsel %vm274, %v72, 0.0
  %v385 = vadd.f32 %v383, %v384
  %v386 = vsel %vm274, %v73, 0.0
  %v387 = vadd.f32 %v385, %v386
  %v388 = vsel %vm274, %v74, 0.0
  %v389 = vadd.f32 %v387, %v388
  %v390 = vsel %vm274, %v75, 0.0
  %v391 = vadd.f32 %v389, %v390
  %v392 = vsel %vm274, %v76, 0.0
  %v393 = vadd.f32 %v391, %v392
  %v394 = vsel %vm274, %v77, 0.0
  %v395 = vadd.f32 %v393, %v394
  %v396 = vsel %vm274, %v78, 0.0
  %v397 = vadd.f32 %v395, %v396
  %v398 = vsel %vm274, %v79, 0.0
  %v399 = vadd.f32 %v397, %v398
  %v400 = vsel %vm274, %v80, 0.0
  %v401 = vadd.f32 %v399, %v400
  %v402 = vsel %vm274, %v81, 0.0
  %v403 = vadd.f32 %v401, %v402
  %v404 = vsel %vm274, %v82, 0.0
  %v405 = vadd.f32 %v403, %v404
  %v406 = vsel %vm274, %v83, 0.0
  %v407 = vadd.f32 %v405, %v406
  %v408 = vsel %vm274, %v84, 0.0
  %v409 = vadd.f32 %v407, %v408
  %v410 = vsel %vm274, %v85, 0.0
  %v411 = vadd.f32 %v409, %v410
  %v412 = vsel %vm274, %v86, 0.0
  %v413 = vadd.f32 %v411, %v412
  %v414 = vsel %vm274, %v87, 0.0
  %v415 = vadd.f32 %v413, %v414
  %v416 = vsel %vm274, %v88, 0.0
  %v417 = vadd.f32 %v415, %v416
  %v418 = vsel %vm274, %v89, 0.0
  %v419 = vadd.f32 %v417, %v418
  %v420 = vsel %vm274, %v90, 0.0
  %v421 = vadd.f32 %v419, %v420
  %v422 = vsel %vm274, %v91, 0.0
  %v423 = vadd.f32 %v421, %v422
  %v424 = vsel %vm274, %v92, 0.0
  %v425 = vadd.f32 %v423, %v424
  %v426 = vsel %vm274, %v93, 0.0
  %v427 = vadd.f32 %v425, %v426
  %v428 = vsel %vm274, %v94, 0.0
  %v429 = vadd.f32 %v427, %v428
  %v430 = vsel %vm274, %v95, 0.0
  %v431 = vadd.f32 %v429, %v430
  %v432 = vsel %vm274, %v96, 0.0
  %v433 = vadd.f32 %v431, %v432
  %v434 = vsel %vm274, %v97, 0.0
  %v435 = vadd.f32 %v433, %v434
  %v436 = vsel %vm274, %v98, 0.0
  %v437 = vadd.f32 %v435, %v436
  %v438 = vsel %vm274, %v99, 0.0
  %v439 = vadd.f32 %v437, %v438
  %v440 = vsel %vm274, %v100, 0.0
  %v441 = vadd.f32 %v439, %v440
  %v442 = vsel %vm274, %v101, 0.0
  %v443 = vadd.f32 %v441, %v442
  %v444 = vsel %vm274, %v102, 0.0
  %v445 = vadd.f32 %v443, %v444
  %v446 = vsel %vm274, %v103, 0.0
  %v447 = vadd.f32 %v445, %v446
  %v448 = vsel %vm274, %v104, 0.0
  %v449 = vadd.f32 %v447, %v448
  %v450 = vsel %vm274, %v105, 0.0
  %v451 = vadd.f32 %v449, %v450
  %v452 = vsel %vm274, %v106, 0.0
  %v453 = vadd.f32 %v451, %v452
  %v454 = vsel %vm274, %v107, 0.0
  %v455 = vadd.f32 %v453, %v454
  %v456 = vsel %vm274, %v108, 0.0
  %v457 = vadd.f32 %v455, %v456
  %v458 = vsel %vm274, %v109, 0.0
  %v459 = vadd.f32 %v457, %v458
  %v460 = vsel %vm274, %v110, 0.0
  %v461 = vadd.f32 %v459, %v460
  %v462 = vsel %vm274, %v111, 0.0
  %v463 = vadd.f32 %v461, %v462
  %v464 = vsel %vm274, %v112, 0.0
  %v465 = vadd.f32 %v463, %v464
  %v466 = vsel %vm274, %v113, 0.0
  %v467 = vadd.f32 %v465, %v466
  %v468 = vsel %vm274, %v114, 0.0
  %v469 = vadd.f32 %v467, %v468
  %v470 = vsel %vm274, %v115, 0.0
  %v471 = vadd.f32 %v469, %v470
  %v472 = vsel %vm274, %v116, 0.0
  %v473 = vadd.f32 %v471, %v472
  %v474 = vsel %vm274, %v117, 0.0
  %v475 = vadd.f32 %v473, %v474
  %v476 = vsel %vm274, %v118, 0.0
  %v477 = vadd.f32 %v475, %v476
  %v478 = vsel %vm274, %v119, 0.0
  %v479 = vadd.f32 %v477, %v478
  %v480 = vsel %vm274, %v120, 0.0
  %v481 = vadd.f32 %v479, %v480
  %v482 = vsel %vm274, %v121, 0.0
  %v483 = vadd.f32 %v481, %v482
  %v484 = vsel %vm274, %v122, 0.0
  %v485 = vadd.f32 %v483, %v484
  %v486 = vsel %vm274, %v123, 0.0
  %v487 = vadd.f32 %v485, %v486
  %v488 = vsel %vm274, %v124, 0.0
  %v489 = vadd.f32 %v487, %v488
  %v490 = vsel %vm274, %v125, 0.0
  %v491 = vadd.f32 %v489, %v490
  %v492 = vsel %vm274, %v126, 0.0
  %v493 = vadd.f32 %v491, %v492
  %v494 = vsel %vm274, %v127, 0.0
  %v495 = vadd.f32 %v493, %v494
  %v496 = vsel %vm274, %v128, 0.0
  %v497 = vadd.f32 %v495, %v496
  %v498 = vsel %vm274, %v129, 0.0
  %v499 = vadd.f32 %v497, %v498
  %v500 = vsel %vm274, %v130, 0.0
  %v501 = vadd.f32 %v499, %v500
  %v502 = vsel %vm274, %v131, 0.0
  %v503 = vadd.f32 %v501, %v502
  %v504 = vsel %vm274, %v132, 0.0
  %v505 = vadd.f32 %v503, %v504
  %v506 = vsel %vm274, %v133, 0.0
  %v507 = vadd.f32 %v505, %v506
  %v508 = vsel %vm274, %v134, 0.0
  %v509 = vadd.f32 %v507, %v508
  %v510 = vsel %vm274, %v135, 0.0
  %v511 = vadd.f32 %v509, %v510
  %v512 = vsel %vm274, %v136, 0.0
  %v513 = vadd.f32 %v511, %v512
  %v514 = vsel %vm274, %v137, 0.0
  %v515 = vadd.f32 %v513, %v514
  %v516 = vsel %vm274, %v138, 0.0
  %v517 = vadd.f32 %v515, %v516
  %v518 = vsel %vm274, %v139, 0.0
  %v519 = vadd.f32 %v517, %v518
  %v520 = vsel %vm274, %v140, 0.0
  %v521 = vadd.f32 %v519, %v520
  %v522 = vsel %vm274, %v141, 0.0
  %v523 = vadd.f32 %v521, %v522
  %v524 = vsel %vm274, %v142, 0.0
  %v525 = vadd.f32 %v523, %v524
  %v526 = vsel %vm274, %v143, 0.0
  %v527 = vadd.f32 %v525, %v526
  %v528 = vsel %vm274, %v144, 0.0
  %v529 = vadd.f32 %v527, %v528
  %v530 = vsel %vm274, %v145, 0.0
  %v531 = vadd.f32 %v529, %v530
  %v532 = vsel %vm274, %v146, 0.0
  %v533 = vadd.f32 %v531, %v532
  %v534 = vsel %vm274, %v147, 0.0
  %v535 = vadd.f32 %v533, %v534
  %v536 = vsel %vm274, %v148, 0.0
  %v537 = vadd.f32 %v535, %v536
  %v538 = vsel %vm274, %v149, 0.0
  %v539 = vadd.f32 %v537, %v538
  %v540 = vsel %vm274, %v150, 0.0
  %v541 = vadd.f32 %v539, %v540
  %v542 = vsel %vm274, %v151, 0.0
  %v543 = vadd.f32 %v541, %v542
  %v544 = vsel %vm274, %v152, 0.0
  %v545 = vadd.f32 %v543, %v544
  %v546 = vsel %vm274, %v153, 0.0
  %v547 = vadd.f32 %v545, %v546
  %v548 = vsel %vm274, %v154, 0.0
  %v549 = vadd.f32 %v547, %v548
  %v550 = vsel %vm274, %v155, 0.0
  %v551 = vadd.f32 %v549, %v550
  %v552 = vsel %vm274, %v156, 0.0
  %v553 = vadd.f32 %v551, %v552
  %v554 = vsel %vm274, %v157, 0.0
  %v555 = vadd.f32 %v553, %v554
  %v556 = vsel %vm274, %v158, 0.0
  %v557 = vadd.f32 %v555, %v556
  %v558 = vsel %vm274, %v159, 0.0
  %v559 = vadd.f32 %v557, %v558
  %v560 = vsel %vm274, %v160, 0.0
  %v561 = vadd.f32 %v559, %v560
  %v562 = vsel %vm274, %v161, 0.0
  %v563 = vadd.f32 %v561, %v562
  %v564 = vsel %vm274, %v162, 0.0
  %v565 = vadd.f32 %v563, %v564
  %v566 = vsel %vm274, %v163, 0.0
  %v567 = vadd.f32 %v565, %v566
  %v568 = vsel %vm274, %v164, 0.0
  %v569 = vadd.f32 %v567, %v568
  %v570 = vsel %vm274, %v165, 0.0
  %v571 = vadd.f32 %v569, %v570
  %v572 = vsel %vm274, %v166, 0.0
  %v573 = vadd.f32 %v571, %v572
  %v574 = vsel %vm274, %v167, 0.0
  %v575 = vadd.f32 %v573, %v574
  %v576 = vsel %vm274, %v168, 0.0
  %v577 = vadd.f32 %v575, %v576
  %v578 = vsel %vm274, %v169, 0.0
  %v579 = vadd.f32 %v577, %v578
  %v580 = vsel %vm274, %v170, 0.0
  %v581 = vadd.f32 %v579, %v580
  %v582 = vsel %vm274, %v171, 0.0
  %v583 = vadd.f32 %v581, %v582
  %v584 = vsel %vm274, %v172, 0.0
  %v585 = vadd.f32 %v583, %v584
  %v586 = vsel %vm274, %v173, 0.0
  %v587 = vadd.f32 %v585, %v586
  %v588 = vsel %vm274, %v174, 0.0
  %v589 = vadd.f32 %v587, %v588
  %v590 = vsel %vm274, %v175, 0.0
  %v591 = vadd.f32 %v589, %v590
  %v592 = vsel %vm274, %v176, 0.0
  %v593 = vadd.f32 %v591, %v592
  %v594 = vsel %vm274, %v177, 0.0
  %v595 = vadd.f32 %v593, %v594
  %v596 = vsel %vm274, %v178, 0.0
  %v597 = vadd.f32 %v595, %v596
  %v598 = vsel %vm274, %v179, 0.0
  %v599 = vadd.f32 %v597, %v598
  %v600 = vsel %vm274, %v180, 0.0
  %v601 = vadd.f32 %v599, %v600
  %v602 = vsel %vm274, %v181, 0.0
  %v603 = vadd.f32 %v601, %v602
  %v604 = vsel %vm274, %v182, 0.0
  %v605 = vadd.f32 %v603, %v604
  %v606 = vsel %vm274, %v183, 0.0
  %v607 = vadd.f32 %v605, %v606
  %v608 = vsel %vm274, %v184, 0.0
  %v609 = vadd.f32 %v607, %v608
  %v610 = vsel %vm274, %v185, 0.0
  %v611 = vadd.f32 %v609, %v610
  %v612 = vsel %vm274, %v186, 0.0
  %v613 = vadd.f32 %v611, %v612
  %v614 = vsel %vm274, %v187, 0.0
  %v615 = vadd.f32 %v613, %v614
  %v616 = vsel %vm274, %v188, 0.0
  %v617 = vadd.f32 %v615, %v616
  %v618 = vsel %vm274, %v189, 0.0
  %v619 = vadd.f32 %v617, %v618
  %v620 = vsel %vm274, %v190, 0.0
  %v621 = vadd.f32 %v619, %v620
  %v622 = vsel %vm274, %v191, 0.0
  %v623 = vadd.f32 %v621, %v622
  %v624 = vsel %vm274, %v192, 0.0
  %v625 = vadd.f32 %v623, %v624
  %v626 = vsel %vm274, %v193, 0.0
  %v627 = vadd.f32 %v625, %v626
  %v628 = vsel %vm274, %v194, 0.0
  %v629 = vadd.f32 %v627, %v628
  %v630 = vsel %vm274, %v195, 0.0
  %v631 = vadd.f32 %v629, %v630
  %v632 = vsel %vm274, %v196, 0.0
  %v633 = vadd.f32 %v631, %v632
  %v634 = vsel %vm274, %v197, 0.0
  %v635 = vadd.f32 %v633, %v634
  %v636 = vsel %vm274, %v198, 0.0
  %v637 = vadd.f32 %v635, %v636
  %v638 = vsel %vm274, %v199, 0.0
  %v639 = vadd.f32 %v637, %v638
  %v640 = vsel %vm274, %v200, 0.0
  %v641 = vadd.f32 %v639, %v640
  %v642 = vsel %vm274, %v201, 0.0
  %v643 = vadd.f32 %v641, %v642
  %v644 = vsel %vm274, %v202, 0.0
  %v645 = vadd.f32 %v643, %v644
  %v646 = vsel %vm274, %v203, 0.0
  %v647 = vadd.f32 %v645, %v646
  %v648 = vsel %vm274, %v204, 0.0
  %v649 = vadd.f32 %v647, %v648
  %v650 = vsel %vm274, %v205, 0.0
  %v651 = vadd.f32 %v649, %v650
  %v652 = vsel %vm274, %v206, 0.0
  %v653 = vadd.f32 %v651, %v652
  %v654 = vsel %vm274, %v207, 0.0
  %v655 = vadd.f32 %v653, %v654
  %v656 = vsel %vm274, %v208, 0.0
  %v657 = vadd.f32 %v655, %v656
  %v658 = vsel %vm274, %v209, 0.0
  %v659 = vadd.f32 %v657, %v658
  %v660 = vsel %vm274, %v210, 0.0
  %v661 = vadd.f32 %v659, %v660
  %v662 = vsel %vm274, %v211, 0.0
  %v663 = vadd.f32 %v661, %v662
  %v664 = vsel %vm274, %v212, 0.0
  %v665 = vadd.f32 %v663, %v664
  %v666 = vsel %vm274, %v213, 0.0
  %v667 = vadd.f32 %v665, %v666
  %v668 = vsel %vm274, %v214, 0.0
  %v669 = vadd.f32 %v667, %v668
  %v670 = vsel %vm274, %v215, 0.0
  %v671 = vadd.f32 %v669, %v670
  %v672 = vsel %vm274, %v216, 0.0
  %v673 = vadd.f32 %v671, %v672
  %v674 = vsel %vm274, %v217, 0.0
  %v675 = vadd.f32 %v673, %v674
  %v676 = vsel %vm274, %v218, 0.0
  %v677 = vadd.f32 %v675, %v676
  %v678 = vsel %vm274, %v219, 0.0
  %v679 = vadd.f32 %v677, %v678
  %v680 = vsel %vm274, %v220, 0.0
  %v681 = vadd.f32 %v679, %v680
  %v682 = vsel %vm274, %v221, 0.0
  %v683 = vadd.f32 %v681, %v682
  %v684 = vsel %vm274, %v222, 0.0
  %v685 = vadd.f32 %v683, %v684
  %v686 = vsel %vm274, %v223, 0.0
  %v687 = vadd.f32 %v685, %v686
  %v688 = vsel %vm274, %v224, 0.0
  %v689 = vadd.f32 %v687, %v688
  %v690 = vsel %vm274, %v225, 0.0
  %v691 = vadd.f32 %v689, %v690
  %v692 = vsel %vm274, %v226, 0.0
  %v693 = vadd.f32 %v691, %v692
  %v694 = vsel %vm274, %v227, 0.0
  %v695 = vadd.f32 %v693, %v694
  %v696 = vsel %vm274, %v228, 0.0
  %v697 = vadd.f32 %v695, %v696
  %v698 = vsel %vm274, %v229, 0.0
  %v699 = vadd.f32 %v697, %v698
  %v700 = vsel %vm274, %v230, 0.0
  %v701 = vadd.f32 %v699, %v700
  %v702 = vsel %vm274, %v231, 0.0
  %v703 = vadd.f32 %v701, %v702
  %v704 = vsel %vm274, %v232, 0.0
  %v705 = vadd.f32 %v703, %v704
  %v706 = vsel %vm274, %v233, 0.0
  %v707 = vadd.f32 %v705, %v706
  %v708 = vsel %vm274, %v234, 0.0
  %v709 = vadd.f32 %v707, %v708
  %v710 = vsel %vm274, %v235, 0.0
  %v711 = vadd.f32 %v709, %v710
  %v712 = vsel %vm274, %v236, 0.0
  %v713 = vadd.f32 %v711, %v712
  %v714 = vsel %vm274, %v237, 0.0
  %v715 = vadd.f32 %v713, %v714
  %v716 = vsel %vm274, %v238, 0.0
  %v717 = vadd.f32 %v715, %v716
  %v718 = vsel %vm274, %v239, 0.0
  %v719 = vadd.f32 %v717, %v718
  %v720 = vsel %vm274, %v240, 0.0
  %v721 = vadd.f32 %v719, %v720
  %v722 = vsel %vm274, %v241, 0.0
  %v723 = vadd.f32 %v721, %v722
  %v724 = vsel %vm274, %v242, 0.0
  %v725 = vadd.f32 %v723, %v724
  %v726 = vsel %vm274, %v243, 0.0
  %v727 = vadd.f32 %v725, %v726
  %v728 = vsel %vm274, %v244, 0.0
  %v729 = vadd.f32 %v727, %v728
  %v730 = vsel %vm274, %v245, 0.0
  %v731 = vadd.f32 %v729, %v730
  %v732 = vsel %vm274, %v246, 0.0
  %v733 = vadd.f32 %v731, %v732
  %v734 = vsel %vm274, %v247, 0.0
  %v735 = vadd.f32 %v733, %v734
  %v736 = vsel %vm274, %v248, 0.0
  %v737 = vadd.f32 %v735, %v736
  %v738 = vsel %vm274, %v249, 0.0
  %v739 = vadd.f32 %v737, %v738
  %v740 = vsel %vm274, %v250, 0.0
  %v741 = vadd.f32 %v739, %v740
  %v742 = vsel %vm274, %v251, 0.0
  %v743 = vadd.f32 %v741, %v742
  %v744 = vsel %vm274, %v252, 0.0
  %v745 = vadd.f32 %v743, %v744
  %v746 = vsel %vm274, %v253, 0.0
  %v747 = vadd.f32 %v745, %v746
  %v748 = vsel %vm274, %v254, 0.0
  %v749 = vadd.f32 %v747, %v748
  %v750 = vsel %vm274, %v255, 0.0
  %v751 = vadd.f32 %v749, %v750
  %v752 = vsel %vm274, %v256, 0.0
  %v753 = vadd.f32 %v751, %v752
  %v754 = vsel %vm274, %v257, 0.0
  %v755 = vadd.f32 %v753, %v754
  %v756 = vsel %vm274, %v258, 0.0
  %v757 = vadd.f32 %v755, %v756
  %v758 = vsel %vm274, %v259, 0.0
  %v759 = vadd.f32 %v757, %v758
  %v760 = vsel %vm274, %v260, 0.0
  %v761 = vadd.f32 %v759, %v760
  %v762 = vsel %vm274, %v261, 0.0
  %v763 = vadd.f32 %v761, %v762
  %v764 = vsel %vm274, %v262, 0.0
  %v765 = vadd.f32 %v763, %v764
  %v766 = vsel %vm274, %v263, 0.0
  %v767 = vadd.f32 %v765, %v766
  %v768 = vsel %vm274, %v264, 0.0
  %v769 = vadd.f32 %v767, %v768
  %v770 = vsel %vm274, %v265, 0.0
  %v771 = vadd.f32 %v769, %v770
  %v772 = vsel %vm274, %v266, 0.0
  %v773 = vadd.f32 %v771, %v772
  %v774 = vsel %vm274, %v267, 0.0
  %v775 = vadd.f32 %v773, %v774
  %v776 = vsel %vm274, %v268, 0.0
  %v777 = vadd.f32 %v775, %v776
  %v778 = vsel %vm274, %v269, 0.0
  %v779 = vadd.f32 %v777, %v778
  %v780 = vsel %vm274, %v270, 0.0
  %v781 = vadd.f32 %v779, %v780
  %v782 = vsel %vm274, %v271, 0.0
  %v783 = vadd.f32 %v781, %v782
  %v784 = vsel %vm274, %v272, 0.0
  %v785 = vadd.f32 %v783, %v784
  %v786 = vrot.slane %v785, 4
  %v787 = vadd.f32 %v785, %v786
  %v788 = vrot.slane %v787, 2
  %v789 = vadd.f32 %v787, %v788
  %v790 = vrot.slane %v789, 1
  %v791 = vadd.f32 %v789, %v790
  %v792 = vadd.f32 %v273, %v791
  %vm793 = vcmask 57344
  %794 = vst.msk [vmem:[%s1] sm:$0x1] %vm793, %v792
  %v795 = vld [vmem:[%s2] sm:$0x1]
  %v796 = vmul.f32 %v17, %v17
  %v797 = vmul.f32 %v18, %v18
  %v798 = vmul.f32 %v19, %v19
  %v799 = vmul.f32 %v20, %v20
  %v800 = vmul.f32 %v21, %v21
  %v801 = vmul.f32 %v22, %v22
  %v802 = vmul.f32 %v23, %v23
  %v803 = vmul.f32 %v24, %v24
  %v804 = vmul.f32 %v25, %v25
  %v805 = vmul.f32 %v26, %v26
  %v806 = vmul.f32 %v27, %v27
  %v807 = vmul.f32 %v28, %v28
  %v808 = vmul.f32 %v29, %v29
  %v809 = vmul.f32 %v30, %v30
  %v810 = vmul.f32 %v31, %v31
  %v811 = vmul.f32 %v32, %v32
  %v812 = vmul.f32 %v33, %v33
  %v813 = vmul.f32 %v34, %v34
  %v814 = vmul.f32 %v35, %v35
  %v815 = vmul.f32 %v36, %v36
  %v816 = vmul.f32 %v37, %v37
  %v817 = vmul.f32 %v38, %v38
  %v818 = vmul.f32 %v39, %v39
  %v819 = vmul.f32 %v40, %v40
  %v820 = vmul.f32 %v41, %v41
  %v821 = vmul.f32 %v42, %v42
  %v822 = vmul.f32 %v43, %v43
  %v823 = vmul.f32 %v44, %v44
  %v824 = vmul.f32 %v45, %v45
  %v825 = vmul.f32 %v46, %v46
  %v826 = vmul.f32 %v47, %v47
  %v827 = vmul.f32 %v48, %v48
  %v828 = vmul.f32 %v49, %v49
  %v829 = vmul.f32 %v50, %v50
  %v830 = vmul.f32 %v51, %v51
  %v831 = vmul.f32 %v52, %v52
  %v832 = vmul.f32 %v53, %v53
  %v833 = vmul.f32 %v54, %v54
  %v834 = vmul.f32 %v55, %v55
  %v835 = vmul.f32 %v56, %v56
  %v836 = vmul.f32 %v57, %v57
  %v837 = vmul.f32 %v58, %v58
  %v838 = vmul.f32 %v59, %v59
  %v839 = vmul.f32 %v60, %v60
  %v840 = vmul.f32 %v61, %v61
  %v841 = vmul.f32 %v62, %v62
  %v842 = vmul.f32 %v63, %v63
  %v843 = vmul.f32 %v64, %v64
  %v844 = vmul.f32 %v65, %v65
  %v845 = vmul.f32 %v66, %v66
  %v846 = vmul.f32 %v67, %v67
  %v847 = vmul.f32 %v68, %v68
  %v848 = vmul.f32 %v69, %v69
  %v849 = vmul.f32 %v70, %v70
  %v850 = vmul.f32 %v71, %v71
  %v851 = vmul.f32 %v72, %v72
  %v852 = vmul.f32 %v73, %v73
  %v853 = vmul.f32 %v74, %v74
  %v854 = vmul.f32 %v75, %v75
  %v855 = vmul.f32 %v76, %v76
  %v856 = vmul.f32 %v77, %v77
  %v857 = vmul.f32 %v78, %v78
  %v858 = vmul.f32 %v79, %v79
  %v859 = vmul.f32 %v80, %v80
  %v860 = vmul.f32 %v81, %v81
  %v861 = vmul.f32 %v82, %v82
  %v862 = vmul.f32 %v83, %v83
  %v863 = vmul.f32 %v84, %v84
  %v864 = vmul.f32 %v85, %v85
  %v865 = vmul.f32 %v86, %v86
  %v866 = vmul.f32 %v87, %v87
  %v867 = vmul.f32 %v88, %v88
  %v868 = vmul.f32 %v89, %v89
  %v869 = vmul.f32 %v90, %v90
  %v870 = vmul.f32 %v91, %v91
  %v871 = vmul.f32 %v92, %v92
  %v872 = vmul.f32 %v93, %v93
  %v873 = vmul.f32 %v94, %v94
  %v874 = vmul.f32 %v95, %v95
  %v875 = vmul.f32 %v96, %v96
  %v876 = vmul.f32 %v97, %v97
  %v877 = vmul.f32 %v98, %v98
  %v878 = vmul.f32 %v99, %v99
  %v879 = vmul.f32 %v100, %v100
  %v880 = vmul.f32 %v101, %v101
  %v881 = vmul.f32 %v102, %v102
  %v882 = vmul.f32 %v103, %v103
  %v883 = vmul.f32 %v104, %v104
  %v884 = vmul.f32 %v105, %v105
  %v885 = vmul.f32 %v106, %v106
  %v886 = vmul.f32 %v107, %v107
  %v887 = vmul.f32 %v108, %v108
  %v888 = vmul.f32 %v109, %v109
  %v889 = vmul.f32 %v110, %v110
  %v890 = vmul.f32 %v111, %v111
  %v891 = vmul.f32 %v112, %v112
  %v892 = vmul.f32 %v113, %v113
  %v893 = vmul.f32 %v114, %v114
  %v894 = vmul.f32 %v115, %v115
  %v895 = vmul.f32 %v116, %v116
  %v896 = vmul.f32 %v117, %v117
  %v897 = vmul.f32 %v118, %v118
  %v898 = vmul.f32 %v119, %v119
  %v899 = vmul.f32 %v120, %v120
  %v900 = vmul.f32 %v121, %v121
  %v901 = vmul.f32 %v122, %v122
  %v902 = vmul.f32 %v123, %v123
  %v903 = vmul.f32 %v124, %v124
  %v904 = vmul.f32 %v125, %v125
  %v905 = vmul.f32 %v126, %v126
  %v906 = vmul.f32 %v127, %v127
  %v907 = vmul.f32 %v128, %v128
  %v908 = vmul.f32 %v129, %v129
  %v909 = vmul.f32 %v130, %v130
  %v910 = vmul.f32 %v131, %v131
  %v911 = vmul.f32 %v132, %v132
  %v912 = vmul.f32 %v133, %v133
  %v913 = vmul.f32 %v134, %v134
  %v914 = vmul.f32 %v135, %v135
  %v915 = vmul.f32 %v136, %v136
  %v916 = vmul.f32 %v137, %v137
  %v917 = vmul.f32 %v138, %v138
  %v918 = vmul.f32 %v139, %v139
  %v919 = vmul.f32 %v140, %v140
  %v920 = vmul.f32 %v141, %v141
  %v921 = vmul.f32 %v142, %v142
  %v922 = vmul.f32 %v143, %v143
  %v923 = vmul.f32 %v144, %v144
  %v924 = vmul.f32 %v145, %v145
  %v925 = vmul.f32 %v146, %v146
  %v926 = vmul.f32 %v147, %v147
  %v927 = vmul.f32 %v148, %v148
  %v928 = vmul.f32 %v149, %v149
  %v929 = vmul.f32 %v150, %v150
  %v930 = vmul.f32 %v151, %v151
  %v931 = vmul.f32 %v152, %v152
  %v932 = vmul.f32 %v153, %v153
  %v933 = vmul.f32 %v154, %v154
  %v934 = vmul.f32 %v155, %v155
  %v935 = vmul.f32 %v156, %v156
  %v936 = vmul.f32 %v157, %v157
  %v937 = vmul.f32 %v158, %v158
  %v938 = vmul.f32 %v159, %v159
  %v939 = vmul.f32 %v160, %v160
  %v940 = vmul.f32 %v161, %v161
  %v941 = vmul.f32 %v162, %v162
  %v942 = vmul.f32 %v163, %v163
  %v943 = vmul.f32 %v164, %v164
  %v944 = vmul.f32 %v165, %v165
  %v945 = vmul.f32 %v166, %v166
  %v946 = vmul.f32 %v167, %v167
  %v947 = vmul.f32 %v168, %v168
  %v948 = vmul.f32 %v169, %v169
  %v949 = vmul.f32 %v170, %v170
  %v950 = vmul.f32 %v171, %v171
  %v951 = vmul.f32 %v172, %v172
  %v952 = vmul.f32 %v173, %v173
  %v953 = vmul.f32 %v174, %v174
  %v954 = vmul.f32 %v175, %v175
  %v955 = vmul.f32 %v176, %v176
  %v956 = vmul.f32 %v177, %v177
  %v957 = vmul.f32 %v178, %v178
  %v958 = vmul.f32 %v179, %v179
  %v959 = vmul.f32 %v180, %v180
  %v960 = vmul.f32 %v181, %v181
  %v961 = vmul.f32 %v182, %v182
  %v962 = vmul.f32 %v183, %v183
  %v963 = vmul.f32 %v184, %v184
  %v964 = vmul.f32 %v185, %v185
  %v965 = vmul.f32 %v186, %v186
  %v966 = vmul.f32 %v187, %v187
  %v967 = vmul.f32 %v188, %v188
  %v968 = vmul.f32 %v189, %v189
  %v969 = vmul.f32 %v190, %v190
  %v970 = vmul.f32 %v191, %v191
  %v971 = vmul.f32 %v192, %v192
  %v972 = vmul.f32 %v193, %v193
  %v973 = vmul.f32 %v194, %v194
  %v974 = vmul.f32 %v195, %v195
  %v975 = vmul.f32 %v196, %v196
  %v976 = vmul.f32 %v197, %v197
  %v977 = vmul.f32 %v198, %v198
  %v978 = vmul.f32 %v199, %v199
  %v979 = vmul.f32 %v200, %v200
  %v980 = vmul.f32 %v201, %v201
  %v981 = vmul.f32 %v202, %v202
  %v982 = vmul.f32 %v203, %v203
  %v983 = vmul.f32 %v204, %v204
  %v984 = vmul.f32 %v205, %v205
  %v985 = vmul.f32 %v206, %v206
  %v986 = vmul.f32 %v207, %v207
  %v987 = vmul.f32 %v208, %v208
  %v988 = vmul.f32 %v209, %v209
  %v989 = vmul.f32 %v210, %v210
  %v990 = vmul.f32 %v211, %v211
  %v991 = vmul.f32 %v212, %v212
  %v992 = vmul.f32 %v213, %v213
  %v993 = vmul.f32 %v214, %v214
  %v994 = vmul.f32 %v215, %v215
  %v995 = vmul.f32 %v216, %v216
  %v996 = vmul.f32 %v217, %v217
  %v997 = vmul.f32 %v218, %v218
  %v998 = vmul.f32 %v219, %v219
  %v999 = vmul.f32 %v220, %v220
  %v1000 = vmul.f32 %v221, %v221
  %v1001 = vmul.f32 %v222, %v222
  %v1002 = vmul.f32 %v223, %v223
  %v1003 = vmul.f32 %v224, %v224
  %v1004 = vmul.f32 %v225, %v225
  %v1005 = vmul.f32 %v226, %v226
  %v1006 = vmul.f32 %v227, %v227
  %v1007 = vmul.f32 %v228, %v228
  %v1008 = vmul.f32 %v229, %v229
  %v1009 = vmul.f32 %v230, %v230
  %v1010 = vmul.f32 %v231, %v231
  %v1011 = vmul.f32 %v232, %v232
  %v1012 = vmul.f32 %v233, %v233
  %v1013 = vmul.f32 %v234, %v234
  %v1014 = vmul.f32 %v235, %v235
  %v1015 = vmul.f32 %v236, %v236
  %v1016 = vmul.f32 %v237, %v237
  %v1017 = vmul.f32 %v238, %v238
  %v1018 = vmul.f32 %v239, %v239
  %v1019 = vmul.f32 %v240, %v240
  %v1020 = vmul.f32 %v241, %v241
  %v1021 = vmul.f32 %v242, %v242
  %v1022 = vmul.f32 %v243, %v243
  %v1023 = vmul.f32 %v244, %v244
  %v1024 = vmul.f32 %v245, %v245
  %v1025 = vmul.f32 %v246, %v246
  %v1026 = vmul.f32 %v247, %v247
  %v1027 = vmul.f32 %v248, %v248
  %v1028 = vmul.f32 %v249, %v249
  %v1029 = vmul.f32 %v250, %v250
  %v1030 = vmul.f32 %v251, %v251
  %v1031 = vmul.f32 %v252, %v252
  %v1032 = vmul.f32 %v253, %v253
  %v1033 = vmul.f32 %v254, %v254
  %v1034 = vmul.f32 %v255, %v255
  %v1035 = vmul.f32 %v256, %v256
  %v1036 = vmul.f32 %v257, %v257
  %v1037 = vmul.f32 %v258, %v258
  %v1038 = vmul.f32 %v259, %v259
  %v1039 = vmul.f32 %v260, %v260
  %v1040 = vmul.f32 %v261, %v261
  %v1041 = vmul.f32 %v262, %v262
  %v1042 = vmul.f32 %v263, %v263
  %v1043 = vmul.f32 %v264, %v264
  %v1044 = vmul.f32 %v265, %v265
  %v1045 = vmul.f32 %v266, %v266
  %v1046 = vmul.f32 %v267, %v267
  %v1047 = vmul.f32 %v268, %v268
  %v1048 = vmul.f32 %v269, %v269
  %v1049 = vmul.f32 %v270, %v270
  %v1050 = vmul.f32 %v271, %v271
  %v1051 = vmul.f32 %v272, %v272
  %v1052 = vsel %vm274, %v796, 0.0
  %v1053 = vsel %vm274, %v797, 0.0
  %v1054 = vadd.f32 %v1052, %v1053
  %v1055 = vsel %vm274, %v798, 0.0
  %v1056 = vadd.f32 %v1054, %v1055
  %v1057 = vsel %vm274, %v799, 0.0
  %v1058 = vadd.f32 %v1056, %v1057
  %v1059 = vsel %vm274, %v800, 0.0
  %v1060 = vadd.f32 %v1058, %v1059
  %v1061 = vsel %vm274, %v801, 0.0
  %v1062 = vadd.f32 %v1060, %v1061
  %v1063 = vsel %vm274, %v802, 0.0
  %v1064 = vadd.f32 %v1062, %v1063
  %v1065 = vsel %vm274, %v803, 0.0
  %v1066 = vadd.f32 %v1064, %v1065
  %v1067 = vsel %vm274, %v804, 0.0
  %v1068 = vadd.f32 %v1066, %v1067
  %v1069 = vsel %vm274, %v805, 0.0
  %v1070 = vadd.f32 %v1068, %v1069
  %v1071 = vsel %vm274, %v806, 0.0
  %v1072 = vadd.f32 %v1070, %v1071
  %v1073 = vsel %vm274, %v807, 0.0
  %v1074 = vadd.f32 %v1072, %v1073
  %v1075 = vsel %vm274, %v808, 0.0
  %v1076 = vadd.f32 %v1074, %v1075
  %v1077 = vsel %vm274, %v809, 0.0
  %v1078 = vadd.f32 %v1076, %v1077
  %v1079 = vsel %vm274, %v810, 0.0
  %v1080 = vadd.f32 %v1078, %v1079
  %v1081 = vsel %vm274, %v811, 0.0
  %v1082 = vadd.f32 %v1080, %v1081
  %v1083 = vsel %vm274, %v812, 0.0
  %v1084 = vadd.f32 %v1082, %v1083
  %v1085 = vsel %vm274, %v813, 0.0
  %v1086 = vadd.f32 %v1084, %v1085
  %v1087 = vsel %vm274, %v814, 0.0
  %v1088 = vadd.f32 %v1086, %v1087
  %v1089 = vsel %vm274, %v815, 0.0
  %v1090 = vadd.f32 %v1088, %v1089
  %v1091 = vsel %vm274, %v816, 0.0
  %v1092 = vadd.f32 %v1090, %v1091
  %v1093 = vsel %vm274, %v817, 0.0
  %v1094 = vadd.f32 %v1092, %v1093
  %v1095 = vsel %vm274, %v818, 0.0
  %v1096 = vadd.f32 %v1094, %v1095
  %v1097 = vsel %vm274, %v819, 0.0
  %v1098 = vadd.f32 %v1096, %v1097
  %v1099 = vsel %vm274, %v820, 0.0
  %v1100 = vadd.f32 %v1098, %v1099
  %v1101 = vsel %vm274, %v821, 0.0
  %v1102 = vadd.f32 %v1100, %v1101
  %v1103 = vsel %vm274, %v822, 0.0
  %v1104 = vadd.f32 %v1102, %v1103
  %v1105 = vsel %vm274, %v823, 0.0
  %v1106 = vadd.f32 %v1104, %v1105
  %v1107 = vsel %vm274, %v824, 0.0
  %v1108 = vadd.f32 %v1106, %v1107
  %v1109 = vsel %vm274, %v825, 0.0
  %v1110 = vadd.f32 %v1108, %v1109
  %v1111 = vsel %vm274, %v826, 0.0
  %v1112 = vadd.f32 %v1110, %v1111
  %v1113 = vsel %vm274, %v827, 0.0
  %v1114 = vadd.f32 %v1112, %v1113
  %v1115 = vsel %vm274, %v828, 0.0
  %v1116 = vadd.f32 %v1114, %v1115
  %v1117 = vsel %vm274, %v829, 0.0
  %v1118 = vadd.f32 %v1116, %v1117
  %v1119 = vsel %vm274, %v830, 0.0
  %v1120 = vadd.f32 %v1118, %v1119
  %v1121 = vsel %vm274, %v831, 0.0
  %v1122 = vadd.f32 %v1120, %v1121
  %v1123 = vsel %vm274, %v832, 0.0
  %v1124 = vadd.f32 %v1122, %v1123
  %v1125 = vsel %vm274, %v833, 0.0
  %v1126 = vadd.f32 %v1124, %v1125
  %v1127 = vsel %vm274, %v834, 0.0
  %v1128 = vadd.f32 %v1126, %v1127
  %v1129 = vsel %vm274, %v835, 0.0
  %v1130 = vadd.f32 %v1128, %v1129
  %v1131 = vsel %vm274, %v836, 0.0
  %v1132 = vadd.f32 %v1130, %v1131
  %v1133 = vsel %vm274, %v837, 0.0
  %v1134 = vadd.f32 %v1132, %v1133
  %v1135 = vsel %vm274, %v838, 0.0
  %v1136 = vadd.f32 %v1134, %v1135
  %v1137 = vsel %vm274, %v839, 0.0
  %v1138 = vadd.f32 %v1136, %v1137
  %v1139 = vsel %vm274, %v840, 0.0
  %v1140 = vadd.f32 %v1138, %v1139
  %v1141 = vsel %vm274, %v841, 0.0
  %v1142 = vadd.f32 %v1140, %v1141
  %v1143 = vsel %vm274, %v842, 0.0
  %v1144 = vadd.f32 %v1142, %v1143
  %v1145 = vsel %vm274, %v843, 0.0
  %v1146 = vadd.f32 %v1144, %v1145
  %v1147 = vsel %vm274, %v844, 0.0
  %v1148 = vadd.f32 %v1146, %v1147
  %v1149 = vsel %vm274, %v845, 0.0
  %v1150 = vadd.f32 %v1148, %v1149
  %v1151 = vsel %vm274, %v846, 0.0
  %v1152 = vadd.f32 %v1150, %v1151
  %v1153 = vsel %vm274, %v847, 0.0
  %v1154 = vadd.f32 %v1152, %v1153
  %v1155 = vsel %vm274, %v848, 0.0
  %v1156 = vadd.f32 %v1154, %v1155
  %v1157 = vsel %vm274, %v849, 0.0
  %v1158 = vadd.f32 %v1156, %v1157
  %v1159 = vsel %vm274, %v850, 0.0
  %v1160 = vadd.f32 %v1158, %v1159
  %v1161 = vsel %vm274, %v851, 0.0
  %v1162 = vadd.f32 %v1160, %v1161
  %v1163 = vsel %vm274, %v852, 0.0
  %v1164 = vadd.f32 %v1162, %v1163
  %v1165 = vsel %vm274, %v853, 0.0
  %v1166 = vadd.f32 %v1164, %v1165
  %v1167 = vsel %vm274, %v854, 0.0
  %v1168 = vadd.f32 %v1166, %v1167
  %v1169 = vsel %vm274, %v855, 0.0
  %v1170 = vadd.f32 %v1168, %v1169
  %v1171 = vsel %vm274, %v856, 0.0
  %v1172 = vadd.f32 %v1170, %v1171
  %v1173 = vsel %vm274, %v857, 0.0
  %v1174 = vadd.f32 %v1172, %v1173
  %v1175 = vsel %vm274, %v858, 0.0
  %v1176 = vadd.f32 %v1174, %v1175
  %v1177 = vsel %vm274, %v859, 0.0
  %v1178 = vadd.f32 %v1176, %v1177
  %v1179 = vsel %vm274, %v860, 0.0
  %v1180 = vadd.f32 %v1178, %v1179
  %v1181 = vsel %vm274, %v861, 0.0
  %v1182 = vadd.f32 %v1180, %v1181
  %v1183 = vsel %vm274, %v862, 0.0
  %v1184 = vadd.f32 %v1182, %v1183
  %v1185 = vsel %vm274, %v863, 0.0
  %v1186 = vadd.f32 %v1184, %v1185
  %v1187 = vsel %vm274, %v864, 0.0
  %v1188 = vadd.f32 %v1186, %v1187
  %v1189 = vsel %vm274, %v865, 0.0
  %v1190 = vadd.f32 %v1188, %v1189
  %v1191 = vsel %vm274, %v866, 0.0
  %v1192 = vadd.f32 %v1190, %v1191
  %v1193 = vsel %vm274, %v867, 0.0
  %v1194 = vadd.f32 %v1192, %v1193
  %v1195 = vsel %vm274, %v868, 0.0
  %v1196 = vadd.f32 %v1194, %v1195
  %v1197 = vsel %vm274, %v869, 0.0
  %v1198 = vadd.f32 %v1196, %v1197
  %v1199 = vsel %vm274, %v870, 0.0
  %v1200 = vadd.f32 %v1198, %v1199
  %v1201 = vsel %vm274, %v871, 0.0
  %v1202 = vadd.f32 %v1200, %v1201
  %v1203 = vsel %vm274, %v872, 0.0
  %v1204 = vadd.f32 %v1202, %v1203
  %v1205 = vsel %vm274, %v873, 0.0
  %v1206 = vadd.f32 %v1204, %v1205
  %v1207 = vsel %vm274, %v874, 0.0
  %v1208 = vadd.f32 %v1206, %v1207
  %v1209 = vsel %vm274, %v875, 0.0
  %v1210 = vadd.f32 %v1208, %v1209
  %v1211 = vsel %vm274, %v876, 0.0
  %v1212 = vadd.f32 %v1210, %v1211
  %v1213 = vsel %vm274, %v877, 0.0
  %v1214 = vadd.f32 %v1212, %v1213
  %v1215 = vsel %vm274, %v878, 0.0
  %v1216 = vadd.f32 %v1214, %v1215
  %v1217 = vsel %vm274, %v879, 0.0
  %v1218 = vadd.f32 %v1216, %v1217
  %v1219 = vsel %vm274, %v880, 0.0
  %v1220 = vadd.f32 %v1218, %v1219
  %v1221 = vsel %vm274, %v881, 0.0
  %v1222 = vadd.f32 %v1220, %v1221
  %v1223 = vsel %vm274, %v882, 0.0
  %v1224 = vadd.f32 %v1222, %v1223
  %v1225 = vsel %vm274, %v883, 0.0
  %v1226 = vadd.f32 %v1224, %v1225
  %v1227 = vsel %vm274, %v884, 0.0
  %v1228 = vadd.f32 %v1226, %v1227
  %v1229 = vsel %vm274, %v885, 0.0
  %v1230 = vadd.f32 %v1228, %v1229
  %v1231 = vsel %vm274, %v886, 0.0
  %v1232 = vadd.f32 %v1230, %v1231
  %v1233 = vsel %vm274, %v887, 0.0
  %v1234 = vadd.f32 %v1232, %v1233
  %v1235 = vsel %vm274, %v888, 0.0
  %v1236 = vadd.f32 %v1234, %v1235
  %v1237 = vsel %vm274, %v889, 0.0
  %v1238 = vadd.f32 %v1236, %v1237
  %v1239 = vsel %vm274, %v890, 0.0
  %v1240 = vadd.f32 %v1238, %v1239
  %v1241 = vsel %vm274, %v891, 0.0
  %v1242 = vadd.f32 %v1240, %v1241
  %v1243 = vsel %vm274, %v892, 0.0
  %v1244 = vadd.f32 %v1242, %v1243
  %v1245 = vsel %vm274, %v893, 0.0
  %v1246 = vadd.f32 %v1244, %v1245
  %v1247 = vsel %vm274, %v894, 0.0
  %v1248 = vadd.f32 %v1246, %v1247
  %v1249 = vsel %vm274, %v895, 0.0
  %v1250 = vadd.f32 %v1248, %v1249
  %v1251 = vsel %vm274, %v896, 0.0
  %v1252 = vadd.f32 %v1250, %v1251
  %v1253 = vsel %vm274, %v897, 0.0
  %v1254 = vadd.f32 %v1252, %v1253
  %v1255 = vsel %vm274, %v898, 0.0
  %v1256 = vadd.f32 %v1254, %v1255
  %v1257 = vsel %vm274, %v899, 0.0
  %v1258 = vadd.f32 %v1256, %v1257
  %v1259 = vsel %vm274, %v900, 0.0
  %v1260 = vadd.f32 %v1258, %v1259
  %v1261 = vsel %vm274, %v901, 0.0
  %v1262 = vadd.f32 %v1260, %v1261
  %v1263 = vsel %vm274, %v902, 0.0
  %v1264 = vadd.f32 %v1262, %v1263
  %v1265 = vsel %vm274, %v903, 0.0
  %v1266 = vadd.f32 %v1264, %v1265
  %v1267 = vsel %vm274, %v904, 0.0
  %v1268 = vadd.f32 %v1266, %v1267
  %v1269 = vsel %vm274, %v905, 0.0
  %v1270 = vadd.f32 %v1268, %v1269
  %v1271 = vsel %vm274, %v906, 0.0
  %v1272 = vadd.f32 %v1270, %v1271
  %v1273 = vsel %vm274, %v907, 0.0
  %v1274 = vadd.f32 %v1272, %v1273
  %v1275 = vsel %vm274, %v908, 0.0
  %v1276 = vadd.f32 %v1274, %v1275
  %v1277 = vsel %vm274, %v909, 0.0
  %v1278 = vadd.f32 %v1276, %v1277
  %v1279 = vsel %vm274, %v910, 0.0
  %v1280 = vadd.f32 %v1278, %v1279
  %v1281 = vsel %vm274, %v911, 0.0
  %v1282 = vadd.f32 %v1280, %v1281
  %v1283 = vsel %vm274, %v912, 0.0
  %v1284 = vadd.f32 %v1282, %v1283
  %v1285 = vsel %vm274, %v913, 0.0
  %v1286 = vadd.f32 %v1284, %v1285
  %v1287 = vsel %vm274, %v914, 0.0
  %v1288 = vadd.f32 %v1286, %v1287
  %v1289 = vsel %vm274, %v915, 0.0
  %v1290 = vadd.f32 %v1288, %v1289
  %v1291 = vsel %vm274, %v916, 0.0
  %v1292 = vadd.f32 %v1290, %v1291
  %v1293 = vsel %vm274, %v917, 0.0
  %v1294 = vadd.f32 %v1292, %v1293
  %v1295 = vsel %vm274, %v918, 0.0
  %v1296 = vadd.f32 %v1294, %v1295
  %v1297 = vsel %vm274, %v919, 0.0
  %v1298 = vadd.f32 %v1296, %v1297
  %v1299 = vsel %vm274, %v920, 0.0
  %v1300 = vadd.f32 %v1298, %v1299
  %v1301 = vsel %vm274, %v921, 0.0
  %v1302 = vadd.f32 %v1300, %v1301
  %v1303 = vsel %vm274, %v922, 0.0
  %v1304 = vadd.f32 %v1302, %v1303
  %v1305 = vsel %vm274, %v923, 0.0
  %v1306 = vadd.f32 %v1304, %v1305
  %v1307 = vsel %vm274, %v924, 0.0
  %v1308 = vadd.f32 %v1306, %v1307
  %v1309 = vsel %vm274, %v925, 0.0
  %v1310 = vadd.f32 %v1308, %v1309
  %v1311 = vsel %vm274, %v926, 0.0
  %v1312 = vadd.f32 %v1310, %v1311
  %v1313 = vsel %vm274, %v927, 0.0
  %v1314 = vadd.f32 %v1312, %v1313
  %v1315 = vsel %vm274, %v928, 0.0
  %v1316 = vadd.f32 %v1314, %v1315
  %v1317 = vsel %vm274, %v929, 0.0
  %v1318 = vadd.f32 %v1316, %v1317
  %v1319 = vsel %vm274, %v930, 0.0
  %v1320 = vadd.f32 %v1318, %v1319
  %v1321 = vsel %vm274, %v931, 0.0
  %v1322 = vadd.f32 %v1320, %v1321
  %v1323 = vsel %vm274, %v932, 0.0
  %v1324 = vadd.f32 %v1322, %v1323
  %v1325 = vsel %vm274, %v933, 0.0
  %v1326 = vadd.f32 %v1324, %v1325
  %v1327 = vsel %vm274, %v934, 0.0
  %v1328 = vadd.f32 %v1326, %v1327
  %v1329 = vsel %vm274, %v935, 0.0
  %v1330 = vadd.f32 %v1328, %v1329
  %v1331 = vsel %vm274, %v936, 0.0
  %v1332 = vadd.f32 %v1330, %v1331
  %v1333 = vsel %vm274, %v937, 0.0
  %v1334 = vadd.f32 %v1332, %v1333
  %v1335 = vsel %vm274, %v938, 0.0
  %v1336 = vadd.f32 %v1334, %v1335
  %v1337 = vsel %vm274, %v939, 0.0
  %v1338 = vadd.f32 %v1336, %v1337
  %v1339 = vsel %vm274, %v940, 0.0
  %v1340 = vadd.f32 %v1338, %v1339
  %v1341 = vsel %vm274, %v941, 0.0
  %v1342 = vadd.f32 %v1340, %v1341
  %v1343 = vsel %vm274, %v942, 0.0
  %v1344 = vadd.f32 %v1342, %v1343
  %v1345 = vsel %vm274, %v943, 0.0
  %v1346 = vadd.f32 %v1344, %v1345
  %v1347 = vsel %vm274, %v944, 0.0
  %v1348 = vadd.f32 %v1346, %v1347
  %v1349 = vsel %vm274, %v945, 0.0
  %v1350 = vadd.f32 %v1348, %v1349
  %v1351 = vsel %vm274, %v946, 0.0
  %v1352 = vadd.f32 %v1350, %v1351
  %v1353 = vsel %vm274, %v947, 0.0
  %v1354 = vadd.f32 %v1352, %v1353
  %v1355 = vsel %vm274, %v948, 0.0
  %v1356 = vadd.f32 %v1354, %v1355
  %v1357 = vsel %vm274, %v949, 0.0
  %v1358 = vadd.f32 %v1356, %v1357
  %v1359 = vsel %vm274, %v950, 0.0
  %v1360 = vadd.f32 %v1358, %v1359
  %v1361 = vsel %vm274, %v951, 0.0
  %v1362 = vadd.f32 %v1360, %v1361
  %v1363 = vsel %vm274, %v952, 0.0
  %v1364 = vadd.f32 %v1362, %v1363
  %v1365 = vsel %vm274, %v953, 0.0
  %v1366 = vadd.f32 %v1364, %v1365
  %v1367 = vsel %vm274, %v954, 0.0
  %v1368 = vadd.f32 %v1366, %v1367
  %v1369 = vsel %vm274, %v955, 0.0
  %v1370 = vadd.f32 %v1368, %v1369
  %v1371 = vsel %vm274, %v956, 0.0
  %v1372 = vadd.f32 %v1370, %v1371
  %v1373 = vsel %vm274, %v957, 0.0
  %v1374 = vadd.f32 %v1372, %v1373
  %v1375 = vsel %vm274, %v958, 0.0
  %v1376 = vadd.f32 %v1374, %v1375
  %v1377 = vsel %vm274, %v959, 0.0
  %v1378 = vadd.f32 %v1376, %v1377
  %v1379 = vsel %vm274, %v960, 0.0
  %v1380 = vadd.f32 %v1378, %v1379
  %v1381 = vsel %vm274, %v961, 0.0
  %v1382 = vadd.f32 %v1380, %v1381
  %v1383 = vsel %vm274, %v962, 0.0
  %v1384 = vadd.f32 %v1382, %v1383
  %v1385 = vsel %vm274, %v963, 0.0
  %v1386 = vadd.f32 %v1384, %v1385
  %v1387 = vsel %vm274, %v964, 0.0
  %v1388 = vadd.f32 %v1386, %v1387
  %v1389 = vsel %vm274, %v965, 0.0
  %v1390 = vadd.f32 %v1388, %v1389
  %v1391 = vsel %vm274, %v966, 0.0
  %v1392 = vadd.f32 %v1390, %v1391
  %v1393 = vsel %vm274, %v967, 0.0
  %v1394 = vadd.f32 %v1392, %v1393
  %v1395 = vsel %vm274, %v968, 0.0
  %v1396 = vadd.f32 %v1394, %v1395
  %v1397 = vsel %vm274, %v969, 0.0
  %v1398 = vadd.f32 %v1396, %v1397
  %v1399 = vsel %vm274, %v970, 0.0
  %v1400 = vadd.f32 %v1398, %v1399
  %v1401 = vsel %vm274, %v971, 0.0
  %v1402 = vadd.f32 %v1400, %v1401
  %v1403 = vsel %vm274, %v972, 0.0
  %v1404 = vadd.f32 %v1402, %v1403
  %v1405 = vsel %vm274, %v973, 0.0
  %v1406 = vadd.f32 %v1404, %v1405
  %v1407 = vsel %vm274, %v974, 0.0
  %v1408 = vadd.f32 %v1406, %v1407
  %v1409 = vsel %vm274, %v975, 0.0
  %v1410 = vadd.f32 %v1408, %v1409
  %v1411 = vsel %vm274, %v976, 0.0
  %v1412 = vadd.f32 %v1410, %v1411
  %v1413 = vsel %vm274, %v977, 0.0
  %v1414 = vadd.f32 %v1412, %v1413
  %v1415 = vsel %vm274, %v978, 0.0
  %v1416 = vadd.f32 %v1414, %v1415
  %v1417 = vsel %vm274, %v979, 0.0
  %v1418 = vadd.f32 %v1416, %v1417
  %v1419 = vsel %vm274, %v980, 0.0
  %v1420 = vadd.f32 %v1418, %v1419
  %v1421 = vsel %vm274, %v981, 0.0
  %v1422 = vadd.f32 %v1420, %v1421
  %v1423 = vsel %vm274, %v982, 0.0
  %v1424 = vadd.f32 %v1422, %v1423
  %v1425 = vsel %vm274, %v983, 0.0
  %v1426 = vadd.f32 %v1424, %v1425
  %v1427 = vsel %vm274, %v984, 0.0
  %v1428 = vadd.f32 %v1426, %v1427
  %v1429 = vsel %vm274, %v985, 0.0
  %v1430 = vadd.f32 %v1428, %v1429
  %v1431 = vsel %vm274, %v986, 0.0
  %v1432 = vadd.f32 %v1430, %v1431
  %v1433 = vsel %vm274, %v987, 0.0
  %v1434 = vadd.f32 %v1432, %v1433
  %v1435 = vsel %vm274, %v988, 0.0
  %v1436 = vadd.f32 %v1434, %v1435
  %v1437 = vsel %vm274, %v989, 0.0
  %v1438 = vadd.f32 %v1436, %v1437
  %v1439 = vsel %vm274, %v990, 0.0
  %v1440 = vadd.f32 %v1438, %v1439
  %v1441 = vsel %vm274, %v991, 0.0
  %v1442 = vadd.f32 %v1440, %v1441
  %v1443 = vsel %vm274, %v992, 0.0
  %v1444 = vadd.f32 %v1442, %v1443
  %v1445 = vsel %vm274, %v993, 0.0
  %v1446 = vadd.f32 %v1444, %v1445
  %v1447 = vsel %vm274, %v994, 0.0
  %v1448 = vadd.f32 %v1446, %v1447
  %v1449 = vsel %vm274, %v995, 0.0
  %v1450 = vadd.f32 %v1448, %v1449
  %v1451 = vsel %vm274, %v996, 0.0
  %v1452 = vadd.f32 %v1450, %v1451
  %v1453 = vsel %vm274, %v997, 0.0
  %v1454 = vadd.f32 %v1452, %v1453
  %v1455 = vsel %vm274, %v998, 0.0
  %v1456 = vadd.f32 %v1454, %v1455
  %v1457 = vsel %vm274, %v999, 0.0
  %v1458 = vadd.f32 %v1456, %v1457
  %v1459 = vsel %vm274, %v1000, 0.0
  %v1460 = vadd.f32 %v1458, %v1459
  %v1461 = vsel %vm274, %v1001, 0.0
  %v1462 = vadd.f32 %v1460, %v1461
  %v1463 = vsel %vm274, %v1002, 0.0
  %v1464 = vadd.f32 %v1462, %v1463
  %v1465 = vsel %vm274, %v1003, 0.0
  %v1466 = vadd.f32 %v1464, %v1465
  %v1467 = vsel %vm274, %v1004, 0.0
  %v1468 = vadd.f32 %v1466, %v1467
  %v1469 = vsel %vm274, %v1005, 0.0
  %v1470 = vadd.f32 %v1468, %v1469
  %v1471 = vsel %vm274, %v1006, 0.0
  %v1472 = vadd.f32 %v1470, %v1471
  %v1473 = vsel %vm274, %v1007, 0.0
  %v1474 = vadd.f32 %v1472, %v1473
  %v1475 = vsel %vm274, %v1008, 0.0
  %v1476 = vadd.f32 %v1474, %v1475
  %v1477 = vsel %vm274, %v1009, 0.0
  %v1478 = vadd.f32 %v1476, %v1477
  %v1479 = vsel %vm274, %v1010, 0.0
  %v1480 = vadd.f32 %v1478, %v1479
  %v1481 = vsel %vm274, %v1011, 0.0
  %v1482 = vadd.f32 %v1480, %v1481
  %v1483 = vsel %vm274, %v1012, 0.0
  %v1484 = vadd.f32 %v1482, %v1483
  %v1485 = vsel %vm274, %v1013, 0.0
  %v1486 = vadd.f32 %v1484, %v1485
  %v1487 = vsel %vm274, %v1014, 0.0
  %v1488 = vadd.f32 %v1486, %v1487
  %v1489 = vsel %vm274, %v1015, 0.0
  %v1490 = vadd.f32 %v1488, %v1489
  %v1491 = vsel %vm274, %v1016, 0.0
  %v1492 = vadd.f32 %v1490, %v1491
  %v1493 = vsel %vm274, %v1017, 0.0
  %v1494 = vadd.f32 %v1492, %v1493
  %v1495 = vsel %vm274, %v1018, 0.0
  %v1496 = vadd.f32 %v1494, %v1495
  %v1497 = vsel %vm274, %v1019, 0.0
  %v1498 = vadd.f32 %v1496, %v1497
  %v1499 = vsel %vm274, %v1020, 0.0
  %v1500 = vadd.f32 %v1498, %v1499
  %v1501 = vsel %vm274, %v1021, 0.0
  %v1502 = vadd.f32 %v1500, %v1501
  %v1503 = vsel %vm274, %v1022, 0.0
  %v1504 = vadd.f32 %v1502, %v1503
  %v1505 = vsel %vm274, %v1023, 0.0
  %v1506 = vadd.f32 %v1504, %v1505
  %v1507 = vsel %vm274, %v1024, 0.0
  %v1508 = vadd.f32 %v1506, %v1507
  %v1509 = vsel %vm274, %v1025, 0.0
  %v1510 = vadd.f32 %v1508, %v1509
  %v1511 = vsel %vm274, %v1026, 0.0
  %v1512 = vadd.f32 %v1510, %v1511
  %v1513 = vsel %vm274, %v1027, 0.0
  %v1514 = vadd.f32 %v1512, %v1513
  %v1515 = vsel %vm274, %v1028, 0.0
  %v1516 = vadd.f32 %v1514, %v1515
  %v1517 = vsel %vm274, %v1029, 0.0
  %v1518 = vadd.f32 %v1516, %v1517
  %v1519 = vsel %vm274, %v1030, 0.0
  %v1520 = vadd.f32 %v1518, %v1519
  %v1521 = vsel %vm274, %v1031, 0.0
  %v1522 = vadd.f32 %v1520, %v1521
  %v1523 = vsel %vm274, %v1032, 0.0
  %v1524 = vadd.f32 %v1522, %v1523
  %v1525 = vsel %vm274, %v1033, 0.0
  %v1526 = vadd.f32 %v1524, %v1525
  %v1527 = vsel %vm274, %v1034, 0.0
  %v1528 = vadd.f32 %v1526, %v1527
  %v1529 = vsel %vm274, %v1035, 0.0
  %v1530 = vadd.f32 %v1528, %v1529
  %v1531 = vsel %vm274, %v1036, 0.0
  %v1532 = vadd.f32 %v1530, %v1531
  %v1533 = vsel %vm274, %v1037, 0.0
  %v1534 = vadd.f32 %v1532, %v1533
  %v1535 = vsel %vm274, %v1038, 0.0
  %v1536 = vadd.f32 %v1534, %v1535
  %v1537 = vsel %vm274, %v1039, 0.0
  %v1538 = vadd.f32 %v1536, %v1537
  %v1539 = vsel %vm274, %v1040, 0.0
  %v1540 = vadd.f32 %v1538, %v1539
  %v1541 = vsel %vm274, %v1041, 0.0
  %v1542 = vadd.f32 %v1540, %v1541
  %v1543 = vsel %vm274, %v1042, 0.0
  %v1544 = vadd.f32 %v1542, %v1543
  %v1545 = vsel %vm274, %v1043, 0.0
  %v1546 = vadd.f32 %v1544, %v1545
  %v1547 = vsel %vm274, %v1044, 0.0
  %v1548 = vadd.f32 %v1546, %v1547
  %v1549 = vsel %vm274, %v1045, 0.0
  %v1550 = vadd.f32 %v1548, %v1549
  %v1551 = vsel %vm274, %v1046, 0.0
  %v1552 = vadd.f32 %v1550, %v1551
  %v1553 = vsel %vm274, %v1047, 0.0
  %v1554 = vadd.f32 %v1552, %v1553
  %v1555 = vsel %vm274, %v1048, 0.0
  %v1556 = vadd.f32 %v1554, %v1555
  %v1557 = vsel %vm274, %v1049, 0.0
  %v1558 = vadd.f32 %v1556, %v1557
  %v1559 = vsel %vm274, %v1050, 0.0
  %v1560 = vadd.f32 %v1558, %v1559
  %v1561 = vsel %vm274, %v1051, 0.0
  %v1562 = vadd.f32 %v1560, %v1561
  %v1563 = vrot.slane %v1562, 4
  %v1564 = vadd.f32 %v1562, %v1563
  %v1565 = vrot.slane %v1564, 2
  %v1566 = vadd.f32 %v1564, %v1565
  %v1567 = vrot.slane %v1566, 1
  %v1568 = vadd.f32 %v1566, %v1567
  %v1569 = vadd.f32 %v795, %v1568
  %1570 = vst.msk [vmem:[%s2] sm:$0x1] %vm793, %v1569
  // Predicated region
  $region10: #{_lambda_.24} parent=0 // pred_check
    _
  $region11: #{_lambda_.24} parent=0 // pred_check_branch
    %1572 = sbr.rel (0) target = $region13
  $region12: #{_lambda_.24} parent=0 // pred_region
    _
  $region13: #{_lambda_.24} parent=0 // pred_fallthru
    _
  // Predicated region
  $region14: #{_lambda_.24} parent=0 // pred_check
    _
  $region15: #{_lambda_.24} parent=0 // pred_check_branch
    %1574 = sbr.rel (0) target = $region17
  $region16: #{_lambda_.24} parent=0 // pred_region
    _
  $region17: #{_lambda_.24} parent=0 // pred_fallthru
    _
  // Predicated region
  $region18: #{_lambda_.24} parent=0 // pred_check
    _
  $region19: #{_lambda_.24} parent=0 // pred_check_branch
    %1576 = sbr.rel (0) target = $region21
  $region20: #{_lambda_.24} parent=0 // pred_region
    _
  $region21: #{_lambda_.24} parent=0 // pred_fallthru
    _
  // Predicated region
  $region22: #{_lambda_.24} parent=0 // pred_check
    _
  $region23: #{_lambda_.24} parent=0 // pred_check_branch
    %1578 = sbr.rel (0) target = $region25
  $region24: #{_lambda_.24} parent=0 // pred_region
    _
  $region25: #{_lambda_.24} parent=0 // pred_fallthru
    _

// kernel: _lambda_.25
$region0: #{_lambda_.25}
  #allocation0 [shape = 'u32[]', space=smem, size = 0x4, offset = 0x4, fixed_abs, tag = 'smem constant byte address 0x4 - core index']
  #allocation1 [shape = 'u32[144,128]{1,0:T(1,128)}', space=vmem, size = 0x12000, scoped, tag = 'internal scratch']
  %s0 = inlined_call_operand.vmem [shape: f32[2048,8], index: 0, kind: input, shape index: {}]
  %s1 = inlined_call_operand.vmem [shape: f32[1,8], index: 1, kind: input, shape index: {}]
  %s2 = inlined_call_operand.vmem [shape: f32[1,8], index: 2, kind: input, shape index: {}]
  %s3 = inlined_call_operand.vmem [shape: f32[1,8], index: 3, kind: input, shape index: {}]
  %s4 = inlined_call_operand.vmem [shape: f32[1,8], index: 4, kind: input, shape index: {}]
  %s5 = inlined_call_operand.vmem [shape: f32[2048,8], index: 5, kind: output, shape index: {}]
  %s6 = sld [smem:[#allocation0]]
  $region30: #{_lambda_.25} parent=0
    _
  %s8 = ssub.s32 1, %s6
  %s9 = scalar_select 0, %s8, %s6
  // Predicated region
  $region2: #{_lambda_.25} parent=0 // pred_check
    _
  $region3: #{_lambda_.25} parent=0 // pred_check_branch
    %11 = sbr.rel (0) target = $region5
  $region4: #{_lambda_.25} parent=0 // pred_region
    _
  $region5: #{_lambda_.25} parent=0 // pred_fallthru
    _
  // Predicated region
  $region6: #{_lambda_.25} parent=0 // pred_check
    _
  $region7: #{_lambda_.25} parent=0 // pred_check_branch
    %13 = sbr.rel (0) target = $region9
  $region8: #{_lambda_.25} parent=0 // pred_region
    _
  $region9: #{_lambda_.25} parent=0 // pred_fallthru
    _
  // Predicated region
  $region10: #{_lambda_.25} parent=0 // pred_check
    _
  $region11: #{_lambda_.25} parent=0 // pred_check_branch
    %15 = sbr.rel (0) target = $region13
  $region12: #{_lambda_.25} parent=0 // pred_region
    _
  $region13: #{_lambda_.25} parent=0 // pred_fallthru
    _
  // Predicated region
  $region14: #{_lambda_.25} parent=0 // pred_check
    _
  $region15: #{_lambda_.25} parent=0 // pred_check_branch
    %17 = sbr.rel (0) target = $region17
  $region16: #{_lambda_.25} parent=0 // pred_region
    _
  $region17: #{_lambda_.25} parent=0 // pred_fallthru
    _
  // Predicated region
  $region18: #{_lambda_.25} parent=0 // pred_check
    _
  $region19: #{_lambda_.25} parent=0 // pred_check_branch
    %19 = sbr.rel (0) target = $region21
  $region20: #{_lambda_.25} parent=0 // pred_region
    _
  $region21: #{_lambda_.25} parent=0 // pred_fallthru
    _
  %v20 = vld [vmem:[%s1] sm:$0x1]
  %v21 = vmul.f32 %v20, 0.00048828125
  %v22 = vld [vmem:[%s2] sm:$0x1]
  %v23 = vmul.f32 %v22, 0.00048828125
  %v24 = vmul.f32 %v21, %v21
  %v25 = vsub.f32 %v23, %v24
  %v26 = vld [vmem:[%s3] sm:$0x1]
  %v27 = vadd.f32 %v25, 1e-05
  %v28 = vrsqrt.pop %v27
  %v29 = vmul.f32 %v26, %v28
  %v30 = vld [vmem:[%s4] sm:$0x1]
  %v31 = vmul.f32 %v21, %v29
  %v32 = vsub.f32 %v30, %v31
  %v33 = vld [vmem:[%s0] sm:$0xff]
  %v34 = vld [vmem:[%s0 + $0x8] sm:$0xff]
  %v35 = vld [vmem:[%s0 + $0x10] sm:$0xff]
  %v36 = vld [vmem:[%s0 + $0x18] sm:$0xff]
  %v37 = vld [vmem:[%s0 + $0x20] sm:$0xff]
  %v38 = vld [vmem:[%s0 + $0x28] sm:$0xff]
  %v39 = vld [vmem:[%s0 + $0x30] sm:$0xff]
  %v40 = vld [vmem:[%s0 + $0x38] sm:$0xff]
  %v41 = vld [vmem:[%s0 + $0x40] sm:$0xff]
  %v42 = vld [vmem:[%s0 + $0x48] sm:$0xff]
  %v43 = vld [vmem:[%s0 + $0x50] sm:$0xff]
  %v44 = vld [vmem:[%s0 + $0x58] sm:$0xff]
  %v45 = vld [vmem:[%s0 + $0x60] sm:$0xff]
  %v46 = vld [vmem:[%s0 + $0x68] sm:$0xff]
  %v47 = vld [vmem:[%s0 + $0x70] sm:$0xff]
  %v48 = vld [vmem:[%s0 + $0x78] sm:$0xff]
  %v49 = vld [vmem:[%s0 + $0x80] sm:$0xff]
  %v50 = vld [vmem:[%s0 + $0x88] sm:$0xff]
  %v51 = vld [vmem:[%s0 + $0x90] sm:$0xff]
  %v52 = vld [vmem:[%s0 + $0x98] sm:$0xff]
  %v53 = vld [vmem:[%s0 + $0xa0] sm:$0xff]
  %v54 = vld [vmem:[%s0 + $0xa8] sm:$0xff]
  %v55 = vld [vmem:[%s0 + $0xb0] sm:$0xff]
  %v56 = vld [vmem:[%s0 + $0xb8] sm:$0xff]
  %v57 = vld [vmem:[%s0 + $0xc0] sm:$0xff]
  %v58 = vld [vmem:[%s0 + $0xc8] sm:$0xff]
  %v59 = vld [vmem:[%s0 + $0xd0] sm:$0xff]
  %v60 = vld [vmem:[%s0 + $0xd8] sm:$0xff]
  %v61 = vld [vmem:[%s0 + $0xe0] sm:$0xff]
  %v62 = vld [vmem:[%s0 + $0xe8] sm:$0xff]
  %v63 = vld [vmem:[%s0 + $0xf0] sm:$0xff]
  %v64 = vld [vmem:[%s0 + $0xf8] sm:$0xff]
  %v65 = vld [vmem:[%s0 + $0x100] sm:$0xff]
  %v66 = vld [vmem:[%s0 + $0x108] sm:$0xff]
  %v67 = vld [vmem:[%s0 + $0x110] sm:$0xff]
  %v68 = vld [vmem:[%s0 + $0x118] sm:$0xff]
  %v69 = vld [vmem:[%s0 + $0x120] sm:$0xff]
  %v70 = vld [vmem:[%s0 + $0x128] sm:$0xff]
  %v71 = vld [vmem:[%s0 + $0x130] sm:$0xff]
  %v72 = vld [vmem:[%s0 + $0x138] sm:$0xff]
  %v73 = vld [vmem:[%s0 + $0x140] sm:$0xff]
  %v74 = vld [vmem:[%s0 + $0x148] sm:$0xff]
  %v75 = vld [vmem:[%s0 + $0x150] sm:$0xff]
  %v76 = vld [vmem:[%s0 + $0x158] sm:$0xff]
  %v77 = vld [vmem:[%s0 + $0x160] sm:$0xff]
  %v78 = vld [vmem:[%s0 + $0x168] sm:$0xff]
  %v79 = vld [vmem:[%s0 + $0x170] sm:$0xff]
  %v80 = vld [vmem:[%s0 + $0x178] sm:$0xff]
  %v81 = vld [vmem:[%s0 + $0x180] sm:$0xff]
  %v82 = vld [vmem:[%s0 + $0x188] sm:$0xff]
  %v83 = vld [vmem:[%s0 + $0x190] sm:$0xff]
  %v84 = vld [vmem:[%s0 + $0x198] sm:$0xff]
  %v85 = vld [vmem:[%s0 + $0x1a0] sm:$0xff]
  %v86 = vld [vmem:[%s0 + $0x1a8] sm:$0xff]
  %v87 = vld [vmem:[%s0 + $0x1b0] sm:$0xff]
  %v88 = vld [vmem:[%s0 + $0x1b8] sm:$0xff]
  %v89 = vld [vmem:[%s0 + $0x1c0] sm:$0xff]
  %v90 = vld [vmem:[%s0 + $0x1c8] sm:$0xff]
  %v91 = vld [vmem:[%s0 + $0x1d0] sm:$0xff]
  %v92 = vld [vmem:[%s0 + $0x1d8] sm:$0xff]
  %v93 = vld [vmem:[%s0 + $0x1e0] sm:$0xff]
  %v94 = vld [vmem:[%s0 + $0x1e8] sm:$0xff]
  %v95 = vld [vmem:[%s0 + $0x1f0] sm:$0xff]
  %v96 = vld [vmem:[%s0 + $0x1f8] sm:$0xff]
  %v97 = vld [vmem:[%s0 + $0x200] sm:$0xff]
  %v98 = vld [vmem:[%s0 + $0x208] sm:$0xff]
  %v99 = vld [vmem:[%s0 + $0x210] sm:$0xff]
  %v100 = vld [vmem:[%s0 + $0x218] sm:$0xff]
  %v101 = vld [vmem:[%s0 + $0x220] sm:$0xff]
  %v102 = vld [vmem:[%s0 + $0x228] sm:$0xff]
  %v103 = vld [vmem:[%s0 + $0x230] sm:$0xff]
  %v104 = vld [vmem:[%s0 + $0x238] sm:$0xff]
  %v105 = vld [vmem:[%s0 + $0x240] sm:$0xff]
  %v106 = vld [vmem:[%s0 + $0x248] sm:$0xff]
  %v107 = vld [vmem:[%s0 + $0x250] sm:$0xff]
  %v108 = vld [vmem:[%s0 + $0x258] sm:$0xff]
  %v109 = vld [vmem:[%s0 + $0x260] sm:$0xff]
  %v110 = vld [vmem:[%s0 + $0x268] sm:$0xff]
  %v111 = vld [vmem:[%s0 + $0x270] sm:$0xff]
  %v112 = vld [vmem:[%s0 + $0x278] sm:$0xff]
  %v113 = vld [vmem:[%s0 + $0x280] sm:$0xff]
  %v114 = vld [vmem:[%s0 + $0x288] sm:$0xff]
  %v115 = vld [vmem:[%s0 + $0x290] sm:$0xff]
  %v116 = vld [vmem:[%s0 + $0x298] sm:$0xff]
  %v117 = vld [vmem:[%s0 + $0x2a0] sm:$0xff]
  %v118 = vld [vmem:[%s0 + $0x2a8] sm:$0xff]
  %v119 = vld [vmem:[%s0 + $0x2b0] sm:$0xff]
  %v120 = vld [vmem:[%s0 + $0x2b8] sm:$0xff]
  %v121 = vld [vmem:[%s0 + $0x2c0] sm:$0xff]
  %v122 = vld [vmem:[%s0 + $0x2c8] sm:$0xff]
  %v123 = vld [vmem:[%s0 + $0x2d0] sm:$0xff]
  %v124 = vld [vmem:[%s0 + $0x2d8] sm:$0xff]
  %v125 = vld [vmem:[%s0 + $0x2e0] sm:$0xff]
  %v126 = vld [vmem:[%s0 + $0x2e8] sm:$0xff]
  %v127 = vld [vmem:[%s0 + $0x2f0] sm:$0xff]
  %v128 = vld [vmem:[%s0 + $0x2f8] sm:$0xff]
  %v129 = vld [vmem:[%s0 + $0x300] sm:$0xff]
  %v130 = vld [vmem:[%s0 + $0x308] sm:$0xff]
  %v131 = vld [vmem:[%s0 + $0x310] sm:$0xff]
  %v132 = vld [vmem:[%s0 + $0x318] sm:$0xff]
  %v133 = vld [vmem:[%s0 + $0x320] sm:$0xff]
  %v134 = vld [vmem:[%s0 + $0x328] sm:$0xff]
  %v135 = vld [vmem:[%s0 + $0x330] sm:$0xff]
  %v136 = vld [vmem:[%s0 + $0x338] sm:$0xff]
  %v137 = vld [vmem:[%s0 + $0x340] sm:$0xff]
  %v138 = vld [vmem:[%s0 + $0x348] sm:$0xff]
  %v139 = vld [vmem:[%s0 + $0x350] sm:$0xff]
  %v140 = vld [vmem:[%s0 + $0x358] sm:$0xff]
  %v141 = vld [vmem:[%s0 + $0x360] sm:$0xff]
  %v142 = vld [vmem:[%s0 + $0x368] sm:$0xff]
  %v143 = vld [vmem:[%s0 + $0x370] sm:$0xff]
  %v144 = vld [vmem:[%s0 + $0x378] sm:$0xff]
  %v145 = vld [vmem:[%s0 + $0x380] sm:$0xff]
  %v146 = vld [vmem:[%s0 + $0x388] sm:$0xff]
  %v147 = vld [vmem:[%s0 + $0x390] sm:$0xff]
  %v148 = vld [vmem:[%s0 + $0x398] sm:$0xff]
  %v149 = vld [vmem:[%s0 + $0x3a0] sm:$0xff]
  %v150 = vld [vmem:[%s0 + $0x3a8] sm:$0xff]
  %v151 = vld [vmem:[%s0 + $0x3b0] sm:$0xff]
  %v152 = vld [vmem:[%s0 + $0x3b8] sm:$0xff]
  %v153 = vld [vmem:[%s0 + $0x3c0] sm:$0xff]
  %v154 = vld [vmem:[%s0 + $0x3c8] sm:$0xff]
  %v155 = vld [vmem:[%s0 + $0x3d0] sm:$0xff]
  %v156 = vld [vmem:[%s0 + $0x3d8] sm:$0xff]
  %v157 = vld [vmem:[%s0 + $0x3e0] sm:$0xff]
  %v158 = vld [vmem:[%s0 + $0x3e8] sm:$0xff]
  %v159 = vld [vmem:[%s0 + $0x3f0] sm:$0xff]
  %v160 = vld [vmem:[%s0 + $0x3f8] sm:$0xff]
  %v161 = vld [vmem:[%s0 + $0x400] sm:$0xff]
  %v162 = vld [vmem:[%s0 + $0x408] sm:$0xff]
  %v163 = vld [vmem:[%s0 + $0x410] sm:$0xff]
  %v164 = vld [vmem:[%s0 + $0x418] sm:$0xff]
  %v165 = vld [vmem:[%s0 + $0x420] sm:$0xff]
  %v166 = vld [vmem:[%s0 + $0x428] sm:$0xff]
  %v167 = vld [vmem:[%s0 + $0x430] sm:$0xff]
  %v168 = vld [vmem:[%s0 + $0x438] sm:$0xff]
  %v169 = vld [vmem:[%s0 + $0x440] sm:$0xff]
  %v170 = vld [vmem:[%s0 + $0x448] sm:$0xff]
  %v171 = vld [vmem:[%s0 + $0x450] sm:$0xff]
  %v172 = vld [vmem:[%s0 + $0x458] sm:$0xff]
  %v173 = vld [vmem:[%s0 + $0x460] sm:$0xff]
  %v174 = vld [vmem:[%s0 + $0x468] sm:$0xff]
  %v175 = vld [vmem:[%s0 + $0x470] sm:$0xff]
  %v176 = vld [vmem:[%s0 + $0x478] sm:$0xff]
  %v177 = vld [vmem:[%s0 + $0x480] sm:$0xff]
  %v178 = vld [vmem:[%s0 + $0x488] sm:$0xff]
  %v179 = vld [vmem:[%s0 + $0x490] sm:$0xff]
  %v180 = vld [vmem:[%s0 + $0x498] sm:$0xff]
  %v181 = vld [vmem:[%s0 + $0x4a0] sm:$0xff]
  %v182 = vld [vmem:[%s0 + $0x4a8] sm:$0xff]
  %v183 = vld [vmem:[%s0 + $0x4b0] sm:$0xff]
  %v184 = vld [vmem:[%s0 + $0x4b8] sm:$0xff]
  %v185 = vld [vmem:[%s0 + $0x4c0] sm:$0xff]
  %v186 = vld [vmem:[%s0 + $0x4c8] sm:$0xff]
  %v187 = vld [vmem:[%s0 + $0x4d0] sm:$0xff]
  %v188 = vld [vmem:[%s0 + $0x4d8] sm:$0xff]
  %v189 = vld [vmem:[%s0 + $0x4e0] sm:$0xff]
  %v190 = vld [vmem:[%s0 + $0x4e8] sm:$0xff]
  %v191 = vld [vmem:[%s0 + $0x4f0] sm:$0xff]
  %v192 = vld [vmem:[%s0 + $0x4f8] sm:$0xff]
  %v193 = vld [vmem:[%s0 + $0x500] sm:$0xff]
  %v194 = vld [vmem:[%s0 + $0x508] sm:$0xff]
  %v195 = vld [vmem:[%s0 + $0x510] sm:$0xff]
  %v196 = vld [vmem:[%s0 + $0x518] sm:$0xff]
  %v197 = vld [vmem:[%s0 + $0x520] sm:$0xff]
  %v198 = vld [vmem:[%s0 + $0x528] sm:$0xff]
  %v199 = vld [vmem:[%s0 + $0x530] sm:$0xff]
  %v200 = vld [vmem:[%s0 + $0x538] sm:$0xff]
  %v201 = vld [vmem:[%s0 + $0x540] sm:$0xff]
  %v202 = vld [vmem:[%s0 + $0x548] sm:$0xff]
  %v203 = vld [vmem:[%s0 + $0x550] sm:$0xff]
  %v204 = vld [vmem:[%s0 + $0x558] sm:$0xff]
  %v205 = vld [vmem:[%s0 + $0x560] sm:$0xff]
  %v206 = vld [vmem:[%s0 + $0x568] sm:$0xff]
  %v207 = vld [vmem:[%s0 + $0x570] sm:$0xff]
  %v208 = vld [vmem:[%s0 + $0x578] sm:$0xff]
  %v209 = vld [vmem:[%s0 + $0x580] sm:$0xff]
  %v210 = vld [vmem:[%s0 + $0x588] sm:$0xff]
  %v211 = vld [vmem:[%s0 + $0x590] sm:$0xff]
  %v212 = vld [vmem:[%s0 + $0x598] sm:$0xff]
  %v213 = vld [vmem:[%s0 + $0x5a0] sm:$0xff]
  %v214 = vld [vmem:[%s0 + $0x5a8] sm:$0xff]
  %v215 = vld [vmem:[%s0 + $0x5b0] sm:$0xff]
  %v216 = vld [vmem:[%s0 + $0x5b8] sm:$0xff]
  %v217 = vld [vmem:[%s0 + $0x5c0] sm:$0xff]
  %v218 = vld [vmem:[%s0 + $0x5c8] sm:$0xff]
  %v219 = vld [vmem:[%s0 + $0x5d0] sm:$0xff]
  %v220 = vld [vmem:[%s0 + $0x5d8] sm:$0xff]
  %v221 = vld [vmem:[%s0 + $0x5e0] sm:$0xff]
  %v222 = vld [vmem:[%s0 + $0x5e8] sm:$0xff]
  %v223 = vld [vmem:[%s0 + $0x5f0] sm:$0xff]
  %v224 = vld [vmem:[%s0 + $0x5f8] sm:$0xff]
  %v225 = vld [vmem:[%s0 + $0x600] sm:$0xff]
  %v226 = vld [vmem:[%s0 + $0x608] sm:$0xff]
  %v227 = vld [vmem:[%s0 + $0x610] sm:$0xff]
  %v228 = vld [vmem:[%s0 + $0x618] sm:$0xff]
  %v229 = vld [vmem:[%s0 + $0x620] sm:$0xff]
  %v230 = vld [vmem:[%s0 + $0x628] sm:$0xff]
  %v231 = vld [vmem:[%s0 + $0x630] sm:$0xff]
  %v232 = vld [vmem:[%s0 + $0x638] sm:$0xff]
  %v233 = vld [vmem:[%s0 + $0x640] sm:$0xff]
  %v234 = vld [vmem:[%s0 + $0x648] sm:$0xff]
  %v235 = vld [vmem:[%s0 + $0x650] sm:$0xff]
  %v236 = vld [vmem:[%s0 + $0x658] sm:$0xff]
  %v237 = vld [vmem:[%s0 + $0x660] sm:$0xff]
  %v238 = vld [vmem:[%s0 + $0x668] sm:$0xff]
  %v239 = vld [vmem:[%s0 + $0x670] sm:$0xff]
  %v240 = vld [vmem:[%s0 + $0x678] sm:$0xff]
  %v241 = vld [vmem:[%s0 + $0x680] sm:$0xff]
  %v242 = vld [vmem:[%s0 + $0x688] sm:$0xff]
  %v243 = vld [vmem:[%s0 + $0x690] sm:$0xff]
  %v244 = vld [vmem:[%s0 + $0x698] sm:$0xff]
  %v245 = vld [vmem:[%s0 + $0x6a0] sm:$0xff]
  %v246 = vld [vmem:[%s0 + $0x6a8] sm:$0xff]
  %v247 = vld [vmem:[%s0 + $0x6b0] sm:$0xff]
  %v248 = vld [vmem:[%s0 + $0x6b8] sm:$0xff]
  %v249 = vld [vmem:[%s0 + $0x6c0] sm:$0xff]
  %v250 = vld [vmem:[%s0 + $0x6c8] sm:$0xff]
  %v251 = vld [vmem:[%s0 + $0x6d0] sm:$0xff]
  %v252 = vld [vmem:[%s0 + $0x6d8] sm:$0xff]
  %v253 = vld [vmem:[%s0 + $0x6e0] sm:$0xff]
  %v254 = vld [vmem:[%s0 + $0x6e8] sm:$0xff]
  %v255 = vld [vmem:[%s0 + $0x6f0] sm:$0xff]
  %v256 = vld [vmem:[%s0 + $0x6f8] sm:$0xff]
  %v257 = vld [vmem:[%s0 + $0x700] sm:$0xff]
  %v258 = vld [vmem:[%s0 + $0x708] sm:$0xff]
  %v259 = vld [vmem:[%s0 + $0x710] sm:$0xff]
  %v260 = vld [vmem:[%s0 + $0x718] sm:$0xff]
  %v261 = vld [vmem:[%s0 + $0x720] sm:$0xff]
  %v262 = vld [vmem:[%s0 + $0x728] sm:$0xff]
  %v263 = vld [vmem:[%s0 + $0x730] sm:$0xff]
  %v264 = vld [vmem:[%s0 + $0x738] sm:$0xff]
  %v265 = vld [vmem:[%s0 + $0x740] sm:$0xff]
  %v266 = vld [vmem:[%s0 + $0x748] sm:$0xff]
  %v267 = vld [vmem:[%s0 + $0x750] sm:$0xff]
  %v268 = vld [vmem:[%s0 + $0x758] sm:$0xff]
  %v269 = vld [vmem:[%s0 + $0x760] sm:$0xff]
  %v270 = vld [vmem:[%s0 + $0x768] sm:$0xff]
  %v271 = vld [vmem:[%s0 + $0x770] sm:$0xff]
  %v272 = vld [vmem:[%s0 + $0x778] sm:$0xff]
  %v273 = vld [vmem:[%s0 + $0x780] sm:$0xff]
  %v274 = vld [vmem:[%s0 + $0x788] sm:$0xff]
  %v275 = vld [vmem:[%s0 + $0x790] sm:$0xff]
  %v276 = vld [vmem:[%s0 + $0x798] sm:$0xff]
  %v277 = vld [vmem:[%s0 + $0x7a0] sm:$0xff]
  %v278 = vld [vmem:[%s0 + $0x7a8] sm:$0xff]
  %v279 = vld [vmem:[%s0 + $0x7b0] sm:$0xff]
  %v280 = vld [vmem:[%s0 + $0x7b8] sm:$0xff]
  %v281 = vld [vmem:[%s0 + $0x7c0] sm:$0xff]
  %v282 = vld [vmem:[%s0 + $0x7c8] sm:$0xff]
  %v283 = vld [vmem:[%s0 + $0x7d0] sm:$0xff]
  %v284 = vld [vmem:[%s0 + $0x7d8] sm:$0xff]
  %v285 = vld [vmem:[%s0 + $0x7e0] sm:$0xff]
  %v286 = vld [vmem:[%s0 + $0x7e8] sm:$0xff]
  %v287 = vld [vmem:[%s0 + $0x7f0] sm:$0xff]
  %v288 = vld [vmem:[%s0 + $0x7f8] sm:$0xff]
  %v290 = vlaneseq
  %v291 = vshrl.u32 %v290, 7
  %v292 = vsub.s32 0, %v291
  %v293 = vrot.slane %v29, %v292
  %v295 = vmul.f32 %v33, %v293
  %v296 = vmul.f32 %v34, %v293
  %v297 = vmul.f32 %v35, %v293
  %v298 = vmul.f32 %v36, %v293
  %v299 = vmul.f32 %v37, %v293
  %v300 = vmul.f32 %v38, %v293
  %v301 = vmul.f32 %v39, %v293
  %v302 = vmul.f32 %v40, %v293
  %v303 = vmul.f32 %v41, %v293
  %v304 = vmul.f32 %v42, %v293
  %v305 = vmul.f32 %v43, %v293
  %v306 = vmul.f32 %v44, %v293
  %v307 = vmul.f32 %v45, %v293
  %v308 = vmul.f32 %v46, %v293
  %v309 = vmul.f32 %v47, %v293
  %v310 = vmul.f32 %v48, %v293
  %v311 = vmul.f32 %v49, %v293
  %v312 = vmul.f32 %v50, %v293
  %v313 = vmul.f32 %v51, %v293
  %v314 = vmul.f32 %v52, %v293
  %v315 = vmul.f32 %v53, %v293
  %v316 = vmul.f32 %v54, %v293
  %v317 = vmul.f32 %v55, %v293
  %v318 = vmul.f32 %v56, %v293
  %v319 = vmul.f32 %v57, %v293
  %v320 = vmul.f32 %v58, %v293
  %v321 = vmul.f32 %v59, %v293
  %v322 = vmul.f32 %v60, %v293
  %v323 = vmul.f32 %v61, %v293
  %v324 = vmul.f32 %v62, %v293
  %v325 = vmul.f32 %v63, %v293
  %v326 = vmul.f32 %v64, %v293
  %v327 = vmul.f32 %v65, %v293
  %v328 = vmul.f32 %v66, %v293
  %v329 = vmul.f32 %v67, %v293
  %v330 = vmul.f32 %v68, %v293
  %v331 = vmul.f32 %v69, %v293
  %v332 = vmul.f32 %v70, %v293
  %v333 = vmul.f32 %v71, %v293
  %v334 = vmul.f32 %v72, %v293
  %v335 = vmul.f32 %v73, %v293
  %v336 = vmul.f32 %v74, %v293
  %v337 = vmul.f32 %v75, %v293
  %v338 = vmul.f32 %v76, %v293
  %v339 = vmul.f32 %v77, %v293
  %v340 = vmul.f32 %v78, %v293
  %v341 = vmul.f32 %v79, %v293
  %v342 = vmul.f32 %v80, %v293
  %v343 = vmul.f32 %v81, %v293
  %v344 = vmul.f32 %v82, %v293
  %v345 = vmul.f32 %v83, %v293
  %v346 = vmul.f32 %v84, %v293
  %v347 = vmul.f32 %v85, %v293
  %v348 = vmul.f32 %v86, %v293
  %v349 = vmul.f32 %v87, %v293
  %v350 = vmul.f32 %v88, %v293
  %v351 = vmul.f32 %v89, %v293
  %v352 = vmul.f32 %v90, %v293
  %v353 = vmul.f32 %v91, %v293
  %v354 = vmul.f32 %v92, %v293
  %v355 = vmul.f32 %v93, %v293
  %v356 = vmul.f32 %v94, %v293
  %v357 = vmul.f32 %v95, %v293
  %v358 = vmul.f32 %v96, %v293
  %v359 = vmul.f32 %v97, %v293
  %v360 = vmul.f32 %v98, %v293
  %v361 = vmul.f32 %v99, %v293
  %v362 = vmul.f32 %v100, %v293
  %v363 = vmul.f32 %v101, %v293
  %v364 = vmul.f32 %v102, %v293
  %v365 = vmul.f32 %v103, %v293
  %v366 = vmul.f32 %v104, %v293
  %v367 = vmul.f32 %v105, %v293
  %v368 = vmul.f32 %v106, %v293
  %v369 = vmul.f32 %v107, %v293
  %v370 = vmul.f32 %v108, %v293
  %v371 = vmul.f32 %v109, %v293
  %v372 = vmul.f32 %v110, %v293
  %v373 = vmul.f32 %v111, %v293
  %v374 = vmul.f32 %v112, %v293
  %v375 = vmul.f32 %v113, %v293
  %v376 = vmul.f32 %v114, %v293
  %v377 = vmul.f32 %v115, %v293
  %v378 = vmul.f32 %v116, %v293
  %v379 = vmul.f32 %v117, %v293
  %v380 = vmul.f32 %v118, %v293
  %v381 = vmul.f32 %v119, %v293
  %v382 = vmul.f32 %v120, %v293
  %v383 = vmul.f32 %v121, %v293
  %v384 = vmul.f32 %v122, %v293
  %v385 = vmul.f32 %v123, %v293
  %v386 = vmul.f32 %v124, %v293
  %v387 = vmul.f32 %v125, %v293
  %v388 = vmul.f32 %v126, %v293
  %v389 = vmul.f32 %v127, %v293
  %v390 = vmul.f32 %v128, %v293
  %v391 = vmul.f32 %v129, %v293
  %v392 = vmul.f32 %v130, %v293
  %v393 = vmul.f32 %v131, %v293
  %v394 = vmul.f32 %v132, %v293
  %v395 = vmul.f32 %v133, %v293
  %v396 = vmul.f32 %v134, %v293
  %v397 = vmul.f32 %v135, %v293
  %v398 = vmul.f32 %v136, %v293
  %v399 = vmul.f32 %v137, %v293
  %v400 = vmul.f32 %v138, %v293
  %v401 = vmul.f32 %v139, %v293
  %v402 = vmul.f32 %v140, %v293
  %v403 = vmul.f32 %v141, %v293
  %v404 = vmul.f32 %v142, %v293
  %v405 = vmul.f32 %v143, %v293
  %v406 = vmul.f32 %v144, %v293
  %v407 = vmul.f32 %v145, %v293
  %v408 = vmul.f32 %v146, %v293
  %v409 = vmul.f32 %v147, %v293
  %v410 = vmul.f32 %v148, %v293
  %v411 = vmul.f32 %v149, %v293
  %v412 = vmul.f32 %v150, %v293
  %v413 = vmul.f32 %v151, %v293
  %v414 = vmul.f32 %v152, %v293
  %v415 = vmul.f32 %v153, %v293
  %v416 = vmul.f32 %v154, %v293
  %v417 = vmul.f32 %v155, %v293
  %v418 = vmul.f32 %v156, %v293
  %v419 = vmul.f32 %v157, %v293
  %v420 = vmul.f32 %v158, %v293
  %v421 = vmul.f32 %v159, %v293
  %v422 = vmul.f32 %v160, %v293
  %v423 = vmul.f32 %v161, %v293
  %v424 = vmul.f32 %v162, %v293
  %v425 = vmul.f32 %v163, %v293
  %v426 = vmul.f32 %v164, %v293
  %v427 = vmul.f32 %v165, %v293
  %v428 = vmul.f32 %v166, %v293
  %v429 = vmul.f32 %v167, %v293
  %v430 = vmul.f32 %v168, %v293
  %v431 = vmul.f32 %v169, %v293
  %v432 = vmul.f32 %v170, %v293
  %v433 = vmul.f32 %v171, %v293
  %v434 = vmul.f32 %v172, %v293
  %v435 = vmul.f32 %v173, %v293
  %v436 = vmul.f32 %v174, %v293
  %v437 = vmul.f32 %v175, %v293
  %v438 = vmul.f32 %v176, %v293
  %v439 = vmul.f32 %v177, %v293
  %v440 = vmul.f32 %v178, %v293
  %v441 = vmul.f32 %v179, %v293
  %v442 = vmul.f32 %v180, %v293
  %v443 = vmul.f32 %v181, %v293
  %v444 = vmul.f32 %v182, %v293
  %v445 = vmul.f32 %v183, %v293
  %v446 = vmul.f32 %v184, %v293
  %v447 = vmul.f32 %v185, %v293
  %v448 = vmul.f32 %v186, %v293
  %v449 = vmul.f32 %v187, %v293
  %v450 = vmul.f32 %v188, %v293
  %v451 = vmul.f32 %v189, %v293
  %v452 = vmul.f32 %v190, %v293
  %v453 = vmul.f32 %v191, %v293
  %v454 = vmul.f32 %v192, %v293
  %v455 = vmul.f32 %v193, %v293
  %v456 = vmul.f32 %v194, %v293
  %v457 = vmul.f32 %v195, %v293
  %v458 = vmul.f32 %v196, %v293
  %v459 = vmul.f32 %v197, %v293
  %v460 = vmul.f32 %v198, %v293
  %v461 = vmul.f32 %v199, %v293
  %v462 = vmul.f32 %v200, %v293
  %v463 = vmul.f32 %v201, %v293
  %v464 = vmul.f32 %v202, %v293
  %v465 = vmul.f32 %v203, %v293
  %v466 = vmul.f32 %v204, %v293
  %v467 = vmul.f32 %v205, %v293
  %v468 = vmul.f32 %v206, %v293
  %v469 = vmul.f32 %v207, %v293
  %v470 = vmul.f32 %v208, %v293
  %v471 = vmul.f32 %v209, %v293
  %v472 = vmul.f32 %v210, %v293
  %v473 = vmul.f32 %v211, %v293
  %v474 = vmul.f32 %v212, %v293
  %v475 = vmul.f32 %v213, %v293
  %v476 = vmul.f32 %v214, %v293
  %v477 = vmul.f32 %v215, %v293
  %v478 = vmul.f32 %v216, %v293
  %v479 = vmul.f32 %v217, %v293
  %v480 = vmul.f32 %v218, %v293
  %v481 = vmul.f32 %v219, %v293
  %v482 = vmul.f32 %v220, %v293
  %v483 = vmul.f32 %v221, %v293
  %v484 = vmul.f32 %v222, %v293
  %v485 = vmul.f32 %v223, %v293
  %v486 = vmul.f32 %v224, %v293
  %v487 = vmul.f32 %v225, %v293
  %v488 = vmul.f32 %v226, %v293
  %v489 = vmul.f32 %v227, %v293
  %v490 = vmul.f32 %v228, %v293
  %v491 = vmul.f32 %v229, %v293
  %v492 = vmul.f32 %v230, %v293
  %v493 = vmul.f32 %v231, %v293
  %v494 = vmul.f32 %v232, %v293
  %v495 = vmul.f32 %v233, %v293
  %v496 = vmul.f32 %v234, %v293
  %v497 = vmul.f32 %v235, %v293
  %v498 = vmul.f32 %v236, %v293
  %v499 = vmul.f32 %v237, %v293
  %v500 = vmul.f32 %v238, %v293
  %v501 = vmul.f32 %v239, %v293
  %v502 = vmul.f32 %v240, %v293
  %v503 = vmul.f32 %v241, %v293
  %v504 = vmul.f32 %v242, %v293
  %v505 = vmul.f32 %v243, %v293
  %v506 = vmul.f32 %v244, %v293
  %v507 = vmul.f32 %v245, %v293
  %v508 = vmul.f32 %v246, %v293
  %v509 = vmul.f32 %v247, %v293
  %v510 = vmul.f32 %v248, %v293
  %v511 = vmul.f32 %v249, %v293
  %v512 = vmul.f32 %v250, %v293
  %v513 = vmul.f32 %v251, %v293
  %v514 = vmul.f32 %v252, %v293
  %v515 = vmul.f32 %v253, %v293
  %v516 = vmul.f32 %v254, %v293
  %v517 = vmul.f32 %v255, %v293
  %v518 = vmul.f32 %v256, %v293
  %v519 = vmul.f32 %v257, %v293
  %v520 = vmul.f32 %v258, %v293
  %v521 = vmul.f32 %v259, %v293
  %v522 = vmul.f32 %v260, %v293
  %v523 = vmul.f32 %v261, %v293
  %v524 = vmul.f32 %v262, %v293
  %v525 = vmul.f32 %v263, %v293
  %v526 = vmul.f32 %v264, %v293
  %v527 = vmul.f32 %v265, %v293
  %v528 = vmul.f32 %v266, %v293
  %v529 = vmul.f32 %v267, %v293
  %v530 = vmul.f32 %v268, %v293
  %v531 = vmul.f32 %v269, %v293
  %v532 = vmul.f32 %v270, %v293
  %v533 = vmul.f32 %v271, %v293
  %v534 = vmul.f32 %v272, %v293
  %v535 = vmul.f32 %v273, %v293
  %v536 = vmul.f32 %v274, %v293
  %v537 = vmul.f32 %v275, %v293
  %v538 = vmul.f32 %v276, %v293
  %v539 = vmul.f32 %v277, %v293
  %v540 = vmul.f32 %v278, %v293
  %v541 = vmul.f32 %v279, %v293
  %v542 = vmul.f32 %v280, %v293
  %v543 = vmul.f32 %v281, %v293
  %v544 = vmul.f32 %v282, %v293
  %v545 = vmul.f32 %v283, %v293
  %v546 = vmul.f32 %v284, %v293
  %v547 = vmul.f32 %v285, %v293
  %v548 = vmul.f32 %v286, %v293
  %v549 = vmul.f32 %v287, %v293
  %v550 = vmul.f32 %v288, %v293
  %v552 = vlaneseq
  %v553 = vshrl.u32 %v552, 7
  %v554 = vsub.s32 0, %v553
  %v555 = vrot.slane %v32, %v554
  %v557 = vadd.f32 %v295, %v555
  %v558 = vadd.f32 %v296, %v555
  %v559 = vadd.f32 %v297, %v555
  %v560 = vadd.f32 %v298, %v555
  %v561 = vadd.f32 %v299, %v555
  %v562 = vadd.f32 %v300, %v555
  %v563 = vadd.f32 %v301, %v555
  %v564 = vadd.f32 %v302, %v555
  %v565 = vadd.f32 %v303, %v555
  %v566 = vadd.f32 %v304, %v555
  %v567 = vadd.f32 %v305, %v555
  %v568 = vadd.f32 %v306, %v555
  %v569 = vadd.f32 %v307, %v555
  %v570 = vadd.f32 %v308, %v555
  %v571 = vadd.f32 %v309, %v555
  %v572 = vadd.f32 %v310, %v555
  %v573 = vadd.f32 %v311, %v555
  %v574 = vadd.f32 %v312, %v555
  %v575 = vadd.f32 %v313, %v555
  %v576 = vadd.f32 %v314, %v555
  %v577 = vadd.f32 %v315, %v555
  %v578 = vadd.f32 %v316, %v555
  %v579 = vadd.f32 %v317, %v555
  %v580 = vadd.f32 %v318, %v555
  %v581 = vadd.f32 %v319, %v555
  %v582 = vadd.f32 %v320, %v555
  %v583 = vadd.f32 %v321, %v555
  %v584 = vadd.f32 %v322, %v555
  %v585 = vadd.f32 %v323, %v555
  %v586 = vadd.f32 %v324, %v555
  %v587 = vadd.f32 %v325, %v555
  %v588 = vadd.f32 %v326, %v555
  %v589 = vadd.f32 %v327, %v555
  %v590 = vadd.f32 %v328, %v555
  %v591 = vadd.f32 %v329, %v555
  %v592 = vadd.f32 %v330, %v555
  %v593 = vadd.f32 %v331, %v555
  %v594 = vadd.f32 %v332, %v555
  %v595 = vadd.f32 %v333, %v555
  %v596 = vadd.f32 %v334, %v555
  %v597 = vadd.f32 %v335, %v555
  %v598 = vadd.f32 %v336, %v555
  %v599 = vadd.f32 %v337, %v555
  %v600 = vadd.f32 %v338, %v555
  %v601 = vadd.f32 %v339, %v555
  %v602 = vadd.f32 %v340, %v555
  %v603 = vadd.f32 %v341, %v555
  %v604 = vadd.f32 %v342, %v555
  %v605 = vadd.f32 %v343, %v555
  %v606 = vadd.f32 %v344, %v555
  %v607 = vadd.f32 %v345, %v555
  %v608 = vadd.f32 %v346, %v555
  %v609 = vadd.f32 %v347, %v555
  %v610 = vadd.f32 %v348, %v555
  %v611 = vadd.f32 %v349, %v555
  %v612 = vadd.f32 %v350, %v555
  %v613 = vadd.f32 %v351, %v555
  %v614 = vadd.f32 %v352, %v555
  %v615 = vadd.f32 %v353, %v555
  %v616 = vadd.f32 %v354, %v555
  %v617 = vadd.f32 %v355, %v555
  %v618 = vadd.f32 %v356, %v555
  %v619 = vadd.f32 %v357, %v555
  %v620 = vadd.f32 %v358, %v555
  %v621 = vadd.f32 %v359, %v555
  %v622 = vadd.f32 %v360, %v555
  %v623 = vadd.f32 %v361, %v555
  %v624 = vadd.f32 %v362, %v555
  %v625 = vadd.f32 %v363, %v555
  %v626 = vadd.f32 %v364, %v555
  %v627 = vadd.f32 %v365, %v555
  %v628 = vadd.f32 %v366, %v555
  %v629 = vadd.f32 %v367, %v555
  %v630 = vadd.f32 %v368, %v555
  %v631 = vadd.f32 %v369, %v555
  %v632 = vadd.f32 %v370, %v555
  %v633 = vadd.f32 %v371, %v555
  %v634 = vadd.f32 %v372, %v555
  %v635 = vadd.f32 %v373, %v555
  %v636 = vadd.f32 %v374, %v555
  %v637 = vadd.f32 %v375, %v555
  %v638 = vadd.f32 %v376, %v555
  %v639 = vadd.f32 %v377, %v555
  %v640 = vadd.f32 %v378, %v555
  %v641 = vadd.f32 %v379, %v555
  %v642 = vadd.f32 %v380, %v555
  %v643 = vadd.f32 %v381, %v555
  %v644 = vadd.f32 %v382, %v555
  %v645 = vadd.f32 %v383, %v555
  %v646 = vadd.f32 %v384, %v555
  %v647 = vadd.f32 %v385, %v555
  %v648 = vadd.f32 %v386, %v555
  %v649 = vadd.f32 %v387, %v555
  %v650 = vadd.f32 %v388, %v555
  %v651 = vadd.f32 %v389, %v555
  %v652 = vadd.f32 %v390, %v555
  %v653 = vadd.f32 %v391, %v555
  %v654 = vadd.f32 %v392, %v555
  %v655 = vadd.f32 %v393, %v555
  %v656 = vadd.f32 %v394, %v555
  %v657 = vadd.f32 %v395, %v555
  %v658 = vadd.f32 %v396, %v555
  %v659 = vadd.f32 %v397, %v555
  %v660 = vadd.f32 %v398, %v555
  %v661 = vadd.f32 %v399, %v555
  %v662 = vadd.f32 %v400, %v555
  %v663 = vadd.f32 %v401, %v555
  %v664 = vadd.f32 %v402, %v555
  %v665 = vadd.f32 %v403, %v555
  %v666 = vadd.f32 %v404, %v555
  %v667 = vadd.f32 %v405, %v555
  %v668 = vadd.f32 %v406, %v555
  %v669 = vadd.f32 %v407, %v555
  %v670 = vadd.f32 %v408, %v555
  %v671 = vadd.f32 %v409, %v555
  %v672 = vadd.f32 %v410, %v555
  %v673 = vadd.f32 %v411, %v555
  %v674 = vadd.f32 %v412, %v555
  %v675 = vadd.f32 %v413, %v555
  %v676 = vadd.f32 %v414, %v555
  %v677 = vadd.f32 %v415, %v555
  %v678 = vadd.f32 %v416, %v555
  %v679 = vadd.f32 %v417, %v555
  %v680 = vadd.f32 %v418, %v555
  %v681 = vadd.f32 %v419, %v555
  %v682 = vadd.f32 %v420, %v555
  %v683 = vadd.f32 %v421, %v555
  %v684 = vadd.f32 %v422, %v555
  %v685 = vadd.f32 %v423, %v555
  %v686 = vadd.f32 %v424, %v555
  %v687 = vadd.f32 %v425, %v555
  %v688 = vadd.f32 %v426, %v555
  %v689 = vadd.f32 %v427, %v555
  %v690 = vadd.f32 %v428, %v555
  %v691 = vadd.f32 %v429, %v555
  %v692 = vadd.f32 %v430, %v555
  %v693 = vadd.f32 %v431, %v555
  %v694 = vadd.f32 %v432, %v555
  %v695 = vadd.f32 %v433, %v555
  %v696 = vadd.f32 %v434, %v555
  %v697 = vadd.f32 %v435, %v555
  %v698 = vadd.f32 %v436, %v555
  %v699 = vadd.f32 %v437, %v555
  %v700 = vadd.f32 %v438, %v555
  %v701 = vadd.f32 %v439, %v555
  %v702 = vadd.f32 %v440, %v555
  %v703 = vadd.f32 %v441, %v555
  %v704 = vadd.f32 %v442, %v555
  %v705 = vadd.f32 %v443, %v555
  %v706 = vadd.f32 %v444, %v555
  %v707 = vadd.f32 %v445, %v555
  %v708 = vadd.f32 %v446, %v555
  %v709 = vadd.f32 %v447, %v555
  %v710 = vadd.f32 %v448, %v555
  %v711 = vadd.f32 %v449, %v555
  %v712 = vadd.f32 %v450, %v555
  %v713 = vadd.f32 %v451, %v555
  %v714 = vadd.f32 %v452, %v555
  %v715 = vadd.f32 %v453, %v555
  %v716 = vadd.f32 %v454, %v555
  %v717 = vadd.f32 %v455, %v555
  %v718 = vadd.f32 %v456, %v555
  %v719 = vadd.f32 %v457, %v555
  %v720 = vadd.f32 %v458, %v555
  %v721 = vadd.f32 %v459, %v555
  %v722 = vadd.f32 %v460, %v555
  %v723 = vadd.f32 %v461, %v555
  %v724 = vadd.f32 %v462, %v555
  %v725 = vadd.f32 %v463, %v555
  %v726 = vadd.f32 %v464, %v555
  %v727 = vadd.f32 %v465, %v555
  %v728 = vadd.f32 %v466, %v555
  %v729 = vadd.f32 %v467, %v555
  %v730 = vadd.f32 %v468, %v555
  %v731 = vadd.f32 %v469, %v555
  %v732 = vadd.f32 %v470, %v555
  %v733 = vadd.f32 %v471, %v555
  %v734 = vadd.f32 %v472, %v555
  %v735 = vadd.f32 %v473, %v555
  %v736 = vadd.f32 %v474, %v555
  %v737 = vadd.f32 %v475, %v555
  %v738 = vadd.f32 %v476, %v555
  %v739 = vadd.f32 %v477, %v555
  %v740 = vadd.f32 %v478, %v555
  %v741 = vadd.f32 %v479, %v555
  %v742 = vadd.f32 %v480, %v555
  %v743 = vadd.f32 %v481, %v555
  %v744 = vadd.f32 %v482, %v555
  %v745 = vadd.f32 %v483, %v555
  %v746 = vadd.f32 %v484, %v555
  %v747 = vadd.f32 %v485, %v555
  %v748 = vadd.f32 %v486, %v555
  %v749 = vadd.f32 %v487, %v555
  %v750 = vadd.f32 %v488, %v555
  %v751 = vadd.f32 %v489, %v555
  %v752 = vadd.f32 %v490, %v555
  %v753 = vadd.f32 %v491, %v555
  %v754 = vadd.f32 %v492, %v555
  %v755 = vadd.f32 %v493, %v555
  %v756 = vadd.f32 %v494, %v555
  %v757 = vadd.f32 %v495, %v555
  %v758 = vadd.f32 %v496, %v555
  %v759 = vadd.f32 %v497, %v555
  %v760 = vadd.f32 %v498, %v555
  %v761 = vadd.f32 %v499, %v555
  %v762 = vadd.f32 %v500, %v555
  %v763 = vadd.f32 %v501, %v555
  %v764 = vadd.f32 %v502, %v555
  %v765 = vadd.f32 %v503, %v555
  %v766 = vadd.f32 %v504, %v555
  %v767 = vadd.f32 %v505, %v555
  %v768 = vadd.f32 %v506, %v555
  %v769 = vadd.f32 %v507, %v555
  %v770 = vadd.f32 %v508, %v555
  %v771 = vadd.f32 %v509, %v555
  %v772 = vadd.f32 %v510, %v555
  %v773 = vadd.f32 %v511, %v555
  %v774 = vadd.f32 %v512, %v555
  %v775 = vadd.f32 %v513, %v555
  %v776 = vadd.f32 %v514, %v555
  %v777 = vadd.f32 %v515, %v555
  %v778 = vadd.f32 %v516, %v555
  %v779 = vadd.f32 %v517, %v555
  %v780 = vadd.f32 %v518, %v555
  %v781 = vadd.f32 %v519, %v555
  %v782 = vadd.f32 %v520, %v555
  %v783 = vadd.f32 %v521, %v555
  %v784 = vadd.f32 %v522, %v555
  %v785 = vadd.f32 %v523, %v555
  %v786 = vadd.f32 %v524, %v555
  %v787 = vadd.f32 %v525, %v555
  %v788 = vadd.f32 %v526, %v555
  %v789 = vadd.f32 %v527, %v555
  %v790 = vadd.f32 %v528, %v555
  %v791 = vadd.f32 %v529, %v555
  %v792 = vadd.f32 %v530, %v555
  %v793 = vadd.f32 %v531, %v555
  %v794 = vadd.f32 %v532, %v555
  %v795 = vadd.f32 %v533, %v555
  %v796 = vadd.f32 %v534, %v555
  %v797 = vadd.f32 %v535, %v555
  %v798 = vadd.f32 %v536, %v555
  %v799 = vadd.f32 %v537, %v555
  %v800 = vadd.f32 %v538, %v555
  %v801 = vadd.f32 %v539, %v555
  %v802 = vadd.f32 %v540, %v555
  %v803 = vadd.f32 %v541, %v555
  %v804 = vadd.f32 %v542, %v555
  %v805 = vadd.f32 %v543, %v555
  %v806 = vadd.f32 %v544, %v555
  %v807 = vadd.f32 %v545, %v555
  %v808 = vadd.f32 %v546, %v555
  %v809 = vadd.f32 %v547, %v555
  %v810 = vadd.f32 %v548, %v555
  %v811 = vadd.f32 %v549, %v555
  %v812 = vadd.f32 %v550, %v555
  %v813 = vmax.f32 %v557, 0.0
  %v814 = vmax.f32 %v558, 0.0
  %v815 = vmax.f32 %v559, 0.0
  %v816 = vmax.f32 %v560, 0.0
  %v817 = vmax.f32 %v561, 0.0
  %v818 = vmax.f32 %v562, 0.0
  %v819 = vmax.f32 %v563, 0.0
  %v820 = vmax.f32 %v564, 0.0
  %v821 = vmax.f32 %v565, 0.0
  %v822 = vmax.f32 %v566, 0.0
  %v823 = vmax.f32 %v567, 0.0
  %v824 = vmax.f32 %v568, 0.0
  %v825 = vmax.f32 %v569, 0.0
  %v826 = vmax.f32 %v570, 0.0
  %v827 = vmax.f32 %v571, 0.0
  %v828 = vmax.f32 %v572, 0.0
  %v829 = vmax.f32 %v573, 0.0
  %v830 = vmax.f32 %v574, 0.0
  %v831 = vmax.f32 %v575, 0.0
  %v832 = vmax.f32 %v576, 0.0
  %v833 = vmax.f32 %v577, 0.0
  %v834 = vmax.f32 %v578, 0.0
  %v835 = vmax.f32 %v579, 0.0
  %v836 = vmax.f32 %v580, 0.0
  %v837 = vmax.f32 %v581, 0.0
  %v838 = vmax.f32 %v582, 0.0
  %v839 = vmax.f32 %v583, 0.0
  %v840 = vmax.f32 %v584, 0.0
  %v841 = vmax.f32 %v585, 0.0
  %v842 = vmax.f32 %v586, 0.0
  %v843 = vmax.f32 %v587, 0.0
  %v844 = vmax.f32 %v588, 0.0
  %v845 = vmax.f32 %v589, 0.0
  %v846 = vmax.f32 %v590, 0.0
  %v847 = vmax.f32 %v591, 0.0
  %v848 = vmax.f32 %v592, 0.0
  %v849 = vmax.f32 %v593, 0.0
  %v850 = vmax.f32 %v594, 0.0
  %v851 = vmax.f32 %v595, 0.0
  %v852 = vmax.f32 %v596, 0.0
  %v853 = vmax.f32 %v597, 0.0
  %v854 = vmax.f32 %v598, 0.0
  %v855 = vmax.f32 %v599, 0.0
  %v856 = vmax.f32 %v600, 0.0
  %v857 = vmax.f32 %v601, 0.0
  %v858 = vmax.f32 %v602, 0.0
  %v859 = vmax.f32 %v603, 0.0
  %v860 = vmax.f32 %v604, 0.0
  %v861 = vmax.f32 %v605, 0.0
  %v862 = vmax.f32 %v606, 0.0
  %v863 = vmax.f32 %v607, 0.0
  %v864 = vmax.f32 %v608, 0.0
  %v865 = vmax.f32 %v609, 0.0
  %v866 = vmax.f32 %v610, 0.0
  %v867 = vmax.f32 %v611, 0.0
  %v868 = vmax.f32 %v612, 0.0
  %v869 = vmax.f32 %v613, 0.0
  %v870 = vmax.f32 %v614, 0.0
  %v871 = vmax.f32 %v615, 0.0
  %v872 = vmax.f32 %v616, 0.0
  %v873 = vmax.f32 %v617, 0.0
  %v874 = vmax.f32 %v618, 0.0
  %v875 = vmax.f32 %v619, 0.0
  %v876 = vmax.f32 %v620, 0.0
  %v877 = vmax.f32 %v621, 0.0
  %v878 = vmax.f32 %v622, 0.0
  %v879 = vmax.f32 %v623, 0.0
  %v880 = vmax.f32 %v624, 0.0
  %v881 = vmax.f32 %v625, 0.0
  %v882 = vmax.f32 %v626, 0.0
  %v883 = vmax.f32 %v627, 0.0
  %v884 = vmax.f32 %v628, 0.0
  %v885 = vmax.f32 %v629, 0.0
  %v886 = vmax.f32 %v630, 0.0
  %v887 = vmax.f32 %v631, 0.0
  %v888 = vmax.f32 %v632, 0.0
  %v889 = vmax.f32 %v633, 0.0
  %v890 = vmax.f32 %v634, 0.0
  %v891 = vmax.f32 %v635, 0.0
  %v892 = vmax.f32 %v636, 0.0
  %v893 = vmax.f32 %v637, 0.0
  %v894 = vmax.f32 %v638, 0.0
  %v895 = vmax.f32 %v639, 0.0
  %v896 = vmax.f32 %v640, 0.0
  %v897 = vmax.f32 %v641, 0.0
  %v898 = vmax.f32 %v642, 0.0
  %v899 = vmax.f32 %v643, 0.0
  %v900 = vmax.f32 %v644, 0.0
  %v901 = vmax.f32 %v645, 0.0
  %v902 = vmax.f32 %v646, 0.0
  %v903 = vmax.f32 %v647, 0.0
  %v904 = vmax.f32 %v648, 0.0
  %v905 = vmax.f32 %v649, 0.0
  %v906 = vmax.f32 %v650, 0.0
  %v907 = vmax.f32 %v651, 0.0
  %v908 = vmax.f32 %v652, 0.0
  %v909 = vmax.f32 %v653, 0.0
  %v910 = vmax.f32 %v654, 0.0
  %v911 = vmax.f32 %v655, 0.0
  %v912 = vmax.f32 %v656, 0.0
  %v913 = vmax.f32 %v657, 0.0
  %v914 = vmax.f32 %v658, 0.0
  %v915 = vmax.f32 %v659, 0.0
  %v916 = vmax.f32 %v660, 0.0
  %v917 = vmax.f32 %v661, 0.0
  %v918 = vmax.f32 %v662, 0.0
  %v919 = vmax.f32 %v663, 0.0
  %v920 = vmax.f32 %v664, 0.0
  %v921 = vmax.f32 %v665, 0.0
  %v922 = vmax.f32 %v666, 0.0
  %v923 = vmax.f32 %v667, 0.0
  %v924 = vmax.f32 %v668, 0.0
  %v925 = vmax.f32 %v669, 0.0
  %v926 = vmax.f32 %v670, 0.0
  %v927 = vmax.f32 %v671, 0.0
  %v928 = vmax.f32 %v672, 0.0
  %v929 = vmax.f32 %v673, 0.0
  %v930 = vmax.f32 %v674, 0.0
  %v931 = vmax.f32 %v675, 0.0
  %v932 = vmax.f32 %v676, 0.0
  %v933 = vmax.f32 %v677, 0.0
  %v934 = vmax.f32 %v678, 0.0
  %v935 = vmax.f32 %v679, 0.0
  %v936 = vmax.f32 %v680, 0.0
  %v937 = vmax.f32 %v681, 0.0
  %v938 = vmax.f32 %v682, 0.0
  %v939 = vmax.f32 %v683, 0.0
  %v940 = vmax.f32 %v684, 0.0
  %v941 = vmax.f32 %v685, 0.0
  %v942 = vmax.f32 %v686, 0.0
  %v943 = vmax.f32 %v687, 0.0
  %v944 = vmax.f32 %v688, 0.0
  %v945 = vmax.f32 %v689, 0.0
  %v946 = vmax.f32 %v690, 0.0
  %v947 = vmax.f32 %v691, 0.0
  %v948 = vmax.f32 %v692, 0.0
  %v949 = vmax.f32 %v693, 0.0
  %v950 = vmax.f32 %v694, 0.0
  %v951 = vmax.f32 %v695, 0.0
  %v952 = vmax.f32 %v696, 0.0
  %v953 = vmax.f32 %v697, 0.0
  %v954 = vmax.f32 %v698, 0.0
  %v955 = vmax.f32 %v699, 0.0
  %v956 = vmax.f32 %v700, 0.0
  %v957 = vmax.f32 %v701, 0.0
  %v958 = vmax.f32 %v702, 0.0
  %v959 = vmax.f32 %v703, 0.0
  %v960 = vmax.f32 %v704, 0.0
  %v961 = vmax.f32 %v705, 0.0
  %v962 = vmax.f32 %v706, 0.0
  %v963 = vmax.f32 %v707, 0.0
  %v964 = vmax.f32 %v708, 0.0
  %v965 = vmax.f32 %v709, 0.0
  %v966 = vmax.f32 %v710, 0.0
  %v967 = vmax.f32 %v711, 0.0
  %v968 = vmax.f32 %v712, 0.0
  %v969 = vmax.f32 %v713, 0.0
  %v970 = vmax.f32 %v714, 0.0
  %v971 = vmax.f32 %v715, 0.0
  %v972 = vmax.f32 %v716, 0.0
  %v973 = vmax.f32 %v717, 0.0
  %v974 = vmax.f32 %v718, 0.0
  %v975 = vmax.f32 %v719, 0.0
  %v976 = vmax.f32 %v720, 0.0
  %v977 = vmax.f32 %v721, 0.0
  %v978 = vmax.f32 %v722, 0.0
  %v979 = vmax.f32 %v723, 0.0
  %v980 = vmax.f32 %v724, 0.0
  %v981 = vmax.f32 %v725, 0.0
  %v982 = vmax.f32 %v726, 0.0
  %v983 = vmax.f32 %v727, 0.0
  %v984 = vmax.f32 %v728, 0.0
  %v985 = vmax.f32 %v729, 0.0
  %v986 = vmax.f32 %v730, 0.0
  %v987 = vmax.f32 %v731, 0.0
  %v988 = vmax.f32 %v732, 0.0
  %v989 = vmax.f32 %v733, 0.0
  %v990 = vmax.f32 %v734, 0.0
  %v991 = vmax.f32 %v735, 0.0
  %v992 = vmax.f32 %v736, 0.0
  %v993 = vmax.f32 %v737, 0.0
  %v994 = vmax.f32 %v738, 0.0
  %v995 = vmax.f32 %v739, 0.0
  %v996 = vmax.f32 %v740, 0.0
  %v997 = vmax.f32 %v741, 0.0
  %v998 = vmax.f32 %v742, 0.0
  %v999 = vmax.f32 %v743, 0.0
  %v1000 = vmax.f32 %v744, 0.0
  %v1001 = vmax.f32 %v745, 0.0
  %v1002 = vmax.f32 %v746, 0.0
  %v1003 = vmax.f32 %v747, 0.0
  %v1004 = vmax.f32 %v748, 0.0
  %v1005 = vmax.f32 %v749, 0.0
  %v1006 = vmax.f32 %v750, 0.0
  %v1007 = vmax.f32 %v751, 0.0
  %v1008 = vmax.f32 %v752, 0.0
  %v1009 = vmax.f32 %v753, 0.0
  %v1010 = vmax.f32 %v754, 0.0
  %v1011 = vmax.f32 %v755, 0.0
  %v1012 = vmax.f32 %v756, 0.0
  %v1013 = vmax.f32 %v757, 0.0
  %v1014 = vmax.f32 %v758, 0.0
  %v1015 = vmax.f32 %v759, 0.0
  %v1016 = vmax.f32 %v760, 0.0
  %v1017 = vmax.f32 %v761, 0.0
  %v1018 = vmax.f32 %v762, 0.0
  %v1019 = vmax.f32 %v763, 0.0
  %v1020 = vmax.f32 %v764, 0.0
  %v1021 = vmax.f32 %v765, 0.0
  %v1022 = vmax.f32 %v766, 0.0
  %v1023 = vmax.f32 %v767, 0.0
  %v1024 = vmax.f32 %v768, 0.0
  %v1025 = vmax.f32 %v769, 0.0
  %v1026 = vmax.f32 %v770, 0.0
  %v1027 = vmax.f32 %v771, 0.0
  %v1028 = vmax.f32 %v772, 0.0
  %v1029 = vmax.f32 %v773, 0.0
  %v1030 = vmax.f32 %v774, 0.0
  %v1031 = vmax.f32 %v775, 0.0
  %v1032 = vmax.f32 %v776, 0.0
  %v1033 = vmax.f32 %v777, 0.0
  %v1034 = vmax.f32 %v778, 0.0
  %v1035 = vmax.f32 %v779, 0.0
  %v1036 = vmax.f32 %v780, 0.0
  %v1037 = vmax.f32 %v781, 0.0
  %v1038 = vmax.f32 %v782, 0.0
  %v1039 = vmax.f32 %v783, 0.0
  %v1040 = vmax.f32 %v784, 0.0
  %v1041 = vmax.f32 %v785, 0.0
  %v1042 = vmax.f32 %v786, 0.0
  %v1043 = vmax.f32 %v787, 0.0
  %v1044 = vmax.f32 %v788, 0.0
  %v1045 = vmax.f32 %v789, 0.0
  %v1046 = vmax.f32 %v790, 0.0
  %v1047 = vmax.f32 %v791, 0.0
  %v1048 = vmax.f32 %v792, 0.0
  %v1049 = vmax.f32 %v793, 0.0
  %v1050 = vmax.f32 %v794, 0.0
  %v1051 = vmax.f32 %v795, 0.0
  %v1052 = vmax.f32 %v796, 0.0
  %v1053 = vmax.f32 %v797, 0.0
  %v1054 = vmax.f32 %v798, 0.0
  %v1055 = vmax.f32 %v799, 0.0
  %v1056 = vmax.f32 %v800, 0.0
  %v1057 = vmax.f32 %v801, 0.0
  %v1058 = vmax.f32 %v802, 0.0
  %v1059 = vmax.f32 %v803, 0.0
  %v1060 = vmax.f32 %v804, 0.0
  %v1061 = vmax.f32 %v805, 0.0
  %v1062 = vmax.f32 %v806, 0.0
  %v1063 = vmax.f32 %v807, 0.0
  %v1064 = vmax.f32 %v808, 0.0
  %v1065 = vmax.f32 %v809, 0.0
  %v1066 = vmax.f32 %v810, 0.0
  %v1067 = vmax.f32 %v811, 0.0
  %v1068 = vmax.f32 %v812, 0.0
  %vm1069 = vcmask 64512
  %1070 = vst.msk [vmem:[%s5] sm:$0xff] %vm1069, %v813
  %1071 = vst.msk [vmem:[%s5 + $0x8] sm:$0xff] %vm1069, %v814
  %1072 = vst.msk [vmem:[%s5 + $0x10] sm:$0xff] %vm1069, %v815
  %1073 = vst.msk [vmem:[%s5 + $0x18] sm:$0xff] %vm1069, %v816
  %1074 = vst.msk [vmem:[%s5 + $0x20] sm:$0xff] %vm1069, %v817
  %1075 = vst.msk [vmem:[%s5 + $0x28] sm:$0xff] %vm1069, %v818
  %1076 = vst.msk [vmem:[%s5 + $0x30] sm:$0xff] %vm1069, %v819
  %1077 = vst.msk [vmem:[%s5 + $0x38] sm:$0xff] %vm1069, %v820
  %1078 = vst.msk [vmem:[%s5 + $0x40] sm:$0xff] %vm1069, %v821
  %1079 = vst.msk [vmem:[%s5 + $0x48] sm:$0xff] %vm1069, %v822
  %1080 = vst.msk [vmem:[%s5 + $0x50] sm:$0xff] %vm1069, %v823
  %1081 = vst.msk [vmem:[%s5 + $0x58] sm:$0xff] %vm1069, %v824
  %1082 = vst.msk [vmem:[%s5 + $0x60] sm:$0xff] %vm1069, %v825
  %1083 = vst.msk [vmem:[%s5 + $0x68] sm:$0xff] %vm1069, %v826
  %1084 = vst.msk [vmem:[%s5 + $0x70] sm:$0xff] %vm1069, %v827
  %1085 = vst.msk [vmem:[%s5 + $0x78] sm:$0xff] %vm1069, %v828
  %1086 = vst.msk [vmem:[%s5 + $0x80] sm:$0xff] %vm1069, %v829
  %1087 = vst.msk [vmem:[%s5 + $0x88] sm:$0xff] %vm1069, %v830
  %1088 = vst.msk [vmem:[%s5 + $0x90] sm:$0xff] %vm1069, %v831
  %1089 = vst.msk [vmem:[%s5 + $0x98] sm:$0xff] %vm1069, %v832
  %1090 = vst.msk [vmem:[%s5 + $0xa0] sm:$0xff] %vm1069, %v833
  %1091 = vst.msk [vmem:[%s5 + $0xa8] sm:$0xff] %vm1069, %v834
  %1092 = vst.msk [vmem:[%s5 + $0xb0] sm:$0xff] %vm1069, %v835
  %1093 = vst.msk [vmem:[%s5 + $0xb8] sm:$0xff] %vm1069, %v836
  %1094 = vst.msk [vmem:[%s5 + $0xc0] sm:$0xff] %vm1069, %v837
  %1095 = vst.msk [vmem:[%s5 + $0xc8] sm:$0xff] %vm1069, %v838
  %1096 = vst.msk [vmem:[%s5 + $0xd0] sm:$0xff] %vm1069, %v839
  %1097 = vst.msk [vmem:[%s5 + $0xd8] sm:$0xff] %vm1069, %v840
  %1098 = vst.msk [vmem:[%s5 + $0xe0] sm:$0xff] %vm1069, %v841
  %1099 = vst.msk [vmem:[%s5 + $0xe8] sm:$0xff] %vm1069, %v842
  %1100 = vst.msk [vmem:[%s5 + $0xf0] sm:$0xff] %vm1069, %v843
  %1101 = vst.msk [vmem:[%s5 + $0xf8] sm:$0xff] %vm1069, %v844
  %1102 = vst.msk [vmem:[%s5 + $0x100] sm:$0xff] %vm1069, %v845
  %1103 = vst.msk [vmem:[%s5 + $0x108] sm:$0xff] %vm1069, %v846
  %1104 = vst.msk [vmem:[%s5 + $0x110] sm:$0xff] %vm1069, %v847
  %1105 = vst.msk [vmem:[%s5 + $0x118] sm:$0xff] %vm1069, %v848
  %1106 = vst.msk [vmem:[%s5 + $0x120] sm:$0xff] %vm1069, %v849
  %1107 = vst.msk [vmem:[%s5 + $0x128] sm:$0xff] %vm1069, %v850
  %1108 = vst.msk [vmem:[%s5 + $0x130] sm:$0xff] %vm1069, %v851
  %1109 = vst.msk [vmem:[%s5 + $0x138] sm:$0xff] %vm1069, %v852
  %1110 = vst.msk [vmem:[%s5 + $0x140] sm:$0xff] %vm1069, %v853
  %1111 = vst.msk [vmem:[%s5 + $0x148] sm:$0xff] %vm1069, %v854
  %1112 = vst.msk [vmem:[%s5 + $0x150] sm:$0xff] %vm1069, %v855
  %1113 = vst.msk [vmem:[%s5 + $0x158] sm:$0xff] %vm1069, %v856
  %1114 = vst.msk [vmem:[%s5 + $0x160] sm:$0xff] %vm1069, %v857
  %1115 = vst.msk [vmem:[%s5 + $0x168] sm:$0xff] %vm1069, %v858
  %1116 = vst.msk [vmem:[%s5 + $0x170] sm:$0xff] %vm1069, %v859
  %1117 = vst.msk [vmem:[%s5 + $0x178] sm:$0xff] %vm1069, %v860
  %1118 = vst.msk [vmem:[%s5 + $0x180] sm:$0xff] %vm1069, %v861
  %1119 = vst.msk [vmem:[%s5 + $0x188] sm:$0xff] %vm1069, %v862
  %1120 = vst.msk [vmem:[%s5 + $0x190] sm:$0xff] %vm1069, %v863
  %1121 = vst.msk [vmem:[%s5 + $0x198] sm:$0xff] %vm1069, %v864
  %1122 = vst.msk [vmem:[%s5 + $0x1a0] sm:$0xff] %vm1069, %v865
  %1123 = vst.msk [vmem:[%s5 + $0x1a8] sm:$0xff] %vm1069, %v866
  %1124 = vst.msk [vmem:[%s5 + $0x1b0] sm:$0xff] %vm1069, %v867
  %1125 = vst.msk [vmem:[%s5 + $0x1b8] sm:$0xff] %vm1069, %v868
  %1126 = vst.msk [vmem:[%s5 + $0x1c0] sm:$0xff] %vm1069, %v869
  %1127 = vst.msk [vmem:[%s5 + $0x1c8] sm:$0xff] %vm1069, %v870
  %1128 = vst.msk [vmem:[%s5 + $0x1d0] sm:$0xff] %vm1069, %v871
  %1129 = vst.msk [vmem:[%s5 + $0x1d8] sm:$0xff] %vm1069, %v872
  %1130 = vst.msk [vmem:[%s5 + $0x1e0] sm:$0xff] %vm1069, %v873
  %1131 = vst.msk [vmem:[%s5 + $0x1e8] sm:$0xff] %vm1069, %v874
  %1132 = vst.msk [vmem:[%s5 + $0x1f0] sm:$0xff] %vm1069, %v875
  %1133 = vst.msk [vmem:[%s5 + $0x1f8] sm:$0xff] %vm1069, %v876
  %1134 = vst.msk [vmem:[%s5 + $0x200] sm:$0xff] %vm1069, %v877
  %1135 = vst.msk [vmem:[%s5 + $0x208] sm:$0xff] %vm1069, %v878
  %1136 = vst.msk [vmem:[%s5 + $0x210] sm:$0xff] %vm1069, %v879
  %1137 = vst.msk [vmem:[%s5 + $0x218] sm:$0xff] %vm1069, %v880
  %1138 = vst.msk [vmem:[%s5 + $0x220] sm:$0xff] %vm1069, %v881
  %1139 = vst.msk [vmem:[%s5 + $0x228] sm:$0xff] %vm1069, %v882
  %1140 = vst.msk [vmem:[%s5 + $0x230] sm:$0xff] %vm1069, %v883
  %1141 = vst.msk [vmem:[%s5 + $0x238] sm:$0xff] %vm1069, %v884
  %1142 = vst.msk [vmem:[%s5 + $0x240] sm:$0xff] %vm1069, %v885
  %1143 = vst.msk [vmem:[%s5 + $0x248] sm:$0xff] %vm1069, %v886
  %1144 = vst.msk [vmem:[%s5 + $0x250] sm:$0xff] %vm1069, %v887
  %1145 = vst.msk [vmem:[%s5 + $0x258] sm:$0xff] %vm1069, %v888
  %1146 = vst.msk [vmem:[%s5 + $0x260] sm:$0xff] %vm1069, %v889
  %1147 = vst.msk [vmem:[%s5 + $0x268] sm:$0xff] %vm1069, %v890
  %1148 = vst.msk [vmem:[%s5 + $0x270] sm:$0xff] %vm1069, %v891
  %1149 = vst.msk [vmem:[%s5 + $0x278] sm:$0xff] %vm1069, %v892
  %1150 = vst.msk [vmem:[%s5 + $0x280] sm:$0xff] %vm1069, %v893
  %1151 = vst.msk [vmem:[%s5 + $0x288] sm:$0xff] %vm1069, %v894
  %1152 = vst.msk [vmem:[%s5 + $0x290] sm:$0xff] %vm1069, %v895
  %1153 = vst.msk [vmem:[%s5 + $0x298] sm:$0xff] %vm1069, %v896
  %1154 = vst.msk [vmem:[%s5 + $0x2a0] sm:$0xff] %vm1069, %v897
  %1155 = vst.msk [vmem:[%s5 + $0x2a8] sm:$0xff] %vm1069, %v898
  %1156 = vst.msk [vmem:[%s5 + $0x2b0] sm:$0xff] %vm1069, %v899
  %1157 = vst.msk [vmem:[%s5 + $0x2b8] sm:$0xff] %vm1069, %v900
  %1158 = vst.msk [vmem:[%s5 + $0x2c0] sm:$0xff] %vm1069, %v901
  %1159 = vst.msk [vmem:[%s5 + $0x2c8] sm:$0xff] %vm1069, %v902
  %1160 = vst.msk [vmem:[%s5 + $0x2d0] sm:$0xff] %vm1069, %v903
  %1161 = vst.msk [vmem:[%s5 + $0x2d8] sm:$0xff] %vm1069, %v904
  %1162 = vst.msk [vmem:[%s5 + $0x2e0] sm:$0xff] %vm1069, %v905
  %1163 = vst.msk [vmem:[%s5 + $0x2e8] sm:$0xff] %vm1069, %v906
  %1164 = vst.msk [vmem:[%s5 + $0x2f0] sm:$0xff] %vm1069, %v907
  %1165 = vst.msk [vmem:[%s5 + $0x2f8] sm:$0xff] %vm1069, %v908
  %1166 = vst.msk [vmem:[%s5 + $0x300] sm:$0xff] %vm1069, %v909
  %1167 = vst.msk [vmem:[%s5 + $0x308] sm:$0xff] %vm1069, %v910
  %1168 = vst.msk [vmem:[%s5 + $0x310] sm:$0xff] %vm1069, %v911
  %1169 = vst.msk [vmem:[%s5 + $0x318] sm:$0xff] %vm1069, %v912
  %1170 = vst.msk [vmem:[%s5 + $0x320] sm:$0xff] %vm1069, %v913
  %1171 = vst.msk [vmem:[%s5 + $0x328] sm:$0xff] %vm1069, %v914
  %1172 = vst.msk [vmem:[%s5 + $0x330] sm:$0xff] %vm1069, %v915
  %1173 = vst.msk [vmem:[%s5 + $0x338] sm:$0xff] %vm1069, %v916
  %1174 = vst.msk [vmem:[%s5 + $0x340] sm:$0xff] %vm1069, %v917
  %1175 = vst.msk [vmem:[%s5 + $0x348] sm:$0xff] %vm1069, %v918
  %1176 = vst.msk [vmem:[%s5 + $0x350] sm:$0xff] %vm1069, %v919
  %1177 = vst.msk [vmem:[%s5 + $0x358] sm:$0xff] %vm1069, %v920
  %1178 = vst.msk [vmem:[%s5 + $0x360] sm:$0xff] %vm1069, %v921
  %1179 = vst.msk [vmem:[%s5 + $0x368] sm:$0xff] %vm1069, %v922
  %1180 = vst.msk [vmem:[%s5 + $0x370] sm:$0xff] %vm1069, %v923
  %1181 = vst.msk [vmem:[%s5 + $0x378] sm:$0xff] %vm1069, %v924
  %1182 = vst.msk [vmem:[%s5 + $0x380] sm:$0xff] %vm1069, %v925
  %1183 = vst.msk [vmem:[%s5 + $0x388] sm:$0xff] %vm1069, %v926
  %1184 = vst.msk [vmem:[%s5 + $0x390] sm:$0xff] %vm1069, %v927
  %1185 = vst.msk [vmem:[%s5 + $0x398] sm:$0xff] %vm1069, %v928
  %1186 = vst.msk [vmem:[%s5 + $0x3a0] sm:$0xff] %vm1069, %v929
  %1187 = vst.msk [vmem:[%s5 + $0x3a8] sm:$0xff] %vm1069, %v930
  %1188 = vst.msk [vmem:[%s5 + $0x3b0] sm:$0xff] %vm1069, %v931
  %1189 = vst.msk [vmem:[%s5 + $0x3b8] sm:$0xff] %vm1069, %v932
  %1190 = vst.msk [vmem:[%s5 + $0x3c0] sm:$0xff] %vm1069, %v933
  %1191 = vst.msk [vmem:[%s5 + $0x3c8] sm:$0xff] %vm1069, %v934
  %1192 = vst.msk [vmem:[%s5 + $0x3d0] sm:$0xff] %vm1069, %v935
  %1193 = vst.msk [vmem:[%s5 + $0x3d8] sm:$0xff] %vm1069, %v936
  %1194 = vst.msk [vmem:[%s5 + $0x3e0] sm:$0xff] %vm1069, %v937
  %1195 = vst.msk [vmem:[%s5 + $0x3e8] sm:$0xff] %vm1069, %v938
  %1196 = vst.msk [vmem:[%s5 + $0x3f0] sm:$0xff] %vm1069, %v939
  %1197 = vst.msk [vmem:[%s5 + $0x3f8] sm:$0xff] %vm1069, %v940
  %1198 = vst.msk [vmem:[%s5 + $0x400] sm:$0xff] %vm1069, %v941
  %1199 = vst.msk [vmem:[%s5 + $0x408] sm:$0xff] %vm1069, %v942
  %1200 = vst.msk [vmem:[%s5 + $0x410] sm:$0xff] %vm1069, %v943
  %1201 = vst.msk [vmem:[%s5 + $0x418] sm:$0xff] %vm1069, %v944
  %1202 = vst.msk [vmem:[%s5 + $0x420] sm:$0xff] %vm1069, %v945
  %1203 = vst.msk [vmem:[%s5 + $0x428] sm:$0xff] %vm1069, %v946
  %1204 = vst.msk [vmem:[%s5 + $0x430] sm:$0xff] %vm1069, %v947
  %1205 = vst.msk [vmem:[%s5 + $0x438] sm:$0xff] %vm1069, %v948
  %1206 = vst.msk [vmem:[%s5 + $0x440] sm:$0xff] %vm1069, %v949
  %1207 = vst.msk [vmem:[%s5 + $0x448] sm:$0xff] %vm1069, %v950
  %1208 = vst.msk [vmem:[%s5 + $0x450] sm:$0xff] %vm1069, %v951
  %1209 = vst.msk [vmem:[%s5 + $0x458] sm:$0xff] %vm1069, %v952
  %1210 = vst.msk [vmem:[%s5 + $0x460] sm:$0xff] %vm1069, %v953
  %1211 = vst.msk [vmem:[%s5 + $0x468] sm:$0xff] %vm1069, %v954
  %1212 = vst.msk [vmem:[%s5 + $0x470] sm:$0xff] %vm1069, %v955
  %1213 = vst.msk [vmem:[%s5 + $0x478] sm:$0xff] %vm1069, %v956
  %1214 = vst.msk [vmem:[%s5 + $0x480] sm:$0xff] %vm1069, %v957
  %1215 = vst.msk [vmem:[%s5 + $0x488] sm:$0xff] %vm1069, %v958
  %1216 = vst.msk [vmem:[%s5 + $0x490] sm:$0xff] %vm1069, %v959
  %1217 = vst.msk [vmem:[%s5 + $0x498] sm:$0xff] %vm1069, %v960
  %1218 = vst.msk [vmem:[%s5 + $0x4a0] sm:$0xff] %vm1069, %v961
  %1219 = vst.msk [vmem:[%s5 + $0x4a8] sm:$0xff] %vm1069, %v962
  %1220 = vst.msk [vmem:[%s5 + $0x4b0] sm:$0xff] %vm1069, %v963
  %1221 = vst.msk [vmem:[%s5 + $0x4b8] sm:$0xff] %vm1069, %v964
  %1222 = vst.msk [vmem:[%s5 + $0x4c0] sm:$0xff] %vm1069, %v965
  %1223 = vst.msk [vmem:[%s5 + $0x4c8] sm:$0xff] %vm1069, %v966
  %1224 = vst.msk [vmem:[%s5 + $0x4d0] sm:$0xff] %vm1069, %v967
  %1225 = vst.msk [vmem:[%s5 + $0x4d8] sm:$0xff] %vm1069, %v968
  %1226 = vst.msk [vmem:[%s5 + $0x4e0] sm:$0xff] %vm1069, %v969
  %1227 = vst.msk [vmem:[%s5 + $0x4e8] sm:$0xff] %vm1069, %v970
  %1228 = vst.msk [vmem:[%s5 + $0x4f0] sm:$0xff] %vm1069, %v971
  %1229 = vst.msk [vmem:[%s5 + $0x4f8] sm:$0xff] %vm1069, %v972
  %1230 = vst.msk [vmem:[%s5 + $0x500] sm:$0xff] %vm1069, %v973
  %1231 = vst.msk [vmem:[%s5 + $0x508] sm:$0xff] %vm1069, %v974
  %1232 = vst.msk [vmem:[%s5 + $0x510] sm:$0xff] %vm1069, %v975
  %1233 = vst.msk [vmem:[%s5 + $0x518] sm:$0xff] %vm1069, %v976
  %1234 = vst.msk [vmem:[%s5 + $0x520] sm:$0xff] %vm1069, %v977
  %1235 = vst.msk [vmem:[%s5 + $0x528] sm:$0xff] %vm1069, %v978
  %1236 = vst.msk [vmem:[%s5 + $0x530] sm:$0xff] %vm1069, %v979
  %1237 = vst.msk [vmem:[%s5 + $0x538] sm:$0xff] %vm1069, %v980
  %1238 = vst.msk [vmem:[%s5 + $0x540] sm:$0xff] %vm1069, %v981
  %1239 = vst.msk [vmem:[%s5 + $0x548] sm:$0xff] %vm1069, %v982
  %1240 = vst.msk [vmem:[%s5 + $0x550] sm:$0xff] %vm1069, %v983
  %1241 = vst.msk [vmem:[%s5 + $0x558] sm:$0xff] %vm1069, %v984
  %1242 = vst.msk [vmem:[%s5 + $0x560] sm:$0xff] %vm1069, %v985
  %1243 = vst.msk [vmem:[%s5 + $0x568] sm:$0xff] %vm1069, %v986
  %1244 = vst.msk [vmem:[%s5 + $0x570] sm:$0xff] %vm1069, %v987
  %1245 = vst.msk [vmem:[%s5 + $0x578] sm:$0xff] %vm1069, %v988
  %1246 = vst.msk [vmem:[%s5 + $0x580] sm:$0xff] %vm1069, %v989
  %1247 = vst.msk [vmem:[%s5 + $0x588] sm:$0xff] %vm1069, %v990
  %1248 = vst.msk [vmem:[%s5 + $0x590] sm:$0xff] %vm1069, %v991
  %1249 = vst.msk [vmem:[%s5 + $0x598] sm:$0xff] %vm1069, %v992
  %1250 = vst.msk [vmem:[%s5 + $0x5a0] sm:$0xff] %vm1069, %v993
  %1251 = vst.msk [vmem:[%s5 + $0x5a8] sm:$0xff] %vm1069, %v994
  %1252 = vst.msk [vmem:[%s5 + $0x5b0] sm:$0xff] %vm1069, %v995
  %1253 = vst.msk [vmem:[%s5 + $0x5b8] sm:$0xff] %vm1069, %v996
  %1254 = vst.msk [vmem:[%s5 + $0x5c0] sm:$0xff] %vm1069, %v997
  %1255 = vst.msk [vmem:[%s5 + $0x5c8] sm:$0xff] %vm1069, %v998
  %1256 = vst.msk [vmem:[%s5 + $0x5d0] sm:$0xff] %vm1069, %v999
  %1257 = vst.msk [vmem:[%s5 + $0x5d8] sm:$0xff] %vm1069, %v1000
  %1258 = vst.msk [vmem:[%s5 + $0x5e0] sm:$0xff] %vm1069, %v1001
  %1259 = vst.msk [vmem:[%s5 + $0x5e8] sm:$0xff] %vm1069, %v1002
  %1260 = vst.msk [vmem:[%s5 + $0x5f0] sm:$0xff] %vm1069, %v1003
  %1261 = vst.msk [vmem:[%s5 + $0x5f8] sm:$0xff] %vm1069, %v1004
  %1262 = vst.msk [vmem:[%s5 + $0x600] sm:$0xff] %vm1069, %v1005
  %1263 = vst.msk [vmem:[%s5 + $0x608] sm:$0xff] %vm1069, %v1006
  %1264 = vst.msk [vmem:[%s5 + $0x610] sm:$0xff] %vm1069, %v1007
  %1265 = vst.msk [vmem:[%s5 + $0x618] sm:$0xff] %vm1069, %v1008
  %1266 = vst.msk [vmem:[%s5 + $0x620] sm:$0xff] %vm1069, %v1009
  %1267 = vst.msk [vmem:[%s5 + $0x628] sm:$0xff] %vm1069, %v1010
  %1268 = vst.msk [vmem:[%s5 + $0x630] sm:$0xff] %vm1069, %v1011
  %1269 = vst.msk [vmem:[%s5 + $0x638] sm:$0xff] %vm1069, %v1012
  %1270 = vst.msk [vmem:[%s5 + $0x640] sm:$0xff] %vm1069, %v1013
  %1271 = vst.msk [vmem:[%s5 + $0x648] sm:$0xff] %vm1069, %v1014
  %1272 = vst.msk [vmem:[%s5 + $0x650] sm:$0xff] %vm1069, %v1015
  %1273 = vst.msk [vmem:[%s5 + $0x658] sm:$0xff] %vm1069, %v1016
  %1274 = vst.msk [vmem:[%s5 + $0x660] sm:$0xff] %vm1069, %v1017
  %1275 = vst.msk [vmem:[%s5 + $0x668] sm:$0xff] %vm1069, %v1018
  %1276 = vst.msk [vmem:[%s5 + $0x670] sm:$0xff] %vm1069, %v1019
  %1277 = vst.msk [vmem:[%s5 + $0x678] sm:$0xff] %vm1069, %v1020
  %1278 = vst.msk [vmem:[%s5 + $0x680] sm:$0xff] %vm1069, %v1021
  %1279 = vst.msk [vmem:[%s5 + $0x688] sm:$0xff] %vm1069, %v1022
  %1280 = vst.msk [vmem:[%s5 + $0x690] sm:$0xff] %vm1069, %v1023
  %1281 = vst.msk [vmem:[%s5 + $0x698] sm:$0xff] %vm1069, %v1024
  %1282 = vst.msk [vmem:[%s5 + $0x6a0] sm:$0xff] %vm1069, %v1025
  %1283 = vst.msk [vmem:[%s5 + $0x6a8] sm:$0xff] %vm1069, %v1026
  %1284 = vst.msk [vmem:[%s5 + $0x6b0] sm:$0xff] %vm1069, %v1027
  %1285 = vst.msk [vmem:[%s5 + $0x6b8] sm:$0xff] %vm1069, %v1028
  %1286 = vst.msk [vmem:[%s5 + $0x6c0] sm:$0xff] %vm1069, %v1029
  %1287 = vst.msk [vmem:[%s5 + $0x6c8] sm:$0xff] %vm1069, %v1030
  %1288 = vst.msk [vmem:[%s5 + $0x6d0] sm:$0xff] %vm1069, %v1031
  %1289 = vst.msk [vmem:[%s5 + $0x6d8] sm:$0xff] %vm1069, %v1032
  %1290 = vst.msk [vmem:[%s5 + $0x6e0] sm:$0xff] %vm1069, %v1033
  %1291 = vst.msk [vmem:[%s5 + $0x6e8] sm:$0xff] %vm1069, %v1034
  %1292 = vst.msk [vmem:[%s5 + $0x6f0] sm:$0xff] %vm1069, %v1035
  %1293 = vst.msk [vmem:[%s5 + $0x6f8] sm:$0xff] %vm1069, %v1036
  %1294 = vst.msk [vmem:[%s5 + $0x700] sm:$0xff] %vm1069, %v1037
  %1295 = vst.msk [vmem:[%s5 + $0x708] sm:$0xff] %vm1069, %v1038
  %1296 = vst.msk [vmem:[%s5 + $0x710] sm:$0xff] %vm1069, %v1039
  %1297 = vst.msk [vmem:[%s5 + $0x718] sm:$0xff] %vm1069, %v1040
  %1298 = vst.msk [vmem:[%s5 + $0x720] sm:$0xff] %vm1069, %v1041
  %1299 = vst.msk [vmem:[%s5 + $0x728] sm:$0xff] %vm1069, %v1042
  %1300 = vst.msk [vmem:[%s5 + $0x730] sm:$0xff] %vm1069, %v1043
  %1301 = vst.msk [vmem:[%s5 + $0x738] sm:$0xff] %vm1069, %v1044
  %1302 = vst.msk [vmem:[%s5 + $0x740] sm:$0xff] %vm1069, %v1045
  %1303 = vst.msk [vmem:[%s5 + $0x748] sm:$0xff] %vm1069, %v1046
  %1304 = vst.msk [vmem:[%s5 + $0x750] sm:$0xff] %vm1069, %v1047
  %1305 = vst.msk [vmem:[%s5 + $0x758] sm:$0xff] %vm1069, %v1048
  %1306 = vst.msk [vmem:[%s5 + $0x760] sm:$0xff] %vm1069, %v1049
  %1307 = vst.msk [vmem:[%s5 + $0x768] sm:$0xff] %vm1069, %v1050
  %1308 = vst.msk [vmem:[%s5 + $0x770] sm:$0xff] %vm1069, %v1051
  %1309 = vst.msk [vmem:[%s5 + $0x778] sm:$0xff] %vm1069, %v1052
  %1310 = vst.msk [vmem:[%s5 + $0x780] sm:$0xff] %vm1069, %v1053
  %1311 = vst.msk [vmem:[%s5 + $0x788] sm:$0xff] %vm1069, %v1054
  %1312 = vst.msk [vmem:[%s5 + $0x790] sm:$0xff] %vm1069, %v1055
  %1313 = vst.msk [vmem:[%s5 + $0x798] sm:$0xff] %vm1069, %v1056
  %1314 = vst.msk [vmem:[%s5 + $0x7a0] sm:$0xff] %vm1069, %v1057
  %1315 = vst.msk [vmem:[%s5 + $0x7a8] sm:$0xff] %vm1069, %v1058
  %1316 = vst.msk [vmem:[%s5 + $0x7b0] sm:$0xff] %vm1069, %v1059
  %1317 = vst.msk [vmem:[%s5 + $0x7b8] sm:$0xff] %vm1069, %v1060
  %1318 = vst.msk [vmem:[%s5 + $0x7c0] sm:$0xff] %vm1069, %v1061
  %1319 = vst.msk [vmem:[%s5 + $0x7c8] sm:$0xff] %vm1069, %v1062
  %1320 = vst.msk [vmem:[%s5 + $0x7d0] sm:$0xff] %vm1069, %v1063
  %1321 = vst.msk [vmem:[%s5 + $0x7d8] sm:$0xff] %vm1069, %v1064
  %1322 = vst.msk [vmem:[%s5 + $0x7e0] sm:$0xff] %vm1069, %v1065
  %1323 = vst.msk [vmem:[%s5 + $0x7e8] sm:$0xff] %vm1069, %v1066
  %1324 = vst.msk [vmem:[%s5 + $0x7f0] sm:$0xff] %vm1069, %v1067
  %1325 = vst.msk [vmem:[%s5 + $0x7f8] sm:$0xff] %vm1069, %v1068
  // Predicated region
  $region22: #{_lambda_.25} parent=0 // pred_check
    _
  $region23: #{_lambda_.25} parent=0 // pred_check_branch
    %1327 = sbr.rel (0) target = $region25
  $region24: #{_lambda_.25} parent=0 // pred_region
    _
  $region25: #{_lambda_.25} parent=0 // pred_fallthru
    _
  // Predicated region
  $region26: #{_lambda_.25} parent=0 // pred_check
    _
  $region27: #{_lambda_.25} parent=0 // pred_check_branch
    %1329 = sbr.rel (0) target = $region29
  $region28: #{_lambda_.25} parent=0 // pred_region
    _
  $region29: #{_lambda_.25} parent=0 // pred_fallthru
    _

// kernel: _lambda_.26
$region0: #{_lambda_.26}
  #allocation0 [shape = 'u32[]', space=smem, size = 0x4, offset = 0x4, fixed_abs, tag = 'smem constant byte address 0x4 - core index']
  #allocation1 [shape = 'u32[144,128]{1,0:T(1,128)}', space=vmem, size = 0x12000, scoped, tag = 'internal scratch']
  %s0 = inlined_call_operand.vmem [shape: bf16[2048,8], index: 0, kind: input, shape index: {}]
  %s1 = inlined_call_operand.vmem [shape: bf16[8,128], index: 1, kind: input, shape index: {}]
  %s2 = inlined_call_operand.vmem [shape: f32[2048,128], index: 2, kind: output, shape index: {}]
  %s3 = sld [smem:[#allocation0]]
  $region41: #{_lambda_.26} parent=0
    _
  %s5 = ssub.s32 1, %s3
  %s6 = scalar_select 0, %s5, %s3
  loop: start=0, step=1, limit=6
  $region2: #{_lambda_.26} parent=0 // loop_pre_header
    _
  $region3: #{_lambda_.26} parent=0 // loop_header
    %s8 = sphi 0, %s12
    %p9 = scmp.ge.s32.totalorder %s8, 6
    %s18 = sphi 0, %s20
    %s21 = sphi 0, %s18
    %s22 = sphi 0, %s21
    %s38 = sphi 0, %s22
    %s42 = sphi 0, %s42
    %s44 = sphi 0, %s42
    %s45 = sphi 0, %s44
    %s59 = sphi 0, %s45
    %s65 = sphi 0, %s67
    %s68 = sphi 0, %s65
    %s69 = sphi 0, %s68
    %s85 = sphi 0, %s69
  $region4: #{_lambda_.26} parent=0 // loop_header_branch
    %11 = sbr.rel (%p9) target = $region8
  $region5: #{_lambda_.26} parent=0 // loop_body
    %s13 = ssub.s32 %s8, 1
    %s14 = ssub.s32 %s8, 2
    %s15 = sadd.s32 %s8, 1
    %s16 = ssub.s32 %s8, %s15
    %p17 = scmp.eq.s32.totalorder %s16, 0
    %s19 = sadd.s32 %s18, 1
    %s20 = scalar_select %p17, %s18, %s19
    %p23 = pneg %p17
    %p24 = scmp.eq.s32.totalorder %s8, 3
    %p25 = por %p23, %p24
    %p26 = scmp.ne.s32.totalorder %s18, %s21
    %p27 = scmp.eq.s32.totalorder %s8, 0
    %p28 = por %p26, %p27
    %p29 = scmp.ne.s32.totalorder %s18, %s21
    %p30 = scmp.eq.s32.totalorder %s13, 3
    %p31 = por %p29, %p30
    %p32 = scmp.ne.s32.totalorder %s21, %s22
    %p33 = scmp.eq.s32.totalorder %s13, 0
    %p34 = por %p32, %p33
    %p35 = scmp.ne.s32.totalorder %s21, %s22
    %p36 = scmp.eq.s32.totalorder %s14, 3
    %p37 = por %p35, %p36
    %p39 = scmp.ne.s32.totalorder %s22, %s38
    %p40 = scmp.eq.s32.totalorder %s14, 0
    %p41 = por %p39, %p40
    %s43 = sadd.s32 %s42, 1
    %p46 = scmp.eq.s32.totalorder %s8, 3
    %p47 = scmp.ne.s32.totalorder %s42, %s44
    %p48 = scmp.eq.s32.totalorder %s8, 0
    %p49 = por %p47, %p48
    %p50 = scmp.ne.s32.totalorder %s42, %s44
    %p51 = scmp.eq.s32.totalorder %s13, 3
    %p52 = por %p50, %p51
    %p53 = scmp.ne.s32.totalorder %s44, %s45
    %p54 = scmp.eq.s32.totalorder %s13, 0
    %p55 = por %p53, %p54
    %p56 = scmp.ne.s32.totalorder %s44, %s45
    %p57 = scmp.eq.s32.totalorder %s14, 3
    %p58 = por %p56, %p57
    %p60 = scmp.ne.s32.totalorder %s45, %s59
    %p61 = scmp.eq.s32.totalorder %s14, 0
    %p62 = por %p60, %p61
    %s63 = ssub.s32 %s8, %s15
    %p64 = scmp.eq.s32.totalorder %s63, 0
    %s66 = sadd.s32 %s65, 1
    %s67 = scalar_select %p64, %s65, %s66
    %p70 = pneg %p64
    %p71 = scmp.eq.s32.totalorder %s8, 3
    %p72 = por %p70, %p71
    %p73 = scmp.ne.s32.totalorder %s65, %s68
    %p74 = scmp.eq.s32.totalorder %s8, 0
    %p75 = por %p73, %p74
    %p76 = scmp.ne.s32.totalorder %s65, %s68
    %p77 = scmp.eq.s32.totalorder %s13, 3
    %p78 = por %p76, %p77
    %p79 = scmp.ne.s32.totalorder %s68, %s69
    %p80 = scmp.eq.s32.totalorder %s13, 0
    %p81 = por %p79, %p80
    %p82 = scmp.ne.s32.totalorder %s68, %s69
    %p83 = scmp.eq.s32.totalorder %s14, 3
    %p84 = por %p82, %p83
    %p86 = scmp.ne.s32.totalorder %s69, %s85
    %p87 = scmp.eq.s32.totalorder %s14, 0
    %p88 = por %p86, %p87
    %p89 = scmp.le.s32.totalorder 1, %s8
    %p90 = scmp.lt.s32.totalorder %s8, 5
    %p91 = pnand %p89, %p90
    %p92 = pneg %p91
    // Predicated region
    $region9: #{_lambda_.26} parent=5 // pred_check
      _
    $region10: #{_lambda_.26} parent=5 // pred_check_branch
      %94 = sbr.rel (%p91) target = $region12
    $region11: #{_lambda_.26} parent=5 // pred_region
      %s95 = ssub.s32 %s8, 1
      // Predicated region
      $region13: #{_lambda_.26} parent=11 // pred_check
        %p96 = pneg %p55
      $region14: #{_lambda_.26} parent=11 // pred_check_branch
        %98 = sbr.rel (%p96) target = $region16
      $region15: #{_lambda_.26} parent=11 // pred_region
        _
      $region16: #{_lambda_.26} parent=11 // pred_fallthru
        _
    $region12: #{_lambda_.26} parent=5 // pred_fallthru
      _
    %p99 = scmp.lt.s32.totalorder %s8, 4
    // Predicated region
    $region17: #{_lambda_.26} parent=5 // pred_check
      %p100 = pneg %p99
    $region18: #{_lambda_.26} parent=5 // pred_check_branch
      %102 = sbr.rel (%p100) target = $region20
    $region19: #{_lambda_.26} parent=5 // pred_region
      // Predicated region
      $region21: #{_lambda_.26} parent=19 // pred_check
        %p103 = pneg %p28
      $region22: #{_lambda_.26} parent=19 // pred_check_branch
        %105 = sbr.rel (%p103) target = $region24
      $region23: #{_lambda_.26} parent=19 // pred_region
        %s106 = smul.u32 64, %s8
        %p107 = scmp.lt.s32.totalorder %s106, 255
        %s108 = scalar_select %p107, %s106, 255
        %s109 = smul.addr %s108, 4
        %s110 = scalar_lea.vmem %s0, %s109
        %s111 = smul.u32 64, %s8
      $region24: #{_lambda_.26} parent=19 // pred_fallthru
        _
    $region20: #{_lambda_.26} parent=5 // pred_fallthru
      _
    %p112 = scmp.le.s32.totalorder 1, %s8
    %p113 = scmp.lt.s32.totalorder %s8, 5
    %p114 = pnand %p112, %p113
    %p115 = pneg %p114
    // Predicated region
    $region25: #{_lambda_.26} parent=5 // pred_check
      _
    $region26: #{_lambda_.26} parent=5 // pred_check_branch
      %117 = sbr.rel (%p114) target = $region28
    $region27: #{_lambda_.26} parent=5 // pred_region
      %s118 = ssub.s32 %s8, 1
      %s119 = smul.u32 64, %s13
      %p120 = scmp.lt.s32.totalorder %s119, 255
      %s121 = scalar_select %p120, %s119, 255
      %s122 = smul.addr %s121, 4
      %s123 = scalar_lea.vmem %s0, %s122
      %p124 = pneg %p34
      %p125 = pneg %p31
      %p126 = pneg %p55
      %p127 = pneg %p52
      %p128 = pneg %p81
      %p129 = pneg %p78
      %s130 = smul.u32 64, %s13
      %p131 = scmp.lt.s32.totalorder %s130, 255
      %s132 = scalar_select %p131, %s130, 255
      %s133 = smul.addr %s132, 8
      %s134 = scalar_lea.vmem %s2, %s133
      %s135 = smul.u32 64, %s13
      %p136 = scmp.lt.s32.totalorder %s135, 255
      %s137 = scalar_select %p136, %s135, 255
      %s138 = smul.addr %s137, 4
      %s139 = scalar_lea.vmem %s0, %s138
      %s140 = smul.u32 64, %s13
      %s141 = smul.u32 64, %s13
      %p142 = scmp.lt.s32.totalorder %s141, 255
      %s143 = scalar_select %p142, %s141, 255
      %s144 = smul.addr %s143, 8
      %s145 = scalar_lea.vmem %s2, %s144
      %s146 = smul.u32 64, %s13
      %v148 = vld [vmem:[%s139] sm:$0xf]
      %v149 = vld [vmem:[%s139 + $0x4] sm:$0xf]
      %v150 = vld [vmem:[%s139 + $0x8] sm:$0xf]
      %v151 = vld [vmem:[%s139 + $0xc] sm:$0xf]
      %v152 = vld [vmem:[%s139 + $0x10] sm:$0xf]
      %v153 = vld [vmem:[%s139 + $0x14] sm:$0xf]
      %v154 = vld [vmem:[%s139 + $0x18] sm:$0xf]
      %v155 = vld [vmem:[%s139 + $0x1c] sm:$0xf]
      %v156 = vld [vmem:[%s139 + $0x20] sm:$0xf]
      %v157 = vld [vmem:[%s139 + $0x24] sm:$0xf]
      %v158 = vld [vmem:[%s139 + $0x28] sm:$0xf]
      %v159 = vld [vmem:[%s139 + $0x2c] sm:$0xf]
      %v160 = vld [vmem:[%s139 + $0x30] sm:$0xf]
      %v161 = vld [vmem:[%s139 + $0x34] sm:$0xf]
      %v162 = vld [vmem:[%s139 + $0x38] sm:$0xf]
      %v163 = vld [vmem:[%s139 + $0x3c] sm:$0xf]
      %v164 = vld [vmem:[%s139 + $0x40] sm:$0xf]
      %v165 = vld [vmem:[%s139 + $0x44] sm:$0xf]
      %v166 = vld [vmem:[%s139 + $0x48] sm:$0xf]
      %v167 = vld [vmem:[%s139 + $0x4c] sm:$0xf]
      %v168 = vld [vmem:[%s139 + $0x50] sm:$0xf]
      %v169 = vld [vmem:[%s139 + $0x54] sm:$0xf]
      %v170 = vld [vmem:[%s139 + $0x58] sm:$0xf]
      %v171 = vld [vmem:[%s139 + $0x5c] sm:$0xf]
      %v172 = vld [vmem:[%s139 + $0x60] sm:$0xf]
      %v173 = vld [vmem:[%s139 + $0x64] sm:$0xf]
      %v174 = vld [vmem:[%s139 + $0x68] sm:$0xf]
      %v175 = vld [vmem:[%s139 + $0x6c] sm:$0xf]
      %v176 = vld [vmem:[%s139 + $0x70] sm:$0xf]
      %v177 = vld [vmem:[%s139 + $0x74] sm:$0xf]
      %v178 = vld [vmem:[%s139 + $0x78] sm:$0xf]
      %v179 = vld [vmem:[%s139 + $0x7c] sm:$0xf]
      %v180 = vld [vmem:[%s139 + $0x80] sm:$0xf]
      %v181 = vld [vmem:[%s139 + $0x84] sm:$0xf]
      %v182 = vld [vmem:[%s139 + $0x88] sm:$0xf]
      %v183 = vld [vmem:[%s139 + $0x8c] sm:$0xf]
      %v184 = vld [vmem:[%s139 + $0x90] sm:$0xf]
      %v185 = vld [vmem:[%s139 + $0x94] sm:$0xf]
      %v186 = vld [vmem:[%s139 + $0x98] sm:$0xf]
      %v187 = vld [vmem:[%s139 + $0x9c] sm:$0xf]
      %v188 = vld [vmem:[%s139 + $0xa0] sm:$0xf]
      %v189 = vld [vmem:[%s139 + $0xa4] sm:$0xf]
      %v190 = vld [vmem:[%s139 + $0xa8] sm:$0xf]
      %v191 = vld [vmem:[%s139 + $0xac] sm:$0xf]
      %v192 = vld [vmem:[%s139 + $0xb0] sm:$0xf]
      %v193 = vld [vmem:[%s139 + $0xb4] sm:$0xf]
      %v194 = vld [vmem:[%s139 + $0xb8] sm:$0xf]
      %v195 = vld [vmem:[%s139 + $0xbc] sm:$0xf]
      %v196 = vld [vmem:[%s139 + $0xc0] sm:$0xf]
      %v197 = vld [vmem:[%s139 + $0xc4] sm:$0xf]
      %v198 = vld [vmem:[%s139 + $0xc8] sm:$0xf]
      %v199 = vld [vmem:[%s139 + $0xcc] sm:$0xf]
      %v200 = vld [vmem:[%s139 + $0xd0] sm:$0xf]
      %v201 = vld [vmem:[%s139 + $0xd4] sm:$0xf]
      %v202 = vld [vmem:[%s139 + $0xd8] sm:$0xf]
      %v203 = vld [vmem:[%s139 + $0xdc] sm:$0xf]
      %v204 = vld [vmem:[%s139 + $0xe0] sm:$0xf]
      %v205 = vld [vmem:[%s139 + $0xe4] sm:$0xf]
      %v206 = vld [vmem:[%s139 + $0xe8] sm:$0xf]
      %v207 = vld [vmem:[%s139 + $0xec] sm:$0xf]
      %v208 = vld [vmem:[%s139 + $0xf0] sm:$0xf]
      %v209 = vld [vmem:[%s139 + $0xf4] sm:$0xf]
      %v210 = vld [vmem:[%s139 + $0xf8] sm:$0xf]
      %v211 = vld [vmem:[%s139 + $0xfc] sm:$0xf]
      %v212 = vld [vmem:[%s1] sm:$0xf]
      %v277 = vunpack.c.l.b16 %v148
      %v278 = vunpack.c.l.b16 %v149
      %v279 = vunpack.c.l.b16 %v150
      %v280 = vunpack.c.l.b16 %v151
      %v281 = vunpack.c.l.b16 %v152
      %v282 = vunpack.c.l.b16 %v153
      %v283 = vunpack.c.l.b16 %v154
      %v284 = vunpack.c.l.b16 %v155
      %v285 = vunpack.c.l.b16 %v156
      %v286 = vunpack.c.l.b16 %v157
      %v287 = vunpack.c.l.b16 %v158
      %v288 = vunpack.c.l.b16 %v159
      %v289 = vunpack.c.l.b16 %v160
      %v290 = vunpack.c.l.b16 %v161
      %v291 = vunpack.c.l.b16 %v162
      %v292 = vunpack.c.l.b16 %v163
      %v293 = vunpack.c.l.b16 %v164
      %v294 = vunpack.c.l.b16 %v165
      %v295 = vunpack.c.l.b16 %v166
      %v296 = vunpack.c.l.b16 %v167
      %v297 = vunpack.c.l.b16 %v168
      %v298 = vunpack.c.l.b16 %v169
      %v299 = vunpack.c.l.b16 %v170
      %v300 = vunpack.c.l.b16 %v171
      %v301 = vunpack.c.l.b16 %v172
      %v302 = vunpack.c.l.b16 %v173
      %v303 = vunpack.c.l.b16 %v174
      %v304 = vunpack.c.l.b16 %v175
      %v305 = vunpack.c.l.b16 %v176
      %v306 = vunpack.c.l.b16 %v177
      %v307 = vunpack.c.l.b16 %v178
      %v308 = vunpack.c.l.b16 %v179
      %v309 = vunpack.c.l.b16 %v180
      %v310 = vunpack.c.l.b16 %v181
      %v311 = vunpack.c.l.b16 %v182
      %v312 = vunpack.c.l.b16 %v183
      %v313 = vunpack.c.l.b16 %v184
      %v314 = vunpack.c.l.b16 %v185
      %v315 = vunpack.c.l.b16 %v186
      %v316 = vunpack.c.l.b16 %v187
      %v317 = vunpack.c.l.b16 %v188
      %v318 = vunpack.c.l.b16 %v189
      %v319 = vunpack.c.l.b16 %v190
      %v320 = vunpack.c.l.b16 %v191
      %v321 = vunpack.c.l.b16 %v192
      %v322 = vunpack.c.l.b16 %v193
      %v323 = vunpack.c.l.b16 %v194
      %v324 = vunpack.c.l.b16 %v195
      %v325 = vunpack.c.l.b16 %v196
      %v326 = vunpack.c.l.b16 %v197
      %v327 = vunpack.c.l.b16 %v198
      %v328 = vunpack.c.l.b16 %v199
      %v329 = vunpack.c.l.b16 %v200
      %v330 = vunpack.c.l.b16 %v201
      %v331 = vunpack.c.l.b16 %v202
      %v332 = vunpack.c.l.b16 %v203
      %v333 = vunpack.c.l.b16 %v204
      %v334 = vunpack.c.l.b16 %v205
      %v335 = vunpack.c.l.b16 %v206
      %v336 = vunpack.c.l.b16 %v207
      %v337 = vunpack.c.l.b16 %v208
      %v338 = vunpack.c.l.b16 %v209
      %v339 = vunpack.c.l.b16 %v210
      %v340 = vunpack.c.l.b16 %v211
      %v341 = vpack.c.b16 %v278, %v277
      %v342 = vpack.c.b16 %v280, %v279
      %v343 = vpack.c.b16 %v282, %v281
      %v344 = vpack.c.b16 %v284, %v283
      %v345 = vpack.c.b16 %v286, %v285
      %v346 = vpack.c.b16 %v288, %v287
      %v347 = vpack.c.b16 %v290, %v289
      %v348 = vpack.c.b16 %v292, %v291
      %v349 = vpack.c.b16 %v294, %v293
      %v350 = vpack.c.b16 %v296, %v295
      %v351 = vpack.c.b16 %v298, %v297
      %v352 = vpack.c.b16 %v300, %v299
      %v353 = vpack.c.b16 %v302, %v301
      %v354 = vpack.c.b16 %v304, %v303
      %v355 = vpack.c.b16 %v306, %v305
      %v356 = vpack.c.b16 %v308, %v307
      %v357 = vpack.c.b16 %v310, %v309
      %v358 = vpack.c.b16 %v312, %v311
      %v359 = vpack.c.b16 %v314, %v313
      %v360 = vpack.c.b16 %v316, %v315
      %v361 = vpack.c.b16 %v318, %v317
      %v362 = vpack.c.b16 %v320, %v319
      %v363 = vpack.c.b16 %v322, %v321
      %v364 = vpack.c.b16 %v324, %v323
      %v365 = vpack.c.b16 %v326, %v325
      %v366 = vpack.c.b16 %v328, %v327
      %v367 = vpack.c.b16 %v330, %v329
      %v368 = vpack.c.b16 %v332, %v331
      %v369 = vpack.c.b16 %v334, %v333
      %v370 = vpack.c.b16 %v336, %v335
      %v371 = vpack.c.b16 %v338, %v337
      %v372 = vpack.c.b16 %v340, %v339
      %vm373 = vcmask 64512
      %v375 = vsel %vm373, %v341, 0
      %v378 = vsel %vm373, %v342, 0
      %v381 = vsel %vm373, %v343, 0
      %v384 = vsel %vm373, %v344, 0
      %v387 = vsel %vm373, %v345, 0
      %v390 = vsel %vm373, %v346, 0
      %v393 = vsel %vm373, %v347, 0
      %v396 = vsel %vm373, %v348, 0
      %v399 = vsel %vm373, %v349, 0
      %v402 = vsel %vm373, %v350, 0
      %v405 = vsel %vm373, %v351, 0
      %v408 = vsel %vm373, %v352, 0
      %v411 = vsel %vm373, %v353, 0
      %v414 = vsel %vm373, %v354, 0
      %v417 = vsel %vm373, %v355, 0
      %v420 = vsel %vm373, %v356, 0
      %v423 = vsel %vm373, %v357, 0
      %v426 = vsel %vm373, %v358, 0
      %v429 = vsel %vm373, %v359, 0
      %v432 = vsel %vm373, %v360, 0
      %v435 = vsel %vm373, %v361, 0
      %v438 = vsel %vm373, %v362, 0
      %v441 = vsel %vm373, %v363, 0
      %v444 = vsel %vm373, %v364, 0
      %v447 = vsel %vm373, %v365, 0
      %v450 = vsel %vm373, %v366, 0
      %v453 = vsel %vm373, %v367, 0
      %v456 = vsel %vm373, %v368, 0
      %v459 = vsel %vm373, %v369, 0
      %v462 = vsel %vm373, %v370, 0
      %v465 = vsel %vm373, %v371, 0
      %v468 = vsel %vm373, %v372, 0
      %vm470 = vcmask 1043456
      %v472 = vsel %vm470, %v212, 0
      %474 = vmatprep.subr.bf16.mxu0 0
      %475 = vmatpush1.bf16.msra.mxu0 0
      %476 = vmatprep.subr.bf16.mxu0 0
      %477 = vmatpush1.bf16.msra.mxu0 0
      %478 = vmatprep.subr.bf16.mxu0 0
      %479 = vmatpush1.bf16.msra.mxu0 0
      %480 = vmatprep.subr.bf16.mxu0 0
      %481 = vmatpush1.bf16.msra.mxu0 0
      %482 = vmatprep.subr.bf16.mxu0 0
      %483 = vmatpush1.bf16.msra.mxu0 0
      %484 = vmatprep.subr.bf16.mxu0 0
      %485 = vmatpush1.bf16.msra.mxu0 0
      %486 = vmatprep.subr.bf16.mxu0 0
      %487 = vmatpush1.bf16.msra.mxu0 0
      %488 = vmatprep.subr.bf16.mxu0 0
      %489 = vmatpush1.bf16.msra.mxu0 %v472
      %490 = vmatprep.subr.bf16.mxu0 0
      %491 = vmatpush2.bf16.msra.mxu0 0
      %492 = vmatprep.subr.bf16.mxu0 0
      %493 = vmatpush2.bf16.msra.mxu0 0
      %494 = vmatprep.subr.bf16.mxu0 0
      %495 = vmatpush2.bf16.msra.mxu0 0
      %496 = vmatprep.subr.bf16.mxu0 0
      %497 = vmatpush2.bf16.msra.mxu0 0
      %498 = vmatprep.subr.bf16.mxu0 0
      %499 = vmatpush2.bf16.msra.mxu0 0
      %500 = vmatprep.subr.bf16.mxu0 0
      %501 = vmatpush2.bf16.msra.mxu0 0
      %502 = vmatprep.subr.bf16.mxu0 0
      %503 = vmatpush2.bf16.msra.mxu0 0
      %504 = vmatprep.subr.bf16.mxu0 0
      %505 = vmatpush2.bf16.msra.mxu0 0
      %506 = vmatprep.mubr.bf16.mxu0 0
      %507 = vmatmul.mubr.bf16.gmra.mxu0 %v375
      %v508 = vpop.f32.mrf.mxu0
      %v509 = vadd.f32 0.0, %v508
      %v510 = vpop.f32.mrf.mxu0
      %v511 = vpop.f32.mrf.mxu0
      %v512 = vadd.f32 0.0, %v511
      %v513 = vpop.f32.mrf.mxu0
      %514 = vmatprep.mubr.bf16.mxu0 0
      %515 = vmatmul.mubr.bf16.gmra.mxu0 %v378
      %v516 = vpop.f32.mrf.mxu0
      %v517 = vadd.f32 0.0, %v516
      %v518 = vpop.f32.mrf.mxu0
      %v519 = vpop.f32.mrf.mxu0
      %v520 = vadd.f32 0.0, %v519
      %v521 = vpop.f32.mrf.mxu0
      %522 = vmatprep.mubr.bf16.mxu0 0
      %523 = vmatmul.mubr.bf16.gmra.mxu0 %v381
      %v524 = vpop.f32.mrf.mxu0
      %v525 = vadd.f32 0.0, %v524
      %v526 = vpop.f32.mrf.mxu0
      %v527 = vpop.f32.mrf.mxu0
      %v528 = vadd.f32 0.0, %v527
      %v529 = vpop.f32.mrf.mxu0
      %530 = vmatprep.mubr.bf16.mxu0 0
      %531 = vmatmul.mubr.bf16.gmra.mxu0 %v384
      %v532 = vpop.f32.mrf.mxu0
      %v533 = vadd.f32 0.0, %v532
      %v534 = vpop.f32.mrf.mxu0
      %v535 = vpop.f32.mrf.mxu0
      %v536 = vadd.f32 0.0, %v535
      %v537 = vpop.f32.mrf.mxu0
      %538 = vmatprep.mubr.bf16.mxu0 0
      %539 = vmatmul.mubr.bf16.gmra.mxu0 %v387
      %v540 = vpop.f32.mrf.mxu0
      %v541 = vadd.f32 0.0, %v540
      %v542 = vpop.f32.mrf.mxu0
      %v543 = vpop.f32.mrf.mxu0
      %v544 = vadd.f32 0.0, %v543
      %v545 = vpop.f32.mrf.mxu0
      %546 = vmatprep.mubr.bf16.mxu0 0
      %547 = vmatmul.mubr.bf16.gmra.mxu0 %v390
      %v548 = vpop.f32.mrf.mxu0
      %v549 = vadd.f32 0.0, %v548
      %v550 = vpop.f32.mrf.mxu0
      %v551 = vpop.f32.mrf.mxu0
      %v552 = vadd.f32 0.0, %v551
      %v553 = vpop.f32.mrf.mxu0
      %554 = vmatprep.mubr.bf16.mxu0 0
      %555 = vmatmul.mubr.bf16.gmra.mxu0 %v393
      %v556 = vpop.f32.mrf.mxu0
      %v557 = vadd.f32 0.0, %v556
      %v558 = vpop.f32.mrf.mxu0
      %v559 = vpop.f32.mrf.mxu0
      %v560 = vadd.f32 0.0, %v559
      %v561 = vpop.f32.mrf.mxu0
      %562 = vmatprep.mubr.bf16.mxu0 0
      %563 = vmatmul.mubr.bf16.gmra.mxu0 %v396
      %v564 = vpop.f32.mrf.mxu0
      %v565 = vadd.f32 0.0, %v564
      %v566 = vpop.f32.mrf.mxu0
      %v567 = vpop.f32.mrf.mxu0
      %v568 = vadd.f32 0.0, %v567
      %v569 = vpop.f32.mrf.mxu0
      %570 = vmatprep.mubr.bf16.mxu0 0
      %571 = vmatmul.mubr.bf16.gmra.mxu0 %v399
      %v572 = vpop.f32.mrf.mxu0
      %v573 = vadd.f32 0.0, %v572
      %v574 = vpop.f32.mrf.mxu0
      %v575 = vpop.f32.mrf.mxu0
      %v576 = vadd.f32 0.0, %v575
      %v577 = vpop.f32.mrf.mxu0
      %578 = vmatprep.mubr.bf16.mxu0 0
      %579 = vmatmul.mubr.bf16.gmra.mxu0 %v402
      %v580 = vpop.f32.mrf.mxu0
      %v581 = vadd.f32 0.0, %v580
      %v582 = vpop.f32.mrf.mxu0
      %v583 = vpop.f32.mrf.mxu0
      %v584 = vadd.f32 0.0, %v583
      %v585 = vpop.f32.mrf.mxu0
      %586 = vmatprep.mubr.bf16.mxu0 0
      %587 = vmatmul.mubr.bf16.gmra.mxu0 %v405
      %v588 = vpop.f32.mrf.mxu0
      %v589 = vadd.f32 0.0, %v588
      %v590 = vpop.f32.mrf.mxu0
      %v591 = vpop.f32.mrf.mxu0
      %v592 = vadd.f32 0.0, %v591
      %v593 = vpop.f32.mrf.mxu0
      %594 = vmatprep.mubr.bf16.mxu0 0
      %595 = vmatmul.mubr.bf16.gmra.mxu0 %v408
      %v596 = vpop.f32.mrf.mxu0
      %v597 = vadd.f32 0.0, %v596
      %v598 = vpop.f32.mrf.mxu0
      %v599 = vpop.f32.mrf.mxu0
      %v600 = vadd.f32 0.0, %v599
      %v601 = vpop.f32.mrf.mxu0
      %602 = vmatprep.mubr.bf16.mxu0 0
      %603 = vmatmul.mubr.bf16.gmra.mxu0 %v411
      %v604 = vpop.f32.mrf.mxu0
      %v605 = vadd.f32 0.0, %v604
      %v606 = vpop.f32.mrf.mxu0
      %v607 = vpop.f32.mrf.mxu0
      %v608 = vadd.f32 0.0, %v607
      %v609 = vpop.f32.mrf.mxu0
      %610 = vmatprep.mubr.bf16.mxu0 0
      %611 = vmatmul.mubr.bf16.gmra.mxu0 %v414
      %v612 = vpop.f32.mrf.mxu0
      %v613 = vadd.f32 0.0, %v612
      %v614 = vpop.f32.mrf.mxu0
      %v615 = vpop.f32.mrf.mxu0
      %v616 = vadd.f32 0.0, %v615
      %v617 = vpop.f32.mrf.mxu0
      %618 = vmatprep.mubr.bf16.mxu0 0
      %619 = vmatmul.mubr.bf16.gmra.mxu0 %v417
      %v620 = vpop.f32.mrf.mxu0
      %v621 = vadd.f32 0.0, %v620
      %v622 = vpop.f32.mrf.mxu0
      %v623 = vpop.f32.mrf.mxu0
      %v624 = vadd.f32 0.0, %v623
      %v625 = vpop.f32.mrf.mxu0
      %626 = vmatprep.mubr.bf16.mxu0 0
      %627 = vmatmul.mubr.bf16.gmra.mxu0 %v420
      %v628 = vpop.f32.mrf.mxu0
      %v629 = vadd.f32 0.0, %v628
      %v630 = vpop.f32.mrf.mxu0
      %v631 = vpop.f32.mrf.mxu0
      %v632 = vadd.f32 0.0, %v631
      %v633 = vpop.f32.mrf.mxu0
      %634 = vmatprep.mubr.bf16.mxu0 0
      %635 = vmatmul.mubr.bf16.gmra.mxu0 %v423
      %v636 = vpop.f32.mrf.mxu0
      %v637 = vadd.f32 0.0, %v636
      %v638 = vpop.f32.mrf.mxu0
      %v639 = vpop.f32.mrf.mxu0
      %v640 = vadd.f32 0.0, %v639
      %v641 = vpop.f32.mrf.mxu0
      %642 = vmatprep.mubr.bf16.mxu0 0
      %643 = vmatmul.mubr.bf16.gmra.mxu0 %v426
      %v644 = vpop.f32.mrf.mxu0
      %v645 = vadd.f32 0.0, %v644
      %v646 = vpop.f32.mrf.mxu0
      %v647 = vpop.f32.mrf.mxu0
      %v648 = vadd.f32 0.0, %v647
      %v649 = vpop.f32.mrf.mxu0
      %650 = vmatprep.mubr.bf16.mxu0 0
      %651 = vmatmul.mubr.bf16.gmra.mxu0 %v429
      %v652 = vpop.f32.mrf.mxu0
      %v653 = vadd.f32 0.0, %v652
      %v654 = vpop.f32.mrf.mxu0
      %v655 = vpop.f32.mrf.mxu0
      %v656 = vadd.f32 0.0, %v655
      %v657 = vpop.f32.mrf.mxu0
      %658 = vmatprep.mubr.bf16.mxu0 0
      %659 = vmatmul.mubr.bf16.gmra.mxu0 %v432
      %v660 = vpop.f32.mrf.mxu0
      %v661 = vadd.f32 0.0, %v660
      %v662 = vpop.f32.mrf.mxu0
      %v663 = vpop.f32.mrf.mxu0
      %v664 = vadd.f32 0.0, %v663
      %v665 = vpop.f32.mrf.mxu0
      %666 = vmatprep.mubr.bf16.mxu0 0
      %667 = vmatmul.mubr.bf16.gmra.mxu0 %v435
      %v668 = vpop.f32.mrf.mxu0
      %v669 = vadd.f32 0.0, %v668
      %v670 = vpop.f32.mrf.mxu0
      %v671 = vpop.f32.mrf.mxu0
      %v672 = vadd.f32 0.0, %v671
      %v673 = vpop.f32.mrf.mxu0
      %674 = vmatprep.mubr.bf16.mxu0 0
      %675 = vmatmul.mubr.bf16.gmra.mxu0 %v438
      %v676 = vpop.f32.mrf.mxu0
      %v677 = vadd.f32 0.0, %v676
      %v678 = vpop.f32.mrf.mxu0
      %v679 = vpop.f32.mrf.mxu0
      %v680 = vadd.f32 0.0, %v679
      %v681 = vpop.f32.mrf.mxu0
      %682 = vmatprep.mubr.bf16.mxu0 0
      %683 = vmatmul.mubr.bf16.gmra.mxu0 %v441
      %v684 = vpop.f32.mrf.mxu0
      %v685 = vadd.f32 0.0, %v684
      %v686 = vpop.f32.mrf.mxu0
      %v687 = vpop.f32.mrf.mxu0
      %v688 = vadd.f32 0.0, %v687
      %v689 = vpop.f32.mrf.mxu0
      %690 = vmatprep.mubr.bf16.mxu0 0
      %691 = vmatmul.mubr.bf16.gmra.mxu0 %v444
      %v692 = vpop.f32.mrf.mxu0
      %v693 = vadd.f32 0.0, %v692
      %v694 = vpop.f32.mrf.mxu0
      %v695 = vpop.f32.mrf.mxu0
      %v696 = vadd.f32 0.0, %v695
      %v697 = vpop.f32.mrf.mxu0
      %698 = vmatprep.mubr.bf16.mxu0 0
      %699 = vmatmul.mubr.bf16.gmra.mxu0 %v447
      %v700 = vpop.f32.mrf.mxu0
      %v701 = vadd.f32 0.0, %v700
      %v702 = vpop.f32.mrf.mxu0
      %v703 = vpop.f32.mrf.mxu0
      %v704 = vadd.f32 0.0, %v703
      %v705 = vpop.f32.mrf.mxu0
      %706 = vmatprep.mubr.bf16.mxu0 0
      %707 = vmatmul.mubr.bf16.gmra.mxu0 %v450
      %v708 = vpop.f32.mrf.mxu0
      %v709 = vadd.f32 0.0, %v708
      %v710 = vpop.f32.mrf.mxu0
      %v711 = vpop.f32.mrf.mxu0
      %v712 = vadd.f32 0.0, %v711
      %v713 = vpop.f32.mrf.mxu0
      %714 = vmatprep.mubr.bf16.mxu0 0
      %715 = vmatmul.mubr.bf16.gmra.mxu0 %v453
      %v716 = vpop.f32.mrf.mxu0
      %v717 = vadd.f32 0.0, %v716
      %v718 = vpop.f32.mrf.mxu0
      %v719 = vpop.f32.mrf.mxu0
      %v720 = vadd.f32 0.0, %v719
      %v721 = vpop.f32.mrf.mxu0
      %722 = vmatprep.mubr.bf16.mxu0 0
      %723 = vmatmul.mubr.bf16.gmra.mxu0 %v456
      %v724 = vpop.f32.mrf.mxu0
      %v725 = vadd.f32 0.0, %v724
      %v726 = vpop.f32.mrf.mxu0
      %v727 = vpop.f32.mrf.mxu0
      %v728 = vadd.f32 0.0, %v727
      %v729 = vpop.f32.mrf.mxu0
      %730 = vmatprep.mubr.bf16.mxu0 0
      %731 = vmatmul.mubr.bf16.gmra.mxu0 %v459
      %v732 = vpop.f32.mrf.mxu0
      %v733 = vadd.f32 0.0, %v732
      %v734 = vpop.f32.mrf.mxu0
      %v735 = vpop.f32.mrf.mxu0
      %v736 = vadd.f32 0.0, %v735
      %v737 = vpop.f32.mrf.mxu0
      %738 = vmatprep.mubr.bf16.mxu0 0
      %739 = vmatmul.mubr.bf16.gmra.mxu0 %v462
      %v740 = vpop.f32.mrf.mxu0
      %v741 = vadd.f32 0.0, %v740
      %v742 = vpop.f32.mrf.mxu0
      %v743 = vpop.f32.mrf.mxu0
      %v744 = vadd.f32 0.0, %v743
      %v745 = vpop.f32.mrf.mxu0
      %746 = vmatprep.mubr.bf16.mxu0 0
      %747 = vmatmul.mubr.bf16.gmra.mxu0 %v465
      %v748 = vpop.f32.mrf.mxu0
      %v749 = vadd.f32 0.0, %v748
      %v750 = vpop.f32.mrf.mxu0
      %v751 = vpop.f32.mrf.mxu0
      %v752 = vadd.f32 0.0, %v751
      %v753 = vpop.f32.mrf.mxu0
      %754 = vmatprep.mubr.bf16.mxu0 0
      %755 = vmatmul.mubr.bf16.gmra.mxu0 %v468
      %v756 = vpop.f32.mrf.mxu0
      %v757 = vadd.f32 0.0, %v756
      %v758 = vpop.f32.mrf.mxu0
      %v759 = vpop.f32.mrf.mxu0
      %v760 = vadd.f32 0.0, %v759
      %v761 = vpop.f32.mrf.mxu0
      %762 = vdwg.mxu0
      %763 = vst [vmem:[%s145] sm:$0xff] %v509
      %764 = vst [vmem:[%s145 + $0x8] sm:$0xff] %v512
      %765 = vst [vmem:[%s145 + $0x10] sm:$0xff] %v517
      %766 = vst [vmem:[%s145 + $0x18] sm:$0xff] %v520
      %767 = vst [vmem:[%s145 + $0x20] sm:$0xff] %v525
      %768 = vst [vmem:[%s145 + $0x28] sm:$0xff] %v528
      %769 = vst [vmem:[%s145 + $0x30] sm:$0xff] %v533
      %770 = vst [vmem:[%s145 + $0x38] sm:$0xff] %v536
      %771 = vst [vmem:[%s145 + $0x40] sm:$0xff] %v541
      %772 = vst [vmem:[%s145 + $0x48] sm:$0xff] %v544
      %773 = vst [vmem:[%s145 + $0x50] sm:$0xff] %v549
      %774 = vst [vmem:[%s145 + $0x58] sm:$0xff] %v552
      %775 = vst [vmem:[%s145 + $0x60] sm:$0xff] %v557
      %776 = vst [vmem:[%s145 + $0x68] sm:$0xff] %v560
      %777 = vst [vmem:[%s145 + $0x70] sm:$0xff] %v565
      %778 = vst [vmem:[%s145 + $0x78] sm:$0xff] %v568
      %779 = vst [vmem:[%s145 + $0x80] sm:$0xff] %v573
      %780 = vst [vmem:[%s145 + $0x88] sm:$0xff] %v576
      %781 = vst [vmem:[%s145 + $0x90] sm:$0xff] %v581
      %782 = vst [vmem:[%s145 + $0x98] sm:$0xff] %v584
      %783 = vst [vmem:[%s145 + $0xa0] sm:$0xff] %v589
      %784 = vst [vmem:[%s145 + $0xa8] sm:$0xff] %v592
      %785 = vst [vmem:[%s145 + $0xb0] sm:$0xff] %v597
      %786 = vst [vmem:[%s145 + $0xb8] sm:$0xff] %v600
      %787 = vst [vmem:[%s145 + $0xc0] sm:$0xff] %v605
      %788 = vst [vmem:[%s145 + $0xc8] sm:$0xff] %v608
      %789 = vst [vmem:[%s145 + $0xd0] sm:$0xff] %v613
      %790 = vst [vmem:[%s145 + $0xd8] sm:$0xff] %v616
      %791 = vst [vmem:[%s145 + $0xe0] sm:$0xff] %v621
      %792 = vst [vmem:[%s145 + $0xe8] sm:$0xff] %v624
      %793 = vst [vmem:[%s145 + $0xf0] sm:$0xff] %v629
      %794 = vst [vmem:[%s145 + $0xf8] sm:$0xff] %v632
      %795 = vst [vmem:[%s145 + $0x100] sm:$0xff] %v637
      %796 = vst [vmem:[%s145 + $0x108] sm:$0xff] %v640
      %797 = vst [vmem:[%s145 + $0x110] sm:$0xff] %v645
      %798 = vst [vmem:[%s145 + $0x118] sm:$0xff] %v648
      %799 = vst [vmem:[%s145 + $0x120] sm:$0xff] %v653
      %800 = vst [vmem:[%s145 + $0x128] sm:$0xff] %v656
      %801 = vst [vmem:[%s145 + $0x130] sm:$0xff] %v661
      %802 = vst [vmem:[%s145 + $0x138] sm:$0xff] %v664
      %803 = vst [vmem:[%s145 + $0x140] sm:$0xff] %v669
      %804 = vst [vmem:[%s145 + $0x148] sm:$0xff] %v672
      %805 = vst [vmem:[%s145 + $0x150] sm:$0xff] %v677
      %806 = vst [vmem:[%s145 + $0x158] sm:$0xff] %v680
      %807 = vst [vmem:[%s145 + $0x160] sm:$0xff] %v685
      %808 = vst [vmem:[%s145 + $0x168] sm:$0xff] %v688
      %809 = vst [vmem:[%s145 + $0x170] sm:$0xff] %v693
      %810 = vst [vmem:[%s145 + $0x178] sm:$0xff] %v696
      %811 = vst [vmem:[%s145 + $0x180] sm:$0xff] %v701
      %812 = vst [vmem:[%s145 + $0x188] sm:$0xff] %v704
      %813 = vst [vmem:[%s145 + $0x190] sm:$0xff] %v709
      %814 = vst [vmem:[%s145 + $0x198] sm:$0xff] %v712
      %815 = vst [vmem:[%s145 + $0x1a0] sm:$0xff] %v717
      %816 = vst [vmem:[%s145 + $0x1a8] sm:$0xff] %v720
      %817 = vst [vmem:[%s145 + $0x1b0] sm:$0xff] %v725
      %818 = vst [vmem:[%s145 + $0x1b8] sm:$0xff] %v728
      %819 = vst [vmem:[%s145 + $0x1c0] sm:$0xff] %v733
      %820 = vst [vmem:[%s145 + $0x1c8] sm:$0xff] %v736
      %821 = vst [vmem:[%s145 + $0x1d0] sm:$0xff] %v741
      %822 = vst [vmem:[%s145 + $0x1d8] sm:$0xff] %v744
      %823 = vst [vmem:[%s145 + $0x1e0] sm:$0xff] %v749
      %824 = vst [vmem:[%s145 + $0x1e8] sm:$0xff] %v752
      %825 = vst [vmem:[%s145 + $0x1f0] sm:$0xff] %v757
      %826 = vst [vmem:[%s145 + $0x1f8] sm:$0xff] %v760
      %s827 = smul.u32 64, %s13
      %p828 = scmp.lt.s32.totalorder %s827, 255
      %s829 = scalar_select %p828, %s827, 255
      %s830 = smul.addr %s829, 8
      %s831 = scalar_lea.vmem %s2, %s830
      // Predicated region
      $region29: #{_lambda_.26} parent=27 // pred_check
        %p832 = pneg %p78
      $region30: #{_lambda_.26} parent=27 // pred_check_branch
        %834 = sbr.rel (%p832) target = $region32
      $region31: #{_lambda_.26} parent=27 // pred_region
        %s835 = smul.u32 64, %s13
      $region32: #{_lambda_.26} parent=27 // pred_fallthru
        _
    $region28: #{_lambda_.26} parent=5 // pred_fallthru
      _
    %p836 = scmp.le.s32.totalorder 2, %s8
    // Predicated region
    $region33: #{_lambda_.26} parent=5 // pred_check
      %p837 = pneg %p836
    $region34: #{_lambda_.26} parent=5 // pred_check_branch
      %839 = sbr.rel (%p837) target = $region36
    $region35: #{_lambda_.26} parent=5 // pred_region
      %s840 = ssub.s32 %s8, 2
      // Predicated region
      $region37: #{_lambda_.26} parent=35 // pred_check
        %p841 = pneg %p84
      $region38: #{_lambda_.26} parent=35 // pred_check_branch
        %843 = sbr.rel (%p841) target = $region40
      $region39: #{_lambda_.26} parent=35 // pred_region
        %s844 = smul.u32 64, %s14
        %p845 = scmp.lt.s32.totalorder %s844, 255
        %s846 = scalar_select %p845, %s844, 255
        %s847 = smul.addr %s846, 8
        %s848 = scalar_lea.vmem %s2, %s847
      $region40: #{_lambda_.26} parent=35 // pred_fallthru
        _
    $region36: #{_lambda_.26} parent=5 // pred_fallthru
      _
  $region6: #{_lambda_.26} parent=0 // loop_footer
    %s12 = sadd.s32 1, %s8
  $region7: #{_lambda_.26} parent=0 // loop_footer_branch
    %7 = sbr.rel target = $region3
  $region8: #{_lambda_.26} parent=0 // loop_exit
    _

// kernel: _lambda_.27
$region0: #{_lambda_.27}
  #allocation0 [shape = 'u32[]', space=smem, size = 0x4, offset = 0x4, fixed_abs, tag = 'smem constant byte address 0x4 - core index']
  #allocation1 [shape = 'u32[144,128]{1,0:T(1,128)}', space=vmem, size = 0x12000, scoped, tag = 'internal scratch']
  %s0 = inlined_call_operand.vmem [shape: f32[8192,4], index: 0, kind: input, shape index: {}]
  %s1 = inlined_call_operand.vmem [shape: f32[8192,4], index: 1, kind: output, shape index: {}]
  %s2 = sld [smem:[#allocation0]]
  $region37: #{_lambda_.27} parent=0
    _
  %s4 = ssub.s32 1, %s2
  %s5 = scalar_select 0, %s4, %s2
  loop: start=0, step=1, limit=6
  $region2: #{_lambda_.27} parent=0 // loop_pre_header
    _
  $region3: #{_lambda_.27} parent=0 // loop_header
    %s7 = sphi 0, %s11
    %p8 = scmp.ge.s32.totalorder %s7, 6
    %s17 = sphi 0, %s19
    %s20 = sphi 0, %s17
    %s21 = sphi 0, %s20
    %s37 = sphi 0, %s21
    %s43 = sphi 0, %s45
    %s46 = sphi 0, %s43
    %s47 = sphi 0, %s46
    %s63 = sphi 0, %s47
  $region4: #{_lambda_.27} parent=0 // loop_header_branch
    %10 = sbr.rel (%p8) target = $region8
  $region5: #{_lambda_.27} parent=0 // loop_body
    %s12 = ssub.s32 %s7, 1
    %s13 = ssub.s32 %s7, 2
    %s14 = sadd.s32 %s7, 1
    %s15 = ssub.s32 %s7, %s14
    %p16 = scmp.eq.s32.totalorder %s15, 0
    %s18 = sadd.s32 %s17, 1
    %s19 = scalar_select %p16, %s17, %s18
    %p22 = pneg %p16
    %p23 = scmp.eq.s32.totalorder %s7, 3
    %p24 = por %p22, %p23
    %p25 = scmp.ne.s32.totalorder %s17, %s20
    %p26 = scmp.eq.s32.totalorder %s7, 0
    %p27 = por %p25, %p26
    %p28 = scmp.ne.s32.totalorder %s17, %s20
    %p29 = scmp.eq.s32.totalorder %s12, 3
    %p30 = por %p28, %p29
    %p31 = scmp.ne.s32.totalorder %s20, %s21
    %p32 = scmp.eq.s32.totalorder %s12, 0
    %p33 = por %p31, %p32
    %p34 = scmp.ne.s32.totalorder %s20, %s21
    %p35 = scmp.eq.s32.totalorder %s13, 3
    %p36 = por %p34, %p35
    %p38 = scmp.ne.s32.totalorder %s21, %s37
    %p39 = scmp.eq.s32.totalorder %s13, 0
    %p40 = por %p38, %p39
    %s41 = ssub.s32 %s7, %s14
    %p42 = scmp.eq.s32.totalorder %s41, 0
    %s44 = sadd.s32 %s43, 1
    %s45 = scalar_select %p42, %s43, %s44
    %p48 = pneg %p42
    %p49 = scmp.eq.s32.totalorder %s7, 3
    %p50 = por %p48, %p49
    %p51 = scmp.ne.s32.totalorder %s43, %s46
    %p52 = scmp.eq.s32.totalorder %s7, 0
    %p53 = por %p51, %p52
    %p54 = scmp.ne.s32.totalorder %s43, %s46
    %p55 = scmp.eq.s32.totalorder %s12, 3
    %p56 = por %p54, %p55
    %p57 = scmp.ne.s32.totalorder %s46, %s47
    %p58 = scmp.eq.s32.totalorder %s12, 0
    %p59 = por %p57, %p58
    %p60 = scmp.ne.s32.totalorder %s46, %s47
    %p61 = scmp.eq.s32.totalorder %s13, 3
    %p62 = por %p60, %p61
    %p64 = scmp.ne.s32.totalorder %s47, %s63
    %p65 = scmp.eq.s32.totalorder %s13, 0
    %p66 = por %p64, %p65
    %p67 = scmp.le.s32.totalorder 1, %s7
    %p68 = scmp.lt.s32.totalorder %s7, 5
    %p69 = pnand %p67, %p68
    %p70 = pneg %p69
    // Predicated region
    $region9: #{_lambda_.27} parent=5 // pred_check
      _
    $region10: #{_lambda_.27} parent=5 // pred_check_branch
      %72 = sbr.rel (%p69) target = $region12
    $region11: #{_lambda_.27} parent=5 // pred_region
      %s73 = ssub.s32 %s7, 1
    $region12: #{_lambda_.27} parent=5 // pred_fallthru
      _
    %p74 = scmp.lt.s32.totalorder %s7, 4
    // Predicated region
    $region13: #{_lambda_.27} parent=5 // pred_check
      %p75 = pneg %p74
    $region14: #{_lambda_.27} parent=5 // pred_check_branch
      %77 = sbr.rel (%p75) target = $region16
    $region15: #{_lambda_.27} parent=5 // pred_region
      // Predicated region
      $region17: #{_lambda_.27} parent=15 // pred_check
        %p78 = pneg %p27
      $region18: #{_lambda_.27} parent=15 // pred_check_branch
        %80 = sbr.rel (%p78) target = $region20
      $region19: #{_lambda_.27} parent=15 // pred_region
        %s81 = smul.u32 256, %s7
        %p82 = scmp.lt.s32.totalorder %s81, 1023
        %s83 = scalar_select %p82, %s81, 1023
        %s84 = smul.addr %s83, 8
        %s85 = scalar_lea.vmem %s0, %s84
        %s86 = smul.u32 256, %s7
      $region20: #{_lambda_.27} parent=15 // pred_fallthru
        _
    $region16: #{_lambda_.27} parent=5 // pred_fallthru
      _
    %p87 = scmp.le.s32.totalorder 1, %s7
    %p88 = scmp.lt.s32.totalorder %s7, 5
    %p89 = pnand %p87, %p88
    %p90 = pneg %p89
    // Predicated region
    $region21: #{_lambda_.27} parent=5 // pred_check
      _
    $region22: #{_lambda_.27} parent=5 // pred_check_branch
      %92 = sbr.rel (%p89) target = $region24
    $region23: #{_lambda_.27} parent=5 // pred_region
      %s93 = ssub.s32 %s7, 1
      %s94 = smul.u32 256, %s12
      %p95 = scmp.lt.s32.totalorder %s94, 1023
      %s96 = scalar_select %p95, %s94, 1023
      %s97 = smul.addr %s96, 8
      %s98 = scalar_lea.vmem %s0, %s97
      %p99 = pneg %p33
      %p100 = pneg %p30
      %p101 = pneg %p59
      %p102 = pneg %p56
      %s103 = smul.u32 256, %s12
      %p104 = scmp.lt.s32.totalorder %s103, 1023
      %s105 = scalar_select %p104, %s103, 1023
      %s106 = smul.addr %s105, 8
      %s107 = scalar_lea.vmem %s1, %s106
      %s108 = smul.u32 256, %s12
      %p109 = scmp.lt.s32.totalorder %s108, 1023
      %s110 = scalar_select %p109, %s108, 1023
      %s111 = smul.addr %s110, 8
      %s112 = scalar_lea.vmem %s0, %s111
      %s113 = smul.u32 256, %s12
      %s114 = smul.u32 256, %s12
      %p115 = scmp.lt.s32.totalorder %s114, 1023
      %s116 = scalar_select %p115, %s114, 1023
      %s117 = smul.addr %s116, 8
      %s118 = scalar_lea.vmem %s1, %s117
      %s119 = smul.u32 256, %s12
      %v120 = vld [vmem:[%s112] sm:$0xff]
      %v121 = vld [vmem:[%s112 + $0x8] sm:$0xff]
      %v122 = vld [vmem:[%s112 + $0x10] sm:$0xff]
      %v123 = vld [vmem:[%s112 + $0x18] sm:$0xff]
      %v124 = vld [vmem:[%s112 + $0x20] sm:$0xff]
      %v125 = vld [vmem:[%s112 + $0x28] sm:$0xff]
      %v126 = vld [vmem:[%s112 + $0x30] sm:$0xff]
      %v127 = vld [vmem:[%s112 + $0x38] sm:$0xff]
      %v128 = vld [vmem:[%s112 + $0x40] sm:$0xff]
      %v129 = vld [vmem:[%s112 + $0x48] sm:$0xff]
      %v130 = vld [vmem:[%s112 + $0x50] sm:$0xff]
      %v131 = vld [vmem:[%s112 + $0x58] sm:$0xff]
      %v132 = vld [vmem:[%s112 + $0x60] sm:$0xff]
      %v133 = vld [vmem:[%s112 + $0x68] sm:$0xff]
      %v134 = vld [vmem:[%s112 + $0x70] sm:$0xff]
      %v135 = vld [vmem:[%s112 + $0x78] sm:$0xff]
      %v136 = vld [vmem:[%s112 + $0x80] sm:$0xff]
      %v137 = vld [vmem:[%s112 + $0x88] sm:$0xff]
      %v138 = vld [vmem:[%s112 + $0x90] sm:$0xff]
      %v139 = vld [vmem:[%s112 + $0x98] sm:$0xff]
      %v140 = vld [vmem:[%s112 + $0xa0] sm:$0xff]
      %v141 = vld [vmem:[%s112 + $0xa8] sm:$0xff]
      %v142 = vld [vmem:[%s112 + $0xb0] sm:$0xff]
      %v143 = vld [vmem:[%s112 + $0xb8] sm:$0xff]
      %v144 = vld [vmem:[%s112 + $0xc0] sm:$0xff]
      %v145 = vld [vmem:[%s112 + $0xc8] sm:$0xff]
      %v146 = vld [vmem:[%s112 + $0xd0] sm:$0xff]
      %v147 = vld [vmem:[%s112 + $0xd8] sm:$0xff]
      %v148 = vld [vmem:[%s112 + $0xe0] sm:$0xff]
      %v149 = vld [vmem:[%s112 + $0xe8] sm:$0xff]
      %v150 = vld [vmem:[%s112 + $0xf0] sm:$0xff]
      %v151 = vld [vmem:[%s112 + $0xf8] sm:$0xff]
      %v152 = vld [vmem:[%s112 + $0x100] sm:$0xff]
      %v153 = vld [vmem:[%s112 + $0x108] sm:$0xff]
      %v154 = vld [vmem:[%s112 + $0x110] sm:$0xff]
      %v155 = vld [vmem:[%s112 + $0x118] sm:$0xff]
      %v156 = vld [vmem:[%s112 + $0x120] sm:$0xff]
      %v157 = vld [vmem:[%s112 + $0x128] sm:$0xff]
      %v158 = vld [vmem:[%s112 + $0x130] sm:$0xff]
      %v159 = vld [vmem:[%s112 + $0x138] sm:$0xff]
      %v160 = vld [vmem:[%s112 + $0x140] sm:$0xff]
      %v161 = vld [vmem:[%s112 + $0x148] sm:$0xff]
      %v162 = vld [vmem:[%s112 + $0x150] sm:$0xff]
      %v163 = vld [vmem:[%s112 + $0x158] sm:$0xff]
      %v164 = vld [vmem:[%s112 + $0x160] sm:$0xff]
      %v165 = vld [vmem:[%s112 + $0x168] sm:$0xff]
      %v166 = vld [vmem:[%s112 + $0x170] sm:$0xff]
      %v167 = vld [vmem:[%s112 + $0x178] sm:$0xff]
      %v168 = vld [vmem:[%s112 + $0x180] sm:$0xff]
      %v169 = vld [vmem:[%s112 + $0x188] sm:$0xff]
      %v170 = vld [vmem:[%s112 + $0x190] sm:$0xff]
      %v171 = vld [vmem:[%s112 + $0x198] sm:$0xff]
      %v172 = vld [vmem:[%s112 + $0x1a0] sm:$0xff]
      %v173 = vld [vmem:[%s112 + $0x1a8] sm:$0xff]
      %v174 = vld [vmem:[%s112 + $0x1b0] sm:$0xff]
      %v175 = vld [vmem:[%s112 + $0x1b8] sm:$0xff]
      %v176 = vld [vmem:[%s112 + $0x1c0] sm:$0xff]
      %v177 = vld [vmem:[%s112 + $0x1c8] sm:$0xff]
      %v178 = vld [vmem:[%s112 + $0x1d0] sm:$0xff]
      %v179 = vld [vmem:[%s112 + $0x1d8] sm:$0xff]
      %v180 = vld [vmem:[%s112 + $0x1e0] sm:$0xff]
      %v181 = vld [vmem:[%s112 + $0x1e8] sm:$0xff]
      %v182 = vld [vmem:[%s112 + $0x1f0] sm:$0xff]
      %v183 = vld [vmem:[%s112 + $0x1f8] sm:$0xff]
      %v184 = vld [vmem:[%s112 + $0x200] sm:$0xff]
      %v185 = vld [vmem:[%s112 + $0x208] sm:$0xff]
      %v186 = vld [vmem:[%s112 + $0x210] sm:$0xff]
      %v187 = vld [vmem:[%s112 + $0x218] sm:$0xff]
      %v188 = vld [vmem:[%s112 + $0x220] sm:$0xff]
      %v189 = vld [vmem:[%s112 + $0x228] sm:$0xff]
      %v190 = vld [vmem:[%s112 + $0x230] sm:$0xff]
      %v191 = vld [vmem:[%s112 + $0x238] sm:$0xff]
      %v192 = vld [vmem:[%s112 + $0x240] sm:$0xff]
      %v193 = vld [vmem:[%s112 + $0x248] sm:$0xff]
      %v194 = vld [vmem:[%s112 + $0x250] sm:$0xff]
      %v195 = vld [vmem:[%s112 + $0x258] sm:$0xff]
      %v196 = vld [vmem:[%s112 + $0x260] sm:$0xff]
      %v197 = vld [vmem:[%s112 + $0x268] sm:$0xff]
      %v198 = vld [vmem:[%s112 + $0x270] sm:$0xff]
      %v199 = vld [vmem:[%s112 + $0x278] sm:$0xff]
      %v200 = vld [vmem:[%s112 + $0x280] sm:$0xff]
      %v201 = vld [vmem:[%s112 + $0x288] sm:$0xff]
      %v202 = vld [vmem:[%s112 + $0x290] sm:$0xff]
      %v203 = vld [vmem:[%s112 + $0x298] sm:$0xff]
      %v204 = vld [vmem:[%s112 + $0x2a0] sm:$0xff]
      %v205 = vld [vmem:[%s112 + $0x2a8] sm:$0xff]
      %v206 = vld [vmem:[%s112 + $0x2b0] sm:$0xff]
      %v207 = vld [vmem:[%s112 + $0x2b8] sm:$0xff]
      %v208 = vld [vmem:[%s112 + $0x2c0] sm:$0xff]
      %v209 = vld [vmem:[%s112 + $0x2c8] sm:$0xff]
      %v210 = vld [vmem:[%s112 + $0x2d0] sm:$0xff]
      %v211 = vld [vmem:[%s112 + $0x2d8] sm:$0xff]
      %v212 = vld [vmem:[%s112 + $0x2e0] sm:$0xff]
      %v213 = vld [vmem:[%s112 + $0x2e8] sm:$0xff]
      %v214 = vld [vmem:[%s112 + $0x2f0] sm:$0xff]
      %v215 = vld [vmem:[%s112 + $0x2f8] sm:$0xff]
      %v216 = vld [vmem:[%s112 + $0x300] sm:$0xff]
      %v217 = vld [vmem:[%s112 + $0x308] sm:$0xff]
      %v218 = vld [vmem:[%s112 + $0x310] sm:$0xff]
      %v219 = vld [vmem:[%s112 + $0x318] sm:$0xff]
      %v220 = vld [vmem:[%s112 + $0x320] sm:$0xff]
      %v221 = vld [vmem:[%s112 + $0x328] sm:$0xff]
      %v222 = vld [vmem:[%s112 + $0x330] sm:$0xff]
      %v223 = vld [vmem:[%s112 + $0x338] sm:$0xff]
      %v224 = vld [vmem:[%s112 + $0x340] sm:$0xff]
      %v225 = vld [vmem:[%s112 + $0x348] sm:$0xff]
      %v226 = vld [vmem:[%s112 + $0x350] sm:$0xff]
      %v227 = vld [vmem:[%s112 + $0x358] sm:$0xff]
      %v228 = vld [vmem:[%s112 + $0x360] sm:$0xff]
      %v229 = vld [vmem:[%s112 + $0x368] sm:$0xff]
      %v230 = vld [vmem:[%s112 + $0x370] sm:$0xff]
      %v231 = vld [vmem:[%s112 + $0x378] sm:$0xff]
      %v232 = vld [vmem:[%s112 + $0x380] sm:$0xff]
      %v233 = vld [vmem:[%s112 + $0x388] sm:$0xff]
      %v234 = vld [vmem:[%s112 + $0x390] sm:$0xff]
      %v235 = vld [vmem:[%s112 + $0x398] sm:$0xff]
      %v236 = vld [vmem:[%s112 + $0x3a0] sm:$0xff]
      %v237 = vld [vmem:[%s112 + $0x3a8] sm:$0xff]
      %v238 = vld [vmem:[%s112 + $0x3b0] sm:$0xff]
      %v239 = vld [vmem:[%s112 + $0x3b8] sm:$0xff]
      %v240 = vld [vmem:[%s112 + $0x3c0] sm:$0xff]
      %v241 = vld [vmem:[%s112 + $0x3c8] sm:$0xff]
      %v242 = vld [vmem:[%s112 + $0x3d0] sm:$0xff]
      %v243 = vld [vmem:[%s112 + $0x3d8] sm:$0xff]
      %v244 = vld [vmem:[%s112 + $0x3e0] sm:$0xff]
      %v245 = vld [vmem:[%s112 + $0x3e8] sm:$0xff]
      %v246 = vld [vmem:[%s112 + $0x3f0] sm:$0xff]
      %v247 = vld [vmem:[%s112 + $0x3f8] sm:$0xff]
      %v248 = vld [vmem:[%s112 + $0x400] sm:$0xff]
      %v249 = vld [vmem:[%s112 + $0x408] sm:$0xff]
      %v250 = vld [vmem:[%s112 + $0x410] sm:$0xff]
      %v251 = vld [vmem:[%s112 + $0x418] sm:$0xff]
      %v252 = vld [vmem:[%s112 + $0x420] sm:$0xff]
      %v253 = vld [vmem:[%s112 + $0x428] sm:$0xff]
      %v254 = vld [vmem:[%s112 + $0x430] sm:$0xff]
      %v255 = vld [vmem:[%s112 + $0x438] sm:$0xff]
      %v256 = vld [vmem:[%s112 + $0x440] sm:$0xff]
      %v257 = vld [vmem:[%s112 + $0x448] sm:$0xff]
      %v258 = vld [vmem:[%s112 + $0x450] sm:$0xff]
      %v259 = vld [vmem:[%s112 + $0x458] sm:$0xff]
      %v260 = vld [vmem:[%s112 + $0x460] sm:$0xff]
      %v261 = vld [vmem:[%s112 + $0x468] sm:$0xff]
      %v262 = vld [vmem:[%s112 + $0x470] sm:$0xff]
      %v263 = vld [vmem:[%s112 + $0x478] sm:$0xff]
      %v264 = vld [vmem:[%s112 + $0x480] sm:$0xff]
      %v265 = vld [vmem:[%s112 + $0x488] sm:$0xff]
      %v266 = vld [vmem:[%s112 + $0x490] sm:$0xff]
      %v267 = vld [vmem:[%s112 + $0x498] sm:$0xff]
      %v268 = vld [vmem:[%s112 + $0x4a0] sm:$0xff]
      %v269 = vld [vmem:[%s112 + $0x4a8] sm:$0xff]
      %v270 = vld [vmem:[%s112 + $0x4b0] sm:$0xff]
      %v271 = vld [vmem:[%s112 + $0x4b8] sm:$0xff]
      %v272 = vld [vmem:[%s112 + $0x4c0] sm:$0xff]
      %v273 = vld [vmem:[%s112 + $0x4c8] sm:$0xff]
      %v274 = vld [vmem:[%s112 + $0x4d0] sm:$0xff]
      %v275 = vld [vmem:[%s112 + $0x4d8] sm:$0xff]
      %v276 = vld [vmem:[%s112 + $0x4e0] sm:$0xff]
      %v277 = vld [vmem:[%s112 + $0x4e8] sm:$0xff]
      %v278 = vld [vmem:[%s112 + $0x4f0] sm:$0xff]
      %v279 = vld [vmem:[%s112 + $0x4f8] sm:$0xff]
      %v280 = vld [vmem:[%s112 + $0x500] sm:$0xff]
      %v281 = vld [vmem:[%s112 + $0x508] sm:$0xff]
      %v282 = vld [vmem:[%s112 + $0x510] sm:$0xff]
      %v283 = vld [vmem:[%s112 + $0x518] sm:$0xff]
      %v284 = vld [vmem:[%s112 + $0x520] sm:$0xff]
      %v285 = vld [vmem:[%s112 + $0x528] sm:$0xff]
      %v286 = vld [vmem:[%s112 + $0x530] sm:$0xff]
      %v287 = vld [vmem:[%s112 + $0x538] sm:$0xff]
      %v288 = vld [vmem:[%s112 + $0x540] sm:$0xff]
      %v289 = vld [vmem:[%s112 + $0x548] sm:$0xff]
      %v290 = vld [vmem:[%s112 + $0x550] sm:$0xff]
      %v291 = vld [vmem:[%s112 + $0x558] sm:$0xff]
      %v292 = vld [vmem:[%s112 + $0x560] sm:$0xff]
      %v293 = vld [vmem:[%s112 + $0x568] sm:$0xff]
      %v294 = vld [vmem:[%s112 + $0x570] sm:$0xff]
      %v295 = vld [vmem:[%s112 + $0x578] sm:$0xff]
      %v296 = vld [vmem:[%s112 + $0x580] sm:$0xff]
      %v297 = vld [vmem:[%s112 + $0x588] sm:$0xff]
      %v298 = vld [vmem:[%s112 + $0x590] sm:$0xff]
      %v299 = vld [vmem:[%s112 + $0x598] sm:$0xff]
      %v300 = vld [vmem:[%s112 + $0x5a0] sm:$0xff]
      %v301 = vld [vmem:[%s112 + $0x5a8] sm:$0xff]
      %v302 = vld [vmem:[%s112 + $0x5b0] sm:$0xff]
      %v303 = vld [vmem:[%s112 + $0x5b8] sm:$0xff]
      %v304 = vld [vmem:[%s112 + $0x5c0] sm:$0xff]
      %v305 = vld [vmem:[%s112 + $0x5c8] sm:$0xff]
      %v306 = vld [vmem:[%s112 + $0x5d0] sm:$0xff]
      %v307 = vld [vmem:[%s112 + $0x5d8] sm:$0xff]
      %v308 = vld [vmem:[%s112 + $0x5e0] sm:$0xff]
      %v309 = vld [vmem:[%s112 + $0x5e8] sm:$0xff]
      %v310 = vld [vmem:[%s112 + $0x5f0] sm:$0xff]
      %v311 = vld [vmem:[%s112 + $0x5f8] sm:$0xff]
      %v312 = vld [vmem:[%s112 + $0x600] sm:$0xff]
      %v313 = vld [vmem:[%s112 + $0x608] sm:$0xff]
      %v314 = vld [vmem:[%s112 + $0x610] sm:$0xff]
      %v315 = vld [vmem:[%s112 + $0x618] sm:$0xff]
      %v316 = vld [vmem:[%s112 + $0x620] sm:$0xff]
      %v317 = vld [vmem:[%s112 + $0x628] sm:$0xff]
      %v318 = vld [vmem:[%s112 + $0x630] sm:$0xff]
      %v319 = vld [vmem:[%s112 + $0x638] sm:$0xff]
      %v320 = vld [vmem:[%s112 + $0x640] sm:$0xff]
      %v321 = vld [vmem:[%s112 + $0x648] sm:$0xff]
      %v322 = vld [vmem:[%s112 + $0x650] sm:$0xff]
      %v323 = vld [vmem:[%s112 + $0x658] sm:$0xff]
      %v324 = vld [vmem:[%s112 + $0x660] sm:$0xff]
      %v325 = vld [vmem:[%s112 + $0x668] sm:$0xff]
      %v326 = vld [vmem:[%s112 + $0x670] sm:$0xff]
      %v327 = vld [vmem:[%s112 + $0x678] sm:$0xff]
      %v328 = vld [vmem:[%s112 + $0x680] sm:$0xff]
      %v329 = vld [vmem:[%s112 + $0x688] sm:$0xff]
      %v330 = vld [vmem:[%s112 + $0x690] sm:$0xff]
      %v331 = vld [vmem:[%s112 + $0x698] sm:$0xff]
      %v332 = vld [vmem:[%s112 + $0x6a0] sm:$0xff]
      %v333 = vld [vmem:[%s112 + $0x6a8] sm:$0xff]
      %v334 = vld [vmem:[%s112 + $0x6b0] sm:$0xff]
      %v335 = vld [vmem:[%s112 + $0x6b8] sm:$0xff]
      %v336 = vld [vmem:[%s112 + $0x6c0] sm:$0xff]
      %v337 = vld [vmem:[%s112 + $0x6c8] sm:$0xff]
      %v338 = vld [vmem:[%s112 + $0x6d0] sm:$0xff]
      %v339 = vld [vmem:[%s112 + $0x6d8] sm:$0xff]
      %v340 = vld [vmem:[%s112 + $0x6e0] sm:$0xff]
      %v341 = vld [vmem:[%s112 + $0x6e8] sm:$0xff]
      %v342 = vld [vmem:[%s112 + $0x6f0] sm:$0xff]
      %v343 = vld [vmem:[%s112 + $0x6f8] sm:$0xff]
      %v344 = vld [vmem:[%s112 + $0x700] sm:$0xff]
      %v345 = vld [vmem:[%s112 + $0x708] sm:$0xff]
      %v346 = vld [vmem:[%s112 + $0x710] sm:$0xff]
      %v347 = vld [vmem:[%s112 + $0x718] sm:$0xff]
      %v348 = vld [vmem:[%s112 + $0x720] sm:$0xff]
      %v349 = vld [vmem:[%s112 + $0x728] sm:$0xff]
      %v350 = vld [vmem:[%s112 + $0x730] sm:$0xff]
      %v351 = vld [vmem:[%s112 + $0x738] sm:$0xff]
      %v352 = vld [vmem:[%s112 + $0x740] sm:$0xff]
      %v353 = vld [vmem:[%s112 + $0x748] sm:$0xff]
      %v354 = vld [vmem:[%s112 + $0x750] sm:$0xff]
      %v355 = vld [vmem:[%s112 + $0x758] sm:$0xff]
      %v356 = vld [vmem:[%s112 + $0x760] sm:$0xff]
      %v357 = vld [vmem:[%s112 + $0x768] sm:$0xff]
      %v358 = vld [vmem:[%s112 + $0x770] sm:$0xff]
      %v359 = vld [vmem:[%s112 + $0x778] sm:$0xff]
      %v360 = vld [vmem:[%s112 + $0x780] sm:$0xff]
      %v361 = vld [vmem:[%s112 + $0x788] sm:$0xff]
      %v362 = vld [vmem:[%s112 + $0x790] sm:$0xff]
      %v363 = vld [vmem:[%s112 + $0x798] sm:$0xff]
      %v364 = vld [vmem:[%s112 + $0x7a0] sm:$0xff]
      %v365 = vld [vmem:[%s112 + $0x7a8] sm:$0xff]
      %v366 = vld [vmem:[%s112 + $0x7b0] sm:$0xff]
      %v367 = vld [vmem:[%s112 + $0x7b8] sm:$0xff]
      %v368 = vld [vmem:[%s112 + $0x7c0] sm:$0xff]
      %v369 = vld [vmem:[%s112 + $0x7c8] sm:$0xff]
      %v370 = vld [vmem:[%s112 + $0x7d0] sm:$0xff]
      %v371 = vld [vmem:[%s112 + $0x7d8] sm:$0xff]
      %v372 = vld [vmem:[%s112 + $0x7e0] sm:$0xff]
      %v373 = vld [vmem:[%s112 + $0x7e8] sm:$0xff]
      %v374 = vld [vmem:[%s112 + $0x7f0] sm:$0xff]
      %v375 = vld [vmem:[%s112 + $0x7f8] sm:$0xff]
      %v376 = vtanh.pop %v120
      %v377 = vtanh.pop %v121
      %v378 = vtanh.pop %v122
      %v379 = vtanh.pop %v123
      %v380 = vtanh.pop %v124
      %v381 = vtanh.pop %v125
      %v382 = vtanh.pop %v126
      %v383 = vtanh.pop %v127
      %v384 = vtanh.pop %v128
      %v385 = vtanh.pop %v129
      %v386 = vtanh.pop %v130
      %v387 = vtanh.pop %v131
      %v388 = vtanh.pop %v132
      %v389 = vtanh.pop %v133
      %v390 = vtanh.pop %v134
      %v391 = vtanh.pop %v135
      %v392 = vtanh.pop %v136
      %v393 = vtanh.pop %v137
      %v394 = vtanh.pop %v138
      %v395 = vtanh.pop %v139
      %v396 = vtanh.pop %v140
      %v397 = vtanh.pop %v141
      %v398 = vtanh.pop %v142
      %v399 = vtanh.pop %v143
      %v400 = vtanh.pop %v144
      %v401 = vtanh.pop %v145
      %v402 = vtanh.pop %v146
      %v403 = vtanh.pop %v147
      %v404 = vtanh.pop %v148
      %v405 = vtanh.pop %v149
      %v406 = vtanh.pop %v150
      %v407 = vtanh.pop %v151
      %v408 = vtanh.pop %v152
      %v409 = vtanh.pop %v153
      %v410 = vtanh.pop %v154
      %v411 = vtanh.pop %v155
      %v412 = vtanh.pop %v156
      %v413 = vtanh.pop %v157
      %v414 = vtanh.pop %v158
      %v415 = vtanh.pop %v159
      %v416 = vtanh.pop %v160
      %v417 = vtanh.pop %v161
      %v418 = vtanh.pop %v162
      %v419 = vtanh.pop %v163
      %v420 = vtanh.pop %v164
      %v421 = vtanh.pop %v165
      %v422 = vtanh.pop %v166
      %v423 = vtanh.pop %v167
      %v424 = vtanh.pop %v168
      %v425 = vtanh.pop %v169
      %v426 = vtanh.pop %v170
      %v427 = vtanh.pop %v171
      %v428 = vtanh.pop %v172
      %v429 = vtanh.pop %v173
      %v430 = vtanh.pop %v174
      %v431 = vtanh.pop %v175
      %v432 = vtanh.pop %v176
      %v433 = vtanh.pop %v177
      %v434 = vtanh.pop %v178
      %v435 = vtanh.pop %v179
      %v436 = vtanh.pop %v180
      %v437 = vtanh.pop %v181
      %v438 = vtanh.pop %v182
      %v439 = vtanh.pop %v183
      %v440 = vtanh.pop %v184
      %v441 = vtanh.pop %v185
      %v442 = vtanh.pop %v186
      %v443 = vtanh.pop %v187
      %v444 = vtanh.pop %v188
      %v445 = vtanh.pop %v189
      %v446 = vtanh.pop %v190
      %v447 = vtanh.pop %v191
      %v448 = vtanh.pop %v192
      %v449 = vtanh.pop %v193
      %v450 = vtanh.pop %v194
      %v451 = vtanh.pop %v195
      %v452 = vtanh.pop %v196
      %v453 = vtanh.pop %v197
      %v454 = vtanh.pop %v198
      %v455 = vtanh.pop %v199
      %v456 = vtanh.pop %v200
      %v457 = vtanh.pop %v201
      %v458 = vtanh.pop %v202
      %v459 = vtanh.pop %v203
      %v460 = vtanh.pop %v204
      %v461 = vtanh.pop %v205
      %v462 = vtanh.pop %v206
      %v463 = vtanh.pop %v207
      %v464 = vtanh.pop %v208
      %v465 = vtanh.pop %v209
      %v466 = vtanh.pop %v210
      %v467 = vtanh.pop %v211
      %v468 = vtanh.pop %v212
      %v469 = vtanh.pop %v213
      %v470 = vtanh.pop %v214
      %v471 = vtanh.pop %v215
      %v472 = vtanh.pop %v216
      %v473 = vtanh.pop %v217
      %v474 = vtanh.pop %v218
      %v475 = vtanh.pop %v219
      %v476 = vtanh.pop %v220
      %v477 = vtanh.pop %v221
      %v478 = vtanh.pop %v222
      %v479 = vtanh.pop %v223
      %v480 = vtanh.pop %v224
      %v481 = vtanh.pop %v225
      %v482 = vtanh.pop %v226
      %v483 = vtanh.pop %v227
      %v484 = vtanh.pop %v228
      %v485 = vtanh.pop %v229
      %v486 = vtanh.pop %v230
      %v487 = vtanh.pop %v231
      %v488 = vtanh.pop %v232
      %v489 = vtanh.pop %v233
      %v490 = vtanh.pop %v234
      %v491 = vtanh.pop %v235
      %v492 = vtanh.pop %v236
      %v493 = vtanh.pop %v237
      %v494 = vtanh.pop %v238
      %v495 = vtanh.pop %v239
      %v496 = vtanh.pop %v240
      %v497 = vtanh.pop %v241
      %v498 = vtanh.pop %v242
      %v499 = vtanh.pop %v243
      %v500 = vtanh.pop %v244
      %v501 = vtanh.pop %v245
      %v502 = vtanh.pop %v246
      %v503 = vtanh.pop %v247
      %v504 = vtanh.pop %v248
      %v505 = vtanh.pop %v249
      %v506 = vtanh.pop %v250
      %v507 = vtanh.pop %v251
      %v508 = vtanh.pop %v252
      %v509 = vtanh.pop %v253
      %v510 = vtanh.pop %v254
      %v511 = vtanh.pop %v255
      %v512 = vtanh.pop %v256
      %v513 = vtanh.pop %v257
      %v514 = vtanh.pop %v258
      %v515 = vtanh.pop %v259
      %v516 = vtanh.pop %v260
      %v517 = vtanh.pop %v261
      %v518 = vtanh.pop %v262
      %v519 = vtanh.pop %v263
      %v520 = vtanh.pop %v264
      %v521 = vtanh.pop %v265
      %v522 = vtanh.pop %v266
      %v523 = vtanh.pop %v267
      %v524 = vtanh.pop %v268
      %v525 = vtanh.pop %v269
      %v526 = vtanh.pop %v270
      %v527 = vtanh.pop %v271
      %v528 = vtanh.pop %v272
      %v529 = vtanh.pop %v273
      %v530 = vtanh.pop %v274
      %v531 = vtanh.pop %v275
      %v532 = vtanh.pop %v276
      %v533 = vtanh.pop %v277
      %v534 = vtanh.pop %v278
      %v535 = vtanh.pop %v279
      %v536 = vtanh.pop %v280
      %v537 = vtanh.pop %v281
      %v538 = vtanh.pop %v282
      %v539 = vtanh.pop %v283
      %v540 = vtanh.pop %v284
      %v541 = vtanh.pop %v285
      %v542 = vtanh.pop %v286
      %v543 = vtanh.pop %v287
      %v544 = vtanh.pop %v288
      %v545 = vtanh.pop %v289
      %v546 = vtanh.pop %v290
      %v547 = vtanh.pop %v291
      %v548 = vtanh.pop %v292
      %v549 = vtanh.pop %v293
      %v550 = vtanh.pop %v294
      %v551 = vtanh.pop %v295
      %v552 = vtanh.pop %v296
      %v553 = vtanh.pop %v297
      %v554 = vtanh.pop %v298
      %v555 = vtanh.pop %v299
      %v556 = vtanh.pop %v300
      %v557 = vtanh.pop %v301
      %v558 = vtanh.pop %v302
      %v559 = vtanh.pop %v303
      %v560 = vtanh.pop %v304
      %v561 = vtanh.pop %v305
      %v562 = vtanh.pop %v306
      %v563 = vtanh.pop %v307
      %v564 = vtanh.pop %v308
      %v565 = vtanh.pop %v309
      %v566 = vtanh.pop %v310
      %v567 = vtanh.pop %v311
      %v568 = vtanh.pop %v312
      %v569 = vtanh.pop %v313
      %v570 = vtanh.pop %v314
      %v571 = vtanh.pop %v315
      %v572 = vtanh.pop %v316
      %v573 = vtanh.pop %v317
      %v574 = vtanh.pop %v318
      %v575 = vtanh.pop %v319
      %v576 = vtanh.pop %v320
      %v577 = vtanh.pop %v321
      %v578 = vtanh.pop %v322
      %v579 = vtanh.pop %v323
      %v580 = vtanh.pop %v324
      %v581 = vtanh.pop %v325
      %v582 = vtanh.pop %v326
      %v583 = vtanh.pop %v327
      %v584 = vtanh.pop %v328
      %v585 = vtanh.pop %v329
      %v586 = vtanh.pop %v330
      %v587 = vtanh.pop %v331
      %v588 = vtanh.pop %v332
      %v589 = vtanh.pop %v333
      %v590 = vtanh.pop %v334
      %v591 = vtanh.pop %v335
      %v592 = vtanh.pop %v336
      %v593 = vtanh.pop %v337
      %v594 = vtanh.pop %v338
      %v595 = vtanh.pop %v339
      %v596 = vtanh.pop %v340
      %v597 = vtanh.pop %v341
      %v598 = vtanh.pop %v342
      %v599 = vtanh.pop %v343
      %v600 = vtanh.pop %v344
      %v601 = vtanh.pop %v345
      %v602 = vtanh.pop %v346
      %v603 = vtanh.pop %v347
      %v604 = vtanh.pop %v348
      %v605 = vtanh.pop %v349
      %v606 = vtanh.pop %v350
      %v607 = vtanh.pop %v351
      %v608 = vtanh.pop %v352
      %v609 = vtanh.pop %v353
      %v610 = vtanh.pop %v354
      %v611 = vtanh.pop %v355
      %v612 = vtanh.pop %v356
      %v613 = vtanh.pop %v357
      %v614 = vtanh.pop %v358
      %v615 = vtanh.pop %v359
      %v616 = vtanh.pop %v360
      %v617 = vtanh.pop %v361
      %v618 = vtanh.pop %v362
      %v619 = vtanh.pop %v363
      %v620 = vtanh.pop %v364
      %v621 = vtanh.pop %v365
      %v622 = vtanh.pop %v366
      %v623 = vtanh.pop %v367
      %v624 = vtanh.pop %v368
      %v625 = vtanh.pop %v369
      %v626 = vtanh.pop %v370
      %v627 = vtanh.pop %v371
      %v628 = vtanh.pop %v372
      %v629 = vtanh.pop %v373
      %v630 = vtanh.pop %v374
      %v631 = vtanh.pop %v375
      %vm632 = vcmask 31744
      %633 = vst.msk [vmem:[%s118] sm:$0xff] %vm632, %v376
      %634 = vst.msk [vmem:[%s118 + $0x8] sm:$0xff] %vm632, %v377
      %635 = vst.msk [vmem:[%s118 + $0x10] sm:$0xff] %vm632, %v378
      %636 = vst.msk [vmem:[%s118 + $0x18] sm:$0xff] %vm632, %v379
      %637 = vst.msk [vmem:[%s118 + $0x20] sm:$0xff] %vm632, %v380
      %638 = vst.msk [vmem:[%s118 + $0x28] sm:$0xff] %vm632, %v381
      %639 = vst.msk [vmem:[%s118 + $0x30] sm:$0xff] %vm632, %v382
      %640 = vst.msk [vmem:[%s118 + $0x38] sm:$0xff] %vm632, %v383
      %641 = vst.msk [vmem:[%s118 + $0x40] sm:$0xff] %vm632, %v384
      %642 = vst.msk [vmem:[%s118 + $0x48] sm:$0xff] %vm632, %v385
      %643 = vst.msk [vmem:[%s118 + $0x50] sm:$0xff] %vm632, %v386
      %644 = vst.msk [vmem:[%s118 + $0x58] sm:$0xff] %vm632, %v387
      %645 = vst.msk [vmem:[%s118 + $0x60] sm:$0xff] %vm632, %v388
      %646 = vst.msk [vmem:[%s118 + $0x68] sm:$0xff] %vm632, %v389
      %647 = vst.msk [vmem:[%s118 + $0x70] sm:$0xff] %vm632, %v390
      %648 = vst.msk [vmem:[%s118 + $0x78] sm:$0xff] %vm632, %v391
      %649 = vst.msk [vmem:[%s118 + $0x80] sm:$0xff] %vm632, %v392
      %650 = vst.msk [vmem:[%s118 + $0x88] sm:$0xff] %vm632, %v393
      %651 = vst.msk [vmem:[%s118 + $0x90] sm:$0xff] %vm632, %v394
      %652 = vst.msk [vmem:[%s118 + $0x98] sm:$0xff] %vm632, %v395
      %653 = vst.msk [vmem:[%s118 + $0xa0] sm:$0xff] %vm632, %v396
      %654 = vst.msk [vmem:[%s118 + $0xa8] sm:$0xff] %vm632, %v397
      %655 = vst.msk [vmem:[%s118 + $0xb0] sm:$0xff] %vm632, %v398
      %656 = vst.msk [vmem:[%s118 + $0xb8] sm:$0xff] %vm632, %v399
      %657 = vst.msk [vmem:[%s118 + $0xc0] sm:$0xff] %vm632, %v400
      %658 = vst.msk [vmem:[%s118 + $0xc8] sm:$0xff] %vm632, %v401
      %659 = vst.msk [vmem:[%s118 + $0xd0] sm:$0xff] %vm632, %v402
      %660 = vst.msk [vmem:[%s118 + $0xd8] sm:$0xff] %vm632, %v403
      %661 = vst.msk [vmem:[%s118 + $0xe0] sm:$0xff] %vm632, %v404
      %662 = vst.msk [vmem:[%s118 + $0xe8] sm:$0xff] %vm632, %v405
      %663 = vst.msk [vmem:[%s118 + $0xf0] sm:$0xff] %vm632, %v406
      %664 = vst.msk [vmem:[%s118 + $0xf8] sm:$0xff] %vm632, %v407
      %665 = vst.msk [vmem:[%s118 + $0x100] sm:$0xff] %vm632, %v408
      %666 = vst.msk [vmem:[%s118 + $0x108] sm:$0xff] %vm632, %v409
      %667 = vst.msk [vmem:[%s118 + $0x110] sm:$0xff] %vm632, %v410
      %668 = vst.msk [vmem:[%s118 + $0x118] sm:$0xff] %vm632, %v411
      %669 = vst.msk [vmem:[%s118 + $0x120] sm:$0xff] %vm632, %v412
      %670 = vst.msk [vmem:[%s118 + $0x128] sm:$0xff] %vm632, %v413
      %671 = vst.msk [vmem:[%s118 + $0x130] sm:$0xff] %vm632, %v414
      %672 = vst.msk [vmem:[%s118 + $0x138] sm:$0xff] %vm632, %v415
      %673 = vst.msk [vmem:[%s118 + $0x140] sm:$0xff] %vm632, %v416
      %674 = vst.msk [vmem:[%s118 + $0x148] sm:$0xff] %vm632, %v417
      %675 = vst.msk [vmem:[%s118 + $0x150] sm:$0xff] %vm632, %v418
      %676 = vst.msk [vmem:[%s118 + $0x158] sm:$0xff] %vm632, %v419
      %677 = vst.msk [vmem:[%s118 + $0x160] sm:$0xff] %vm632, %v420
      %678 = vst.msk [vmem:[%s118 + $0x168] sm:$0xff] %vm632, %v421
      %679 = vst.msk [vmem:[%s118 + $0x170] sm:$0xff] %vm632, %v422
      %680 = vst.msk [vmem:[%s118 + $0x178] sm:$0xff] %vm632, %v423
      %681 = vst.msk [vmem:[%s118 + $0x180] sm:$0xff] %vm632, %v424
      %682 = vst.msk [vmem:[%s118 + $0x188] sm:$0xff] %vm632, %v425
      %683 = vst.msk [vmem:[%s118 + $0x190] sm:$0xff] %vm632, %v426
      %684 = vst.msk [vmem:[%s118 + $0x198] sm:$0xff] %vm632, %v427
      %685 = vst.msk [vmem:[%s118 + $0x1a0] sm:$0xff] %vm632, %v428
      %686 = vst.msk [vmem:[%s118 + $0x1a8] sm:$0xff] %vm632, %v429
      %687 = vst.msk [vmem:[%s118 + $0x1b0] sm:$0xff] %vm632, %v430
      %688 = vst.msk [vmem:[%s118 + $0x1b8] sm:$0xff] %vm632, %v431
      %689 = vst.msk [vmem:[%s118 + $0x1c0] sm:$0xff] %vm632, %v432
      %690 = vst.msk [vmem:[%s118 + $0x1c8] sm:$0xff] %vm632, %v433
      %691 = vst.msk [vmem:[%s118 + $0x1d0] sm:$0xff] %vm632, %v434
      %692 = vst.msk [vmem:[%s118 + $0x1d8] sm:$0xff] %vm632, %v435
      %693 = vst.msk [vmem:[%s118 + $0x1e0] sm:$0xff] %vm632, %v436
      %694 = vst.msk [vmem:[%s118 + $0x1e8] sm:$0xff] %vm632, %v437
      %695 = vst.msk [vmem:[%s118 + $0x1f0] sm:$0xff] %vm632, %v438
      %696 = vst.msk [vmem:[%s118 + $0x1f8] sm:$0xff] %vm632, %v439
      %697 = vst.msk [vmem:[%s118 + $0x200] sm:$0xff] %vm632, %v440
      %698 = vst.msk [vmem:[%s118 + $0x208] sm:$0xff] %vm632, %v441
      %699 = vst.msk [vmem:[%s118 + $0x210] sm:$0xff] %vm632, %v442
      %700 = vst.msk [vmem:[%s118 + $0x218] sm:$0xff] %vm632, %v443
      %701 = vst.msk [vmem:[%s118 + $0x220] sm:$0xff] %vm632, %v444
      %702 = vst.msk [vmem:[%s118 + $0x228] sm:$0xff] %vm632, %v445
      %703 = vst.msk [vmem:[%s118 + $0x230] sm:$0xff] %vm632, %v446
      %704 = vst.msk [vmem:[%s118 + $0x238] sm:$0xff] %vm632, %v447
      %705 = vst.msk [vmem:[%s118 + $0x240] sm:$0xff] %vm632, %v448
      %706 = vst.msk [vmem:[%s118 + $0x248] sm:$0xff] %vm632, %v449
      %707 = vst.msk [vmem:[%s118 + $0x250] sm:$0xff] %vm632, %v450
      %708 = vst.msk [vmem:[%s118 + $0x258] sm:$0xff] %vm632, %v451
      %709 = vst.msk [vmem:[%s118 + $0x260] sm:$0xff] %vm632, %v452
      %710 = vst.msk [vmem:[%s118 + $0x268] sm:$0xff] %vm632, %v453
      %711 = vst.msk [vmem:[%s118 + $0x270] sm:$0xff] %vm632, %v454
      %712 = vst.msk [vmem:[%s118 + $0x278] sm:$0xff] %vm632, %v455
      %713 = vst.msk [vmem:[%s118 + $0x280] sm:$0xff] %vm632, %v456
      %714 = vst.msk [vmem:[%s118 + $0x288] sm:$0xff] %vm632, %v457
      %715 = vst.msk [vmem:[%s118 + $0x290] sm:$0xff] %vm632, %v458
      %716 = vst.msk [vmem:[%s118 + $0x298] sm:$0xff] %vm632, %v459
      %717 = vst.msk [vmem:[%s118 + $0x2a0] sm:$0xff] %vm632, %v460
      %718 = vst.msk [vmem:[%s118 + $0x2a8] sm:$0xff] %vm632, %v461
      %719 = vst.msk [vmem:[%s118 + $0x2b0] sm:$0xff] %vm632, %v462
      %720 = vst.msk [vmem:[%s118 + $0x2b8] sm:$0xff] %vm632, %v463
      %721 = vst.msk [vmem:[%s118 + $0x2c0] sm:$0xff] %vm632, %v464
      %722 = vst.msk [vmem:[%s118 + $0x2c8] sm:$0xff] %vm632, %v465
      %723 = vst.msk [vmem:[%s118 + $0x2d0] sm:$0xff] %vm632, %v466
      %724 = vst.msk [vmem:[%s118 + $0x2d8] sm:$0xff] %vm632, %v467
      %725 = vst.msk [vmem:[%s118 + $0x2e0] sm:$0xff] %vm632, %v468
      %726 = vst.msk [vmem:[%s118 + $0x2e8] sm:$0xff] %vm632, %v469
      %727 = vst.msk [vmem:[%s118 + $0x2f0] sm:$0xff] %vm632, %v470
      %728 = vst.msk [vmem:[%s118 + $0x2f8] sm:$0xff] %vm632, %v471
      %729 = vst.msk [vmem:[%s118 + $0x300] sm:$0xff] %vm632, %v472
      %730 = vst.msk [vmem:[%s118 + $0x308] sm:$0xff] %vm632, %v473
      %731 = vst.msk [vmem:[%s118 + $0x310] sm:$0xff] %vm632, %v474
      %732 = vst.msk [vmem:[%s118 + $0x318] sm:$0xff] %vm632, %v475
      %733 = vst.msk [vmem:[%s118 + $0x320] sm:$0xff] %vm632, %v476
      %734 = vst.msk [vmem:[%s118 + $0x328] sm:$0xff] %vm632, %v477
      %735 = vst.msk [vmem:[%s118 + $0x330] sm:$0xff] %vm632, %v478
      %736 = vst.msk [vmem:[%s118 + $0x338] sm:$0xff] %vm632, %v479
      %737 = vst.msk [vmem:[%s118 + $0x340] sm:$0xff] %vm632, %v480
      %738 = vst.msk [vmem:[%s118 + $0x348] sm:$0xff] %vm632, %v481
      %739 = vst.msk [vmem:[%s118 + $0x350] sm:$0xff] %vm632, %v482
      %740 = vst.msk [vmem:[%s118 + $0x358] sm:$0xff] %vm632, %v483
      %741 = vst.msk [vmem:[%s118 + $0x360] sm:$0xff] %vm632, %v484
      %742 = vst.msk [vmem:[%s118 + $0x368] sm:$0xff] %vm632, %v485
      %743 = vst.msk [vmem:[%s118 + $0x370] sm:$0xff] %vm632, %v486
      %744 = vst.msk [vmem:[%s118 + $0x378] sm:$0xff] %vm632, %v487
      %745 = vst.msk [vmem:[%s118 + $0x380] sm:$0xff] %vm632, %v488
      %746 = vst.msk [vmem:[%s118 + $0x388] sm:$0xff] %vm632, %v489
      %747 = vst.msk [vmem:[%s118 + $0x390] sm:$0xff] %vm632, %v490
      %748 = vst.msk [vmem:[%s118 + $0x398] sm:$0xff] %vm632, %v491
      %749 = vst.msk [vmem:[%s118 + $0x3a0] sm:$0xff] %vm632, %v492
      %750 = vst.msk [vmem:[%s118 + $0x3a8] sm:$0xff] %vm632, %v493
      %751 = vst.msk [vmem:[%s118 + $0x3b0] sm:$0xff] %vm632, %v494
      %752 = vst.msk [vmem:[%s118 + $0x3b8] sm:$0xff] %vm632, %v495
      %753 = vst.msk [vmem:[%s118 + $0x3c0] sm:$0xff] %vm632, %v496
      %754 = vst.msk [vmem:[%s118 + $0x3c8] sm:$0xff] %vm632, %v497
      %755 = vst.msk [vmem:[%s118 + $0x3d0] sm:$0xff] %vm632, %v498
      %756 = vst.msk [vmem:[%s118 + $0x3d8] sm:$0xff] %vm632, %v499
      %757 = vst.msk [vmem:[%s118 + $0x3e0] sm:$0xff] %vm632, %v500
      %758 = vst.msk [vmem:[%s118 + $0x3e8] sm:$0xff] %vm632, %v501
      %759 = vst.msk [vmem:[%s118 + $0x3f0] sm:$0xff] %vm632, %v502
      %760 = vst.msk [vmem:[%s118 + $0x3f8] sm:$0xff] %vm632, %v503
      %761 = vst.msk [vmem:[%s118 + $0x400] sm:$0xff] %vm632, %v504
      %762 = vst.msk [vmem:[%s118 + $0x408] sm:$0xff] %vm632, %v505
      %763 = vst.msk [vmem:[%s118 + $0x410] sm:$0xff] %vm632, %v506
      %764 = vst.msk [vmem:[%s118 + $0x418] sm:$0xff] %vm632, %v507
      %765 = vst.msk [vmem:[%s118 + $0x420] sm:$0xff] %vm632, %v508
      %766 = vst.msk [vmem:[%s118 + $0x428] sm:$0xff] %vm632, %v509
      %767 = vst.msk [vmem:[%s118 + $0x430] sm:$0xff] %vm632, %v510
      %768 = vst.msk [vmem:[%s118 + $0x438] sm:$0xff] %vm632, %v511
      %769 = vst.msk [vmem:[%s118 + $0x440] sm:$0xff] %vm632, %v512
      %770 = vst.msk [vmem:[%s118 + $0x448] sm:$0xff] %vm632, %v513
      %771 = vst.msk [vmem:[%s118 + $0x450] sm:$0xff] %vm632, %v514
      %772 = vst.msk [vmem:[%s118 + $0x458] sm:$0xff] %vm632, %v515
      %773 = vst.msk [vmem:[%s118 + $0x460] sm:$0xff] %vm632, %v516
      %774 = vst.msk [vmem:[%s118 + $0x468] sm:$0xff] %vm632, %v517
      %775 = vst.msk [vmem:[%s118 + $0x470] sm:$0xff] %vm632, %v518
      %776 = vst.msk [vmem:[%s118 + $0x478] sm:$0xff] %vm632, %v519
      %777 = vst.msk [vmem:[%s118 + $0x480] sm:$0xff] %vm632, %v520
      %778 = vst.msk [vmem:[%s118 + $0x488] sm:$0xff] %vm632, %v521
      %779 = vst.msk [vmem:[%s118 + $0x490] sm:$0xff] %vm632, %v522
      %780 = vst.msk [vmem:[%s118 + $0x498] sm:$0xff] %vm632, %v523
      %781 = vst.msk [vmem:[%s118 + $0x4a0] sm:$0xff] %vm632, %v524
      %782 = vst.msk [vmem:[%s118 + $0x4a8] sm:$0xff] %vm632, %v525
      %783 = vst.msk [vmem:[%s118 + $0x4b0] sm:$0xff] %vm632, %v526
      %784 = vst.msk [vmem:[%s118 + $0x4b8] sm:$0xff] %vm632, %v527
      %785 = vst.msk [vmem:[%s118 + $0x4c0] sm:$0xff] %vm632, %v528
      %786 = vst.msk [vmem:[%s118 + $0x4c8] sm:$0xff] %vm632, %v529
      %787 = vst.msk [vmem:[%s118 + $0x4d0] sm:$0xff] %vm632, %v530
      %788 = vst.msk [vmem:[%s118 + $0x4d8] sm:$0xff] %vm632, %v531
      %789 = vst.msk [vmem:[%s118 + $0x4e0] sm:$0xff] %vm632, %v532
      %790 = vst.msk [vmem:[%s118 + $0x4e8] sm:$0xff] %vm632, %v533
      %791 = vst.msk [vmem:[%s118 + $0x4f0] sm:$0xff] %vm632, %v534
      %792 = vst.msk [vmem:[%s118 + $0x4f8] sm:$0xff] %vm632, %v535
      %793 = vst.msk [vmem:[%s118 + $0x500] sm:$0xff] %vm632, %v536
      %794 = vst.msk [vmem:[%s118 + $0x508] sm:$0xff] %vm632, %v537
      %795 = vst.msk [vmem:[%s118 + $0x510] sm:$0xff] %vm632, %v538
      %796 = vst.msk [vmem:[%s118 + $0x518] sm:$0xff] %vm632, %v539
      %797 = vst.msk [vmem:[%s118 + $0x520] sm:$0xff] %vm632, %v540
      %798 = vst.msk [vmem:[%s118 + $0x528] sm:$0xff] %vm632, %v541
      %799 = vst.msk [vmem:[%s118 + $0x530] sm:$0xff] %vm632, %v542
      %800 = vst.msk [vmem:[%s118 + $0x538] sm:$0xff] %vm632, %v543
      %801 = vst.msk [vmem:[%s118 + $0x540] sm:$0xff] %vm632, %v544
      %802 = vst.msk [vmem:[%s118 + $0x548] sm:$0xff] %vm632, %v545
      %803 = vst.msk [vmem:[%s118 + $0x550] sm:$0xff] %vm632, %v546
      %804 = vst.msk [vmem:[%s118 + $0x558] sm:$0xff] %vm632, %v547
      %805 = vst.msk [vmem:[%s118 + $0x560] sm:$0xff] %vm632, %v548
      %806 = vst.msk [vmem:[%s118 + $0x568] sm:$0xff] %vm632, %v549
      %807 = vst.msk [vmem:[%s118 + $0x570] sm:$0xff] %vm632, %v550
      %808 = vst.msk [vmem:[%s118 + $0x578] sm:$0xff] %vm632, %v551
      %809 = vst.msk [vmem:[%s118 + $0x580] sm:$0xff] %vm632, %v552
      %810 = vst.msk [vmem:[%s118 + $0x588] sm:$0xff] %vm632, %v553
      %811 = vst.msk [vmem:[%s118 + $0x590] sm:$0xff] %vm632, %v554
      %812 = vst.msk [vmem:[%s118 + $0x598] sm:$0xff] %vm632, %v555
      %813 = vst.msk [vmem:[%s118 + $0x5a0] sm:$0xff] %vm632, %v556
      %814 = vst.msk [vmem:[%s118 + $0x5a8] sm:$0xff] %vm632, %v557
      %815 = vst.msk [vmem:[%s118 + $0x5b0] sm:$0xff] %vm632, %v558
      %816 = vst.msk [vmem:[%s118 + $0x5b8] sm:$0xff] %vm632, %v559
      %817 = vst.msk [vmem:[%s118 + $0x5c0] sm:$0xff] %vm632, %v560
      %818 = vst.msk [vmem:[%s118 + $0x5c8] sm:$0xff] %vm632, %v561
      %819 = vst.msk [vmem:[%s118 + $0x5d0] sm:$0xff] %vm632, %v562
      %820 = vst.msk [vmem:[%s118 + $0x5d8] sm:$0xff] %vm632, %v563
      %821 = vst.msk [vmem:[%s118 + $0x5e0] sm:$0xff] %vm632, %v564
      %822 = vst.msk [vmem:[%s118 + $0x5e8] sm:$0xff] %vm632, %v565
      %823 = vst.msk [vmem:[%s118 + $0x5f0] sm:$0xff] %vm632, %v566
      %824 = vst.msk [vmem:[%s118 + $0x5f8] sm:$0xff] %vm632, %v567
      %825 = vst.msk [vmem:[%s118 + $0x600] sm:$0xff] %vm632, %v568
      %826 = vst.msk [vmem:[%s118 + $0x608] sm:$0xff] %vm632, %v569
      %827 = vst.msk [vmem:[%s118 + $0x610] sm:$0xff] %vm632, %v570
      %828 = vst.msk [vmem:[%s118 + $0x618] sm:$0xff] %vm632, %v571
      %829 = vst.msk [vmem:[%s118 + $0x620] sm:$0xff] %vm632, %v572
      %830 = vst.msk [vmem:[%s118 + $0x628] sm:$0xff] %vm632, %v573
      %831 = vst.msk [vmem:[%s118 + $0x630] sm:$0xff] %vm632, %v574
      %832 = vst.msk [vmem:[%s118 + $0x638] sm:$0xff] %vm632, %v575
      %833 = vst.msk [vmem:[%s118 + $0x640] sm:$0xff] %vm632, %v576
      %834 = vst.msk [vmem:[%s118 + $0x648] sm:$0xff] %vm632, %v577
      %835 = vst.msk [vmem:[%s118 + $0x650] sm:$0xff] %vm632, %v578
      %836 = vst.msk [vmem:[%s118 + $0x658] sm:$0xff] %vm632, %v579
      %837 = vst.msk [vmem:[%s118 + $0x660] sm:$0xff] %vm632, %v580
      %838 = vst.msk [vmem:[%s118 + $0x668] sm:$0xff] %vm632, %v581
      %839 = vst.msk [vmem:[%s118 + $0x670] sm:$0xff] %vm632, %v582
      %840 = vst.msk [vmem:[%s118 + $0x678] sm:$0xff] %vm632, %v583
      %841 = vst.msk [vmem:[%s118 + $0x680] sm:$0xff] %vm632, %v584
      %842 = vst.msk [vmem:[%s118 + $0x688] sm:$0xff] %vm632, %v585
      %843 = vst.msk [vmem:[%s118 + $0x690] sm:$0xff] %vm632, %v586
      %844 = vst.msk [vmem:[%s118 + $0x698] sm:$0xff] %vm632, %v587
      %845 = vst.msk [vmem:[%s118 + $0x6a0] sm:$0xff] %vm632, %v588
      %846 = vst.msk [vmem:[%s118 + $0x6a8] sm:$0xff] %vm632, %v589
      %847 = vst.msk [vmem:[%s118 + $0x6b0] sm:$0xff] %vm632, %v590
      %848 = vst.msk [vmem:[%s118 + $0x6b8] sm:$0xff] %vm632, %v591
      %849 = vst.msk [vmem:[%s118 + $0x6c0] sm:$0xff] %vm632, %v592
      %850 = vst.msk [vmem:[%s118 + $0x6c8] sm:$0xff] %vm632, %v593
      %851 = vst.msk [vmem:[%s118 + $0x6d0] sm:$0xff] %vm632, %v594
      %852 = vst.msk [vmem:[%s118 + $0x6d8] sm:$0xff] %vm632, %v595
      %853 = vst.msk [vmem:[%s118 + $0x6e0] sm:$0xff] %vm632, %v596
      %854 = vst.msk [vmem:[%s118 + $0x6e8] sm:$0xff] %vm632, %v597
      %855 = vst.msk [vmem:[%s118 + $0x6f0] sm:$0xff] %vm632, %v598
      %856 = vst.msk [vmem:[%s118 + $0x6f8] sm:$0xff] %vm632, %v599
      %857 = vst.msk [vmem:[%s118 + $0x700] sm:$0xff] %vm632, %v600
      %858 = vst.msk [vmem:[%s118 + $0x708] sm:$0xff] %vm632, %v601
      %859 = vst.msk [vmem:[%s118 + $0x710] sm:$0xff] %vm632, %v602
      %860 = vst.msk [vmem:[%s118 + $0x718] sm:$0xff] %vm632, %v603
      %861 = vst.msk [vmem:[%s118 + $0x720] sm:$0xff] %vm632, %v604
      %862 = vst.msk [vmem:[%s118 + $0x728] sm:$0xff] %vm632, %v605
      %863 = vst.msk [vmem:[%s118 + $0x730] sm:$0xff] %vm632, %v606
      %864 = vst.msk [vmem:[%s118 + $0x738] sm:$0xff] %vm632, %v607
      %865 = vst.msk [vmem:[%s118 + $0x740] sm:$0xff] %vm632, %v608
      %866 = vst.msk [vmem:[%s118 + $0x748] sm:$0xff] %vm632, %v609
      %867 = vst.msk [vmem:[%s118 + $0x750] sm:$0xff] %vm632, %v610
      %868 = vst.msk [vmem:[%s118 + $0x758] sm:$0xff] %vm632, %v611
      %869 = vst.msk [vmem:[%s118 + $0x760] sm:$0xff] %vm632, %v612
      %870 = vst.msk [vmem:[%s118 + $0x768] sm:$0xff] %vm632, %v613
      %871 = vst.msk [vmem:[%s118 + $0x770] sm:$0xff] %vm632, %v614
      %872 = vst.msk [vmem:[%s118 + $0x778] sm:$0xff] %vm632, %v615
      %873 = vst.msk [vmem:[%s118 + $0x780] sm:$0xff] %vm632, %v616
      %874 = vst.msk [vmem:[%s118 + $0x788] sm:$0xff] %vm632, %v617
      %875 = vst.msk [vmem:[%s118 + $0x790] sm:$0xff] %vm632, %v618
      %876 = vst.msk [vmem:[%s118 + $0x798] sm:$0xff] %vm632, %v619
      %877 = vst.msk [vmem:[%s118 + $0x7a0] sm:$0xff] %vm632, %v620
      %878 = vst.msk [vmem:[%s118 + $0x7a8] sm:$0xff] %vm632, %v621
      %879 = vst.msk [vmem:[%s118 + $0x7b0] sm:$0xff] %vm632, %v622
      %880 = vst.msk [vmem:[%s118 + $0x7b8] sm:$0xff] %vm632, %v623
      %881 = vst.msk [vmem:[%s118 + $0x7c0] sm:$0xff] %vm632, %v624
      %882 = vst.msk [vmem:[%s118 + $0x7c8] sm:$0xff] %vm632, %v625
      %883 = vst.msk [vmem:[%s118 + $0x7d0] sm:$0xff] %vm632, %v626
      %884 = vst.msk [vmem:[%s118 + $0x7d8] sm:$0xff] %vm632, %v627
      %885 = vst.msk [vmem:[%s118 + $0x7e0] sm:$0xff] %vm632, %v628
      %886 = vst.msk [vmem:[%s118 + $0x7e8] sm:$0xff] %vm632, %v629
      %887 = vst.msk [vmem:[%s118 + $0x7f0] sm:$0xff] %vm632, %v630
      %888 = vst.msk [vmem:[%s118 + $0x7f8] sm:$0xff] %vm632, %v631
      %s889 = smul.u32 256, %s12
      %p890 = scmp.lt.s32.totalorder %s889, 1023
      %s891 = scalar_select %p890, %s889, 1023
      %s892 = smul.addr %s891, 8
      %s893 = scalar_lea.vmem %s1, %s892
      // Predicated region
      $region25: #{_lambda_.27} parent=23 // pred_check
        %p894 = pneg %p56
      $region26: #{_lambda_.27} parent=23 // pred_check_branch
        %896 = sbr.rel (%p894) target = $region28
      $region27: #{_lambda_.27} parent=23 // pred_region
        %s897 = smul.u32 256, %s12
      $region28: #{_lambda_.27} parent=23 // pred_fallthru
        _
    $region24: #{_lambda_.27} parent=5 // pred_fallthru
      _
    %p898 = scmp.le.s32.totalorder 2, %s7
    // Predicated region
    $region29: #{_lambda_.27} parent=5 // pred_check
      %p899 = pneg %p898
    $region30: #{_lambda_.27} parent=5 // pred_check_branch
      %901 = sbr.rel (%p899) target = $region32
    $region31: #{_lambda_.27} parent=5 // pred_region
      %s902 = ssub.s32 %s7, 2
      // Predicated region
      $region33: #{_lambda_.27} parent=31 // pred_check
        %p903 = pneg %p62
      $region34: #{_lambda_.27} parent=31 // pred_check_branch
        %905 = sbr.rel (%p903) target = $region36
      $region35: #{_lambda_.27} parent=31 // pred_region
        %s906 = smul.u32 256, %s13
        %p907 = scmp.lt.s32.totalorder %s906, 1023
        %s908 = scalar_select %p907, %s906, 1023
        %s909 = smul.addr %s908, 8
        %s910 = scalar_lea.vmem %s1, %s909
      $region36: #{_lambda_.27} parent=31 // pred_fallthru
        _
    $region32: #{_lambda_.27} parent=5 // pred_fallthru
      _
  $region6: #{_lambda_.27} parent=0 // loop_footer
    %s11 = sadd.s32 1, %s7
  $region7: #{_lambda_.27} parent=0 // loop_footer_branch
    %6 = sbr.rel target = $region3
  $region8: #{_lambda_.27} parent=0 // loop_exit
    _

</llo_original>
